<compile_context>
chip_gen: v7x
topology: tpu7x:2x2x1
jax: 0.10.0
libtpu: 0.0.40
codegen_flags: <defaults>
</compile_context>

<pallas_src>
import functools
import math

import jax
import jax.numpy as jnp
from jax.experimental import pallas as pl
from jax.experimental.pallas import tpu as pltpu


_VMEM_LIMIT = 48 * 1024 * 1024  # safe on v7x (64 MiB/TC), > default 32 MiB


# ---------------------------------------------------------------------------
# Kernel bodies
# ---------------------------------------------------------------------------

def _project_kernel(x_ref, w_ref, out_ref):
    """out = x @ w  (one-shot hoisted feature projection, f32 accumulate)."""
    out_ref[...] = jnp.dot(
        x_ref[...], w_ref[...], preferred_element_type=jnp.float32
    ).astype(out_ref.dtype)


def _prop_project_kernel(adj_ref, xw_ref, b_ref, wproj_ref, out_ref, acc_ref,
                         *, alpha):
    """out = ( LeakyReLU(adj @ xw + b) ) @ wproj.

    Streams only the adjacency contraction (acc += adj_tile @ xw_tile); the
    gc3/gc4 weight projection is fused into the epilogue so the wide hidden
    activations never leave VMEM unprojected.
    """
    k = pl.program_id(1)

    @pl.when(k == 0)
    def _():
        acc_ref[...] = jnp.zeros_like(acc_ref)

    acc_ref[...] += jnp.dot(adj_ref[...], xw_ref[...],
                            preferred_element_type=jnp.float32)

    @pl.when(k == pl.num_programs(1) - 1)
    def _():
        ho = acc_ref[...] + b_ref[...]
        ho = jnp.where(ho > 0, ho, alpha * ho).astype(jnp.bfloat16)
        out_ref[...] = jnp.dot(ho, wproj_ref[...],
                               preferred_element_type=jnp.float32
                               ).astype(out_ref.dtype)


def _prop_union_kernel(adj_ref, z_ref, b_ref, xf_ref, wa_ref, wb_ref, bu_ref,
                       out_ref, acc_ref, *, alpha):
    """out = relu( LeakyReLU(adj @ z + b) @ wa + xf @ wb + bu ).

    z already carries the gc3/gc4 projection, so the streamed loop is a pure
    adjacency contraction; the union Linear + ReLU epilogue is fused so the
    (rows, F) intermediate never hits HBM.
    """
    k = pl.program_id(1)

    @pl.when(k == 0)
    def _():
        acc_ref[...] = jnp.zeros_like(acc_ref)

    acc_ref[...] += jnp.dot(adj_ref[...], z_ref[...],
                            preferred_element_type=jnp.float32)

    @pl.when(k == pl.num_programs(1) - 1)
    def _():
        ho = acc_ref[...] + b_ref[...]
        ho = jnp.where(ho > 0, ho, alpha * ho).astype(jnp.bfloat16)
        y = (jnp.dot(ho, wa_ref[...], preferred_element_type=jnp.float32)
             + jnp.dot(xf_ref[...], wb_ref[...],
                       preferred_element_type=jnp.float32)
             + bu_ref[...])
        out_ref[...] = jnp.maximum(y, 0.0).astype(out_ref.dtype)


# ---------------------------------------------------------------------------
# pallas_call wrappers
# ---------------------------------------------------------------------------

_PARAMS_2D = pltpu.CompilerParams(
    dimension_semantics=("parallel", "arbitrary"),
    vmem_limit_bytes=_VMEM_LIMIT,
)
_PARAMS_1D = pltpu.CompilerParams(
    dimension_semantics=("parallel",),
    vmem_limit_bytes=_VMEM_LIMIT,
)


def _project(x, w, *, tile_m):
    m, fin = x.shape
    fout = w.shape[1]
    return pl.pallas_call(
        _project_kernel,
        out_shape=jax.ShapeDtypeStruct((m, fout), jnp.bfloat16),
        grid_spec=pltpu.PrefetchScalarGridSpec(
            num_scalar_prefetch=0,
            grid=(m // tile_m,),
            in_specs=[
                pl.BlockSpec((tile_m, fin), lambda i: (i, 0)),
                pl.BlockSpec((fin, fout),   lambda i: (0, 0)),   # resident
            ],
            out_specs=pl.BlockSpec((tile_m, fout), lambda i: (i, 0)),
        ),
        compiler_params=_PARAMS_1D,
    )(x, w)


def _prop_project(adj, xw, b, wproj, *, alpha, tile_m, tile_k):
    m, kdim = adj.shape
    hin = xw.shape[1]
    fout = wproj.shape[1]
    grid = (m // tile_m, kdim // tile_k)
    return pl.pallas_call(
        functools.partial(_prop_project_kernel, alpha=alpha),
        out_shape=jax.ShapeDtypeStruct((m, fout), jnp.bfloat16),
        grid_spec=pltpu.PrefetchScalarGridSpec(
            num_scalar_prefetch=0,
            grid=grid,
            in_specs=[
                pl.BlockSpec((tile_m, tile_k), lambda i, k: (i, k)),  # adj tile
                pl.BlockSpec((tile_k, hin),    lambda i, k: (k, 0)),  # hoisted X@W
                pl.BlockSpec((1, hin),         lambda i, k: (0, 0)),  # bias (resident)
                pl.BlockSpec((hin, fout),      lambda i, k: (0, 0)),  # W3/W4 (resident)
            ],
            out_specs=pl.BlockSpec((tile_m, fout), lambda i, k: (i, 0)),
            scratch_shapes=[pltpu.VMEM((tile_m, hin), jnp.float32)],
        ),
        compiler_params=_PARAMS_2D,
    )(adj, xw, b, wproj)


def _prop_union(adj, z, b, xf, wa, wb, bu, *, alpha, out_dtype, tile_m, tile_k):
    m, kdim = adj.shape
    fout = z.shape[1]
    grid = (m // tile_m, kdim // tile_k)
    return pl.pallas_call(
        functools.partial(_prop_union_kernel, alpha=alpha),
        out_shape=jax.ShapeDtypeStruct((m, fout), out_dtype),
        grid_spec=pltpu.PrefetchScalarGridSpec(
            num_scalar_prefetch=0,
            grid=grid,
            in_specs=[
                pl.BlockSpec((tile_m, tile_k), lambda i, k: (i, k)),  # adj tile
                pl.BlockSpec((tile_k, fout),   lambda i, k: (k, 0)),  # projected hidden
                pl.BlockSpec((1, fout),        lambda i, k: (0, 0)),  # b3/b4 (resident)
                pl.BlockSpec((tile_m, fout),   lambda i, k: (i, 0)),  # skip features
                pl.BlockSpec((fout, fout),     lambda i, k: (0, 0)),  # union Wa (resident)
                pl.BlockSpec((fout, fout),     lambda i, k: (0, 0)),  # union Wb (resident)
                pl.BlockSpec((1, fout),        lambda i, k: (0, 0)),  # union bias
            ],
            out_specs=pl.BlockSpec((tile_m, fout), lambda i, k: (i, 0)),
            scratch_shapes=[pltpu.VMEM((tile_m, fout), jnp.float32)],
        ),
        compiler_params=_PARAMS_2D,
    )(adj, z, b, xf, wa, wb, bu)


# ---------------------------------------------------------------------------
# Forward pass
# ---------------------------------------------------------------------------

def _round_up(x, m):
    return ((x + m - 1) // m) * m


def _pad2(x, r, c):
    return jnp.pad(x, ((0, r - x.shape[0]), (0, c - x.shape[1])))


@functools.partial(jax.jit, static_argnames=("alpha", "tile_m", "tile_k"))
def dgcn_layer_forward(ufea, vfea, uv_adj, vu_adj, params, *, alpha,
                       tile_m=512, tile_k=512):
    nu, fdim = ufea.shape
    nv = vfea.shape[0]
    hdim = params["w1"].shape[1]

    row_mult = math.lcm(tile_m, tile_k)
    nup = _round_up(nu, row_mult)
    nvp = _round_up(nv, row_mult)
    fp = _round_up(fdim, 128)
    hp = _round_up(hdim, 128)

    bf16 = jnp.bfloat16

    # Zero-pad to lane/tile-aligned shapes; bf16 MXU operands, f32 biases.
    ufea_p = _pad2(ufea, nup, fp).astype(bf16)
    vfea_p = _pad2(vfea, nvp, fp).astype(bf16)
    uv_p = _pad2(uv_adj.astype(bf16), nup, nvp)
    vu_p = _pad2(vu_adj.astype(bf16), nvp, nup)

    w1_p = _pad2(params["w1"], fp, hp).astype(bf16)
    w2_p = _pad2(params["w2"], fp, hp).astype(bf16)
    w3_p = _pad2(params["w3"], hp, fp).astype(bf16)
    w4_p = _pad2(params["w4"], hp, fp).astype(bf16)
    b1_p = _pad2(params["b1"].reshape(1, -1), 1, hp).astype(jnp.float32)
    b2_p = _pad2(params["b2"].reshape(1, -1), 1, hp).astype(jnp.float32)
    b3_p = _pad2(params["b3"].reshape(1, -1), 1, fp).astype(jnp.float32)
    b4_p = _pad2(params["b4"].reshape(1, -1), 1, fp).astype(jnp.float32)

    # Split union weights: concat(ho, fea) @ W.T == ho @ W[:,:F].T + fea @ W[:,F:].T
    wu = params["wu"]
    wi = params["wi"]
    wua_p = _pad2(wu[:, :fdim].T, fp, fp).astype(bf16)
    wub_p = _pad2(wu[:, fdim:].T, fp, fp).astype(bf16)
    wia_p = _pad2(wi[:, :fdim].T, fp, fp).astype(bf16)
    wib_p = _pad2(wi[:, fdim:].T, fp, fp).astype(bf16)
    bu_p = _pad2(params["bu"].reshape(1, -1), 1, fp).astype(jnp.float32)
    bi_p = _pad2(params["bi"].reshape(1, -1), 1, fp).astype(jnp.float32)

    # Phase 0: hoisted feature projections (computed exactly once, single
    # rounding; previously recomputed per output-row tile inside the grid).
    xw1 = _project(ufea_p, w1_p, tile_m=tile_m)           # (nup, hp) bf16
    xw2 = _project(vfea_p, w2_p, tile_m=tile_m)           # (nvp, hp) bf16

    # Phase 1: adjacency contraction + LeakyReLU, W3/W4 projection fused into
    # the epilogue so only the (rows, fp) projected hidden hits HBM.
    zu = _prop_project(vu_p, xw1, b1_p, w3_p, alpha=alpha,
                       tile_m=tile_m, tile_k=tile_k)       # (nvp, fp) bf16
    zi = _prop_project(uv_p, xw2, b2_p, w4_p, alpha=alpha,
                       tile_m=tile_m, tile_k=tile_k)       # (nup, fp) bf16

    # Phase 2: second-hop contraction fused with union Linear + ReLU epilogue.
    user = _prop_union(uv_p, zu, b3_p, ufea_p, wua_p, wub_p, bu_p,
                       alpha=alpha, out_dtype=jnp.float32,
                       tile_m=tile_m, tile_k=tile_k)       # (nup, fp)
    item = _prop_union(vu_p, zi, b4_p, vfea_p, wia_p, wib_p, bi_p,
                       alpha=alpha, out_dtype=jnp.float32,
                       tile_m=tile_m, tile_k=tile_k)       # (nvp, fp)

    return user[:nu, :fdim], item[:nv, :fdim]


# ---------------------------------------------------------------------------
# Plain-JAX reference (mirrors the PyTorch module in eval mode)
# ---------------------------------------------------------------------------

def reference_forward(ufea, vfea, uv_adj, vu_adj, params, *, alpha):
    def leaky(x):
        return jnp.where(x > 0, x, alpha * x)

    u_h1 = leaky(vu_adj @ (ufea @ params["w1"]) + params["b1"])
    i_h1 = leaky(uv_adj @ (vfea @ params["w2"]) + params["b2"])
    u_ho = leaky(uv_adj @ (u_h1 @ params["w3"]) + params["b3"])
    i_ho = leaky(vu_adj @ (i_h1 @ params["w4"]) + params["b4"])
    user = jnp.concatenate([u_ho, ufea], axis=1) @ params["wu"].T + params["bu"]
    item = jnp.concatenate([i_ho, vfea], axis=1) @ params["wi"].T + params["bi"]
    return jnp.maximum(user, 0.0), jnp.maximum(item, 0.0)


def make_params(key, feature_dim, hidden_dim):
    ks = jax.random.split(key, 12)
    u = lambda k, shape, s: jax.random.uniform(k, shape, jnp.float32, -s, s)
    return {
        # GraphConvolution weights: (in_features, out_features), bias (out,)
        "w1": u(ks[0], (feature_dim, hidden_dim), 0.1),
        "b1": u(ks[1], (hidden_dim,), 0.1),
        "w2": u(ks[2], (feature_dim, hidden_dim), 0.1),
        "b2": u(ks[3], (hidden_dim,), 0.1),
        "w3": u(ks[4], (hidden_dim, feature_dim), 0.1),
        "b3": u(ks[5], (feature_dim,), 0.1),
        "w4": u(ks[6], (hidden_dim, feature_dim), 0.1),
        "b4": u(ks[7], (feature_dim,), 0.1),
        # nn.Linear(2F, F): weight (F, 2F), bias (F,)
        "wu": u(ks[8], (feature_dim, 2 * feature_dim), 0.1),
        "bu": u(ks[9], (feature_dim,), 0.1),
        "wi": u(ks[10], (feature_dim, 2 * feature_dim), 0.1),
        "bi": u(ks[11], (feature_dim,), 0.1),
    }


if __name__ == "__main__":
    # Small bipartite user/item graph; dims deliberately not multiples of 128
    # to exercise the padding path.  Tiles of 256 keep the demo grid multi-step
    # (validates the K accumulation); production default is 512.
    n_user, n_item = 200, 300
    feature_dim, hidden_dim = 96, 48
    leakey = 0.1  # opt['leakey']

    key = jax.random.PRNGKey(0)
    k_u, k_v, k_uv, k_vu, k_p = jax.random.split(key, 5)

    ufea = jax.random.normal(k_u, (n_user, feature_dim), jnp.float32)
    vfea = jax.random.normal(k_v, (n_item, feature_dim), jnp.float32)
    # Dense stand-ins for the (sparse) normalized adjacency matrices.
    uv_adj = jax.random.uniform(k_uv, (n_user, n_item), jnp.float32) / n_item
    vu_adj = jax.random.uniform(k_vu, (n_item, n_user), jnp.float32) / n_user

    params = make_params(k_p, feature_dim, hidden_dim)

    user, item = dgcn_layer_forward(ufea, vfea, uv_adj, vu_adj, params,
                                    alpha=leakey, tile_m=256, tile_k=256)
    jax.block_until_ready((user, item))

    user_ref, item_ref = reference_forward(ufea, vfea, uv_adj, vu_adj, params,
                                           alpha=leakey)
    assert user.shape == (n_user, feature_dim)
    assert item.shape == (n_item, feature_dim)
    # bf16 MXU inputs with f32 accumulation -> loose tolerance vs f32 reference.
    assert jnp.allclose(user, user_ref, atol=2e-2, rtol=2e-2)
    assert jnp.allclose(item, item_ref, atol=2e-2, rtol=2e-2)

    print("KERNEL_OK")
</pallas_src>

<mosaic_0001>
module attributes {stable_mosaic.version = 11 : i64} {
  func.func @_project_kernel(%arg0: i32, %arg1: memref<256x128xbf16, #tpu.memory_space<vmem>>, %arg2: memref<128x128xbf16, #tpu.memory_space<vmem>>, %arg3: memref<256x128xbf16, #tpu.memory_space<vmem>>) attributes {dimension_semantics = [#tpu.dimension_semantics<parallel>], iteration_bounds = array<i64: 1>, scalar_prefetch = 0 : i64, scratch_operands = 0 : i64, tpu.core_type = #tpu.core_type<tc>, window_params = [{transform_indices = @transform_0, window_bounds = array<i64: 256, 128>}, {pipeline_mode = #tpu.pipeline_mode<synchronous>, transform_indices = @transform_1, window_bounds = array<i64: 128, 128>}, {transform_indices = @transform_2, window_bounds = array<i64: 256, 128>}]} {
    %c0 = arith.constant 0 : index
    %c0_0 = arith.constant 0 : index
    %0 = vector.load %arg1[%c0, %c0_0] : memref<256x128xbf16, #tpu.memory_space<vmem>>, vector<256x128xbf16>
    %c0_1 = arith.constant 0 : index
    %c0_2 = arith.constant 0 : index
    %1 = vector.load %arg2[%c0_1, %c0_2] : memref<128x128xbf16, #tpu.memory_space<vmem>>, vector<128x128xbf16>
    %cst = arith.constant dense<0.000000e+00> : vector<256x128xf32>
    %2 = tpu.matmul %0, %1, %cst {dimension_numbers = #tpu.dot_dimension_numbers<[1], [0], [0], [1], [0, 0, 1, 1], [], []>} : vector<256x128xbf16>, vector<128x128xbf16>, vector<256x128xf32> -> vector<256x128xf32>
    %3 = arith.truncf %2 : vector<256x128xf32> to vector<256x128xbf16>
    %c0_3 = arith.constant 0 : index
    %c0_4 = arith.constant 0 : index
    %4 = vector.load %arg3[%c0_3, %c0_4] : memref<256x128xbf16, #tpu.memory_space<vmem>>, vector<256x128xbf16>
    tpu.vector_store %arg3[%c0_3, %c0_4], %3 {strides = array<i32>} : memref<256x128xbf16, #tpu.memory_space<vmem>>, vector<256x128xbf16>,
    return
  }
  func.func @transform_0(%arg0: i32) -> (i32, i32) {
    %c0_i32 = arith.constant 0 : i32
    %c0_i32_0 = arith.constant 0 : i32
    return %arg0, %c0_i32 : i32, i32
  }
  func.func @transform_1(%arg0: i32) -> (i32, i32) {
    %c0_i32 = arith.constant 0 : i32
    %c0_i32_0 = arith.constant 0 : i32
    %c0_i32_1 = arith.constant 0 : i32
    return %c0_i32, %c0_i32_0 : i32, i32
  }
  func.func @transform_2(%arg0: i32) -> (i32, i32) {
    %c0_i32 = arith.constant 0 : i32
    %c0_i32_0 = arith.constant 0 : i32
    return %arg0, %c0_i32 : i32, i32
  }
}

module attributes {stable_mosaic.version = 11 : i64} {
  func.func @_prop_project_kernel(%arg0: i32, %arg1: i32, %arg2: memref<256x256xbf16, #tpu.memory_space<vmem>>, %arg3: memref<256x128xbf16, #tpu.memory_space<vmem>>, %arg4: memref<1x128xf32, #tpu.memory_space<vmem>>, %arg5: memref<128x128xbf16, #tpu.memory_space<vmem>>, %arg6: memref<256x128xbf16, #tpu.memory_space<vmem>>, %arg7: memref<256x128xf32, #tpu.memory_space<vmem>>) attributes {dimension_semantics = [#tpu.dimension_semantics<parallel>, #tpu.dimension_semantics<arbitrary>], iteration_bounds = array<i64: 2, 1>, scalar_prefetch = 0 : i64, scratch_operands = 1 : i64, tpu.core_type = #tpu.core_type<tc>, window_params = [{transform_indices = @transform_0, window_bounds = array<i64: 256, 256>}, {transform_indices = @transform_1, window_bounds = array<i64: 256, 128>}, {pipeline_mode = #tpu.pipeline_mode<synchronous>, transform_indices = @transform_2, window_bounds = array<i64: 1, 128>}, {pipeline_mode = #tpu.pipeline_mode<synchronous>, transform_indices = @transform_3, window_bounds = array<i64: 128, 128>}, {transform_indices = @transform_4, window_bounds = array<i64: 256, 128>}]} {
    %c0_i32 = arith.constant 0 : i32
    %0 = arith.cmpi eq, %arg1, %c0_i32 : i32
    %1 = arith.extui %0 : i1 to i32
    %c0_i32_0 = arith.constant 0 : i32
    %2 = arith.cmpi ne, %1, %c0_i32_0 : i32
    scf.if %2 {
      %cst_10 = arith.constant 0.000000e+00 : f32
      %12 = vector.broadcast %cst_10 : f32 to vector<256x128xf32>
      %c0_11 = arith.constant 0 : index
      %c0_12 = arith.constant 0 : index
      %13 = vector.load %arg7[%c0_11, %c0_12] : memref<256x128xf32, #tpu.memory_space<vmem>>, vector<256x128xf32>
      tpu.vector_store %arg7[%c0_11, %c0_12], %12 {strides = array<i32>} : memref<256x128xf32, #tpu.memory_space<vmem>>, vector<256x128xf32>,
    } else {
    }
    %c0 = arith.constant 0 : index
    %c0_1 = arith.constant 0 : index
    %3 = vector.load %arg7[%c0, %c0_1] : memref<256x128xf32, #tpu.memory_space<vmem>>, vector<256x128xf32>
    %c0_2 = arith.constant 0 : index
    %c0_3 = arith.constant 0 : index
    %4 = vector.load %arg2[%c0_2, %c0_3] : memref<256x256xbf16, #tpu.memory_space<vmem>>, vector<256x256xbf16>
    %c0_4 = arith.constant 0 : index
    %c0_5 = arith.constant 0 : index
    %5 = vector.load %arg3[%c0_4, %c0_5] : memref<256x128xbf16, #tpu.memory_space<vmem>>, vector<256x128xbf16>
    %cst = arith.constant dense<0.000000e+00> : vector<256x128xf32>
    %6 = tpu.matmul %4, %5, %cst {dimension_numbers = #tpu.dot_dimension_numbers<[1], [0], [0], [1], [0, 0, 1, 1], [], []>} : vector<256x256xbf16>, vector<256x128xbf16>, vector<256x128xf32> -> vector<256x128xf32>
    %7 = arith.addf %3, %6 : vector<256x128xf32>
    %c0_6 = arith.constant 0 : index
    %c0_7 = arith.constant 0 : index
    %8 = vector.load %arg7[%c0_6, %c0_7] : memref<256x128xf32, #tpu.memory_space<vmem>>, vector<256x128xf32>
    tpu.vector_store %arg7[%c0_6, %c0_7], %7 {strides = array<i32>} : memref<256x128xf32, #tpu.memory_space<vmem>>, vector<256x128xf32>,
    %c0_i32_8 = arith.constant 0 : i32
    %9 = arith.cmpi eq, %arg1, %c0_i32_8 : i32
    %10 = arith.extui %9 : i1 to i32
    %c0_i32_9 = arith.constant 0 : i32
    %11 = arith.cmpi ne, %10, %c0_i32_9 : i32
    scf.if %11 {
      %c0_10 = arith.constant 0 : index
      %c0_11 = arith.constant 0 : index
      %12 = vector.load %arg7[%c0_10, %c0_11] : memref<256x128xf32, #tpu.memory_space<vmem>>, vector<256x128xf32>
      %c0_12 = arith.constant 0 : index
      %c0_13 = arith.constant 0 : index
      %13 = vector.load %arg4[%c0_12, %c0_13] : memref<1x128xf32, #tpu.memory_space<vmem>>, vector<1x128xf32>
      %14 = vector.broadcast %13 : vector<1x128xf32> to vector<256x128xf32>
      %15 = arith.addf %12, %14 : vector<256x128xf32>
      %cst_14 = arith.constant 0.000000e+00 : f32
      %16 = vector.broadcast %cst_14 : f32 to vector<256x128xf32>
      %17 = arith.cmpf ogt, %15, %16 : vector<256x128xf32>
      %cst_15 = arith.constant 1.000000e-01 : f32
      %18 = vector.broadcast %cst_15 : f32 to vector<256x128xf32>
      %19 = arith.mulf %18, %15 : vector<256x128xf32>
      %20 = arith.select %17, %15, %19 : vector<256x128xi1>, vector<256x128xf32>
      %21 = arith.truncf %20 : vector<256x128xf32> to vector<256x128xbf16>
      %c0_16 = arith.constant 0 : index
      %c0_17 = arith.constant 0 : index
      %22 = vector.load %arg5[%c0_16, %c0_17] : memref<128x128xbf16, #tpu.memory_space<vmem>>, vector<128x128xbf16>
      %cst_18 = arith.constant dense<0.000000e+00> : vector<256x128xf32>
      %23 = tpu.matmul %21, %22, %cst_18 {dimension_numbers = #tpu.dot_dimension_numbers<[1], [0], [0], [1], [0, 0, 1, 1], [], []>} : vector<256x128xbf16>, vector<128x128xbf16>, vector<256x128xf32> -> vector<256x128xf32>
      %24 = arith.truncf %23 : vector<256x128xf32> to vector<256x128xbf16>
      %c0_19 = arith.constant 0 : index
      %c0_20 = arith.constant 0 : index
      %25 = vector.load %arg6[%c0_19, %c0_20] : memref<256x128xbf16, #tpu.memory_space<vmem>>, vector<256x128xbf16>
      tpu.vector_store %arg6[%c0_19, %c0_20], %24 {strides = array<i32>} : memref<256x128xbf16, #tpu.memory_space<vmem>>, vector<256x128xbf16>,
    } else {
    }
    return
  }
  func.func @transform_0(%arg0: i32, %arg1: i32) -> (i32, i32) {
    %c0_i32 = arith.constant 0 : i32
    return %arg0, %arg1 : i32, i32
  }
  func.func @transform_1(%arg0: i32, %arg1: i32) -> (i32, i32) {
    %c0_i32 = arith.constant 0 : i32
    %c0_i32_0 = arith.constant 0 : i32
    return %arg1, %c0_i32 : i32, i32
  }
  func.func @transform_2(%arg0: i32, %arg1: i32) -> (i32, i32) {
    %c0_i32 = arith.constant 0 : i32
    %c0_i32_0 = arith.constant 0 : i32
    %c0_i32_1 = arith.constant 0 : i32
    return %c0_i32, %c0_i32_0 : i32, i32
  }
  func.func @transform_3(%arg0: i32, %arg1: i32) -> (i32, i32) {
    %c0_i32 = arith.constant 0 : i32
    %c0_i32_0 = arith.constant 0 : i32
    %c0_i32_1 = arith.constant 0 : i32
    return %c0_i32, %c0_i32_0 : i32, i32
  }
  func.func @transform_4(%arg0: i32, %arg1: i32) -> (i32, i32) {
    %c0_i32 = arith.constant 0 : i32
    %c0_i32_0 = arith.constant 0 : i32
    return %arg0, %c0_i32 : i32, i32
  }
}

module attributes {stable_mosaic.version = 11 : i64} {
  func.func @_prop_union_kernel(%arg0: i32, %arg1: i32, %arg2: memref<256x256xbf16, #tpu.memory_space<vmem>>, %arg3: memref<256x128xbf16, #tpu.memory_space<vmem>>, %arg4: memref<1x128xf32, #tpu.memory_space<vmem>>, %arg5: memref<256x128xbf16, #tpu.memory_space<vmem>>, %arg6: memref<128x128xbf16, #tpu.memory_space<vmem>>, %arg7: memref<128x128xbf16, #tpu.memory_space<vmem>>, %arg8: memref<1x128xf32, #tpu.memory_space<vmem>>, %arg9: memref<256x128xf32, #tpu.memory_space<vmem>>, %arg10: memref<256x128xf32, #tpu.memory_space<vmem>>) attributes {dimension_semantics = [#tpu.dimension_semantics<parallel>, #tpu.dimension_semantics<arbitrary>], iteration_bounds = array<i64: 1, 2>, scalar_prefetch = 0 : i64, scratch_operands = 1 : i64, tpu.core_type = #tpu.core_type<tc>, window_params = [{transform_indices = @transform_0, window_bounds = array<i64: 256, 256>}, {transform_indices = @transform_1, window_bounds = array<i64: 256, 128>}, {pipeline_mode = #tpu.pipeline_mode<synchronous>, transform_indices = @transform_2, window_bounds = array<i64: 1, 128>}, {transform_indices = @transform_3, window_bounds = array<i64: 256, 128>}, {pipeline_mode = #tpu.pipeline_mode<synchronous>, transform_indices = @transform_4, window_bounds = array<i64: 128, 128>}, {pipeline_mode = #tpu.pipeline_mode<synchronous>, transform_indices = @transform_5, window_bounds = array<i64: 128, 128>}, {pipeline_mode = #tpu.pipeline_mode<synchronous>, transform_indices = @transform_6, window_bounds = array<i64: 1, 128>}, {transform_indices = @transform_7, window_bounds = array<i64: 256, 128>}]} {
    %c0_i32 = arith.constant 0 : i32
    %0 = arith.cmpi eq, %arg1, %c0_i32 : i32
    %1 = arith.extui %0 : i1 to i32
    %c0_i32_0 = arith.constant 0 : i32
    %2 = arith.cmpi ne, %1, %c0_i32_0 : i32
    scf.if %2 {
      %cst_9 = arith.constant 0.000000e+00 : f32
      %12 = vector.broadcast %cst_9 : f32 to vector<256x128xf32>
      %c0_10 = arith.constant 0 : index
      %c0_11 = arith.constant 0 : index
      %13 = vector.load %arg10[%c0_10, %c0_11] : memref<256x128xf32, #tpu.memory_space<vmem>>, vector<256x128xf32>
      tpu.vector_store %arg10[%c0_10, %c0_11], %12 {strides = array<i32>} : memref<256x128xf32, #tpu.memory_space<vmem>>, vector<256x128xf32>,
    } else {
    }
    %c0 = arith.constant 0 : index
    %c0_1 = arith.constant 0 : index
    %3 = vector.load %arg10[%c0, %c0_1] : memref<256x128xf32, #tpu.memory_space<vmem>>, vector<256x128xf32>
    %c0_2 = arith.constant 0 : index
    %c0_3 = arith.constant 0 : index
    %4 = vector.load %arg2[%c0_2, %c0_3] : memref<256x256xbf16, #tpu.memory_space<vmem>>, vector<256x256xbf16>
    %c0_4 = arith.constant 0 : index
    %c0_5 = arith.constant 0 : index
    %5 = vector.load %arg3[%c0_4, %c0_5] : memref<256x128xbf16, #tpu.memory_space<vmem>>, vector<256x128xbf16>
    %cst = arith.constant dense<0.000000e+00> : vector<256x128xf32>
    %6 = tpu.matmul %4, %5, %cst {dimension_numbers = #tpu.dot_dimension_numbers<[1], [0], [0], [1], [0, 0, 1, 1], [], []>} : vector<256x256xbf16>, vector<256x128xbf16>, vector<256x128xf32> -> vector<256x128xf32>
    %7 = arith.addf %3, %6 : vector<256x128xf32>
    %c0_6 = arith.constant 0 : index
    %c0_7 = arith.constant 0 : index
    %8 = vector.load %arg10[%c0_6, %c0_7] : memref<256x128xf32, #tpu.memory_space<vmem>>, vector<256x128xf32>
    tpu.vector_store %arg10[%c0_6, %c0_7], %7 {strides = array<i32>} : memref<256x128xf32, #tpu.memory_space<vmem>>, vector<256x128xf32>,
    %c1_i32 = arith.constant 1 : i32
    %9 = arith.cmpi eq, %arg1, %c1_i32 : i32
    %10 = arith.extui %9 : i1 to i32
    %c0_i32_8 = arith.constant 0 : i32
    %11 = arith.cmpi ne, %10, %c0_i32_8 : i32
    scf.if %11 {
      %c0_9 = arith.constant 0 : index
      %c0_10 = arith.constant 0 : index
      %12 = vector.load %arg10[%c0_9, %c0_10] : memref<256x128xf32, #tpu.memory_space<vmem>>, vector<256x128xf32>
      %c0_11 = arith.constant 0 : index
      %c0_12 = arith.constant 0 : index
      %13 = vector.load %arg4[%c0_11, %c0_12] : memref<1x128xf32, #tpu.memory_space<vmem>>, vector<1x128xf32>
      %14 = vector.broadcast %13 : vector<1x128xf32> to vector<256x128xf32>
      %15 = arith.addf %12, %14 : vector<256x128xf32>
      %cst_13 = arith.constant 0.000000e+00 : f32
      %16 = vector.broadcast %cst_13 : f32 to vector<256x128xf32>
      %17 = arith.cmpf ogt, %15, %16 : vector<256x128xf32>
      %cst_14 = arith.constant 1.000000e-01 : f32
      %18 = vector.broadcast %cst_14 : f32 to vector<256x128xf32>
      %19 = arith.mulf %18, %15 : vector<256x128xf32>
      %20 = arith.select %17, %15, %19 : vector<256x128xi1>, vector<256x128xf32>
      %21 = arith.truncf %20 : vector<256x128xf32> to vector<256x128xbf16>
      %c0_15 = arith.constant 0 : index
      %c0_16 = arith.constant 0 : index
      %22 = vector.load %arg6[%c0_15, %c0_16] : memref<128x128xbf16, #tpu.memory_space<vmem>>, vector<128x128xbf16>
      %cst_17 = arith.constant dense<0.000000e+00> : vector<256x128xf32>
      %23 = tpu.matmul %21, %22, %cst_17 {dimension_numbers = #tpu.dot_dimension_numbers<[1], [0], [0], [1], [0, 0, 1, 1], [], []>} : vector<256x128xbf16>, vector<128x128xbf16>, vector<256x128xf32> -> vector<256x128xf32>
      %c0_18 = arith.constant 0 : index
      %c0_19 = arith.constant 0 : index
      %24 = vector.load %arg5[%c0_18, %c0_19] : memref<256x128xbf16, #tpu.memory_space<vmem>>, vector<256x128xbf16>
      %c0_20 = arith.constant 0 : index
      %c0_21 = arith.constant 0 : index
      %25 = vector.load %arg7[%c0_20, %c0_21] : memref<128x128xbf16, #tpu.memory_space<vmem>>, vector<128x128xbf16>
      %cst_22 = arith.constant dense<0.000000e+00> : vector<256x128xf32>
      %26 = tpu.matmul %24, %25, %cst_22 {dimension_numbers = #tpu.dot_dimension_numbers<[1], [0], [0], [1], [0, 0, 1, 1], [], []>} : vector<256x128xbf16>, vector<128x128xbf16>, vector<256x128xf32> -> vector<256x128xf32>
      %27 = arith.addf %23, %26 : vector<256x128xf32>
      %c0_23 = arith.constant 0 : index
      %c0_24 = arith.constant 0 : index
      %28 = vector.load %arg8[%c0_23, %c0_24] : memref<1x128xf32, #tpu.memory_space<vmem>>, vector<1x128xf32>
      %29 = vector.broadcast %28 : vector<1x128xf32> to vector<256x128xf32>
      %30 = arith.addf %27, %29 : vector<256x128xf32>
      %cst_25 = arith.constant 0.000000e+00 : f32
      %31 = vector.broadcast %cst_25 : f32 to vector<256x128xf32>
      %32 = arith.maximumf %30, %31 : vector<256x128xf32>
      %c0_26 = arith.constant 0 : index
      %c0_27 = arith.constant 0 : index
      %33 = vector.load %arg9[%c0_26, %c0_27] : memref<256x128xf32, #tpu.memory_space<vmem>>, vector<256x128xf32>
      tpu.vector_store %arg9[%c0_26, %c0_27], %32 {strides = array<i32>} : memref<256x128xf32, #tpu.memory_space<vmem>>, vector<256x128xf32>,
    } else {
    }
    return
  }
  func.func @transform_0(%arg0: i32, %arg1: i32) -> (i32, i32) {
    %c0_i32 = arith.constant 0 : i32
    return %arg0, %arg1 : i32, i32
  }
  func.func @transform_1(%arg0: i32, %arg1: i32) -> (i32, i32) {
    %c0_i32 = arith.constant 0 : i32
    %c0_i32_0 = arith.constant 0 : i32
    return %arg1, %c0_i32 : i32, i32
  }
  func.func @transform_2(%arg0: i32, %arg1: i32) -> (i32, i32) {
    %c0_i32 = arith.constant 0 : i32
    %c0_i32_0 = arith.constant 0 : i32
    %c0_i32_1 = arith.constant 0 : i32
    return %c0_i32, %c0_i32_0 : i32, i32
  }
  func.func @transform_3(%arg0: i32, %arg1: i32) -> (i32, i32) {
    %c0_i32 = arith.constant 0 : i32
    %c0_i32_0 = arith.constant 0 : i32
    return %arg0, %c0_i32 : i32, i32
  }
  func.func @transform_4(%arg0: i32, %arg1: i32) -> (i32, i32) {
    %c0_i32 = arith.constant 0 : i32
    %c0_i32_0 = arith.constant 0 : i32
    %c0_i32_1 = arith.constant 0 : i32
    return %c0_i32, %c0_i32_0 : i32, i32
  }
  func.func @transform_5(%arg0: i32, %arg1: i32) -> (i32, i32) {
    %c0_i32 = arith.constant 0 : i32
    %c0_i32_0 = arith.constant 0 : i32
    %c0_i32_1 = arith.constant 0 : i32
    return %c0_i32, %c0_i32_0 : i32, i32
  }
  func.func @transform_6(%arg0: i32, %arg1: i32) -> (i32, i32) {
    %c0_i32 = arith.constant 0 : i32
    %c0_i32_0 = arith.constant 0 : i32
    %c0_i32_1 = arith.constant 0 : i32
    return %c0_i32, %c0_i32_0 : i32, i32
  }
  func.func @transform_7(%arg0: i32, %arg1: i32) -> (i32, i32) {
    %c0_i32 = arith.constant 0 : i32
    %c0_i32_0 = arith.constant 0 : i32
    return %arg0, %c0_i32 : i32, i32
  }
}

module attributes {stable_mosaic.version = 11 : i64} {
  func.func @_project_kernel(%arg0: i32, %arg1: memref<256x128xbf16, #tpu.memory_space<vmem>>, %arg2: memref<128x128xbf16, #tpu.memory_space<vmem>>, %arg3: memref<256x128xbf16, #tpu.memory_space<vmem>>) attributes {dimension_semantics = [#tpu.dimension_semantics<parallel>], iteration_bounds = array<i64: 2>, scalar_prefetch = 0 : i64, scratch_operands = 0 : i64, tpu.core_type = #tpu.core_type<tc>, window_params = [{transform_indices = @transform_0, window_bounds = array<i64: 256, 128>}, {pipeline_mode = #tpu.pipeline_mode<synchronous>, transform_indices = @transform_1, window_bounds = array<i64: 128, 128>}, {transform_indices = @transform_2, window_bounds = array<i64: 256, 128>}]} {
    %c0 = arith.constant 0 : index
    %c0_0 = arith.constant 0 : index
    %0 = vector.load %arg1[%c0, %c0_0] : memref<256x128xbf16, #tpu.memory_space<vmem>>, vector<256x128xbf16>
    %c0_1 = arith.constant 0 : index
    %c0_2 = arith.constant 0 : index
    %1 = vector.load %arg2[%c0_1, %c0_2] : memref<128x128xbf16, #tpu.memory_space<vmem>>, vector<128x128xbf16>
    %cst = arith.constant dense<0.000000e+00> : vector<256x128xf32>
    %2 = tpu.matmul %0, %1, %cst {dimension_numbers = #tpu.dot_dimension_numbers<[1], [0], [0], [1], [0, 0, 1, 1], [], []>} : vector<256x128xbf16>, vector<128x128xbf16>, vector<256x128xf32> -> vector<256x128xf32>
    %3 = arith.truncf %2 : vector<256x128xf32> to vector<256x128xbf16>
    %c0_3 = arith.constant 0 : index
    %c0_4 = arith.constant 0 : index
    %4 = vector.load %arg3[%c0_3, %c0_4] : memref<256x128xbf16, #tpu.memory_space<vmem>>, vector<256x128xbf16>
    tpu.vector_store %arg3[%c0_3, %c0_4], %3 {strides = array<i32>} : memref<256x128xbf16, #tpu.memory_space<vmem>>, vector<256x128xbf16>,
    return
  }
  func.func @transform_0(%arg0: i32) -> (i32, i32) {
    %c0_i32 = arith.constant 0 : i32
    %c0_i32_0 = arith.constant 0 : i32
    return %arg0, %c0_i32 : i32, i32
  }
  func.func @transform_1(%arg0: i32) -> (i32, i32) {
    %c0_i32 = arith.constant 0 : i32
    %c0_i32_0 = arith.constant 0 : i32
    %c0_i32_1 = arith.constant 0 : i32
    return %c0_i32, %c0_i32_0 : i32, i32
  }
  func.func @transform_2(%arg0: i32) -> (i32, i32) {
    %c0_i32 = arith.constant 0 : i32
    %c0_i32_0 = arith.constant 0 : i32
    return %arg0, %c0_i32 : i32, i32
  }
}

module attributes {stable_mosaic.version = 11 : i64} {
  func.func @_prop_project_kernel(%arg0: i32, %arg1: i32, %arg2: memref<256x256xbf16, #tpu.memory_space<vmem>>, %arg3: memref<256x128xbf16, #tpu.memory_space<vmem>>, %arg4: memref<1x128xf32, #tpu.memory_space<vmem>>, %arg5: memref<128x128xbf16, #tpu.memory_space<vmem>>, %arg6: memref<256x128xbf16, #tpu.memory_space<vmem>>, %arg7: memref<256x128xf32, #tpu.memory_space<vmem>>) attributes {dimension_semantics = [#tpu.dimension_semantics<parallel>, #tpu.dimension_semantics<arbitrary>], iteration_bounds = array<i64: 1, 2>, scalar_prefetch = 0 : i64, scratch_operands = 1 : i64, tpu.core_type = #tpu.core_type<tc>, window_params = [{transform_indices = @transform_0, window_bounds = array<i64: 256, 256>}, {transform_indices = @transform_1, window_bounds = array<i64: 256, 128>}, {pipeline_mode = #tpu.pipeline_mode<synchronous>, transform_indices = @transform_2, window_bounds = array<i64: 1, 128>}, {pipeline_mode = #tpu.pipeline_mode<synchronous>, transform_indices = @transform_3, window_bounds = array<i64: 128, 128>}, {transform_indices = @transform_4, window_bounds = array<i64: 256, 128>}]} {
    %c0_i32 = arith.constant 0 : i32
    %0 = arith.cmpi eq, %arg1, %c0_i32 : i32
    %1 = arith.extui %0 : i1 to i32
    %c0_i32_0 = arith.constant 0 : i32
    %2 = arith.cmpi ne, %1, %c0_i32_0 : i32
    scf.if %2 {
      %cst_9 = arith.constant 0.000000e+00 : f32
      %12 = vector.broadcast %cst_9 : f32 to vector<256x128xf32>
      %c0_10 = arith.constant 0 : index
      %c0_11 = arith.constant 0 : index
      %13 = vector.load %arg7[%c0_10, %c0_11] : memref<256x128xf32, #tpu.memory_space<vmem>>, vector<256x128xf32>
      tpu.vector_store %arg7[%c0_10, %c0_11], %12 {strides = array<i32>} : memref<256x128xf32, #tpu.memory_space<vmem>>, vector<256x128xf32>,
    } else {
    }
    %c0 = arith.constant 0 : index
    %c0_1 = arith.constant 0 : index
    %3 = vector.load %arg7[%c0, %c0_1] : memref<256x128xf32, #tpu.memory_space<vmem>>, vector<256x128xf32>
    %c0_2 = arith.constant 0 : index
    %c0_3 = arith.constant 0 : index
    %4 = vector.load %arg2[%c0_2, %c0_3] : memref<256x256xbf16, #tpu.memory_space<vmem>>, vector<256x256xbf16>
    %c0_4 = arith.constant 0 : index
    %c0_5 = arith.constant 0 : index
    %5 = vector.load %arg3[%c0_4, %c0_5] : memref<256x128xbf16, #tpu.memory_space<vmem>>, vector<256x128xbf16>
    %cst = arith.constant dense<0.000000e+00> : vector<256x128xf32>
    %6 = tpu.matmul %4, %5, %cst {dimension_numbers = #tpu.dot_dimension_numbers<[1], [0], [0], [1], [0, 0, 1, 1], [], []>} : vector<256x256xbf16>, vector<256x128xbf16>, vector<256x128xf32> -> vector<256x128xf32>
    %7 = arith.addf %3, %6 : vector<256x128xf32>
    %c0_6 = arith.constant 0 : index
    %c0_7 = arith.constant 0 : index
    %8 = vector.load %arg7[%c0_6, %c0_7] : memref<256x128xf32, #tpu.memory_space<vmem>>, vector<256x128xf32>
    tpu.vector_store %arg7[%c0_6, %c0_7], %7 {strides = array<i32>} : memref<256x128xf32, #tpu.memory_space<vmem>>, vector<256x128xf32>,
    %c1_i32 = arith.constant 1 : i32
    %9 = arith.cmpi eq, %arg1, %c1_i32 : i32
    %10 = arith.extui %9 : i1 to i32
    %c0_i32_8 = arith.constant 0 : i32
    %11 = arith.cmpi ne, %10, %c0_i32_8 : i32
    scf.if %11 {
      %c0_9 = arith.constant 0 : index
      %c0_10 = arith.constant 0 : index
      %12 = vector.load %arg7[%c0_9, %c0_10] : memref<256x128xf32, #tpu.memory_space<vmem>>, vector<256x128xf32>
      %c0_11 = arith.constant 0 : index
      %c0_12 = arith.constant 0 : index
      %13 = vector.load %arg4[%c0_11, %c0_12] : memref<1x128xf32, #tpu.memory_space<vmem>>, vector<1x128xf32>
      %14 = vector.broadcast %13 : vector<1x128xf32> to vector<256x128xf32>
      %15 = arith.addf %12, %14 : vector<256x128xf32>
      %cst_13 = arith.constant 0.000000e+00 : f32
      %16 = vector.broadcast %cst_13 : f32 to vector<256x128xf32>
      %17 = arith.cmpf ogt, %15, %16 : vector<256x128xf32>
      %cst_14 = arith.constant 1.000000e-01 : f32
      %18 = vector.broadcast %cst_14 : f32 to vector<256x128xf32>
      %19 = arith.mulf %18, %15 : vector<256x128xf32>
      %20 = arith.select %17, %15, %19 : vector<256x128xi1>, vector<256x128xf32>
      %21 = arith.truncf %20 : vector<256x128xf32> to vector<256x128xbf16>
      %c0_15 = arith.constant 0 : index
      %c0_16 = arith.constant 0 : index
      %22 = vector.load %arg5[%c0_15, %c0_16] : memref<128x128xbf16, #tpu.memory_space<vmem>>, vector<128x128xbf16>
      %cst_17 = arith.constant dense<0.000000e+00> : vector<256x128xf32>
      %23 = tpu.matmul %21, %22, %cst_17 {dimension_numbers = #tpu.dot_dimension_numbers<[1], [0], [0], [1], [0, 0, 1, 1], [], []>} : vector<256x128xbf16>, vector<128x128xbf16>, vector<256x128xf32> -> vector<256x128xf32>
      %24 = arith.truncf %23 : vector<256x128xf32> to vector<256x128xbf16>
      %c0_18 = arith.constant 0 : index
      %c0_19 = arith.constant 0 : index
      %25 = vector.load %arg6[%c0_18, %c0_19] : memref<256x128xbf16, #tpu.memory_space<vmem>>, vector<256x128xbf16>
      tpu.vector_store %arg6[%c0_18, %c0_19], %24 {strides = array<i32>} : memref<256x128xbf16, #tpu.memory_space<vmem>>, vector<256x128xbf16>,
    } else {
    }
    return
  }
  func.func @transform_0(%arg0: i32, %arg1: i32) -> (i32, i32) {
    %c0_i32 = arith.constant 0 : i32
    return %arg0, %arg1 : i32, i32
  }
  func.func @transform_1(%arg0: i32, %arg1: i32) -> (i32, i32) {
    %c0_i32 = arith.constant 0 : i32
    %c0_i32_0 = arith.constant 0 : i32
    return %arg1, %c0_i32 : i32, i32
  }
  func.func @transform_2(%arg0: i32, %arg1: i32) -> (i32, i32) {
    %c0_i32 = arith.constant 0 : i32
    %c0_i32_0 = arith.constant 0 : i32
    %c0_i32_1 = arith.constant 0 : i32
    return %c0_i32, %c0_i32_0 : i32, i32
  }
  func.func @transform_3(%arg0: i32, %arg1: i32) -> (i32, i32) {
    %c0_i32 = arith.constant 0 : i32
    %c0_i32_0 = arith.constant 0 : i32
    %c0_i32_1 = arith.constant 0 : i32
    return %c0_i32, %c0_i32_0 : i32, i32
  }
  func.func @transform_4(%arg0: i32, %arg1: i32) -> (i32, i32) {
    %c0_i32 = arith.constant 0 : i32
    %c0_i32_0 = arith.constant 0 : i32
    return %arg0, %c0_i32 : i32, i32
  }
}

module attributes {stable_mosaic.version = 11 : i64} {
  func.func @_prop_union_kernel(%arg0: i32, %arg1: i32, %arg2: memref<256x256xbf16, #tpu.memory_space<vmem>>, %arg3: memref<256x128xbf16, #tpu.memory_space<vmem>>, %arg4: memref<1x128xf32, #tpu.memory_space<vmem>>, %arg5: memref<256x128xbf16, #tpu.memory_space<vmem>>, %arg6: memref<128x128xbf16, #tpu.memory_space<vmem>>, %arg7: memref<128x128xbf16, #tpu.memory_space<vmem>>, %arg8: memref<1x128xf32, #tpu.memory_space<vmem>>, %arg9: memref<256x128xf32, #tpu.memory_space<vmem>>, %arg10: memref<256x128xf32, #tpu.memory_space<vmem>>) attributes {dimension_semantics = [#tpu.dimension_semantics<parallel>, #tpu.dimension_semantics<arbitrary>], iteration_bounds = array<i64: 2, 1>, scalar_prefetch = 0 : i64, scratch_operands = 1 : i64, tpu.core_type = #tpu.core_type<tc>, window_params = [{transform_indices = @transform_0, window_bounds = array<i64: 256, 256>}, {transform_indices = @transform_1, window_bounds = array<i64: 256, 128>}, {pipeline_mode = #tpu.pipeline_mode<synchronous>, transform_indices = @transform_2, window_bounds = array<i64: 1, 128>}, {transform_indices = @transform_3, window_bounds = array<i64: 256, 128>}, {pipeline_mode = #tpu.pipeline_mode<synchronous>, transform_indices = @transform_4, window_bounds = array<i64: 128, 128>}, {pipeline_mode = #tpu.pipeline_mode<synchronous>, transform_indices = @transform_5, window_bounds = array<i64: 128, 128>}, {pipeline_mode = #tpu.pipeline_mode<synchronous>, transform_indices = @transform_6, window_bounds = array<i64: 1, 128>}, {transform_indices = @transform_7, window_bounds = array<i64: 256, 128>}]} {
    %c0_i32 = arith.constant 0 : i32
    %0 = arith.cmpi eq, %arg1, %c0_i32 : i32
    %1 = arith.extui %0 : i1 to i32
    %c0_i32_0 = arith.constant 0 : i32
    %2 = arith.cmpi ne, %1, %c0_i32_0 : i32
    scf.if %2 {
      %cst_10 = arith.constant 0.000000e+00 : f32
      %12 = vector.broadcast %cst_10 : f32 to vector<256x128xf32>
      %c0_11 = arith.constant 0 : index
      %c0_12 = arith.constant 0 : index
      %13 = vector.load %arg10[%c0_11, %c0_12] : memref<256x128xf32, #tpu.memory_space<vmem>>, vector<256x128xf32>
      tpu.vector_store %arg10[%c0_11, %c0_12], %12 {strides = array<i32>} : memref<256x128xf32, #tpu.memory_space<vmem>>, vector<256x128xf32>,
    } else {
    }
    %c0 = arith.constant 0 : index
    %c0_1 = arith.constant 0 : index
    %3 = vector.load %arg10[%c0, %c0_1] : memref<256x128xf32, #tpu.memory_space<vmem>>, vector<256x128xf32>
    %c0_2 = arith.constant 0 : index
    %c0_3 = arith.constant 0 : index
    %4 = vector.load %arg2[%c0_2, %c0_3] : memref<256x256xbf16, #tpu.memory_space<vmem>>, vector<256x256xbf16>
    %c0_4 = arith.constant 0 : index
    %c0_5 = arith.constant 0 : index
    %5 = vector.load %arg3[%c0_4, %c0_5] : memref<256x128xbf16, #tpu.memory_space<vmem>>, vector<256x128xbf16>
    %cst = arith.constant dense<0.000000e+00> : vector<256x128xf32>
    %6 = tpu.matmul %4, %5, %cst {dimension_numbers = #tpu.dot_dimension_numbers<[1], [0], [0], [1], [0, 0, 1, 1], [], []>} : vector<256x256xbf16>, vector<256x128xbf16>, vector<256x128xf32> -> vector<256x128xf32>
    %7 = arith.addf %3, %6 : vector<256x128xf32>
    %c0_6 = arith.constant 0 : index
    %c0_7 = arith.constant 0 : index
    %8 = vector.load %arg10[%c0_6, %c0_7] : memref<256x128xf32, #tpu.memory_space<vmem>>, vector<256x128xf32>
    tpu.vector_store %arg10[%c0_6, %c0_7], %7 {strides = array<i32>} : memref<256x128xf32, #tpu.memory_space<vmem>>, vector<256x128xf32>,
    %c0_i32_8 = arith.constant 0 : i32
    %9 = arith.cmpi eq, %arg1, %c0_i32_8 : i32
    %10 = arith.extui %9 : i1 to i32
    %c0_i32_9 = arith.constant 0 : i32
    %11 = arith.cmpi ne, %10, %c0_i32_9 : i32
    scf.if %11 {
      %c0_10 = arith.constant 0 : index
      %c0_11 = arith.constant 0 : index
      %12 = vector.load %arg10[%c0_10, %c0_11] : memref<256x128xf32, #tpu.memory_space<vmem>>, vector<256x128xf32>
      %c0_12 = arith.constant 0 : index
      %c0_13 = arith.constant 0 : index
      %13 = vector.load %arg4[%c0_12, %c0_13] : memref<1x128xf32, #tpu.memory_space<vmem>>, vector<1x128xf32>
      %14 = vector.broadcast %13 : vector<1x128xf32> to vector<256x128xf32>
      %15 = arith.addf %12, %14 : vector<256x128xf32>
      %cst_14 = arith.constant 0.000000e+00 : f32
      %16 = vector.broadcast %cst_14 : f32 to vector<256x128xf32>
      %17 = arith.cmpf ogt, %15, %16 : vector<256x128xf32>
      %cst_15 = arith.constant 1.000000e-01 : f32
      %18 = vector.broadcast %cst_15 : f32 to vector<256x128xf32>
      %19 = arith.mulf %18, %15 : vector<256x128xf32>
      %20 = arith.select %17, %15, %19 : vector<256x128xi1>, vector<256x128xf32>
      %21 = arith.truncf %20 : vector<256x128xf32> to vector<256x128xbf16>
      %c0_16 = arith.constant 0 : index
      %c0_17 = arith.constant 0 : index
      %22 = vector.load %arg6[%c0_16, %c0_17] : memref<128x128xbf16, #tpu.memory_space<vmem>>, vector<128x128xbf16>
      %cst_18 = arith.constant dense<0.000000e+00> : vector<256x128xf32>
      %23 = tpu.matmul %21, %22, %cst_18 {dimension_numbers = #tpu.dot_dimension_numbers<[1], [0], [0], [1], [0, 0, 1, 1], [], []>} : vector<256x128xbf16>, vector<128x128xbf16>, vector<256x128xf32> -> vector<256x128xf32>
      %c0_19 = arith.constant 0 : index
      %c0_20 = arith.constant 0 : index
      %24 = vector.load %arg5[%c0_19, %c0_20] : memref<256x128xbf16, #tpu.memory_space<vmem>>, vector<256x128xbf16>
      %c0_21 = arith.constant 0 : index
      %c0_22 = arith.constant 0 : index
      %25 = vector.load %arg7[%c0_21, %c0_22] : memref<128x128xbf16, #tpu.memory_space<vmem>>, vector<128x128xbf16>
      %cst_23 = arith.constant dense<0.000000e+00> : vector<256x128xf32>
      %26 = tpu.matmul %24, %25, %cst_23 {dimension_numbers = #tpu.dot_dimension_numbers<[1], [0], [0], [1], [0, 0, 1, 1], [], []>} : vector<256x128xbf16>, vector<128x128xbf16>, vector<256x128xf32> -> vector<256x128xf32>
      %27 = arith.addf %23, %26 : vector<256x128xf32>
      %c0_24 = arith.constant 0 : index
      %c0_25 = arith.constant 0 : index
      %28 = vector.load %arg8[%c0_24, %c0_25] : memref<1x128xf32, #tpu.memory_space<vmem>>, vector<1x128xf32>
      %29 = vector.broadcast %28 : vector<1x128xf32> to vector<256x128xf32>
      %30 = arith.addf %27, %29 : vector<256x128xf32>
      %cst_26 = arith.constant 0.000000e+00 : f32
      %31 = vector.broadcast %cst_26 : f32 to vector<256x128xf32>
      %32 = arith.maximumf %30, %31 : vector<256x128xf32>
      %c0_27 = arith.constant 0 : index
      %c0_28 = arith.constant 0 : index
      %33 = vector.load %arg9[%c0_27, %c0_28] : memref<256x128xf32, #tpu.memory_space<vmem>>, vector<256x128xf32>
      tpu.vector_store %arg9[%c0_27, %c0_28], %32 {strides = array<i32>} : memref<256x128xf32, #tpu.memory_space<vmem>>, vector<256x128xf32>,
    } else {
    }
    return
  }
  func.func @transform_0(%arg0: i32, %arg1: i32) -> (i32, i32) {
    %c0_i32 = arith.constant 0 : i32
    return %arg0, %arg1 : i32, i32
  }
  func.func @transform_1(%arg0: i32, %arg1: i32) -> (i32, i32) {
    %c0_i32 = arith.constant 0 : i32
    %c0_i32_0 = arith.constant 0 : i32
    return %arg1, %c0_i32 : i32, i32
  }
  func.func @transform_2(%arg0: i32, %arg1: i32) -> (i32, i32) {
    %c0_i32 = arith.constant 0 : i32
    %c0_i32_0 = arith.constant 0 : i32
    %c0_i32_1 = arith.constant 0 : i32
    return %c0_i32, %c0_i32_0 : i32, i32
  }
  func.func @transform_3(%arg0: i32, %arg1: i32) -> (i32, i32) {
    %c0_i32 = arith.constant 0 : i32
    %c0_i32_0 = arith.constant 0 : i32
    return %arg0, %c0_i32 : i32, i32
  }
  func.func @transform_4(%arg0: i32, %arg1: i32) -> (i32, i32) {
    %c0_i32 = arith.constant 0 : i32
    %c0_i32_0 = arith.constant 0 : i32
    %c0_i32_1 = arith.constant 0 : i32
    return %c0_i32, %c0_i32_0 : i32, i32
  }
  func.func @transform_5(%arg0: i32, %arg1: i32) -> (i32, i32) {
    %c0_i32 = arith.constant 0 : i32
    %c0_i32_0 = arith.constant 0 : i32
    %c0_i32_1 = arith.constant 0 : i32
    return %c0_i32, %c0_i32_0 : i32, i32
  }
  func.func @transform_6(%arg0: i32, %arg1: i32) -> (i32, i32) {
    %c0_i32 = arith.constant 0 : i32
    %c0_i32_0 = arith.constant 0 : i32
    %c0_i32_1 = arith.constant 0 : i32
    return %c0_i32, %c0_i32_0 : i32, i32
  }
  func.func @transform_7(%arg0: i32, %arg1: i32) -> (i32, i32) {
    %c0_i32 = arith.constant 0 : i32
    %c0_i32_0 = arith.constant 0 : i32
    return %arg0, %c0_i32 : i32, i32
  }
}

</mosaic_0001>

<llo_original>
// kernel: dgcn_layer_forward.6
$region0: #{dgcn_layer_forward.6}
  #allocation0 [shape = 'u32[]', space=smem, size = 0x4, offset = 0x4, fixed_abs, tag = 'smem constant byte address 0x4 - core index']
  #allocation1 [shape = 'u32[144,128]{1,0:T(1,128)}', space=vmem, size = 0x12000, scoped, tag = 'internal scratch']
  %s0 = inlined_call_operand.vmem [shape: bf16[256,128], index: 0, kind: input, shape index: {}]
  %s1 = inlined_call_operand.vmem [shape: bf16[128,128], index: 1, kind: input, shape index: {}]
  %s2 = inlined_call_operand.vmem [shape: bf16[256,128], index: 2, kind: output, shape index: {}]
  %s3 = sld [smem:[#allocation0]]
  $region18: #{dgcn_layer_forward.6} parent=0
    _
  %s5 = ssub.s32 1, %s3
  %s6 = scalar_select 0, %s5, %s3
  // Predicated region
  $region2: #{dgcn_layer_forward.6} parent=0 // pred_check
    _
  $region3: #{dgcn_layer_forward.6} parent=0 // pred_check_branch
    %8 = sbr.rel (0) target = $region5
  $region4: #{dgcn_layer_forward.6} parent=0 // pred_region
    _
  $region5: #{dgcn_layer_forward.6} parent=0 // pred_fallthru
    _
  // Predicated region
  $region6: #{dgcn_layer_forward.6} parent=0 // pred_check
    _
  $region7: #{dgcn_layer_forward.6} parent=0 // pred_check_branch
    %10 = sbr.rel (0) target = $region9
  $region8: #{dgcn_layer_forward.6} parent=0 // pred_region
    _
  $region9: #{dgcn_layer_forward.6} parent=0 // pred_fallthru
    _
  %v12 = vld [vmem:[%s0] sm:$0xf]
  %v13 = vld [vmem:[%s0 + $0x4] sm:$0xf]
  %v14 = vld [vmem:[%s0 + $0x8] sm:$0xf]
  %v15 = vld [vmem:[%s0 + $0xc] sm:$0xf]
  %v16 = vld [vmem:[%s0 + $0x10] sm:$0xf]
  %v17 = vld [vmem:[%s0 + $0x14] sm:$0xf]
  %v18 = vld [vmem:[%s0 + $0x18] sm:$0xf]
  %v19 = vld [vmem:[%s0 + $0x1c] sm:$0xf]
  %v20 = vld [vmem:[%s0 + $0x20] sm:$0xf]
  %v21 = vld [vmem:[%s0 + $0x24] sm:$0xf]
  %v22 = vld [vmem:[%s0 + $0x28] sm:$0xf]
  %v23 = vld [vmem:[%s0 + $0x2c] sm:$0xf]
  %v24 = vld [vmem:[%s0 + $0x30] sm:$0xf]
  %v25 = vld [vmem:[%s0 + $0x34] sm:$0xf]
  %v26 = vld [vmem:[%s0 + $0x38] sm:$0xf]
  %v27 = vld [vmem:[%s0 + $0x3c] sm:$0xf]
  %v28 = vld [vmem:[%s0 + $0x40] sm:$0xf]
  %v29 = vld [vmem:[%s0 + $0x44] sm:$0xf]
  %v30 = vld [vmem:[%s0 + $0x48] sm:$0xf]
  %v31 = vld [vmem:[%s0 + $0x4c] sm:$0xf]
  %v32 = vld [vmem:[%s0 + $0x50] sm:$0xf]
  %v33 = vld [vmem:[%s0 + $0x54] sm:$0xf]
  %v34 = vld [vmem:[%s0 + $0x58] sm:$0xf]
  %v35 = vld [vmem:[%s0 + $0x5c] sm:$0xf]
  %v36 = vld [vmem:[%s0 + $0x60] sm:$0xf]
  %v37 = vld [vmem:[%s0 + $0x64] sm:$0xf]
  %v38 = vld [vmem:[%s0 + $0x68] sm:$0xf]
  %v39 = vld [vmem:[%s0 + $0x6c] sm:$0xf]
  %v40 = vld [vmem:[%s0 + $0x70] sm:$0xf]
  %v41 = vld [vmem:[%s0 + $0x74] sm:$0xf]
  %v42 = vld [vmem:[%s0 + $0x78] sm:$0xf]
  %v43 = vld [vmem:[%s0 + $0x7c] sm:$0xf]
  %v44 = vld [vmem:[%s1] sm:$0xf]
  %v45 = vld [vmem:[%s1 + $0x4] sm:$0xf]
  %v46 = vld [vmem:[%s1 + $0x8] sm:$0xf]
  %v47 = vld [vmem:[%s1 + $0xc] sm:$0xf]
  %v48 = vld [vmem:[%s1 + $0x10] sm:$0xf]
  %v49 = vld [vmem:[%s1 + $0x14] sm:$0xf]
  %v50 = vld [vmem:[%s1 + $0x18] sm:$0xf]
  %v51 = vld [vmem:[%s1 + $0x1c] sm:$0xf]
  %v52 = vld [vmem:[%s1 + $0x20] sm:$0xf]
  %v53 = vld [vmem:[%s1 + $0x24] sm:$0xf]
  %v54 = vld [vmem:[%s1 + $0x28] sm:$0xf]
  %v55 = vld [vmem:[%s1 + $0x2c] sm:$0xf]
  %v56 = vld [vmem:[%s1 + $0x30] sm:$0xf]
  %v57 = vld [vmem:[%s1 + $0x34] sm:$0xf]
  %v58 = vld [vmem:[%s1 + $0x38] sm:$0xf]
  %v59 = vld [vmem:[%s1 + $0x3c] sm:$0xf]
  %v92 = vunpack.c.l.b16 %v12
  %v93 = vunpack.c.l.b16 %v13
  %v94 = vunpack.c.l.b16 %v14
  %v95 = vunpack.c.l.b16 %v15
  %v96 = vunpack.c.l.b16 %v16
  %v97 = vunpack.c.l.b16 %v17
  %v98 = vunpack.c.l.b16 %v18
  %v99 = vunpack.c.l.b16 %v19
  %v100 = vunpack.c.l.b16 %v20
  %v101 = vunpack.c.l.b16 %v21
  %v102 = vunpack.c.l.b16 %v22
  %v103 = vunpack.c.l.b16 %v23
  %v104 = vunpack.c.l.b16 %v24
  %v105 = vunpack.c.l.b16 %v25
  %v106 = vunpack.c.l.b16 %v26
  %v107 = vunpack.c.l.b16 %v27
  %v108 = vunpack.c.l.b16 %v28
  %v109 = vunpack.c.l.b16 %v29
  %v110 = vunpack.c.l.b16 %v30
  %v111 = vunpack.c.l.b16 %v31
  %v112 = vunpack.c.l.b16 %v32
  %v113 = vunpack.c.l.b16 %v33
  %v114 = vunpack.c.l.b16 %v34
  %v115 = vunpack.c.l.b16 %v35
  %v116 = vunpack.c.l.b16 %v36
  %v117 = vunpack.c.l.b16 %v37
  %v118 = vunpack.c.l.b16 %v38
  %v119 = vunpack.c.l.b16 %v39
  %v120 = vunpack.c.l.b16 %v40
  %v121 = vunpack.c.l.b16 %v41
  %v122 = vunpack.c.l.b16 %v42
  %v123 = vunpack.c.l.b16 %v43
  %v124 = vpack.c.b16 %v93, %v92
  %v125 = vpack.c.b16 %v95, %v94
  %v126 = vpack.c.b16 %v97, %v96
  %v127 = vpack.c.b16 %v99, %v98
  %v128 = vpack.c.b16 %v101, %v100
  %v129 = vpack.c.b16 %v103, %v102
  %v130 = vpack.c.b16 %v105, %v104
  %v131 = vpack.c.b16 %v107, %v106
  %v132 = vpack.c.b16 %v109, %v108
  %v133 = vpack.c.b16 %v111, %v110
  %v134 = vpack.c.b16 %v113, %v112
  %v135 = vpack.c.b16 %v115, %v114
  %v136 = vpack.c.b16 %v117, %v116
  %v137 = vpack.c.b16 %v119, %v118
  %v138 = vpack.c.b16 %v121, %v120
  %v139 = vpack.c.b16 %v123, %v122
  %v172 = vunpack.c.l.b16 %v44
  %v173 = vunpack.c.l.b16 %v45
  %v174 = vunpack.c.l.b16 %v46
  %v175 = vunpack.c.l.b16 %v47
  %v176 = vunpack.c.l.b16 %v48
  %v177 = vunpack.c.l.b16 %v49
  %v178 = vunpack.c.l.b16 %v50
  %v179 = vunpack.c.l.b16 %v51
  %v180 = vunpack.c.l.b16 %v52
  %v181 = vunpack.c.l.b16 %v53
  %v182 = vunpack.c.l.b16 %v54
  %v183 = vunpack.c.l.b16 %v55
  %v184 = vunpack.c.l.b16 %v56
  %v185 = vunpack.c.l.b16 %v57
  %v186 = vunpack.c.l.b16 %v58
  %v187 = vunpack.c.l.b16 %v59
  %v188 = vpack.c.b16 %v173, %v172
  %v189 = vpack.c.b16 %v175, %v174
  %v190 = vpack.c.b16 %v177, %v176
  %v191 = vpack.c.b16 %v179, %v178
  %v192 = vpack.c.b16 %v181, %v180
  %v193 = vpack.c.b16 %v183, %v182
  %v194 = vpack.c.b16 %v185, %v184
  %v195 = vpack.c.b16 %v187, %v186
  %204 = vmatprep.subr.bf16.mxu0 0
  %205 = vmatpush1.bf16.msra.mxu0 %v188
  %206 = vmatprep.subr.bf16.mxu0 0
  %207 = vmatpush1.bf16.msra.mxu0 %v189
  %208 = vmatprep.subr.bf16.mxu0 0
  %209 = vmatpush1.bf16.msra.mxu0 %v190
  %210 = vmatprep.subr.bf16.mxu0 0
  %211 = vmatpush1.bf16.msra.mxu0 %v191
  %212 = vmatprep.subr.bf16.mxu0 0
  %213 = vmatpush1.bf16.msra.mxu0 %v192
  %214 = vmatprep.subr.bf16.mxu0 0
  %215 = vmatpush1.bf16.msra.mxu0 %v193
  %216 = vmatprep.subr.bf16.mxu0 0
  %217 = vmatpush1.bf16.msra.mxu0 %v194
  %218 = vmatprep.subr.bf16.mxu0 0
  %219 = vmatpush1.bf16.msra.mxu0 %v195
  %220 = vmatprep.subr.bf16.mxu0 0
  %221 = vmatpush1.bf16.msra.mxu0 0
  %222 = vmatprep.subr.bf16.mxu0 0
  %223 = vmatpush1.bf16.msra.mxu0 0
  %224 = vmatprep.subr.bf16.mxu0 0
  %225 = vmatpush1.bf16.msra.mxu0 0
  %226 = vmatprep.subr.bf16.mxu0 0
  %227 = vmatpush1.bf16.msra.mxu0 0
  %228 = vmatprep.subr.bf16.mxu0 0
  %229 = vmatpush1.bf16.msra.mxu0 0
  %230 = vmatprep.subr.bf16.mxu0 0
  %231 = vmatpush1.bf16.msra.mxu0 0
  %232 = vmatprep.subr.bf16.mxu0 0
  %233 = vmatpush1.bf16.msra.mxu0 0
  %234 = vmatprep.subr.bf16.mxu0 0
  %235 = vmatpush1.bf16.msra.mxu0 0
  %236 = vmatprep.mubr.bf16.mxu0 0
  %237 = vmatmul.mubr.bf16.gmra.mrb[0].mxu0 %v124
  %v238 = vpop.f32.mrb[0].mxu0
  %v239 = vadd.f32 0.0, %v238
  %v240 = vpop.f32.mrb[0].mxu0
  %v241 = vpop.f32.mrb[0].mxu0
  %v242 = vadd.f32 0.0, %v241
  %v243 = vpop.f32.mrb[0].mxu0
  %244 = vmatprep.mubr.bf16.mxu0 0
  %245 = vmatmul.mubr.bf16.gmra.mrb[0].mxu0 %v125
  %v246 = vpop.f32.mrb[0].mxu0
  %v247 = vadd.f32 0.0, %v246
  %v248 = vpop.f32.mrb[0].mxu0
  %v249 = vpop.f32.mrb[0].mxu0
  %v250 = vadd.f32 0.0, %v249
  %v251 = vpop.f32.mrb[0].mxu0
  %252 = vmatprep.mubr.bf16.mxu0 0
  %253 = vmatmul.mubr.bf16.gmra.mrb[0].mxu0 %v126
  %v254 = vpop.f32.mrb[0].mxu0
  %v255 = vadd.f32 0.0, %v254
  %v256 = vpop.f32.mrb[0].mxu0
  %v257 = vpop.f32.mrb[0].mxu0
  %v258 = vadd.f32 0.0, %v257
  %v259 = vpop.f32.mrb[0].mxu0
  %260 = vmatprep.mubr.bf16.mxu0 0
  %261 = vmatmul.mubr.bf16.gmra.mrb[0].mxu0 %v127
  %v262 = vpop.f32.mrb[0].mxu0
  %v263 = vadd.f32 0.0, %v262
  %v264 = vpop.f32.mrb[0].mxu0
  %v265 = vpop.f32.mrb[0].mxu0
  %v266 = vadd.f32 0.0, %v265
  %v267 = vpop.f32.mrb[0].mxu0
  %268 = vmatprep.mubr.bf16.mxu0 0
  %269 = vmatmul.mubr.bf16.gmra.mrb[0].mxu0 %v128
  %v270 = vpop.f32.mrb[0].mxu0
  %v271 = vadd.f32 0.0, %v270
  %v272 = vpop.f32.mrb[0].mxu0
  %v273 = vpop.f32.mrb[0].mxu0
  %v274 = vadd.f32 0.0, %v273
  %v275 = vpop.f32.mrb[0].mxu0
  %276 = vmatprep.mubr.bf16.mxu0 0
  %277 = vmatmul.mubr.bf16.gmra.mrb[0].mxu0 %v129
  %v278 = vpop.f32.mrb[0].mxu0
  %v279 = vadd.f32 0.0, %v278
  %v280 = vpop.f32.mrb[0].mxu0
  %v281 = vpop.f32.mrb[0].mxu0
  %v282 = vadd.f32 0.0, %v281
  %v283 = vpop.f32.mrb[0].mxu0
  %284 = vmatprep.mubr.bf16.mxu0 0
  %285 = vmatmul.mubr.bf16.gmra.mrb[0].mxu0 %v130
  %v286 = vpop.f32.mrb[0].mxu0
  %v287 = vadd.f32 0.0, %v286
  %v288 = vpop.f32.mrb[0].mxu0
  %v289 = vpop.f32.mrb[0].mxu0
  %v290 = vadd.f32 0.0, %v289
  %v291 = vpop.f32.mrb[0].mxu0
  %292 = vmatprep.mubr.bf16.mxu0 0
  %293 = vmatmul.mubr.bf16.gmra.mrb[0].mxu0 %v131
  %v294 = vpop.f32.mrb[0].mxu0
  %v295 = vadd.f32 0.0, %v294
  %v296 = vpop.f32.mrb[0].mxu0
  %v297 = vpop.f32.mrb[0].mxu0
  %v298 = vadd.f32 0.0, %v297
  %v299 = vpop.f32.mrb[0].mxu0
  %300 = vmatprep.mubr.bf16.mxu0 0
  %301 = vmatmul.mubr.bf16.gmra.mrb[0].mxu0 %v132
  %v302 = vpop.f32.mrb[0].mxu0
  %v303 = vadd.f32 0.0, %v302
  %v304 = vpop.f32.mrb[0].mxu0
  %v305 = vpop.f32.mrb[0].mxu0
  %v306 = vadd.f32 0.0, %v305
  %v307 = vpop.f32.mrb[0].mxu0
  %308 = vmatprep.mubr.bf16.mxu0 0
  %309 = vmatmul.mubr.bf16.gmra.mrb[0].mxu0 %v133
  %v310 = vpop.f32.mrb[0].mxu0
  %v311 = vadd.f32 0.0, %v310
  %v312 = vpop.f32.mrb[0].mxu0
  %v313 = vpop.f32.mrb[0].mxu0
  %v314 = vadd.f32 0.0, %v313
  %v315 = vpop.f32.mrb[0].mxu0
  %316 = vmatprep.mubr.bf16.mxu0 0
  %317 = vmatmul.mubr.bf16.gmra.mrb[0].mxu0 %v134
  %v318 = vpop.f32.mrb[0].mxu0
  %v319 = vadd.f32 0.0, %v318
  %v320 = vpop.f32.mrb[0].mxu0
  %v321 = vpop.f32.mrb[0].mxu0
  %v322 = vadd.f32 0.0, %v321
  %v323 = vpop.f32.mrb[0].mxu0
  %324 = vmatprep.mubr.bf16.mxu0 0
  %325 = vmatmul.mubr.bf16.gmra.mrb[0].mxu0 %v135
  %v326 = vpop.f32.mrb[0].mxu0
  %v327 = vadd.f32 0.0, %v326
  %v328 = vpop.f32.mrb[0].mxu0
  %v329 = vpop.f32.mrb[0].mxu0
  %v330 = vadd.f32 0.0, %v329
  %v331 = vpop.f32.mrb[0].mxu0
  %332 = vmatprep.mubr.bf16.mxu0 0
  %333 = vmatmul.mubr.bf16.gmra.mrb[0].mxu0 %v136
  %v334 = vpop.f32.mrb[0].mxu0
  %v335 = vadd.f32 0.0, %v334
  %v336 = vpop.f32.mrb[0].mxu0
  %v337 = vpop.f32.mrb[0].mxu0
  %v338 = vadd.f32 0.0, %v337
  %v339 = vpop.f32.mrb[0].mxu0
  %340 = vmatprep.mubr.bf16.mxu0 0
  %341 = vmatmul.mubr.bf16.gmra.mrb[0].mxu0 %v137
  %v342 = vpop.f32.mrb[0].mxu0
  %v343 = vadd.f32 0.0, %v342
  %v344 = vpop.f32.mrb[0].mxu0
  %v345 = vpop.f32.mrb[0].mxu0
  %v346 = vadd.f32 0.0, %v345
  %v347 = vpop.f32.mrb[0].mxu0
  %348 = vmatprep.mubr.bf16.mxu0 0
  %349 = vmatmul.mubr.bf16.gmra.mrb[0].mxu0 %v138
  %v350 = vpop.f32.mrb[0].mxu0
  %v351 = vadd.f32 0.0, %v350
  %v352 = vpop.f32.mrb[0].mxu0
  %v353 = vpop.f32.mrb[0].mxu0
  %v354 = vadd.f32 0.0, %v353
  %v355 = vpop.f32.mrb[0].mxu0
  %356 = vmatprep.mubr.bf16.mxu0 0
  %357 = vmatmul.mubr.bf16.gmra.mrb[0].mxu0 %v139
  %v358 = vpop.f32.mrb[0].mxu0
  %v359 = vadd.f32 0.0, %v358
  %v360 = vpop.f32.mrb[0].mxu0
  %v361 = vpop.f32.mrb[0].mxu0
  %v362 = vadd.f32 0.0, %v361
  %v363 = vpop.f32.mrb[0].mxu0
  %364 = vdwg.mxu0
  %v365 = vpack.c.bf16 %v242, %v239
  %v366 = vpack.c.bf16 %v250, %v247
  %v367 = vpack.c.bf16 %v258, %v255
  %v368 = vpack.c.bf16 %v266, %v263
  %v369 = vpack.c.bf16 %v274, %v271
  %v370 = vpack.c.bf16 %v282, %v279
  %v371 = vpack.c.bf16 %v290, %v287
  %v372 = vpack.c.bf16 %v298, %v295
  %v373 = vpack.c.bf16 %v306, %v303
  %v374 = vpack.c.bf16 %v314, %v311
  %v375 = vpack.c.bf16 %v322, %v319
  %v376 = vpack.c.bf16 %v330, %v327
  %v377 = vpack.c.bf16 %v338, %v335
  %v378 = vpack.c.bf16 %v346, %v343
  %v379 = vpack.c.bf16 %v354, %v351
  %v380 = vpack.c.bf16 %v362, %v359
  %v397 = vunpack.c.l.b16 %v365
  %v398 = vunpack.c.h.b16 %v365
  %v399 = vunpack.c.l.b16 %v366
  %v400 = vunpack.c.h.b16 %v366
  %v401 = vunpack.c.l.b16 %v367
  %v402 = vunpack.c.h.b16 %v367
  %v403 = vunpack.c.l.b16 %v368
  %v404 = vunpack.c.h.b16 %v368
  %v405 = vunpack.c.l.b16 %v369
  %v406 = vunpack.c.h.b16 %v369
  %v407 = vunpack.c.l.b16 %v370
  %v408 = vunpack.c.h.b16 %v370
  %v409 = vunpack.c.l.b16 %v371
  %v410 = vunpack.c.h.b16 %v371
  %v411 = vunpack.c.l.b16 %v372
  %v412 = vunpack.c.h.b16 %v372
  %v413 = vunpack.c.l.b16 %v373
  %v414 = vunpack.c.h.b16 %v373
  %v415 = vunpack.c.l.b16 %v374
  %v416 = vunpack.c.h.b16 %v374
  %v417 = vunpack.c.l.b16 %v375
  %v418 = vunpack.c.h.b16 %v375
  %v419 = vunpack.c.l.b16 %v376
  %v420 = vunpack.c.h.b16 %v376
  %v421 = vunpack.c.l.b16 %v377
  %v422 = vunpack.c.h.b16 %v377
  %v423 = vunpack.c.l.b16 %v378
  %v424 = vunpack.c.h.b16 %v378
  %v425 = vunpack.c.l.b16 %v379
  %v426 = vunpack.c.h.b16 %v379
  %v427 = vunpack.c.l.b16 %v380
  %v428 = vunpack.c.h.b16 %v380
  %v429 = vpack.c.b16 %v397, %v397
  %v430 = vpack.c.b16 %v398, %v398
  %v431 = vpack.c.b16 %v399, %v399
  %v432 = vpack.c.b16 %v400, %v400
  %v433 = vpack.c.b16 %v401, %v401
  %v434 = vpack.c.b16 %v402, %v402
  %v435 = vpack.c.b16 %v403, %v403
  %v436 = vpack.c.b16 %v404, %v404
  %v437 = vpack.c.b16 %v405, %v405
  %v438 = vpack.c.b16 %v406, %v406
  %v439 = vpack.c.b16 %v407, %v407
  %v440 = vpack.c.b16 %v408, %v408
  %v441 = vpack.c.b16 %v409, %v409
  %v442 = vpack.c.b16 %v410, %v410
  %v443 = vpack.c.b16 %v411, %v411
  %v444 = vpack.c.b16 %v412, %v412
  %v445 = vpack.c.b16 %v413, %v413
  %v446 = vpack.c.b16 %v414, %v414
  %v447 = vpack.c.b16 %v415, %v415
  %v448 = vpack.c.b16 %v416, %v416
  %v449 = vpack.c.b16 %v417, %v417
  %v450 = vpack.c.b16 %v418, %v418
  %v451 = vpack.c.b16 %v419, %v419
  %v452 = vpack.c.b16 %v420, %v420
  %v453 = vpack.c.b16 %v421, %v421
  %v454 = vpack.c.b16 %v422, %v422
  %v455 = vpack.c.b16 %v423, %v423
  %v456 = vpack.c.b16 %v424, %v424
  %v457 = vpack.c.b16 %v425, %v425
  %v458 = vpack.c.b16 %v426, %v426
  %v459 = vpack.c.b16 %v427, %v427
  %v460 = vpack.c.b16 %v428, %v428
  %493 = vst [vmem:[%s2] sm:$0xf] %v429
  %494 = vst [vmem:[%s2 + $0x4] sm:$0xf] %v430
  %495 = vst [vmem:[%s2 + $0x8] sm:$0xf] %v431
  %496 = vst [vmem:[%s2 + $0xc] sm:$0xf] %v432
  %497 = vst [vmem:[%s2 + $0x10] sm:$0xf] %v433
  %498 = vst [vmem:[%s2 + $0x14] sm:$0xf] %v434
  %499 = vst [vmem:[%s2 + $0x18] sm:$0xf] %v435
  %500 = vst [vmem:[%s2 + $0x1c] sm:$0xf] %v436
  %501 = vst [vmem:[%s2 + $0x20] sm:$0xf] %v437
  %502 = vst [vmem:[%s2 + $0x24] sm:$0xf] %v438
  %503 = vst [vmem:[%s2 + $0x28] sm:$0xf] %v439
  %504 = vst [vmem:[%s2 + $0x2c] sm:$0xf] %v440
  %505 = vst [vmem:[%s2 + $0x30] sm:$0xf] %v441
  %506 = vst [vmem:[%s2 + $0x34] sm:$0xf] %v442
  %507 = vst [vmem:[%s2 + $0x38] sm:$0xf] %v443
  %508 = vst [vmem:[%s2 + $0x3c] sm:$0xf] %v444
  %509 = vst [vmem:[%s2 + $0x40] sm:$0xf] %v445
  %510 = vst [vmem:[%s2 + $0x44] sm:$0xf] %v446
  %511 = vst [vmem:[%s2 + $0x48] sm:$0xf] %v447
  %512 = vst [vmem:[%s2 + $0x4c] sm:$0xf] %v448
  %513 = vst [vmem:[%s2 + $0x50] sm:$0xf] %v449
  %514 = vst [vmem:[%s2 + $0x54] sm:$0xf] %v450
  %515 = vst [vmem:[%s2 + $0x58] sm:$0xf] %v451
  %516 = vst [vmem:[%s2 + $0x5c] sm:$0xf] %v452
  %517 = vst [vmem:[%s2 + $0x60] sm:$0xf] %v453
  %518 = vst [vmem:[%s2 + $0x64] sm:$0xf] %v454
  %519 = vst [vmem:[%s2 + $0x68] sm:$0xf] %v455
  %520 = vst [vmem:[%s2 + $0x6c] sm:$0xf] %v456
  %521 = vst [vmem:[%s2 + $0x70] sm:$0xf] %v457
  %522 = vst [vmem:[%s2 + $0x74] sm:$0xf] %v458
  %523 = vst [vmem:[%s2 + $0x78] sm:$0xf] %v459
  %524 = vst [vmem:[%s2 + $0x7c] sm:$0xf] %v460
  // Predicated region
  $region10: #{dgcn_layer_forward.6} parent=0 // pred_check
    _
  $region11: #{dgcn_layer_forward.6} parent=0 // pred_check_branch
    %526 = sbr.rel (0) target = $region13
  $region12: #{dgcn_layer_forward.6} parent=0 // pred_region
    _
  $region13: #{dgcn_layer_forward.6} parent=0 // pred_fallthru
    _
  // Predicated region
  $region14: #{dgcn_layer_forward.6} parent=0 // pred_check
    _
  $region15: #{dgcn_layer_forward.6} parent=0 // pred_check_branch
    %528 = sbr.rel (0) target = $region17
  $region16: #{dgcn_layer_forward.6} parent=0 // pred_region
    _
  $region17: #{dgcn_layer_forward.6} parent=0 // pred_fallthru
    _

// kernel: dgcn_layer_forward.8
$region0: #{dgcn_layer_forward.8}
  #allocation0 [shape = 'u32[]', space=smem, size = 0x4, offset = 0x4, fixed_abs, tag = 'smem constant byte address 0x4 - core index']
  #allocation1 [shape = 'u32[144,128]{1,0:T(1,128)}', space=vmem, size = 0x12000, scoped, tag = 'internal scratch']
  #allocation2 [shape = 'f32[256,128]{1,0:T(8,128)}', space=vmem, size = 0x20000, scoped, tag = 'scratch operand']
  %s0 = inlined_call_operand.vmem [shape: bf16[512,256], index: 0, kind: input, shape index: {}]
  %s1 = inlined_call_operand.vmem [shape: bf16[256,128], index: 1, kind: input, shape index: {}]
  %s2 = inlined_call_operand.vmem [shape: f32[1,128], index: 2, kind: input, shape index: {}]
  %s3 = inlined_call_operand.vmem [shape: bf16[128,128], index: 3, kind: input, shape index: {}]
  %s4 = inlined_call_operand.vmem [shape: bf16[512,128], index: 4, kind: output, shape index: {}]
  %s5 = sld [smem:[#allocation0]]
  $region57: #{dgcn_layer_forward.8} parent=0
    _
  %s7 = ssub.s32 1, %s5
  %s8 = scalar_select 0, %s7, %s5
  loop: start=0, step=1, limit=4
  $region2: #{dgcn_layer_forward.8} parent=0 // loop_pre_header
    _
  $region3: #{dgcn_layer_forward.8} parent=0 // loop_header
    %s10 = sphi 0, %s14
    %p11 = scmp.ge.s32.totalorder %s10, 4
    %s17 = sphi 0, %s29
    %s18 = sphi 0, %s25
    %s19 = sphi 0, %s17
    %s20 = sphi 0, %s18
    %s21 = sphi 0, %s19
    %s22 = sphi 0, %s20
    %s34 = sphi 0, %s36
    %s37 = sphi 0, %s34
    %s38 = sphi 0, %s37
    %s54 = sphi 0, %s38
    %s60 = sphi 0, %s62
    %s63 = sphi 0, %s60
    %s64 = sphi 0, %s63
    %s80 = sphi 0, %s64
    %s84 = sphi 0, %s84
    %s86 = sphi 0, %s84
    %s87 = sphi 0, %s86
    %s101 = sphi 0, %s87
    %s105 = sphi 0, %s105
    %s107 = sphi 0, %s105
    %s108 = sphi 0, %s107
    %s122 = sphi 0, %s108
    %s128 = sphi 0, %s130
    %s131 = sphi 0, %s128
    %s132 = sphi 0, %s131
    %s148 = sphi 0, %s132
  $region4: #{dgcn_layer_forward.8} parent=0 // loop_header_branch
    %13 = sbr.rel (%p11) target = $region8
  $region5: #{dgcn_layer_forward.8} parent=0 // loop_body
    %s15 = ssub.s32 %s10, 1
    %s16 = ssub.s32 %s10, 2
    %s23 = sadd.s32 1, %s18
    %p24 = scmp.ge.s32.totalorder %s23, 1
    %s25 = scalar_select %p24, 0, %s23
    %s26 = sadd.s32 1, %s17
    %s27 = scalar_select %p24, %s26, %s17
    %p28 = scmp.ge.s32.totalorder %s27, 2
    %s29 = scalar_select %p28, 0, %s27
    %s30 = ssub.s32 %s17, %s29
    %s31 = ssub.s32 %s18, %s25
    %s32 = sor.u32 %s30, %s31
    %p33 = scmp.eq.s32.totalorder %s32, 0
    %s35 = sadd.s32 %s34, 1
    %s36 = scalar_select %p33, %s34, %s35
    %p39 = pneg %p33
    %p40 = scmp.eq.s32.totalorder %s10, 1
    %p41 = por %p39, %p40
    %p42 = scmp.ne.s32.totalorder %s34, %s37
    %p43 = scmp.eq.s32.totalorder %s10, 0
    %p44 = por %p42, %p43
    %p45 = scmp.ne.s32.totalorder %s34, %s37
    %p46 = scmp.eq.s32.totalorder %s15, 1
    %p47 = por %p45, %p46
    %p48 = scmp.ne.s32.totalorder %s37, %s38
    %p49 = scmp.eq.s32.totalorder %s15, 0
    %p50 = por %p48, %p49
    %p51 = scmp.ne.s32.totalorder %s37, %s38
    %p52 = scmp.eq.s32.totalorder %s16, 1
    %p53 = por %p51, %p52
    %p55 = scmp.ne.s32.totalorder %s38, %s54
    %p56 = scmp.eq.s32.totalorder %s16, 0
    %p57 = por %p55, %p56
    %s58 = ssub.s32 %s18, %s25
    %p59 = scmp.eq.s32.totalorder %s58, 0
    %s61 = sadd.s32 %s60, 1
    %s62 = scalar_select %p59, %s60, %s61
    %p65 = pneg %p59
    %p66 = scmp.eq.s32.totalorder %s10, 1
    %p67 = por %p65, %p66
    %p68 = scmp.ne.s32.totalorder %s60, %s63
    %p69 = scmp.eq.s32.totalorder %s10, 0
    %p70 = por %p68, %p69
    %p71 = scmp.ne.s32.totalorder %s60, %s63
    %p72 = scmp.eq.s32.totalorder %s15, 1
    %p73 = por %p71, %p72
    %p74 = scmp.ne.s32.totalorder %s63, %s64
    %p75 = scmp.eq.s32.totalorder %s15, 0
    %p76 = por %p74, %p75
    %p77 = scmp.ne.s32.totalorder %s63, %s64
    %p78 = scmp.eq.s32.totalorder %s16, 1
    %p79 = por %p77, %p78
    %p81 = scmp.ne.s32.totalorder %s64, %s80
    %p82 = scmp.eq.s32.totalorder %s16, 0
    %p83 = por %p81, %p82
    %s85 = sadd.s32 %s84, 1
    %p88 = scmp.eq.s32.totalorder %s10, 1
    %p89 = scmp.ne.s32.totalorder %s84, %s86
    %p90 = scmp.eq.s32.totalorder %s10, 0
    %p91 = por %p89, %p90
    %p92 = scmp.ne.s32.totalorder %s84, %s86
    %p93 = scmp.eq.s32.totalorder %s15, 1
    %p94 = por %p92, %p93
    %p95 = scmp.ne.s32.totalorder %s86, %s87
    %p96 = scmp.eq.s32.totalorder %s15, 0
    %p97 = por %p95, %p96
    %p98 = scmp.ne.s32.totalorder %s86, %s87
    %p99 = scmp.eq.s32.totalorder %s16, 1
    %p100 = por %p98, %p99
    %p102 = scmp.ne.s32.totalorder %s87, %s101
    %p103 = scmp.eq.s32.totalorder %s16, 0
    %p104 = por %p102, %p103
    %s106 = sadd.s32 %s105, 1
    %p109 = scmp.eq.s32.totalorder %s10, 1
    %p110 = scmp.ne.s32.totalorder %s105, %s107
    %p111 = scmp.eq.s32.totalorder %s10, 0
    %p112 = por %p110, %p111
    %p113 = scmp.ne.s32.totalorder %s105, %s107
    %p114 = scmp.eq.s32.totalorder %s15, 1
    %p115 = por %p113, %p114
    %p116 = scmp.ne.s32.totalorder %s107, %s108
    %p117 = scmp.eq.s32.totalorder %s15, 0
    %p118 = por %p116, %p117
    %p119 = scmp.ne.s32.totalorder %s107, %s108
    %p120 = scmp.eq.s32.totalorder %s16, 1
    %p121 = por %p119, %p120
    %p123 = scmp.ne.s32.totalorder %s108, %s122
    %p124 = scmp.eq.s32.totalorder %s16, 0
    %p125 = por %p123, %p124
    %s126 = ssub.s32 %s17, %s29
    %p127 = scmp.eq.s32.totalorder %s126, 0
    %s129 = sadd.s32 %s128, 1
    %s130 = scalar_select %p127, %s128, %s129
    %p133 = pneg %p127
    %p134 = scmp.eq.s32.totalorder %s10, 1
    %p135 = por %p133, %p134
    %p136 = scmp.ne.s32.totalorder %s128, %s131
    %p137 = scmp.eq.s32.totalorder %s10, 0
    %p138 = por %p136, %p137
    %p139 = scmp.ne.s32.totalorder %s128, %s131
    %p140 = scmp.eq.s32.totalorder %s15, 1
    %p141 = por %p139, %p140
    %p142 = scmp.ne.s32.totalorder %s131, %s132
    %p143 = scmp.eq.s32.totalorder %s15, 0
    %p144 = por %p142, %p143
    %p145 = scmp.ne.s32.totalorder %s131, %s132
    %p146 = scmp.eq.s32.totalorder %s16, 1
    %p147 = por %p145, %p146
    %p149 = scmp.ne.s32.totalorder %s132, %s148
    %p150 = scmp.eq.s32.totalorder %s16, 0
    %p151 = por %p149, %p150
    %p152 = scmp.le.s32.totalorder 1, %s10
    %p153 = scmp.lt.s32.totalorder %s10, 3
    %p154 = pnand %p152, %p153
    %p155 = pneg %p154
    // Predicated region
    $region9: #{dgcn_layer_forward.8} parent=5 // pred_check
      _
    $region10: #{dgcn_layer_forward.8} parent=5 // pred_check_branch
      %157 = sbr.rel (%p154) target = $region12
    $region11: #{dgcn_layer_forward.8} parent=5 // pred_region
      %s158 = ssub.s32 %s10, 1
      // Predicated region
      $region13: #{dgcn_layer_forward.8} parent=11 // pred_check
        %p159 = pneg %p76
      $region14: #{dgcn_layer_forward.8} parent=11 // pred_check_branch
        %161 = sbr.rel (%p159) target = $region16
      $region15: #{dgcn_layer_forward.8} parent=11 // pred_region
        %s162 = smul.u32 32, %s20
        %p163 = scmp.lt.s32.totalorder %s162, 31
        %s164 = scalar_select %p163, %s162, 31
        %s165 = smul.addr %s164, 4
        %s166 = scalar_lea.vmem %s1, %s165
        %s167 = smul.u32 32, %s20
      $region16: #{dgcn_layer_forward.8} parent=11 // pred_fallthru
        _
      // Predicated region
      $region17: #{dgcn_layer_forward.8} parent=11 // pred_check
        %p168 = pneg %p97
      $region18: #{dgcn_layer_forward.8} parent=11 // pred_check_branch
        %170 = sbr.rel (%p168) target = $region20
      $region19: #{dgcn_layer_forward.8} parent=11 // pred_region
        _
      $region20: #{dgcn_layer_forward.8} parent=11 // pred_fallthru
        _
      // Predicated region
      $region21: #{dgcn_layer_forward.8} parent=11 // pred_check
        %p171 = pneg %p118
      $region22: #{dgcn_layer_forward.8} parent=11 // pred_check_branch
        %173 = sbr.rel (%p171) target = $region24
      $region23: #{dgcn_layer_forward.8} parent=11 // pred_region
        _
      $region24: #{dgcn_layer_forward.8} parent=11 // pred_fallthru
        _
    $region12: #{dgcn_layer_forward.8} parent=5 // pred_fallthru
      _
    %p174 = scmp.lt.s32.totalorder %s10, 2
    // Predicated region
    $region25: #{dgcn_layer_forward.8} parent=5 // pred_check
      %p175 = pneg %p174
    $region26: #{dgcn_layer_forward.8} parent=5 // pred_check_branch
      %177 = sbr.rel (%p175) target = $region28
    $region27: #{dgcn_layer_forward.8} parent=5 // pred_region
      // Predicated region
      $region29: #{dgcn_layer_forward.8} parent=27 // pred_check
        %p178 = pneg %p44
      $region30: #{dgcn_layer_forward.8} parent=27 // pred_check_branch
        %180 = sbr.rel (%p178) target = $region32
      $region31: #{dgcn_layer_forward.8} parent=27 // pred_region
        %s181 = smul.u32 32, %s17
        %s182 = smul.u32 2, %s18
        %p183 = scmp.lt.s32.totalorder %s181, 63
        %s184 = scalar_select %p183, %s181, 63
        %p185 = scmp.lt.s32.totalorder %s182, 1
        %s186 = scalar_select %p185, %s182, 1
        %s187 = smul.addr %s184, 2
        %s188 = sadd.s32 %s186, %s187
        %s189 = smul.addr %s188, 4
        %s190 = scalar_lea.vmem %s0, %s189
        %s191 = smul.u32 32, %s17
        %s192 = smul.u32 2, %s18
      $region32: #{dgcn_layer_forward.8} parent=27 // pred_fallthru
        _
    $region28: #{dgcn_layer_forward.8} parent=5 // pred_fallthru
      _
    %p193 = scmp.le.s32.totalorder 1, %s10
    %p194 = scmp.lt.s32.totalorder %s10, 3
    %p195 = pnand %p193, %p194
    %p196 = pneg %p195
    // Predicated region
    $region33: #{dgcn_layer_forward.8} parent=5 // pred_check
      _
    $region34: #{dgcn_layer_forward.8} parent=5 // pred_check_branch
      %198 = sbr.rel (%p195) target = $region36
    $region35: #{dgcn_layer_forward.8} parent=5 // pred_region
      %s199 = ssub.s32 %s10, 1
      %s200 = smul.u32 32, %s19
      %s201 = smul.u32 2, %s20
      %p202 = scmp.lt.s32.totalorder %s200, 63
      %s203 = scalar_select %p202, %s200, 63
      %p204 = scmp.lt.s32.totalorder %s201, 1
      %s205 = scalar_select %p204, %s201, 1
      %s206 = smul.addr %s203, 2
      %s207 = sadd.s32 %s205, %s206
      %s208 = smul.addr %s207, 4
      %s209 = scalar_lea.vmem %s0, %s208
      %p210 = pneg %p50
      %p211 = pneg %p47
      %s212 = smul.u32 32, %s20
      %p213 = scmp.lt.s32.totalorder %s212, 31
      %s214 = scalar_select %p213, %s212, 31
      %s215 = smul.addr %s214, 4
      %s216 = scalar_lea.vmem %s1, %s215
      %p217 = pneg %p76
      %p218 = pneg %p73
      %p219 = pneg %p97
      %p220 = pneg %p94
      %p221 = pneg %p118
      %p222 = pneg %p115
      %p223 = pneg %p144
      %p224 = pneg %p141
      %s225 = smul.u32 32, %s19
      %p226 = scmp.lt.s32.totalorder %s225, 63
      %s227 = scalar_select %p226, %s225, 63
      %s228 = smul.addr %s227, 4
      %s229 = scalar_lea.vmem %s4, %s228
      %s230 = smul.u32 32, %s19
      %s231 = smul.u32 2, %s20
      %p232 = scmp.lt.s32.totalorder %s230, 63
      %s233 = scalar_select %p232, %s230, 63
      %p234 = scmp.lt.s32.totalorder %s231, 1
      %s235 = scalar_select %p234, %s231, 1
      %s236 = smul.addr %s233, 2
      %s237 = sadd.s32 %s235, %s236
      %s238 = smul.addr %s237, 4
      %s239 = scalar_lea.vmem %s0, %s238
      %s240 = smul.u32 32, %s19
      %s241 = smul.u32 2, %s20
      %s242 = smul.u32 32, %s20
      %p243 = scmp.lt.s32.totalorder %s242, 31
      %s244 = scalar_select %p243, %s242, 31
      %s245 = smul.addr %s244, 4
      %s246 = scalar_lea.vmem %s1, %s245
      %s247 = smul.u32 32, %s20
      %s248 = smul.u32 32, %s19
      %p249 = scmp.lt.s32.totalorder %s248, 63
      %s250 = scalar_select %p249, %s248, 63
      %s251 = smul.addr %s250, 4
      %s252 = scalar_lea.vmem %s4, %s251
      %s253 = smul.u32 32, %s19
      %p255 = scmp.eq.s32.totalorder %s20, 0
      // Predicated region
      $region37: #{dgcn_layer_forward.8} parent=35 // pred_check
        %p256 = pneg %p255
      $region38: #{dgcn_layer_forward.8} parent=35 // pred_check_branch
        %258 = sbr.rel (%p256) target = $region40
      $region39: #{dgcn_layer_forward.8} parent=35 // pred_region
        %259 = vst [vmem:[#allocation2] sm:$0xff] 0.0
        %260 = vst [vmem:[#allocation2 + $0x8] sm:$0xff] 0.0
        %261 = vst [vmem:[#allocation2 + $0x10] sm:$0xff] 0.0
        %262 = vst [vmem:[#allocation2 + $0x18] sm:$0xff] 0.0
        %263 = vst [vmem:[#allocation2 + $0x20] sm:$0xff] 0.0
        %264 = vst [vmem:[#allocation2 + $0x28] sm:$0xff] 0.0
        %265 = vst [vmem:[#allocation2 + $0x30] sm:$0xff] 0.0
        %266 = vst [vmem:[#allocation2 + $0x38] sm:$0xff] 0.0
        %267 = vst [vmem:[#allocation2 + $0x40] sm:$0xff] 0.0
        %268 = vst [vmem:[#allocation2 + $0x48] sm:$0xff] 0.0
        %269 = vst [vmem:[#allocation2 + $0x50] sm:$0xff] 0.0
        %270 = vst [vmem:[#allocation2 + $0x58] sm:$0xff] 0.0
        %271 = vst [vmem:[#allocation2 + $0x60] sm:$0xff] 0.0
        %272 = vst [vmem:[#allocation2 + $0x68] sm:$0xff] 0.0
        %273 = vst [vmem:[#allocation2 + $0x70] sm:$0xff] 0.0
        %274 = vst [vmem:[#allocation2 + $0x78] sm:$0xff] 0.0
        %275 = vst [vmem:[#allocation2 + $0x80] sm:$0xff] 0.0
        %276 = vst [vmem:[#allocation2 + $0x88] sm:$0xff] 0.0
        %277 = vst [vmem:[#allocation2 + $0x90] sm:$0xff] 0.0
        %278 = vst [vmem:[#allocation2 + $0x98] sm:$0xff] 0.0
        %279 = vst [vmem:[#allocation2 + $0xa0] sm:$0xff] 0.0
        %280 = vst [vmem:[#allocation2 + $0xa8] sm:$0xff] 0.0
        %281 = vst [vmem:[#allocation2 + $0xb0] sm:$0xff] 0.0
        %282 = vst [vmem:[#allocation2 + $0xb8] sm:$0xff] 0.0
        %283 = vst [vmem:[#allocation2 + $0xc0] sm:$0xff] 0.0
        %284 = vst [vmem:[#allocation2 + $0xc8] sm:$0xff] 0.0
        %285 = vst [vmem:[#allocation2 + $0xd0] sm:$0xff] 0.0
        %286 = vst [vmem:[#allocation2 + $0xd8] sm:$0xff] 0.0
        %287 = vst [vmem:[#allocation2 + $0xe0] sm:$0xff] 0.0
        %288 = vst [vmem:[#allocation2 + $0xe8] sm:$0xff] 0.0
        %289 = vst [vmem:[#allocation2 + $0xf0] sm:$0xff] 0.0
        %290 = vst [vmem:[#allocation2 + $0xf8] sm:$0xff] 0.0
      $region40: #{dgcn_layer_forward.8} parent=35 // pred_fallthru
        _
      %v291 = vld [vmem:[#allocation2] sm:$0xff]
      %v292 = vld [vmem:[#allocation2 + $0x8] sm:$0xff]
      %v293 = vld [vmem:[#allocation2 + $0x10] sm:$0xff]
      %v294 = vld [vmem:[#allocation2 + $0x18] sm:$0xff]
      %v295 = vld [vmem:[#allocation2 + $0x20] sm:$0xff]
      %v296 = vld [vmem:[#allocation2 + $0x28] sm:$0xff]
      %v297 = vld [vmem:[#allocation2 + $0x30] sm:$0xff]
      %v298 = vld [vmem:[#allocation2 + $0x38] sm:$0xff]
      %v299 = vld [vmem:[#allocation2 + $0x40] sm:$0xff]
      %v300 = vld [vmem:[#allocation2 + $0x48] sm:$0xff]
      %v301 = vld [vmem:[#allocation2 + $0x50] sm:$0xff]
      %v302 = vld [vmem:[#allocation2 + $0x58] sm:$0xff]
      %v303 = vld [vmem:[#allocation2 + $0x60] sm:$0xff]
      %v304 = vld [vmem:[#allocation2 + $0x68] sm:$0xff]
      %v305 = vld [vmem:[#allocation2 + $0x70] sm:$0xff]
      %v306 = vld [vmem:[#allocation2 + $0x78] sm:$0xff]
      %v307 = vld [vmem:[#allocation2 + $0x80] sm:$0xff]
      %v308 = vld [vmem:[#allocation2 + $0x88] sm:$0xff]
      %v309 = vld [vmem:[#allocation2 + $0x90] sm:$0xff]
      %v310 = vld [vmem:[#allocation2 + $0x98] sm:$0xff]
      %v311 = vld [vmem:[#allocation2 + $0xa0] sm:$0xff]
      %v312 = vld [vmem:[#allocation2 + $0xa8] sm:$0xff]
      %v313 = vld [vmem:[#allocation2 + $0xb0] sm:$0xff]
      %v314 = vld [vmem:[#allocation2 + $0xb8] sm:$0xff]
      %v315 = vld [vmem:[#allocation2 + $0xc0] sm:$0xff]
      %v316 = vld [vmem:[#allocation2 + $0xc8] sm:$0xff]
      %v317 = vld [vmem:[#allocation2 + $0xd0] sm:$0xff]
      %v318 = vld [vmem:[#allocation2 + $0xd8] sm:$0xff]
      %v319 = vld [vmem:[#allocation2 + $0xe0] sm:$0xff]
      %v320 = vld [vmem:[#allocation2 + $0xe8] sm:$0xff]
      %v321 = vld [vmem:[#allocation2 + $0xf0] sm:$0xff]
      %v322 = vld [vmem:[#allocation2 + $0xf8] sm:$0xff]
      %v323 = vld [vmem:[%s239] sm:$0xff]
      %v324 = vld [vmem:[%s239 + $0x8] sm:$0xff]
      %v325 = vld [vmem:[%s239 + $0x10] sm:$0xff]
      %v326 = vld [vmem:[%s239 + $0x18] sm:$0xff]
      %v327 = vld [vmem:[%s239 + $0x20] sm:$0xff]
      %v328 = vld [vmem:[%s239 + $0x28] sm:$0xff]
      %v329 = vld [vmem:[%s239 + $0x30] sm:$0xff]
      %v330 = vld [vmem:[%s239 + $0x38] sm:$0xff]
      %v331 = vld [vmem:[%s239 + $0x40] sm:$0xff]
      %v332 = vld [vmem:[%s239 + $0x48] sm:$0xff]
      %v333 = vld [vmem:[%s239 + $0x50] sm:$0xff]
      %v334 = vld [vmem:[%s239 + $0x58] sm:$0xff]
      %v335 = vld [vmem:[%s239 + $0x60] sm:$0xff]
      %v336 = vld [vmem:[%s239 + $0x68] sm:$0xff]
      %v337 = vld [vmem:[%s239 + $0x70] sm:$0xff]
      %v338 = vld [vmem:[%s239 + $0x78] sm:$0xff]
      %v339 = vld [vmem:[%s239 + $0x80] sm:$0xff]
      %v340 = vld [vmem:[%s239 + $0x88] sm:$0xff]
      %v341 = vld [vmem:[%s239 + $0x90] sm:$0xff]
      %v342 = vld [vmem:[%s239 + $0x98] sm:$0xff]
      %v343 = vld [vmem:[%s239 + $0xa0] sm:$0xff]
      %v344 = vld [vmem:[%s239 + $0xa8] sm:$0xff]
      %v345 = vld [vmem:[%s239 + $0xb0] sm:$0xff]
      %v346 = vld [vmem:[%s239 + $0xb8] sm:$0xff]
      %v347 = vld [vmem:[%s239 + $0xc0] sm:$0xff]
      %v348 = vld [vmem:[%s239 + $0xc8] sm:$0xff]
      %v349 = vld [vmem:[%s239 + $0xd0] sm:$0xff]
      %v350 = vld [vmem:[%s239 + $0xd8] sm:$0xff]
      %v351 = vld [vmem:[%s239 + $0xe0] sm:$0xff]
      %v352 = vld [vmem:[%s239 + $0xe8] sm:$0xff]
      %v353 = vld [vmem:[%s239 + $0xf0] sm:$0xff]
      %v354 = vld [vmem:[%s239 + $0xf8] sm:$0xff]
      %v355 = vld [vmem:[%s246] sm:$0xf]
      %v356 = vld [vmem:[%s246 + $0x4] sm:$0xf]
      %v357 = vld [vmem:[%s246 + $0x8] sm:$0xf]
      %v358 = vld [vmem:[%s246 + $0xc] sm:$0xf]
      %v359 = vld [vmem:[%s246 + $0x10] sm:$0xf]
      %v360 = vld [vmem:[%s246 + $0x14] sm:$0xf]
      %v361 = vld [vmem:[%s246 + $0x18] sm:$0xf]
      %v362 = vld [vmem:[%s246 + $0x1c] sm:$0xf]
      %v363 = vld [vmem:[%s246 + $0x20] sm:$0xf]
      %v364 = vld [vmem:[%s246 + $0x24] sm:$0xf]
      %v365 = vld [vmem:[%s246 + $0x28] sm:$0xf]
      %v366 = vld [vmem:[%s246 + $0x2c] sm:$0xf]
      %v367 = vld [vmem:[%s246 + $0x30] sm:$0xf]
      %v368 = vld [vmem:[%s246 + $0x34] sm:$0xf]
      %v369 = vld [vmem:[%s246 + $0x38] sm:$0xf]
      %v370 = vld [vmem:[%s246 + $0x3c] sm:$0xf]
      %v371 = vld [vmem:[%s246 + $0x40] sm:$0xf]
      %v372 = vld [vmem:[%s246 + $0x44] sm:$0xf]
      %v373 = vld [vmem:[%s246 + $0x48] sm:$0xf]
      %v374 = vld [vmem:[%s246 + $0x4c] sm:$0xf]
      %v375 = vld [vmem:[%s246 + $0x50] sm:$0xf]
      %v376 = vld [vmem:[%s246 + $0x54] sm:$0xf]
      %v377 = vld [vmem:[%s246 + $0x58] sm:$0xf]
      %v378 = vld [vmem:[%s246 + $0x5c] sm:$0xf]
      %v379 = vld [vmem:[%s246 + $0x60] sm:$0xf]
      %v380 = vld [vmem:[%s246 + $0x64] sm:$0xf]
      %v381 = vld [vmem:[%s246 + $0x68] sm:$0xf]
      %v382 = vld [vmem:[%s246 + $0x6c] sm:$0xf]
      %v383 = vld [vmem:[%s246 + $0x70] sm:$0xf]
      %v384 = vld [vmem:[%s246 + $0x74] sm:$0xf]
      %v385 = vld [vmem:[%s246 + $0x78] sm:$0xf]
      %v386 = vld [vmem:[%s246 + $0x7c] sm:$0xf]
      %v419 = vunpack.c.l.b16 %v323
      %v420 = vunpack.c.h.b16 %v323
      %v421 = vunpack.c.l.b16 %v324
      %v422 = vunpack.c.h.b16 %v324
      %v423 = vunpack.c.l.b16 %v325
      %v424 = vunpack.c.h.b16 %v325
      %v425 = vunpack.c.l.b16 %v326
      %v426 = vunpack.c.h.b16 %v326
      %v427 = vunpack.c.l.b16 %v327
      %v428 = vunpack.c.h.b16 %v327
      %v429 = vunpack.c.l.b16 %v328
      %v430 = vunpack.c.h.b16 %v328
      %v431 = vunpack.c.l.b16 %v329
      %v432 = vunpack.c.h.b16 %v329
      %v433 = vunpack.c.l.b16 %v330
      %v434 = vunpack.c.h.b16 %v330
      %v435 = vunpack.c.l.b16 %v331
      %v436 = vunpack.c.h.b16 %v331
      %v437 = vunpack.c.l.b16 %v332
      %v438 = vunpack.c.h.b16 %v332
      %v439 = vunpack.c.l.b16 %v333
      %v440 = vunpack.c.h.b16 %v333
      %v441 = vunpack.c.l.b16 %v334
      %v442 = vunpack.c.h.b16 %v334
      %v443 = vunpack.c.l.b16 %v335
      %v444 = vunpack.c.h.b16 %v335
      %v445 = vunpack.c.l.b16 %v336
      %v446 = vunpack.c.h.b16 %v336
      %v447 = vunpack.c.l.b16 %v337
      %v448 = vunpack.c.h.b16 %v337
      %v449 = vunpack.c.l.b16 %v338
      %v450 = vunpack.c.h.b16 %v338
      %v451 = vunpack.c.l.b16 %v339
      %v452 = vunpack.c.h.b16 %v339
      %v453 = vunpack.c.l.b16 %v340
      %v454 = vunpack.c.h.b16 %v340
      %v455 = vunpack.c.l.b16 %v341
      %v456 = vunpack.c.h.b16 %v341
      %v457 = vunpack.c.l.b16 %v342
      %v458 = vunpack.c.h.b16 %v342
      %v459 = vunpack.c.l.b16 %v343
      %v460 = vunpack.c.h.b16 %v343
      %v461 = vunpack.c.l.b16 %v344
      %v462 = vunpack.c.h.b16 %v344
      %v463 = vunpack.c.l.b16 %v345
      %v464 = vunpack.c.h.b16 %v345
      %v465 = vunpack.c.l.b16 %v346
      %v466 = vunpack.c.h.b16 %v346
      %v467 = vunpack.c.l.b16 %v347
      %v468 = vunpack.c.h.b16 %v347
      %v469 = vunpack.c.l.b16 %v348
      %v470 = vunpack.c.h.b16 %v348
      %v471 = vunpack.c.l.b16 %v349
      %v472 = vunpack.c.h.b16 %v349
      %v473 = vunpack.c.l.b16 %v350
      %v474 = vunpack.c.h.b16 %v350
      %v475 = vunpack.c.l.b16 %v351
      %v476 = vunpack.c.h.b16 %v351
      %v477 = vunpack.c.l.b16 %v352
      %v478 = vunpack.c.h.b16 %v352
      %v479 = vunpack.c.l.b16 %v353
      %v480 = vunpack.c.h.b16 %v353
      %v481 = vunpack.c.l.b16 %v354
      %v482 = vunpack.c.h.b16 %v354
      %v483 = vpack.c.b16 %v421, %v419
      %v484 = vpack.c.b16 %v422, %v420
      %v485 = vpack.c.b16 %v425, %v423
      %v486 = vpack.c.b16 %v426, %v424
      %v487 = vpack.c.b16 %v429, %v427
      %v488 = vpack.c.b16 %v430, %v428
      %v489 = vpack.c.b16 %v433, %v431
      %v490 = vpack.c.b16 %v434, %v432
      %v491 = vpack.c.b16 %v437, %v435
      %v492 = vpack.c.b16 %v438, %v436
      %v493 = vpack.c.b16 %v441, %v439
      %v494 = vpack.c.b16 %v442, %v440
      %v495 = vpack.c.b16 %v445, %v443
      %v496 = vpack.c.b16 %v446, %v444
      %v497 = vpack.c.b16 %v449, %v447
      %v498 = vpack.c.b16 %v450, %v448
      %v499 = vpack.c.b16 %v453, %v451
      %v500 = vpack.c.b16 %v454, %v452
      %v501 = vpack.c.b16 %v457, %v455
      %v502 = vpack.c.b16 %v458, %v456
      %v503 = vpack.c.b16 %v461, %v459
      %v504 = vpack.c.b16 %v462, %v460
      %v505 = vpack.c.b16 %v465, %v463
      %v506 = vpack.c.b16 %v466, %v464
      %v507 = vpack.c.b16 %v469, %v467
      %v508 = vpack.c.b16 %v470, %v468
      %v509 = vpack.c.b16 %v473, %v471
      %v510 = vpack.c.b16 %v474, %v472
      %v511 = vpack.c.b16 %v477, %v475
      %v512 = vpack.c.b16 %v478, %v476
      %v513 = vpack.c.b16 %v481, %v479
      %v514 = vpack.c.b16 %v482, %v480
      %v579 = vunpack.c.l.b16 %v355
      %v580 = vunpack.c.l.b16 %v356
      %v581 = vunpack.c.l.b16 %v357
      %v582 = vunpack.c.l.b16 %v358
      %v583 = vunpack.c.l.b16 %v359
      %v584 = vunpack.c.l.b16 %v360
      %v585 = vunpack.c.l.b16 %v361
      %v586 = vunpack.c.l.b16 %v362
      %v587 = vunpack.c.l.b16 %v363
      %v588 = vunpack.c.l.b16 %v364
      %v589 = vunpack.c.l.b16 %v365
      %v590 = vunpack.c.l.b16 %v366
      %v591 = vunpack.c.l.b16 %v367
      %v592 = vunpack.c.l.b16 %v368
      %v593 = vunpack.c.l.b16 %v369
      %v594 = vunpack.c.l.b16 %v370
      %v595 = vunpack.c.l.b16 %v371
      %v596 = vunpack.c.l.b16 %v372
      %v597 = vunpack.c.l.b16 %v373
      %v598 = vunpack.c.l.b16 %v374
      %v599 = vunpack.c.l.b16 %v375
      %v600 = vunpack.c.l.b16 %v376
      %v601 = vunpack.c.l.b16 %v377
      %v602 = vunpack.c.l.b16 %v378
      %v603 = vunpack.c.l.b16 %v379
      %v604 = vunpack.c.l.b16 %v380
      %v605 = vunpack.c.l.b16 %v381
      %v606 = vunpack.c.l.b16 %v382
      %v607 = vunpack.c.l.b16 %v383
      %v608 = vunpack.c.l.b16 %v384
      %v609 = vunpack.c.l.b16 %v385
      %v610 = vunpack.c.l.b16 %v386
      %v611 = vpack.c.b16 %v580, %v579
      %v612 = vpack.c.b16 %v582, %v581
      %v613 = vpack.c.b16 %v584, %v583
      %v614 = vpack.c.b16 %v586, %v585
      %v615 = vpack.c.b16 %v588, %v587
      %v616 = vpack.c.b16 %v590, %v589
      %v617 = vpack.c.b16 %v592, %v591
      %v618 = vpack.c.b16 %v594, %v593
      %v619 = vpack.c.b16 %v596, %v595
      %v620 = vpack.c.b16 %v598, %v597
      %v621 = vpack.c.b16 %v600, %v599
      %v622 = vpack.c.b16 %v602, %v601
      %v623 = vpack.c.b16 %v604, %v603
      %v624 = vpack.c.b16 %v606, %v605
      %v625 = vpack.c.b16 %v608, %v607
      %v626 = vpack.c.b16 %v610, %v609
      %643 = vmatprep.subr.bf16.mxu0 0
      %644 = vmatpush1.bf16.msra.mxu0 %v611
      %645 = vmatprep.subr.bf16.mxu0 0
      %646 = vmatpush1.bf16.msra.mxu0 %v612
      %647 = vmatprep.subr.bf16.mxu0 0
      %648 = vmatpush1.bf16.msra.mxu0 %v613
      %649 = vmatprep.subr.bf16.mxu0 0
      %650 = vmatpush1.bf16.msra.mxu0 %v614
      %651 = vmatprep.subr.bf16.mxu0 0
      %652 = vmatpush1.bf16.msra.mxu0 %v615
      %653 = vmatprep.subr.bf16.mxu0 0
      %654 = vmatpush1.bf16.msra.mxu0 %v616
      %655 = vmatprep.subr.bf16.mxu0 0
      %656 = vmatpush1.bf16.msra.mxu0 %v617
      %657 = vmatprep.subr.bf16.mxu0 0
      %658 = vmatpush1.bf16.msra.mxu0 %v618
      %659 = vmatprep.subr.bf16.mxu0 0
      %660 = vmatpush1.bf16.msra.mxu0 %v619
      %661 = vmatprep.subr.bf16.mxu0 0
      %662 = vmatpush1.bf16.msra.mxu0 %v620
      %663 = vmatprep.subr.bf16.mxu0 0
      %664 = vmatpush1.bf16.msra.mxu0 %v621
      %665 = vmatprep.subr.bf16.mxu0 0
      %666 = vmatpush1.bf16.msra.mxu0 %v622
      %667 = vmatprep.subr.bf16.mxu0 0
      %668 = vmatpush1.bf16.msra.mxu0 %v623
      %669 = vmatprep.subr.bf16.mxu0 0
      %670 = vmatpush1.bf16.msra.mxu0 %v624
      %671 = vmatprep.subr.bf16.mxu0 0
      %672 = vmatpush1.bf16.msra.mxu0 %v625
      %673 = vmatprep.subr.bf16.mxu0 0
      %674 = vmatpush1.bf16.msra.mxu0 %v626
      %675 = vmatprep.mubr.bf16.mxu0 %v484
      %676 = vmatmul.mubr.bf16.gmra.mrb[0].mxu0 %v483
      %v677 = vpop.f32.mrb[0].mxu0
      %v678 = vadd.f32 0.0, %v677
      %v679 = vpop.f32.mrb[0].mxu0
      %v680 = vpop.f32.mrb[0].mxu0
      %v681 = vadd.f32 0.0, %v680
      %v682 = vpop.f32.mrb[0].mxu0
      %683 = vmatprep.mubr.bf16.mxu0 %v486
      %684 = vmatmul.mubr.bf16.gmra.mrb[0].mxu0 %v485
      %v685 = vpop.f32.mrb[0].mxu0
      %v686 = vadd.f32 0.0, %v685
      %v687 = vpop.f32.mrb[0].mxu0
      %v688 = vpop.f32.mrb[0].mxu0
      %v689 = vadd.f32 0.0, %v688
      %v690 = vpop.f32.mrb[0].mxu0
      %691 = vmatprep.mubr.bf16.mxu0 %v488
      %692 = vmatmul.mubr.bf16.gmra.mrb[0].mxu0 %v487
      %v693 = vpop.f32.mrb[0].mxu0
      %v694 = vadd.f32 0.0, %v693
      %v695 = vpop.f32.mrb[0].mxu0
      %v696 = vpop.f32.mrb[0].mxu0
      %v697 = vadd.f32 0.0, %v696
      %v698 = vpop.f32.mrb[0].mxu0
      %699 = vmatprep.mubr.bf16.mxu0 %v490
      %700 = vmatmul.mubr.bf16.gmra.mrb[0].mxu0 %v489
      %v701 = vpop.f32.mrb[0].mxu0
      %v702 = vadd.f32 0.0, %v701
      %v703 = vpop.f32.mrb[0].mxu0
      %v704 = vpop.f32.mrb[0].mxu0
      %v705 = vadd.f32 0.0, %v704
      %v706 = vpop.f32.mrb[0].mxu0
      %707 = vmatprep.mubr.bf16.mxu0 %v492
      %708 = vmatmul.mubr.bf16.gmra.mrb[0].mxu0 %v491
      %v709 = vpop.f32.mrb[0].mxu0
      %v710 = vadd.f32 0.0, %v709
      %v711 = vpop.f32.mrb[0].mxu0
      %v712 = vpop.f32.mrb[0].mxu0
      %v713 = vadd.f32 0.0, %v712
      %v714 = vpop.f32.mrb[0].mxu0
      %715 = vmatprep.mubr.bf16.mxu0 %v494
      %716 = vmatmul.mubr.bf16.gmra.mrb[0].mxu0 %v493
      %v717 = vpop.f32.mrb[0].mxu0
      %v718 = vadd.f32 0.0, %v717
      %v719 = vpop.f32.mrb[0].mxu0
      %v720 = vpop.f32.mrb[0].mxu0
      %v721 = vadd.f32 0.0, %v720
      %v722 = vpop.f32.mrb[0].mxu0
      %723 = vmatprep.mubr.bf16.mxu0 %v496
      %724 = vmatmul.mubr.bf16.gmra.mrb[0].mxu0 %v495
      %v725 = vpop.f32.mrb[0].mxu0
      %v726 = vadd.f32 0.0, %v725
      %v727 = vpop.f32.mrb[0].mxu0
      %v728 = vpop.f32.mrb[0].mxu0
      %v729 = vadd.f32 0.0, %v728
      %v730 = vpop.f32.mrb[0].mxu0
      %731 = vmatprep.mubr.bf16.mxu0 %v498
      %732 = vmatmul.mubr.bf16.gmra.mrb[0].mxu0 %v497
      %v733 = vpop.f32.mrb[0].mxu0
      %v734 = vadd.f32 0.0, %v733
      %v735 = vpop.f32.mrb[0].mxu0
      %v736 = vpop.f32.mrb[0].mxu0
      %v737 = vadd.f32 0.0, %v736
      %v738 = vpop.f32.mrb[0].mxu0
      %739 = vmatprep.mubr.bf16.mxu0 %v500
      %740 = vmatmul.mubr.bf16.gmra.mrb[0].mxu0 %v499
      %v741 = vpop.f32.mrb[0].mxu0
      %v742 = vadd.f32 0.0, %v741
      %v743 = vpop.f32.mrb[0].mxu0
      %v744 = vpop.f32.mrb[0].mxu0
      %v745 = vadd.f32 0.0, %v744
      %v746 = vpop.f32.mrb[0].mxu0
      %747 = vmatprep.mubr.bf16.mxu0 %v502
      %748 = vmatmul.mubr.bf16.gmra.mrb[0].mxu0 %v501
      %v749 = vpop.f32.mrb[0].mxu0
      %v750 = vadd.f32 0.0, %v749
      %v751 = vpop.f32.mrb[0].mxu0
      %v752 = vpop.f32.mrb[0].mxu0
      %v753 = vadd.f32 0.0, %v752
      %v754 = vpop.f32.mrb[0].mxu0
      %755 = vmatprep.mubr.bf16.mxu0 %v504
      %756 = vmatmul.mubr.bf16.gmra.mrb[0].mxu0 %v503
      %v757 = vpop.f32.mrb[0].mxu0
      %v758 = vadd.f32 0.0, %v757
      %v759 = vpop.f32.mrb[0].mxu0
      %v760 = vpop.f32.mrb[0].mxu0
      %v761 = vadd.f32 0.0, %v760
      %v762 = vpop.f32.mrb[0].mxu0
      %763 = vmatprep.mubr.bf16.mxu0 %v506
      %764 = vmatmul.mubr.bf16.gmra.mrb[0].mxu0 %v505
      %v765 = vpop.f32.mrb[0].mxu0
      %v766 = vadd.f32 0.0, %v765
      %v767 = vpop.f32.mrb[0].mxu0
      %v768 = vpop.f32.mrb[0].mxu0
      %v769 = vadd.f32 0.0, %v768
      %v770 = vpop.f32.mrb[0].mxu0
      %771 = vmatprep.mubr.bf16.mxu0 %v508
      %772 = vmatmul.mubr.bf16.gmra.mrb[0].mxu0 %v507
      %v773 = vpop.f32.mrb[0].mxu0
      %v774 = vadd.f32 0.0, %v773
      %v775 = vpop.f32.mrb[0].mxu0
      %v776 = vpop.f32.mrb[0].mxu0
      %v777 = vadd.f32 0.0, %v776
      %v778 = vpop.f32.mrb[0].mxu0
      %779 = vmatprep.mubr.bf16.mxu0 %v510
      %780 = vmatmul.mubr.bf16.gmra.mrb[0].mxu0 %v509
      %v781 = vpop.f32.mrb[0].mxu0
      %v782 = vadd.f32 0.0, %v781
      %v783 = vpop.f32.mrb[0].mxu0
      %v784 = vpop.f32.mrb[0].mxu0
      %v785 = vadd.f32 0.0, %v784
      %v786 = vpop.f32.mrb[0].mxu0
      %787 = vmatprep.mubr.bf16.mxu0 %v512
      %788 = vmatmul.mubr.bf16.gmra.mrb[0].mxu0 %v511
      %v789 = vpop.f32.mrb[0].mxu0
      %v790 = vadd.f32 0.0, %v789
      %v791 = vpop.f32.mrb[0].mxu0
      %v792 = vpop.f32.mrb[0].mxu0
      %v793 = vadd.f32 0.0, %v792
      %v794 = vpop.f32.mrb[0].mxu0
      %795 = vmatprep.mubr.bf16.mxu0 %v514
      %796 = vmatmul.mubr.bf16.gmra.mrb[0].mxu0 %v513
      %v797 = vpop.f32.mrb[0].mxu0
      %v798 = vadd.f32 0.0, %v797
      %v799 = vpop.f32.mrb[0].mxu0
      %v800 = vpop.f32.mrb[0].mxu0
      %v801 = vadd.f32 0.0, %v800
      %v802 = vpop.f32.mrb[0].mxu0
      %803 = vdwg.mxu0
      %v804 = vadd.f32 %v291, %v678
      %v805 = vadd.f32 %v292, %v681
      %v806 = vadd.f32 %v293, %v686
      %v807 = vadd.f32 %v294, %v689
      %v808 = vadd.f32 %v295, %v694
      %v809 = vadd.f32 %v296, %v697
      %v810 = vadd.f32 %v297, %v702
      %v811 = vadd.f32 %v298, %v705
      %v812 = vadd.f32 %v299, %v710
      %v813 = vadd.f32 %v300, %v713
      %v814 = vadd.f32 %v301, %v718
      %v815 = vadd.f32 %v302, %v721
      %v816 = vadd.f32 %v303, %v726
      %v817 = vadd.f32 %v304, %v729
      %v818 = vadd.f32 %v305, %v734
      %v819 = vadd.f32 %v306, %v737
      %v820 = vadd.f32 %v307, %v742
      %v821 = vadd.f32 %v308, %v745
      %v822 = vadd.f32 %v309, %v750
      %v823 = vadd.f32 %v310, %v753
      %v824 = vadd.f32 %v311, %v758
      %v825 = vadd.f32 %v312, %v761
      %v826 = vadd.f32 %v313, %v766
      %v827 = vadd.f32 %v314, %v769
      %v828 = vadd.f32 %v315, %v774
      %v829 = vadd.f32 %v316, %v777
      %v830 = vadd.f32 %v317, %v782
      %v831 = vadd.f32 %v318, %v785
      %v832 = vadd.f32 %v319, %v790
      %v833 = vadd.f32 %v320, %v793
      %v834 = vadd.f32 %v321, %v798
      %v835 = vadd.f32 %v322, %v801
      %836 = vst [vmem:[#allocation2] sm:$0xff] %v804
      %837 = vst [vmem:[#allocation2 + $0x8] sm:$0xff] %v805
      %838 = vst [vmem:[#allocation2 + $0x10] sm:$0xff] %v806
      %839 = vst [vmem:[#allocation2 + $0x18] sm:$0xff] %v807
      %840 = vst [vmem:[#allocation2 + $0x20] sm:$0xff] %v808
      %841 = vst [vmem:[#allocation2 + $0x28] sm:$0xff] %v809
      %842 = vst [vmem:[#allocation2 + $0x30] sm:$0xff] %v810
      %843 = vst [vmem:[#allocation2 + $0x38] sm:$0xff] %v811
      %844 = vst [vmem:[#allocation2 + $0x40] sm:$0xff] %v812
      %845 = vst [vmem:[#allocation2 + $0x48] sm:$0xff] %v813
      %846 = vst [vmem:[#allocation2 + $0x50] sm:$0xff] %v814
      %847 = vst [vmem:[#allocation2 + $0x58] sm:$0xff] %v815
      %848 = vst [vmem:[#allocation2 + $0x60] sm:$0xff] %v816
      %849 = vst [vmem:[#allocation2 + $0x68] sm:$0xff] %v817
      %850 = vst [vmem:[#allocation2 + $0x70] sm:$0xff] %v818
      %851 = vst [vmem:[#allocation2 + $0x78] sm:$0xff] %v819
      %852 = vst [vmem:[#allocation2 + $0x80] sm:$0xff] %v820
      %853 = vst [vmem:[#allocation2 + $0x88] sm:$0xff] %v821
      %854 = vst [vmem:[#allocation2 + $0x90] sm:$0xff] %v822
      %855 = vst [vmem:[#allocation2 + $0x98] sm:$0xff] %v823
      %856 = vst [vmem:[#allocation2 + $0xa0] sm:$0xff] %v824
      %857 = vst [vmem:[#allocation2 + $0xa8] sm:$0xff] %v825
      %858 = vst [vmem:[#allocation2 + $0xb0] sm:$0xff] %v826
      %859 = vst [vmem:[#allocation2 + $0xb8] sm:$0xff] %v827
      %860 = vst [vmem:[#allocation2 + $0xc0] sm:$0xff] %v828
      %861 = vst [vmem:[#allocation2 + $0xc8] sm:$0xff] %v829
      %862 = vst [vmem:[#allocation2 + $0xd0] sm:$0xff] %v830
      %863 = vst [vmem:[#allocation2 + $0xd8] sm:$0xff] %v831
      %864 = vst [vmem:[#allocation2 + $0xe0] sm:$0xff] %v832
      %865 = vst [vmem:[#allocation2 + $0xe8] sm:$0xff] %v833
      %866 = vst [vmem:[#allocation2 + $0xf0] sm:$0xff] %v834
      %867 = vst [vmem:[#allocation2 + $0xf8] sm:$0xff] %v835
      // Predicated region
      $region41: #{dgcn_layer_forward.8} parent=35 // pred_check
        %p868 = pneg %p255
      $region42: #{dgcn_layer_forward.8} parent=35 // pred_check_branch
        %870 = sbr.rel (%p868) target = $region44
      $region43: #{dgcn_layer_forward.8} parent=35 // pred_region
        %v871 = vld [vmem:[#allocation2] sm:$0xff]
        %v872 = vld [vmem:[#allocation2 + $0x8] sm:$0xff]
        %v873 = vld [vmem:[#allocation2 + $0x10] sm:$0xff]
        %v874 = vld [vmem:[#allocation2 + $0x18] sm:$0xff]
        %v875 = vld [vmem:[#allocation2 + $0x20] sm:$0xff]
        %v876 = vld [vmem:[#allocation2 + $0x28] sm:$0xff]
        %v877 = vld [vmem:[#allocation2 + $0x30] sm:$0xff]
        %v878 = vld [vmem:[#allocation2 + $0x38] sm:$0xff]
        %v879 = vld [vmem:[#allocation2 + $0x40] sm:$0xff]
        %v880 = vld [vmem:[#allocation2 + $0x48] sm:$0xff]
        %v881 = vld [vmem:[#allocation2 + $0x50] sm:$0xff]
        %v882 = vld [vmem:[#allocation2 + $0x58] sm:$0xff]
        %v883 = vld [vmem:[#allocation2 + $0x60] sm:$0xff]
        %v884 = vld [vmem:[#allocation2 + $0x68] sm:$0xff]
        %v885 = vld [vmem:[#allocation2 + $0x70] sm:$0xff]
        %v886 = vld [vmem:[#allocation2 + $0x78] sm:$0xff]
        %v887 = vld [vmem:[#allocation2 + $0x80] sm:$0xff]
        %v888 = vld [vmem:[#allocation2 + $0x88] sm:$0xff]
        %v889 = vld [vmem:[#allocation2 + $0x90] sm:$0xff]
        %v890 = vld [vmem:[#allocation2 + $0x98] sm:$0xff]
        %v891 = vld [vmem:[#allocation2 + $0xa0] sm:$0xff]
        %v892 = vld [vmem:[#allocation2 + $0xa8] sm:$0xff]
        %v893 = vld [vmem:[#allocation2 + $0xb0] sm:$0xff]
        %v894 = vld [vmem:[#allocation2 + $0xb8] sm:$0xff]
        %v895 = vld [vmem:[#allocation2 + $0xc0] sm:$0xff]
        %v896 = vld [vmem:[#allocation2 + $0xc8] sm:$0xff]
        %v897 = vld [vmem:[#allocation2 + $0xd0] sm:$0xff]
        %v898 = vld [vmem:[#allocation2 + $0xd8] sm:$0xff]
        %v899 = vld [vmem:[#allocation2 + $0xe0] sm:$0xff]
        %v900 = vld [vmem:[#allocation2 + $0xe8] sm:$0xff]
        %v901 = vld [vmem:[#allocation2 + $0xf0] sm:$0xff]
        %v902 = vld [vmem:[#allocation2 + $0xf8] sm:$0xff]
        %v903 = vld [vmem:[%s2] sm:$0x1]
        %v905 = vlaneseq
        %v906 = vshrl.u32 %v905, 7
        %v907 = vsub.s32 0, %v906
        %v908 = vrot.slane %v903, %v907
        %v910 = vadd.f32 %v871, %v908
        %v911 = vadd.f32 %v872, %v908
        %v912 = vadd.f32 %v873, %v908
        %v913 = vadd.f32 %v874, %v908
        %v914 = vadd.f32 %v875, %v908
        %v915 = vadd.f32 %v876, %v908
        %v916 = vadd.f32 %v877, %v908
        %v917 = vadd.f32 %v878, %v908
        %v918 = vadd.f32 %v879, %v908
        %v919 = vadd.f32 %v880, %v908
        %v920 = vadd.f32 %v881, %v908
        %v921 = vadd.f32 %v882, %v908
        %v922 = vadd.f32 %v883, %v908
        %v923 = vadd.f32 %v884, %v908
        %v924 = vadd.f32 %v885, %v908
        %v925 = vadd.f32 %v886, %v908
        %v926 = vadd.f32 %v887, %v908
        %v927 = vadd.f32 %v888, %v908
        %v928 = vadd.f32 %v889, %v908
        %v929 = vadd.f32 %v890, %v908
        %v930 = vadd.f32 %v891, %v908
        %v931 = vadd.f32 %v892, %v908
        %v932 = vadd.f32 %v893, %v908
        %v933 = vadd.f32 %v894, %v908
        %v934 = vadd.f32 %v895, %v908
        %v935 = vadd.f32 %v896, %v908
        %v936 = vadd.f32 %v897, %v908
        %v937 = vadd.f32 %v898, %v908
        %v938 = vadd.f32 %v899, %v908
        %v939 = vadd.f32 %v900, %v908
        %v940 = vadd.f32 %v901, %v908
        %v941 = vadd.f32 %v902, %v908
        %vm942 = vcmp.gt.f32.partialorder %v910, 0.0
        %vm943 = vcmp.gt.f32.partialorder %v911, 0.0
        %vm944 = vcmp.gt.f32.partialorder %v912, 0.0
        %vm945 = vcmp.gt.f32.partialorder %v913, 0.0
        %vm946 = vcmp.gt.f32.partialorder %v914, 0.0
        %vm947 = vcmp.gt.f32.partialorder %v915, 0.0
        %vm948 = vcmp.gt.f32.partialorder %v916, 0.0
        %vm949 = vcmp.gt.f32.partialorder %v917, 0.0
        %vm950 = vcmp.gt.f32.partialorder %v918, 0.0
        %vm951 = vcmp.gt.f32.partialorder %v919, 0.0
        %vm952 = vcmp.gt.f32.partialorder %v920, 0.0
        %vm953 = vcmp.gt.f32.partialorder %v921, 0.0
        %vm954 = vcmp.gt.f32.partialorder %v922, 0.0
        %vm955 = vcmp.gt.f32.partialorder %v923, 0.0
        %vm956 = vcmp.gt.f32.partialorder %v924, 0.0
        %vm957 = vcmp.gt.f32.partialorder %v925, 0.0
        %vm958 = vcmp.gt.f32.partialorder %v926, 0.0
        %vm959 = vcmp.gt.f32.partialorder %v927, 0.0
        %vm960 = vcmp.gt.f32.partialorder %v928, 0.0
        %vm961 = vcmp.gt.f32.partialorder %v929, 0.0
        %vm962 = vcmp.gt.f32.partialorder %v930, 0.0
        %vm963 = vcmp.gt.f32.partialorder %v931, 0.0
        %vm964 = vcmp.gt.f32.partialorder %v932, 0.0
        %vm965 = vcmp.gt.f32.partialorder %v933, 0.0
        %vm966 = vcmp.gt.f32.partialorder %v934, 0.0
        %vm967 = vcmp.gt.f32.partialorder %v935, 0.0
        %vm968 = vcmp.gt.f32.partialorder %v936, 0.0
        %vm969 = vcmp.gt.f32.partialorder %v937, 0.0
        %vm970 = vcmp.gt.f32.partialorder %v938, 0.0
        %vm971 = vcmp.gt.f32.partialorder %v939, 0.0
        %vm972 = vcmp.gt.f32.partialorder %v940, 0.0
        %vm973 = vcmp.gt.f32.partialorder %v941, 0.0
        %v974 = vmul.f32 %v910, 0.1
        %v975 = vmul.f32 %v911, 0.1
        %v976 = vmul.f32 %v912, 0.1
        %v977 = vmul.f32 %v913, 0.1
        %v978 = vmul.f32 %v914, 0.1
        %v979 = vmul.f32 %v915, 0.1
        %v980 = vmul.f32 %v916, 0.1
        %v981 = vmul.f32 %v917, 0.1
        %v982 = vmul.f32 %v918, 0.1
        %v983 = vmul.f32 %v919, 0.1
        %v984 = vmul.f32 %v920, 0.1
        %v985 = vmul.f32 %v921, 0.1
        %v986 = vmul.f32 %v922, 0.1
        %v987 = vmul.f32 %v923, 0.1
        %v988 = vmul.f32 %v924, 0.1
        %v989 = vmul.f32 %v925, 0.1
        %v990 = vmul.f32 %v926, 0.1
        %v991 = vmul.f32 %v927, 0.1
        %v992 = vmul.f32 %v928, 0.1
        %v993 = vmul.f32 %v929, 0.1
        %v994 = vmul.f32 %v930, 0.1
        %v995 = vmul.f32 %v931, 0.1
        %v996 = vmul.f32 %v932, 0.1
        %v997 = vmul.f32 %v933, 0.1
        %v998 = vmul.f32 %v934, 0.1
        %v999 = vmul.f32 %v935, 0.1
        %v1000 = vmul.f32 %v936, 0.1
        %v1001 = vmul.f32 %v937, 0.1
        %v1002 = vmul.f32 %v938, 0.1
        %v1003 = vmul.f32 %v939, 0.1
        %v1004 = vmul.f32 %v940, 0.1
        %v1005 = vmul.f32 %v941, 0.1
        %v1006 = vsel %vm942, %v910, %v974
        %v1007 = vsel %vm943, %v911, %v975
        %v1008 = vsel %vm944, %v912, %v976
        %v1009 = vsel %vm945, %v913, %v977
        %v1010 = vsel %vm946, %v914, %v978
        %v1011 = vsel %vm947, %v915, %v979
        %v1012 = vsel %vm948, %v916, %v980
        %v1013 = vsel %vm949, %v917, %v981
        %v1014 = vsel %vm950, %v918, %v982
        %v1015 = vsel %vm951, %v919, %v983
        %v1016 = vsel %vm952, %v920, %v984
        %v1017 = vsel %vm953, %v921, %v985
        %v1018 = vsel %vm954, %v922, %v986
        %v1019 = vsel %vm955, %v923, %v987
        %v1020 = vsel %vm956, %v924, %v988
        %v1021 = vsel %vm957, %v925, %v989
        %v1022 = vsel %vm958, %v926, %v990
        %v1023 = vsel %vm959, %v927, %v991
        %v1024 = vsel %vm960, %v928, %v992
        %v1025 = vsel %vm961, %v929, %v993
        %v1026 = vsel %vm962, %v930, %v994
        %v1027 = vsel %vm963, %v931, %v995
        %v1028 = vsel %vm964, %v932, %v996
        %v1029 = vsel %vm965, %v933, %v997
        %v1030 = vsel %vm966, %v934, %v998
        %v1031 = vsel %vm967, %v935, %v999
        %v1032 = vsel %vm968, %v936, %v1000
        %v1033 = vsel %vm969, %v937, %v1001
        %v1034 = vsel %vm970, %v938, %v1002
        %v1035 = vsel %vm971, %v939, %v1003
        %v1036 = vsel %vm972, %v940, %v1004
        %v1037 = vsel %vm973, %v941, %v1005
        %v1038 = vpack.c.bf16 %v1007, %v1006
        %v1039 = vpack.c.bf16 %v1009, %v1008
        %v1040 = vpack.c.bf16 %v1011, %v1010
        %v1041 = vpack.c.bf16 %v1013, %v1012
        %v1042 = vpack.c.bf16 %v1015, %v1014
        %v1043 = vpack.c.bf16 %v1017, %v1016
        %v1044 = vpack.c.bf16 %v1019, %v1018
        %v1045 = vpack.c.bf16 %v1021, %v1020
        %v1046 = vpack.c.bf16 %v1023, %v1022
        %v1047 = vpack.c.bf16 %v1025, %v1024
        %v1048 = vpack.c.bf16 %v1027, %v1026
        %v1049 = vpack.c.bf16 %v1029, %v1028
        %v1050 = vpack.c.bf16 %v1031, %v1030
        %v1051 = vpack.c.bf16 %v1033, %v1032
        %v1052 = vpack.c.bf16 %v1035, %v1034
        %v1053 = vpack.c.bf16 %v1037, %v1036
        %v1054 = vld [vmem:[%s3] sm:$0xf]
        %v1055 = vld [vmem:[%s3 + $0x4] sm:$0xf]
        %v1056 = vld [vmem:[%s3 + $0x8] sm:$0xf]
        %v1057 = vld [vmem:[%s3 + $0xc] sm:$0xf]
        %v1058 = vld [vmem:[%s3 + $0x10] sm:$0xf]
        %v1059 = vld [vmem:[%s3 + $0x14] sm:$0xf]
        %v1060 = vld [vmem:[%s3 + $0x18] sm:$0xf]
        %v1061 = vld [vmem:[%s3 + $0x1c] sm:$0xf]
        %v1062 = vld [vmem:[%s3 + $0x20] sm:$0xf]
        %v1063 = vld [vmem:[%s3 + $0x24] sm:$0xf]
        %v1064 = vld [vmem:[%s3 + $0x28] sm:$0xf]
        %v1065 = vld [vmem:[%s3 + $0x2c] sm:$0xf]
        %v1066 = vld [vmem:[%s3 + $0x30] sm:$0xf]
        %v1067 = vld [vmem:[%s3 + $0x34] sm:$0xf]
        %v1068 = vld [vmem:[%s3 + $0x38] sm:$0xf]
        %v1069 = vld [vmem:[%s3 + $0x3c] sm:$0xf]
        %v1086 = vunpack.c.l.b16 %v1054
        %v1087 = vunpack.c.l.b16 %v1055
        %v1088 = vunpack.c.l.b16 %v1056
        %v1089 = vunpack.c.l.b16 %v1057
        %v1090 = vunpack.c.l.b16 %v1058
        %v1091 = vunpack.c.l.b16 %v1059
        %v1092 = vunpack.c.l.b16 %v1060
        %v1093 = vunpack.c.l.b16 %v1061
        %v1094 = vunpack.c.l.b16 %v1062
        %v1095 = vunpack.c.l.b16 %v1063
        %v1096 = vunpack.c.l.b16 %v1064
        %v1097 = vunpack.c.l.b16 %v1065
        %v1098 = vunpack.c.l.b16 %v1066
        %v1099 = vunpack.c.l.b16 %v1067
        %v1100 = vunpack.c.l.b16 %v1068
        %v1101 = vunpack.c.l.b16 %v1069
        %v1102 = vpack.c.b16 %v1087, %v1086
        %v1103 = vpack.c.b16 %v1089, %v1088
        %v1104 = vpack.c.b16 %v1091, %v1090
        %v1105 = vpack.c.b16 %v1093, %v1092
        %v1106 = vpack.c.b16 %v1095, %v1094
        %v1107 = vpack.c.b16 %v1097, %v1096
        %v1108 = vpack.c.b16 %v1099, %v1098
        %v1109 = vpack.c.b16 %v1101, %v1100
        %1118 = vmatprep.subr.bf16.mxu0 0
        %1119 = vmatpush1.bf16.msra.mxu0 %v1102
        %1120 = vmatprep.subr.bf16.mxu0 0
        %1121 = vmatpush1.bf16.msra.mxu0 %v1103
        %1122 = vmatprep.subr.bf16.mxu0 0
        %1123 = vmatpush1.bf16.msra.mxu0 %v1104
        %1124 = vmatprep.subr.bf16.mxu0 0
        %1125 = vmatpush1.bf16.msra.mxu0 %v1105
        %1126 = vmatprep.subr.bf16.mxu0 0
        %1127 = vmatpush1.bf16.msra.mxu0 %v1106
        %1128 = vmatprep.subr.bf16.mxu0 0
        %1129 = vmatpush1.bf16.msra.mxu0 %v1107
        %1130 = vmatprep.subr.bf16.mxu0 0
        %1131 = vmatpush1.bf16.msra.mxu0 %v1108
        %1132 = vmatprep.subr.bf16.mxu0 0
        %1133 = vmatpush1.bf16.msra.mxu0 %v1109
        %1134 = vmatprep.subr.bf16.mxu0 0
        %1135 = vmatpush1.bf16.msra.mxu0 0
        %1136 = vmatprep.subr.bf16.mxu0 0
        %1137 = vmatpush1.bf16.msra.mxu0 0
        %1138 = vmatprep.subr.bf16.mxu0 0
        %1139 = vmatpush1.bf16.msra.mxu0 0
        %1140 = vmatprep.subr.bf16.mxu0 0
        %1141 = vmatpush1.bf16.msra.mxu0 0
        %1142 = vmatprep.subr.bf16.mxu0 0
        %1143 = vmatpush1.bf16.msra.mxu0 0
        %1144 = vmatprep.subr.bf16.mxu0 0
        %1145 = vmatpush1.bf16.msra.mxu0 0
        %1146 = vmatprep.subr.bf16.mxu0 0
        %1147 = vmatpush1.bf16.msra.mxu0 0
        %1148 = vmatprep.subr.bf16.mxu0 0
        %1149 = vmatpush1.bf16.msra.mxu0 0
        %1150 = vmatprep.mubr.bf16.mxu0 0
        %1151 = vmatmul.mubr.bf16.gmra.mrb[0].mxu0 %v1038
        %v1152 = vpop.f32.mrb[0].mxu0
        %v1153 = vadd.f32 0.0, %v1152
        %v1154 = vpop.f32.mrb[0].mxu0
        %v1155 = vpop.f32.mrb[0].mxu0
        %v1156 = vadd.f32 0.0, %v1155
        %v1157 = vpop.f32.mrb[0].mxu0
        %1158 = vmatprep.mubr.bf16.mxu0 0
        %1159 = vmatmul.mubr.bf16.gmra.mrb[0].mxu0 %v1039
        %v1160 = vpop.f32.mrb[0].mxu0
        %v1161 = vadd.f32 0.0, %v1160
        %v1162 = vpop.f32.mrb[0].mxu0
        %v1163 = vpop.f32.mrb[0].mxu0
        %v1164 = vadd.f32 0.0, %v1163
        %v1165 = vpop.f32.mrb[0].mxu0
        %1166 = vmatprep.mubr.bf16.mxu0 0
        %1167 = vmatmul.mubr.bf16.gmra.mrb[0].mxu0 %v1040
        %v1168 = vpop.f32.mrb[0].mxu0
        %v1169 = vadd.f32 0.0, %v1168
        %v1170 = vpop.f32.mrb[0].mxu0
        %v1171 = vpop.f32.mrb[0].mxu0
        %v1172 = vadd.f32 0.0, %v1171
        %v1173 = vpop.f32.mrb[0].mxu0
        %1174 = vmatprep.mubr.bf16.mxu0 0
        %1175 = vmatmul.mubr.bf16.gmra.mrb[0].mxu0 %v1041
        %v1176 = vpop.f32.mrb[0].mxu0
        %v1177 = vadd.f32 0.0, %v1176
        %v1178 = vpop.f32.mrb[0].mxu0
        %v1179 = vpop.f32.mrb[0].mxu0
        %v1180 = vadd.f32 0.0, %v1179
        %v1181 = vpop.f32.mrb[0].mxu0
        %1182 = vmatprep.mubr.bf16.mxu0 0
        %1183 = vmatmul.mubr.bf16.gmra.mrb[0].mxu0 %v1042
        %v1184 = vpop.f32.mrb[0].mxu0
        %v1185 = vadd.f32 0.0, %v1184
        %v1186 = vpop.f32.mrb[0].mxu0
        %v1187 = vpop.f32.mrb[0].mxu0
        %v1188 = vadd.f32 0.0, %v1187
        %v1189 = vpop.f32.mrb[0].mxu0
        %1190 = vmatprep.mubr.bf16.mxu0 0
        %1191 = vmatmul.mubr.bf16.gmra.mrb[0].mxu0 %v1043
        %v1192 = vpop.f32.mrb[0].mxu0
        %v1193 = vadd.f32 0.0, %v1192
        %v1194 = vpop.f32.mrb[0].mxu0
        %v1195 = vpop.f32.mrb[0].mxu0
        %v1196 = vadd.f32 0.0, %v1195
        %v1197 = vpop.f32.mrb[0].mxu0
        %1198 = vmatprep.mubr.bf16.mxu0 0
        %1199 = vmatmul.mubr.bf16.gmra.mrb[0].mxu0 %v1044
        %v1200 = vpop.f32.mrb[0].mxu0
        %v1201 = vadd.f32 0.0, %v1200
        %v1202 = vpop.f32.mrb[0].mxu0
        %v1203 = vpop.f32.mrb[0].mxu0
        %v1204 = vadd.f32 0.0, %v1203
        %v1205 = vpop.f32.mrb[0].mxu0
        %1206 = vmatprep.mubr.bf16.mxu0 0
        %1207 = vmatmul.mubr.bf16.gmra.mrb[0].mxu0 %v1045
        %v1208 = vpop.f32.mrb[0].mxu0
        %v1209 = vadd.f32 0.0, %v1208
        %v1210 = vpop.f32.mrb[0].mxu0
        %v1211 = vpop.f32.mrb[0].mxu0
        %v1212 = vadd.f32 0.0, %v1211
        %v1213 = vpop.f32.mrb[0].mxu0
        %1214 = vmatprep.mubr.bf16.mxu0 0
        %1215 = vmatmul.mubr.bf16.gmra.mrb[0].mxu0 %v1046
        %v1216 = vpop.f32.mrb[0].mxu0
        %v1217 = vadd.f32 0.0, %v1216
        %v1218 = vpop.f32.mrb[0].mxu0
        %v1219 = vpop.f32.mrb[0].mxu0
        %v1220 = vadd.f32 0.0, %v1219
        %v1221 = vpop.f32.mrb[0].mxu0
        %1222 = vmatprep.mubr.bf16.mxu0 0
        %1223 = vmatmul.mubr.bf16.gmra.mrb[0].mxu0 %v1047
        %v1224 = vpop.f32.mrb[0].mxu0
        %v1225 = vadd.f32 0.0, %v1224
        %v1226 = vpop.f32.mrb[0].mxu0
        %v1227 = vpop.f32.mrb[0].mxu0
        %v1228 = vadd.f32 0.0, %v1227
        %v1229 = vpop.f32.mrb[0].mxu0
        %1230 = vmatprep.mubr.bf16.mxu0 0
        %1231 = vmatmul.mubr.bf16.gmra.mrb[0].mxu0 %v1048
        %v1232 = vpop.f32.mrb[0].mxu0
        %v1233 = vadd.f32 0.0, %v1232
        %v1234 = vpop.f32.mrb[0].mxu0
        %v1235 = vpop.f32.mrb[0].mxu0
        %v1236 = vadd.f32 0.0, %v1235
        %v1237 = vpop.f32.mrb[0].mxu0
        %1238 = vmatprep.mubr.bf16.mxu0 0
        %1239 = vmatmul.mubr.bf16.gmra.mrb[0].mxu0 %v1049
        %v1240 = vpop.f32.mrb[0].mxu0
        %v1241 = vadd.f32 0.0, %v1240
        %v1242 = vpop.f32.mrb[0].mxu0
        %v1243 = vpop.f32.mrb[0].mxu0
        %v1244 = vadd.f32 0.0, %v1243
        %v1245 = vpop.f32.mrb[0].mxu0
        %1246 = vmatprep.mubr.bf16.mxu0 0
        %1247 = vmatmul.mubr.bf16.gmra.mrb[0].mxu0 %v1050
        %v1248 = vpop.f32.mrb[0].mxu0
        %v1249 = vadd.f32 0.0, %v1248
        %v1250 = vpop.f32.mrb[0].mxu0
        %v1251 = vpop.f32.mrb[0].mxu0
        %v1252 = vadd.f32 0.0, %v1251
        %v1253 = vpop.f32.mrb[0].mxu0
        %1254 = vmatprep.mubr.bf16.mxu0 0
        %1255 = vmatmul.mubr.bf16.gmra.mrb[0].mxu0 %v1051
        %v1256 = vpop.f32.mrb[0].mxu0
        %v1257 = vadd.f32 0.0, %v1256
        %v1258 = vpop.f32.mrb[0].mxu0
        %v1259 = vpop.f32.mrb[0].mxu0
        %v1260 = vadd.f32 0.0, %v1259
        %v1261 = vpop.f32.mrb[0].mxu0
        %1262 = vmatprep.mubr.bf16.mxu0 0
        %1263 = vmatmul.mubr.bf16.gmra.mrb[0].mxu0 %v1052
        %v1264 = vpop.f32.mrb[0].mxu0
        %v1265 = vadd.f32 0.0, %v1264
        %v1266 = vpop.f32.mrb[0].mxu0
        %v1267 = vpop.f32.mrb[0].mxu0
        %v1268 = vadd.f32 0.0, %v1267
        %v1269 = vpop.f32.mrb[0].mxu0
        %1270 = vmatprep.mubr.bf16.mxu0 0
        %1271 = vmatmul.mubr.bf16.gmra.mrb[0].mxu0 %v1053
        %v1272 = vpop.f32.mrb[0].mxu0
        %v1273 = vadd.f32 0.0, %v1272
        %v1274 = vpop.f32.mrb[0].mxu0
        %v1275 = vpop.f32.mrb[0].mxu0
        %v1276 = vadd.f32 0.0, %v1275
        %v1277 = vpop.f32.mrb[0].mxu0
        %1278 = vdwg.mxu0
        %v1279 = vpack.c.bf16 %v1156, %v1153
        %v1280 = vpack.c.bf16 %v1164, %v1161
        %v1281 = vpack.c.bf16 %v1172, %v1169
        %v1282 = vpack.c.bf16 %v1180, %v1177
        %v1283 = vpack.c.bf16 %v1188, %v1185
        %v1284 = vpack.c.bf16 %v1196, %v1193
        %v1285 = vpack.c.bf16 %v1204, %v1201
        %v1286 = vpack.c.bf16 %v1212, %v1209
        %v1287 = vpack.c.bf16 %v1220, %v1217
        %v1288 = vpack.c.bf16 %v1228, %v1225
        %v1289 = vpack.c.bf16 %v1236, %v1233
        %v1290 = vpack.c.bf16 %v1244, %v1241
        %v1291 = vpack.c.bf16 %v1252, %v1249
        %v1292 = vpack.c.bf16 %v1260, %v1257
        %v1293 = vpack.c.bf16 %v1268, %v1265
        %v1294 = vpack.c.bf16 %v1276, %v1273
        %v1311 = vunpack.c.l.b16 %v1279
        %v1312 = vunpack.c.h.b16 %v1279
        %v1313 = vunpack.c.l.b16 %v1280
        %v1314 = vunpack.c.h.b16 %v1280
        %v1315 = vunpack.c.l.b16 %v1281
        %v1316 = vunpack.c.h.b16 %v1281
        %v1317 = vunpack.c.l.b16 %v1282
        %v1318 = vunpack.c.h.b16 %v1282
        %v1319 = vunpack.c.l.b16 %v1283
        %v1320 = vunpack.c.h.b16 %v1283
        %v1321 = vunpack.c.l.b16 %v1284
        %v1322 = vunpack.c.h.b16 %v1284
        %v1323 = vunpack.c.l.b16 %v1285
        %v1324 = vunpack.c.h.b16 %v1285
        %v1325 = vunpack.c.l.b16 %v1286
        %v1326 = vunpack.c.h.b16 %v1286
        %v1327 = vunpack.c.l.b16 %v1287
        %v1328 = vunpack.c.h.b16 %v1287
        %v1329 = vunpack.c.l.b16 %v1288
        %v1330 = vunpack.c.h.b16 %v1288
        %v1331 = vunpack.c.l.b16 %v1289
        %v1332 = vunpack.c.h.b16 %v1289
        %v1333 = vunpack.c.l.b16 %v1290
        %v1334 = vunpack.c.h.b16 %v1290
        %v1335 = vunpack.c.l.b16 %v1291
        %v1336 = vunpack.c.h.b16 %v1291
        %v1337 = vunpack.c.l.b16 %v1292
        %v1338 = vunpack.c.h.b16 %v1292
        %v1339 = vunpack.c.l.b16 %v1293
        %v1340 = vunpack.c.h.b16 %v1293
        %v1341 = vunpack.c.l.b16 %v1294
        %v1342 = vunpack.c.h.b16 %v1294
        %v1343 = vpack.c.b16 %v1311, %v1311
        %v1344 = vpack.c.b16 %v1312, %v1312
        %v1345 = vpack.c.b16 %v1313, %v1313
        %v1346 = vpack.c.b16 %v1314, %v1314
        %v1347 = vpack.c.b16 %v1315, %v1315
        %v1348 = vpack.c.b16 %v1316, %v1316
        %v1349 = vpack.c.b16 %v1317, %v1317
        %v1350 = vpack.c.b16 %v1318, %v1318
        %v1351 = vpack.c.b16 %v1319, %v1319
        %v1352 = vpack.c.b16 %v1320, %v1320
        %v1353 = vpack.c.b16 %v1321, %v1321
        %v1354 = vpack.c.b16 %v1322, %v1322
        %v1355 = vpack.c.b16 %v1323, %v1323
        %v1356 = vpack.c.b16 %v1324, %v1324
        %v1357 = vpack.c.b16 %v1325, %v1325
        %v1358 = vpack.c.b16 %v1326, %v1326
        %v1359 = vpack.c.b16 %v1327, %v1327
        %v1360 = vpack.c.b16 %v1328, %v1328
        %v1361 = vpack.c.b16 %v1329, %v1329
        %v1362 = vpack.c.b16 %v1330, %v1330
        %v1363 = vpack.c.b16 %v1331, %v1331
        %v1364 = vpack.c.b16 %v1332, %v1332
        %v1365 = vpack.c.b16 %v1333, %v1333
        %v1366 = vpack.c.b16 %v1334, %v1334
        %v1367 = vpack.c.b16 %v1335, %v1335
        %v1368 = vpack.c.b16 %v1336, %v1336
        %v1369 = vpack.c.b16 %v1337, %v1337
        %v1370 = vpack.c.b16 %v1338, %v1338
        %v1371 = vpack.c.b16 %v1339, %v1339
        %v1372 = vpack.c.b16 %v1340, %v1340
        %v1373 = vpack.c.b16 %v1341, %v1341
        %v1374 = vpack.c.b16 %v1342, %v1342
        %1407 = vst [vmem:[%s252] sm:$0xf] %v1343
        %1408 = vst [vmem:[%s252 + $0x4] sm:$0xf] %v1344
        %1409 = vst [vmem:[%s252 + $0x8] sm:$0xf] %v1345
        %1410 = vst [vmem:[%s252 + $0xc] sm:$0xf] %v1346
        %1411 = vst [vmem:[%s252 + $0x10] sm:$0xf] %v1347
        %1412 = vst [vmem:[%s252 + $0x14] sm:$0xf] %v1348
        %1413 = vst [vmem:[%s252 + $0x18] sm:$0xf] %v1349
        %1414 = vst [vmem:[%s252 + $0x1c] sm:$0xf] %v1350
        %1415 = vst [vmem:[%s252 + $0x20] sm:$0xf] %v1351
        %1416 = vst [vmem:[%s252 + $0x24] sm:$0xf] %v1352
        %1417 = vst [vmem:[%s252 + $0x28] sm:$0xf] %v1353
        %1418 = vst [vmem:[%s252 + $0x2c] sm:$0xf] %v1354
        %1419 = vst [vmem:[%s252 + $0x30] sm:$0xf] %v1355
        %1420 = vst [vmem:[%s252 + $0x34] sm:$0xf] %v1356
        %1421 = vst [vmem:[%s252 + $0x38] sm:$0xf] %v1357
        %1422 = vst [vmem:[%s252 + $0x3c] sm:$0xf] %v1358
        %1423 = vst [vmem:[%s252 + $0x40] sm:$0xf] %v1359
        %1424 = vst [vmem:[%s252 + $0x44] sm:$0xf] %v1360
        %1425 = vst [vmem:[%s252 + $0x48] sm:$0xf] %v1361
        %1426 = vst [vmem:[%s252 + $0x4c] sm:$0xf] %v1362
        %1427 = vst [vmem:[%s252 + $0x50] sm:$0xf] %v1363
        %1428 = vst [vmem:[%s252 + $0x54] sm:$0xf] %v1364
        %1429 = vst [vmem:[%s252 + $0x58] sm:$0xf] %v1365
        %1430 = vst [vmem:[%s252 + $0x5c] sm:$0xf] %v1366
        %1431 = vst [vmem:[%s252 + $0x60] sm:$0xf] %v1367
        %1432 = vst [vmem:[%s252 + $0x64] sm:$0xf] %v1368
        %1433 = vst [vmem:[%s252 + $0x68] sm:$0xf] %v1369
        %1434 = vst [vmem:[%s252 + $0x6c] sm:$0xf] %v1370
        %1435 = vst [vmem:[%s252 + $0x70] sm:$0xf] %v1371
        %1436 = vst [vmem:[%s252 + $0x74] sm:$0xf] %v1372
        %1437 = vst [vmem:[%s252 + $0x78] sm:$0xf] %v1373
        %1438 = vst [vmem:[%s252 + $0x7c] sm:$0xf] %v1374
      $region44: #{dgcn_layer_forward.8} parent=35 // pred_fallthru
        _
      %s1439 = smul.u32 32, %s19
      %p1440 = scmp.lt.s32.totalorder %s1439, 63
      %s1441 = scalar_select %p1440, %s1439, 63
      %s1442 = smul.addr %s1441, 4
      %s1443 = scalar_lea.vmem %s4, %s1442
      // Predicated region
      $region45: #{dgcn_layer_forward.8} parent=35 // pred_check
        %p1444 = pneg %p141
      $region46: #{dgcn_layer_forward.8} parent=35 // pred_check_branch
        %1446 = sbr.rel (%p1444) target = $region48
      $region47: #{dgcn_layer_forward.8} parent=35 // pred_region
        %s1447 = smul.u32 32, %s19
      $region48: #{dgcn_layer_forward.8} parent=35 // pred_fallthru
        _
    $region36: #{dgcn_layer_forward.8} parent=5 // pred_fallthru
      _
    %p1448 = scmp.le.s32.totalorder 2, %s10
    // Predicated region
    $region49: #{dgcn_layer_forward.8} parent=5 // pred_check
      %p1449 = pneg %p1448
    $region50: #{dgcn_layer_forward.8} parent=5 // pred_check_branch
      %1451 = sbr.rel (%p1449) target = $region52
    $region51: #{dgcn_layer_forward.8} parent=5 // pred_region
      %s1452 = ssub.s32 %s10, 2
      // Predicated region
      $region53: #{dgcn_layer_forward.8} parent=51 // pred_check
        %p1453 = pneg %p147
      $region54: #{dgcn_layer_forward.8} parent=51 // pred_check_branch
        %1455 = sbr.rel (%p1453) target = $region56
      $region55: #{dgcn_layer_forward.8} parent=51 // pred_region
        %s1456 = smul.u32 32, %s21
        %p1457 = scmp.lt.s32.totalorder %s1456, 63
        %s1458 = scalar_select %p1457, %s1456, 63
        %s1459 = smul.addr %s1458, 4
        %s1460 = scalar_lea.vmem %s4, %s1459
      $region56: #{dgcn_layer_forward.8} parent=51 // pred_fallthru
        _
    $region52: #{dgcn_layer_forward.8} parent=5 // pred_fallthru
      _
  $region6: #{dgcn_layer_forward.8} parent=0 // loop_footer
    %s14 = sadd.s32 1, %s10
  $region7: #{dgcn_layer_forward.8} parent=0 // loop_footer_branch
    %9 = sbr.rel target = $region3
  $region8: #{dgcn_layer_forward.8} parent=0 // loop_exit
    _

// kernel: dgcn_layer_forward.10
$region0: #{dgcn_layer_forward.10}
  #allocation0 [shape = 'u32[]', space=smem, size = 0x4, offset = 0x4, fixed_abs, tag = 'smem constant byte address 0x4 - core index']
  #allocation1 [shape = 'u32[144,128]{1,0:T(1,128)}', space=vmem, size = 0x12000, scoped, tag = 'internal scratch']
  #allocation2 [shape = 'f32[256,128]{1,0:T(8,128)}', space=vmem, size = 0x20000, scoped, tag = 'scratch operand']
  %s0 = inlined_call_operand.vmem [shape: bf16[256,512], index: 0, kind: input, shape index: {}]
  %s1 = inlined_call_operand.vmem [shape: bf16[512,128], index: 1, kind: input, shape index: {}]
  %s2 = inlined_call_operand.vmem [shape: f32[1,128], index: 2, kind: input, shape index: {}]
  %s3 = inlined_call_operand.vmem [shape: bf16[256,128], index: 3, kind: input, shape index: {}]
  %s4 = inlined_call_operand.vmem [shape: bf16[128,128], index: 4, kind: input, shape index: {}]
  %s5 = inlined_call_operand.vmem [shape: bf16[128,128], index: 5, kind: input, shape index: {}]
  %s6 = inlined_call_operand.vmem [shape: f32[1,128], index: 6, kind: input, shape index: {}]
  %s7 = inlined_call_operand.vmem [shape: f32[256,128], index: 7, kind: output, shape index: {}]
  %s8 = sld [smem:[#allocation0]]
  $region107: #{dgcn_layer_forward.10} parent=0
    _
  %s10 = ssub.s32 1, %s8
  %s11 = scalar_select 0, %s10, %s8
  $region1: #{dgcn_layer_forward.10} parent=0
    #allocation3 [shape = 'u8[262144]{0}', space=vmem, size = 0x40000, scoped, tag = 'input window, operand 0']
    loop: start=0, step=1, limit=4
    $region2: #{dgcn_layer_forward.10} parent=1 // loop_pre_header
      _
    $region3: #{dgcn_layer_forward.10} parent=1 // loop_header
      %s13 = sphi 0, %s17
      %p14 = scmp.ge.s32.totalorder %s13, 4
      %s20 = sphi 0, %s32
      %s21 = sphi 0, %s28
      %s22 = sphi 0, %s20
      %s23 = sphi 0, %s21
      %s24 = sphi 0, %s22
      %s25 = sphi 0, %s23
      %s37 = sphi 0, %s39
      %s40 = sphi 0, %s37
      %s41 = sphi 0, %s40
      %s57 = sphi 0, %s41
      %s63 = sphi 0, %s65
      %s66 = sphi 0, %s63
      %s67 = sphi 0, %s66
      %s83 = sphi 0, %s67
      %s87 = sphi 0, %s87
      %s89 = sphi 0, %s87
      %s90 = sphi 0, %s89
      %s104 = sphi 0, %s90
      %s110 = sphi 0, %s112
      %s113 = sphi 0, %s110
      %s114 = sphi 0, %s113
      %s130 = sphi 0, %s114
      %s134 = sphi 0, %s134
      %s136 = sphi 0, %s134
      %s137 = sphi 0, %s136
      %s151 = sphi 0, %s137
      %s155 = sphi 0, %s155
      %s157 = sphi 0, %s155
      %s158 = sphi 0, %s157
      %s172 = sphi 0, %s158
      %s176 = sphi 0, %s176
      %s178 = sphi 0, %s176
      %s179 = sphi 0, %s178
      %s193 = sphi 0, %s179
      %s199 = sphi 0, %s201
      %s202 = sphi 0, %s199
      %s203 = sphi 0, %s202
      %s219 = sphi 0, %s203
    $region4: #{dgcn_layer_forward.10} parent=1 // loop_header_branch
      %16 = sbr.rel (%p14) target = $region8
    $region5: #{dgcn_layer_forward.10} parent=1 // loop_body
      %s18 = ssub.s32 %s13, 1
      %s19 = ssub.s32 %s13, 2
      %s26 = sadd.s32 1, %s21
      %p27 = scmp.ge.s32.totalorder %s26, 2
      %s28 = scalar_select %p27, 0, %s26
      %s29 = sadd.s32 1, %s20
      %s30 = scalar_select %p27, %s29, %s20
      %p31 = scmp.ge.s32.totalorder %s30, 1
      %s32 = scalar_select %p31, 0, %s30
      %s33 = ssub.s32 %s20, %s32
      %s34 = ssub.s32 %s21, %s28
      %s35 = sor.u32 %s33, %s34
      %p36 = scmp.eq.s32.totalorder %s35, 0
      %s38 = sadd.s32 %s37, 1
      %s39 = scalar_select %p36, %s37, %s38
      %p42 = pneg %p36
      %p43 = scmp.eq.s32.totalorder %s13, 1
      %p44 = por %p42, %p43
      %p45 = scmp.ne.s32.totalorder %s37, %s40
      %p46 = scmp.eq.s32.totalorder %s13, 0
      %p47 = por %p45, %p46
      %p48 = scmp.ne.s32.totalorder %s37, %s40
      %p49 = scmp.eq.s32.totalorder %s18, 1
      %p50 = por %p48, %p49
      %p51 = scmp.ne.s32.totalorder %s40, %s41
      %p52 = scmp.eq.s32.totalorder %s18, 0
      %p53 = por %p51, %p52
      %p54 = scmp.ne.s32.totalorder %s40, %s41
      %p55 = scmp.eq.s32.totalorder %s19, 1
      %p56 = por %p54, %p55
      %p58 = scmp.ne.s32.totalorder %s41, %s57
      %p59 = scmp.eq.s32.totalorder %s19, 0
      %p60 = por %p58, %p59
      %s61 = ssub.s32 %s21, %s28
      %p62 = scmp.eq.s32.totalorder %s61, 0
      %s64 = sadd.s32 %s63, 1
      %s65 = scalar_select %p62, %s63, %s64
      %p68 = pneg %p62
      %p69 = scmp.eq.s32.totalorder %s13, 1
      %p70 = por %p68, %p69
      %p71 = scmp.ne.s32.totalorder %s63, %s66
      %p72 = scmp.eq.s32.totalorder %s13, 0
      %p73 = por %p71, %p72
      %p74 = scmp.ne.s32.totalorder %s63, %s66
      %p75 = scmp.eq.s32.totalorder %s18, 1
      %p76 = por %p74, %p75
      %p77 = scmp.ne.s32.totalorder %s66, %s67
      %p78 = scmp.eq.s32.totalorder %s18, 0
      %p79 = por %p77, %p78
      %p80 = scmp.ne.s32.totalorder %s66, %s67
      %p81 = scmp.eq.s32.totalorder %s19, 1
      %p82 = por %p80, %p81
      %p84 = scmp.ne.s32.totalorder %s67, %s83
      %p85 = scmp.eq.s32.totalorder %s19, 0
      %p86 = por %p84, %p85
      %s88 = sadd.s32 %s87, 1
      %p91 = scmp.eq.s32.totalorder %s13, 1
      %p92 = scmp.ne.s32.totalorder %s87, %s89
      %p93 = scmp.eq.s32.totalorder %s13, 0
      %p94 = por %p92, %p93
      %p95 = scmp.ne.s32.totalorder %s87, %s89
      %p96 = scmp.eq.s32.totalorder %s18, 1
      %p97 = por %p95, %p96
      %p98 = scmp.ne.s32.totalorder %s89, %s90
      %p99 = scmp.eq.s32.totalorder %s18, 0
      %p100 = por %p98, %p99
      %p101 = scmp.ne.s32.totalorder %s89, %s90
      %p102 = scmp.eq.s32.totalorder %s19, 1
      %p103 = por %p101, %p102
      %p105 = scmp.ne.s32.totalorder %s90, %s104
      %p106 = scmp.eq.s32.totalorder %s19, 0
      %p107 = por %p105, %p106
      %s108 = ssub.s32 %s20, %s32
      %p109 = scmp.eq.s32.totalorder %s108, 0
      %s111 = sadd.s32 %s110, 1
      %s112 = scalar_select %p109, %s110, %s111
      %p115 = pneg %p109
      %p116 = scmp.eq.s32.totalorder %s13, 1
      %p117 = por %p115, %p116
      %p118 = scmp.ne.s32.totalorder %s110, %s113
      %p119 = scmp.eq.s32.totalorder %s13, 0
      %p120 = por %p118, %p119
      %p121 = scmp.ne.s32.totalorder %s110, %s113
      %p122 = scmp.eq.s32.totalorder %s18, 1
      %p123 = por %p121, %p122
      %p124 = scmp.ne.s32.totalorder %s113, %s114
      %p125 = scmp.eq.s32.totalorder %s18, 0
      %p126 = por %p124, %p125
      %p127 = scmp.ne.s32.totalorder %s113, %s114
      %p128 = scmp.eq.s32.totalorder %s19, 1
      %p129 = por %p127, %p128
      %p131 = scmp.ne.s32.totalorder %s114, %s130
      %p132 = scmp.eq.s32.totalorder %s19, 0
      %p133 = por %p131, %p132
      %s135 = sadd.s32 %s134, 1
      %p138 = scmp.eq.s32.totalorder %s13, 1
      %p139 = scmp.ne.s32.totalorder %s134, %s136
      %p140 = scmp.eq.s32.totalorder %s13, 0
      %p141 = por %p139, %p140
      %p142 = scmp.ne.s32.totalorder %s134, %s136
      %p143 = scmp.eq.s32.totalorder %s18, 1
      %p144 = por %p142, %p143
      %p145 = scmp.ne.s32.totalorder %s136, %s137
      %p146 = scmp.eq.s32.totalorder %s18, 0
      %p147 = por %p145, %p146
      %p148 = scmp.ne.s32.totalorder %s136, %s137
      %p149 = scmp.eq.s32.totalorder %s19, 1
      %p150 = por %p148, %p149
      %p152 = scmp.ne.s32.totalorder %s137, %s151
      %p153 = scmp.eq.s32.totalorder %s19, 0
      %p154 = por %p152, %p153
      %s156 = sadd.s32 %s155, 1
      %p159 = scmp.eq.s32.totalorder %s13, 1
      %p160 = scmp.ne.s32.totalorder %s155, %s157
      %p161 = scmp.eq.s32.totalorder %s13, 0
      %p162 = por %p160, %p161
      %p163 = scmp.ne.s32.totalorder %s155, %s157
      %p164 = scmp.eq.s32.totalorder %s18, 1
      %p165 = por %p163, %p164
      %p166 = scmp.ne.s32.totalorder %s157, %s158
      %p167 = scmp.eq.s32.totalorder %s18, 0
      %p168 = por %p166, %p167
      %p169 = scmp.ne.s32.totalorder %s157, %s158
      %p170 = scmp.eq.s32.totalorder %s19, 1
      %p171 = por %p169, %p170
      %p173 = scmp.ne.s32.totalorder %s158, %s172
      %p174 = scmp.eq.s32.totalorder %s19, 0
      %p175 = por %p173, %p174
      %s177 = sadd.s32 %s176, 1
      %p180 = scmp.eq.s32.totalorder %s13, 1
      %p181 = scmp.ne.s32.totalorder %s176, %s178
      %p182 = scmp.eq.s32.totalorder %s13, 0
      %p183 = por %p181, %p182
      %p184 = scmp.ne.s32.totalorder %s176, %s178
      %p185 = scmp.eq.s32.totalorder %s18, 1
      %p186 = por %p184, %p185
      %p187 = scmp.ne.s32.totalorder %s178, %s179
      %p188 = scmp.eq.s32.totalorder %s18, 0
      %p189 = por %p187, %p188
      %p190 = scmp.ne.s32.totalorder %s178, %s179
      %p191 = scmp.eq.s32.totalorder %s19, 1
      %p192 = por %p190, %p191
      %p194 = scmp.ne.s32.totalorder %s179, %s193
      %p195 = scmp.eq.s32.totalorder %s19, 0
      %p196 = por %p194, %p195
      %s197 = ssub.s32 %s20, %s32
      %p198 = scmp.eq.s32.totalorder %s197, 0
      %s200 = sadd.s32 %s199, 1
      %s201 = scalar_select %p198, %s199, %s200
      %p204 = pneg %p198
      %p205 = scmp.eq.s32.totalorder %s13, 1
      %p206 = por %p204, %p205
      %p207 = scmp.ne.s32.totalorder %s199, %s202
      %p208 = scmp.eq.s32.totalorder %s13, 0
      %p209 = por %p207, %p208
      %p210 = scmp.ne.s32.totalorder %s199, %s202
      %p211 = scmp.eq.s32.totalorder %s18, 1
      %p212 = por %p210, %p211
      %p213 = scmp.ne.s32.totalorder %s202, %s203
      %p214 = scmp.eq.s32.totalorder %s18, 0
      %p215 = por %p213, %p214
      %p216 = scmp.ne.s32.totalorder %s202, %s203
      %p217 = scmp.eq.s32.totalorder %s19, 1
      %p218 = por %p216, %p217
      %p220 = scmp.ne.s32.totalorder %s203, %s219
      %p221 = scmp.eq.s32.totalorder %s19, 0
      %p222 = por %p220, %p221
      %p223 = scmp.le.s32.totalorder 1, %s13
      %p224 = scmp.lt.s32.totalorder %s13, 3
      %p225 = pnand %p223, %p224
      %p226 = pneg %p225
      // Predicated region
      $region9: #{dgcn_layer_forward.10} parent=5 // pred_check
        _
      $region10: #{dgcn_layer_forward.10} parent=5 // pred_check_branch
        %228 = sbr.rel (%p225) target = $region12
      $region11: #{dgcn_layer_forward.10} parent=5 // pred_region
        %s229 = ssub.s32 %s13, 1
        // Predicated region
        $region13: #{dgcn_layer_forward.10} parent=11 // pred_check
          %p230 = pneg %p100
        $region14: #{dgcn_layer_forward.10} parent=11 // pred_check_branch
          %232 = sbr.rel (%p230) target = $region16
        $region15: #{dgcn_layer_forward.10} parent=11 // pred_region
          _
        $region16: #{dgcn_layer_forward.10} parent=11 // pred_fallthru
          _
        // Predicated region
        $region17: #{dgcn_layer_forward.10} parent=11 // pred_check
          %p233 = pneg %p126
        $region18: #{dgcn_layer_forward.10} parent=11 // pred_check_branch
          %235 = sbr.rel (%p233) target = $region20
        $region19: #{dgcn_layer_forward.10} parent=11 // pred_region
          %s236 = smul.u32 32, %s22
          %p237 = scmp.lt.s32.totalorder %s236, 31
          %s238 = scalar_select %p237, %s236, 31
          %s239 = smul.addr %s238, 4
          %s240 = scalar_lea.vmem %s3, %s239
          %s241 = smul.u32 32, %s22
        $region20: #{dgcn_layer_forward.10} parent=11 // pred_fallthru
          _
        // Predicated region
        $region21: #{dgcn_layer_forward.10} parent=11 // pred_check
          %p242 = pneg %p147
        $region22: #{dgcn_layer_forward.10} parent=11 // pred_check_branch
          %244 = sbr.rel (%p242) target = $region24
        $region23: #{dgcn_layer_forward.10} parent=11 // pred_region
          _
        $region24: #{dgcn_layer_forward.10} parent=11 // pred_fallthru
          _
        // Predicated region
        $region25: #{dgcn_layer_forward.10} parent=11 // pred_check
          %p245 = pneg %p168
        $region26: #{dgcn_layer_forward.10} parent=11 // pred_check_branch
          %247 = sbr.rel (%p245) target = $region28
        $region27: #{dgcn_layer_forward.10} parent=11 // pred_region
          _
        $region28: #{dgcn_layer_forward.10} parent=11 // pred_fallthru
          _
        // Predicated region
        $region29: #{dgcn_layer_forward.10} parent=11 // pred_check
          %p248 = pneg %p189
        $region30: #{dgcn_layer_forward.10} parent=11 // pred_check_branch
          %250 = sbr.rel (%p248) target = $region32
        $region31: #{dgcn_layer_forward.10} parent=11 // pred_region
          _
        $region32: #{dgcn_layer_forward.10} parent=11 // pred_fallthru
          _
      $region12: #{dgcn_layer_forward.10} parent=5 // pred_fallthru
        _
      %p251 = scmp.lt.s32.totalorder %s13, 2
      // Predicated region
      $region33: #{dgcn_layer_forward.10} parent=5 // pred_check
        %p252 = pneg %p251
      $region34: #{dgcn_layer_forward.10} parent=5 // pred_check_branch
        %254 = sbr.rel (%p252) target = $region36
      $region35: #{dgcn_layer_forward.10} parent=5 // pred_region
        // Predicated region
        $region37: #{dgcn_layer_forward.10} parent=35 // pred_check
          %p255 = pneg %p47
        $region38: #{dgcn_layer_forward.10} parent=35 // pred_check_branch
          %257 = sbr.rel (%p255) target = $region40
        $region39: #{dgcn_layer_forward.10} parent=35 // pred_region
          %s258 = sand.u32 %s37, 1
          %s259 = sand.u32 %s37, 1
          %s260 = smul.addr %s259, 256
          %s261 = scalar_lea.vmem [#allocation3], %s260
          %s262 = smul.u32 32, %s20
          %s263 = smul.u32 2, %s21
          %s264 = smul.addr %s262, 4
          %s265 = sadd.s32 %s263, %s264
          %s266 = smul.addr %s265, 4
          %s267 = scalar_lea.vmem %s0, %s266
          // Predicated region
          $region41: #{dgcn_layer_forward.10} parent=39 // pred_check
            _
          $region42: #{dgcn_layer_forward.10} parent=39 // pred_check_branch
            %269 = sbr.rel (0) target = $region44
          $region43: #{dgcn_layer_forward.10} parent=39 // pred_region
            // Predicated region
            $region45: #{dgcn_layer_forward.10} parent=43 // pred_check
              _
            $region46: #{dgcn_layer_forward.10} parent=43 // pred_check_branch
              %271 = sbr.rel (0) target = $region48
            $region47: #{dgcn_layer_forward.10} parent=43 // pred_region
              // Predicated region
              $region60: #{dgcn_layer_forward.10} parent=47 // pred_check
                _
              $region61: #{dgcn_layer_forward.10} parent=47 // pred_check_branch
                %348 = sbr.rel (0) target = $region63
              $region62: #{dgcn_layer_forward.10} parent=47 // pred_region
                loop: start=0, step=1, limit=1
                $region64: #{dgcn_layer_forward.10} parent=62 // loop_pre_header
                  _
                $region65: #{dgcn_layer_forward.10} parent=62 // loop_header
                  %s350 = sphi 0, %s354
                  %p351 = scmp.ge.s32.totalorder %s350, 1
                  %s355 = sphi %s267, %s267
                  %s356 = sphi %s261, %s261
                $region66: #{dgcn_layer_forward.10} parent=62 // loop_header_branch
                  %353 = sbr.rel (%p351) target = $region70
                $region67: #{dgcn_layer_forward.10} parent=62 // loop_body
                  %v357 = vld [vmem:[%s355] sm:$0xff]
                  %358 = vst [vmem:[%s356] sm:$0xff] %v357
                  %v359 = vld [vmem:[%s355 + $0x10] sm:$0xff]
                  %360 = vst [vmem:[%s356 + $0x8] sm:$0xff] %v359
                  %v361 = vld [vmem:[%s355 + $0x20] sm:$0xff]
                  %362 = vst [vmem:[%s356 + $0x10] sm:$0xff] %v361
                  %v363 = vld [vmem:[%s355 + $0x30] sm:$0xff]
                  %364 = vst [vmem:[%s356 + $0x18] sm:$0xff] %v363
                  %v365 = vld [vmem:[%s355 + $0x40] sm:$0xff]
                  %366 = vst [vmem:[%s356 + $0x20] sm:$0xff] %v365
                  %v367 = vld [vmem:[%s355 + $0x50] sm:$0xff]
                  %368 = vst [vmem:[%s356 + $0x28] sm:$0xff] %v367
                  %v369 = vld [vmem:[%s355 + $0x60] sm:$0xff]
                  %370 = vst [vmem:[%s356 + $0x30] sm:$0xff] %v369
                  %v371 = vld [vmem:[%s355 + $0x70] sm:$0xff]
                  %372 = vst [vmem:[%s356 + $0x38] sm:$0xff] %v371
                  %v373 = vld [vmem:[%s355 + $0x80] sm:$0xff]
                  %374 = vst [vmem:[%s356 + $0x40] sm:$0xff] %v373
                  %v375 = vld [vmem:[%s355 + $0x90] sm:$0xff]
                  %376 = vst [vmem:[%s356 + $0x48] sm:$0xff] %v375
                  %v377 = vld [vmem:[%s355 + $0xa0] sm:$0xff]
                  %378 = vst [vmem:[%s356 + $0x50] sm:$0xff] %v377
                  %v379 = vld [vmem:[%s355 + $0xb0] sm:$0xff]
                  %380 = vst [vmem:[%s356 + $0x58] sm:$0xff] %v379
                  %v381 = vld [vmem:[%s355 + $0xc0] sm:$0xff]
                  %382 = vst [vmem:[%s356 + $0x60] sm:$0xff] %v381
                  %v383 = vld [vmem:[%s355 + $0xd0] sm:$0xff]
                  %384 = vst [vmem:[%s356 + $0x68] sm:$0xff] %v383
                  %v385 = vld [vmem:[%s355 + $0xe0] sm:$0xff]
                  %386 = vst [vmem:[%s356 + $0x70] sm:$0xff] %v385
                  %v387 = vld [vmem:[%s355 + $0xf0] sm:$0xff]
                  %388 = vst [vmem:[%s356 + $0x78] sm:$0xff] %v387
                  %v389 = vld [vmem:[%s355 + $0x100] sm:$0xff]
                  %390 = vst [vmem:[%s356 + $0x80] sm:$0xff] %v389
                  %v391 = vld [vmem:[%s355 + $0x110] sm:$0xff]
                  %392 = vst [vmem:[%s356 + $0x88] sm:$0xff] %v391
                  %v393 = vld [vmem:[%s355 + $0x120] sm:$0xff]
                  %394 = vst [vmem:[%s356 + $0x90] sm:$0xff] %v393
                  %v395 = vld [vmem:[%s355 + $0x130] sm:$0xff]
                  %396 = vst [vmem:[%s356 + $0x98] sm:$0xff] %v395
                  %v397 = vld [vmem:[%s355 + $0x140] sm:$0xff]
                  %398 = vst [vmem:[%s356 + $0xa0] sm:$0xff] %v397
                  %v399 = vld [vmem:[%s355 + $0x150] sm:$0xff]
                  %400 = vst [vmem:[%s356 + $0xa8] sm:$0xff] %v399
                  %v401 = vld [vmem:[%s355 + $0x160] sm:$0xff]
                  %402 = vst [vmem:[%s356 + $0xb0] sm:$0xff] %v401
                  %v403 = vld [vmem:[%s355 + $0x170] sm:$0xff]
                  %404 = vst [vmem:[%s356 + $0xb8] sm:$0xff] %v403
                  %v405 = vld [vmem:[%s355 + $0x180] sm:$0xff]
                  %406 = vst [vmem:[%s356 + $0xc0] sm:$0xff] %v405
                  %v407 = vld [vmem:[%s355 + $0x190] sm:$0xff]
                  %408 = vst [vmem:[%s356 + $0xc8] sm:$0xff] %v407
                  %v409 = vld [vmem:[%s355 + $0x1a0] sm:$0xff]
                  %410 = vst [vmem:[%s356 + $0xd0] sm:$0xff] %v409
                  %v411 = vld [vmem:[%s355 + $0x1b0] sm:$0xff]
                  %412 = vst [vmem:[%s356 + $0xd8] sm:$0xff] %v411
                  %v413 = vld [vmem:[%s355 + $0x1c0] sm:$0xff]
                  %414 = vst [vmem:[%s356 + $0xe0] sm:$0xff] %v413
                  %v415 = vld [vmem:[%s355 + $0x1d0] sm:$0xff]
                  %416 = vst [vmem:[%s356 + $0xe8] sm:$0xff] %v415
                  %v417 = vld [vmem:[%s355 + $0x1e0] sm:$0xff]
                  %418 = vst [vmem:[%s356 + $0xf0] sm:$0xff] %v417
                  %v419 = vld [vmem:[%s355 + $0x1f0] sm:$0xff]
                  %420 = vst [vmem:[%s356 + $0xf8] sm:$0xff] %v419
                $region68: #{dgcn_layer_forward.10} parent=62 // loop_footer
                  %s354 = sadd.s32 1, %s350
                $region69: #{dgcn_layer_forward.10} parent=62 // loop_footer_branch
                  %349 = sbr.rel target = $region65
                $region70: #{dgcn_layer_forward.10} parent=62 // loop_exit
                  _
              $region63: #{dgcn_layer_forward.10} parent=47 // pred_fallthru
                _
              // Predicated region
              $region71: #{dgcn_layer_forward.10} parent=47 // pred_check
                _
              $region72: #{dgcn_layer_forward.10} parent=47 // pred_check_branch
                %422 = sbr.rel target = $region74
              $region73: #{dgcn_layer_forward.10} parent=47 // pred_region
                _
              $region74: #{dgcn_layer_forward.10} parent=47 // pred_fallthru
                _
            $region48: #{dgcn_layer_forward.10} parent=43 // pred_fallthru
              _
            // Predicated region
            $region49: #{dgcn_layer_forward.10} parent=43 // pred_check
              _
            $region50: #{dgcn_layer_forward.10} parent=43 // pred_check_branch
              %273 = sbr.rel target = $region52
            $region51: #{dgcn_layer_forward.10} parent=43 // pred_region
              loop: start=0, step=1, limit=1
              $region53: #{dgcn_layer_forward.10} parent=51 // loop_pre_header
                _
              $region54: #{dgcn_layer_forward.10} parent=51 // loop_header
                %s276 = sphi 0, %s280
                %p277 = scmp.ge.s32.totalorder %s276, 1
                %s281 = sphi %s267, %s267
                %s282 = sphi %s261, %s261
              $region55: #{dgcn_layer_forward.10} parent=51 // loop_header_branch
                %279 = sbr.rel (%p277) target = $region59
              $region56: #{dgcn_layer_forward.10} parent=51 // loop_body
                %v283 = vld [vmem:[%s281] sm:$0xff]
                %284 = vst [vmem:[%s282] sm:$0xff] %v283
                %v285 = vld [vmem:[%s281 + $0x10] sm:$0xff]
                %286 = vst [vmem:[%s282 + $0x8] sm:$0xff] %v285
                %v287 = vld [vmem:[%s281 + $0x20] sm:$0xff]
                %288 = vst [vmem:[%s282 + $0x10] sm:$0xff] %v287
                %v289 = vld [vmem:[%s281 + $0x30] sm:$0xff]
                %290 = vst [vmem:[%s282 + $0x18] sm:$0xff] %v289
                %v291 = vld [vmem:[%s281 + $0x40] sm:$0xff]
                %292 = vst [vmem:[%s282 + $0x20] sm:$0xff] %v291
                %v293 = vld [vmem:[%s281 + $0x50] sm:$0xff]
                %294 = vst [vmem:[%s282 + $0x28] sm:$0xff] %v293
                %v295 = vld [vmem:[%s281 + $0x60] sm:$0xff]
                %296 = vst [vmem:[%s282 + $0x30] sm:$0xff] %v295
                %v297 = vld [vmem:[%s281 + $0x70] sm:$0xff]
                %298 = vst [vmem:[%s282 + $0x38] sm:$0xff] %v297
                %v299 = vld [vmem:[%s281 + $0x80] sm:$0xff]
                %300 = vst [vmem:[%s282 + $0x40] sm:$0xff] %v299
                %v301 = vld [vmem:[%s281 + $0x90] sm:$0xff]
                %302 = vst [vmem:[%s282 + $0x48] sm:$0xff] %v301
                %v303 = vld [vmem:[%s281 + $0xa0] sm:$0xff]
                %304 = vst [vmem:[%s282 + $0x50] sm:$0xff] %v303
                %v305 = vld [vmem:[%s281 + $0xb0] sm:$0xff]
                %306 = vst [vmem:[%s282 + $0x58] sm:$0xff] %v305
                %v307 = vld [vmem:[%s281 + $0xc0] sm:$0xff]
                %308 = vst [vmem:[%s282 + $0x60] sm:$0xff] %v307
                %v309 = vld [vmem:[%s281 + $0xd0] sm:$0xff]
                %310 = vst [vmem:[%s282 + $0x68] sm:$0xff] %v309
                %v311 = vld [vmem:[%s281 + $0xe0] sm:$0xff]
                %312 = vst [vmem:[%s282 + $0x70] sm:$0xff] %v311
                %v313 = vld [vmem:[%s281 + $0xf0] sm:$0xff]
                %314 = vst [vmem:[%s282 + $0x78] sm:$0xff] %v313
                %v315 = vld [vmem:[%s281 + $0x100] sm:$0xff]
                %316 = vst [vmem:[%s282 + $0x80] sm:$0xff] %v315
                %v317 = vld [vmem:[%s281 + $0x110] sm:$0xff]
                %318 = vst [vmem:[%s282 + $0x88] sm:$0xff] %v317
                %v319 = vld [vmem:[%s281 + $0x120] sm:$0xff]
                %320 = vst [vmem:[%s282 + $0x90] sm:$0xff] %v319
                %v321 = vld [vmem:[%s281 + $0x130] sm:$0xff]
                %322 = vst [vmem:[%s282 + $0x98] sm:$0xff] %v321
                %v323 = vld [vmem:[%s281 + $0x140] sm:$0xff]
                %324 = vst [vmem:[%s282 + $0xa0] sm:$0xff] %v323
                %v325 = vld [vmem:[%s281 + $0x150] sm:$0xff]
                %326 = vst [vmem:[%s282 + $0xa8] sm:$0xff] %v325
                %v327 = vld [vmem:[%s281 + $0x160] sm:$0xff]
                %328 = vst [vmem:[%s282 + $0xb0] sm:$0xff] %v327
                %v329 = vld [vmem:[%s281 + $0x170] sm:$0xff]
                %330 = vst [vmem:[%s282 + $0xb8] sm:$0xff] %v329
                %v331 = vld [vmem:[%s281 + $0x180] sm:$0xff]
                %332 = vst [vmem:[%s282 + $0xc0] sm:$0xff] %v331
                %v333 = vld [vmem:[%s281 + $0x190] sm:$0xff]
                %334 = vst [vmem:[%s282 + $0xc8] sm:$0xff] %v333
                %v335 = vld [vmem:[%s281 + $0x1a0] sm:$0xff]
                %336 = vst [vmem:[%s282 + $0xd0] sm:$0xff] %v335
                %v337 = vld [vmem:[%s281 + $0x1b0] sm:$0xff]
                %338 = vst [vmem:[%s282 + $0xd8] sm:$0xff] %v337
                %v339 = vld [vmem:[%s281 + $0x1c0] sm:$0xff]
                %340 = vst [vmem:[%s282 + $0xe0] sm:$0xff] %v339
                %v341 = vld [vmem:[%s281 + $0x1d0] sm:$0xff]
                %342 = vst [vmem:[%s282 + $0xe8] sm:$0xff] %v341
                %v343 = vld [vmem:[%s281 + $0x1e0] sm:$0xff]
                %344 = vst [vmem:[%s282 + $0xf0] sm:$0xff] %v343
                %v345 = vld [vmem:[%s281 + $0x1f0] sm:$0xff]
                %346 = vst [vmem:[%s282 + $0xf8] sm:$0xff] %v345
              $region57: #{dgcn_layer_forward.10} parent=51 // loop_footer
                %s280 = sadd.s32 1, %s276
              $region58: #{dgcn_layer_forward.10} parent=51 // loop_footer_branch
                %275 = sbr.rel target = $region54
              $region59: #{dgcn_layer_forward.10} parent=51 // loop_exit
                _
            $region52: #{dgcn_layer_forward.10} parent=43 // pred_fallthru
              _
          $region44: #{dgcn_layer_forward.10} parent=39 // pred_fallthru
            _
          %423 = vnop
        $region40: #{dgcn_layer_forward.10} parent=35 // pred_fallthru
          _
        // Predicated region
        $region75: #{dgcn_layer_forward.10} parent=35 // pred_check
          %p424 = pneg %p73
        $region76: #{dgcn_layer_forward.10} parent=35 // pred_check_branch
          %426 = sbr.rel (%p424) target = $region78
        $region77: #{dgcn_layer_forward.10} parent=35 // pred_region
          %s427 = smul.u32 32, %s21
          %p428 = scmp.lt.s32.totalorder %s427, 63
          %s429 = scalar_select %p428, %s427, 63
          %s430 = smul.addr %s429, 4
          %s431 = scalar_lea.vmem %s1, %s430
          %s432 = smul.u32 32, %s21
        $region78: #{dgcn_layer_forward.10} parent=35 // pred_fallthru
          _
      $region36: #{dgcn_layer_forward.10} parent=5 // pred_fallthru
        _
      %p433 = scmp.le.s32.totalorder 1, %s13
      %p434 = scmp.lt.s32.totalorder %s13, 3
      %p435 = pnand %p433, %p434
      %p436 = pneg %p435
      // Predicated region
      $region79: #{dgcn_layer_forward.10} parent=5 // pred_check
        _
      $region80: #{dgcn_layer_forward.10} parent=5 // pred_check_branch
        %438 = sbr.rel (%p435) target = $region82
      $region81: #{dgcn_layer_forward.10} parent=5 // pred_region
        %s439 = ssub.s32 %s13, 1
        %s440 = sand.u32 %s40, 1
        %s441 = sand.u32 %s40, 1
        %s442 = smul.addr %s441, 256
        %s443 = scalar_lea.vmem [#allocation3], %s442
        // Predicated region
        $region83: #{dgcn_layer_forward.10} parent=81 // pred_check
          %p444 = pneg %p53
        $region84: #{dgcn_layer_forward.10} parent=81 // pred_check_branch
          %446 = sbr.rel (%p444) target = $region86
        $region85: #{dgcn_layer_forward.10} parent=81 // pred_region
          _
        $region86: #{dgcn_layer_forward.10} parent=81 // pred_fallthru
          _
        %s447 = sand.u32 %s40, 1
        %s448 = sand.u32 %s40, 1
        %s449 = smul.addr %s448, 256
        %s450 = scalar_lea.vmem [#allocation3], %s449
        %p451 = pneg %p53
        %p452 = pneg %p50
        %s453 = smul.u32 32, %s23
        %p454 = scmp.lt.s32.totalorder %s453, 63
        %s455 = scalar_select %p454, %s453, 63
        %s456 = smul.addr %s455, 4
        %s457 = scalar_lea.vmem %s1, %s456
        %p458 = pneg %p79
        %p459 = pneg %p76
        %p460 = pneg %p100
        %p461 = pneg %p97
        %s462 = smul.u32 32, %s22
        %p463 = scmp.lt.s32.totalorder %s462, 31
        %s464 = scalar_select %p463, %s462, 31
        %s465 = smul.addr %s464, 4
        %s466 = scalar_lea.vmem %s3, %s465
        %p467 = pneg %p126
        %p468 = pneg %p123
        %p469 = pneg %p147
        %p470 = pneg %p144
        %p471 = pneg %p168
        %p472 = pneg %p165
        %p473 = pneg %p189
        %p474 = pneg %p186
        %p475 = pneg %p215
        %p476 = pneg %p212
        %s477 = smul.u32 32, %s22
        %p478 = scmp.lt.s32.totalorder %s477, 31
        %s479 = scalar_select %p478, %s477, 31
        %s480 = smul.addr %s479, 8
        %s481 = scalar_lea.vmem %s7, %s480
        %s482 = smul.u32 32, %s22
        %s483 = smul.u32 2, %s23
        %s484 = smul.u32 32, %s23
        %p485 = scmp.lt.s32.totalorder %s484, 63
        %s486 = scalar_select %p485, %s484, 63
        %s487 = smul.addr %s486, 4
        %s488 = scalar_lea.vmem %s1, %s487
        %s489 = smul.u32 32, %s23
        %s490 = smul.u32 32, %s22
        %p491 = scmp.lt.s32.totalorder %s490, 31
        %s492 = scalar_select %p491, %s490, 31
        %s493 = smul.addr %s492, 4
        %s494 = scalar_lea.vmem %s3, %s493
        %s495 = smul.u32 32, %s22
        %s496 = smul.u32 32, %s22
        %p497 = scmp.lt.s32.totalorder %s496, 31
        %s498 = scalar_select %p497, %s496, 31
        %s499 = smul.addr %s498, 8
        %s500 = scalar_lea.vmem %s7, %s499
        %s501 = smul.u32 32, %s22
        %p503 = scmp.eq.s32.totalorder %s23, 0
        // Predicated region
        $region87: #{dgcn_layer_forward.10} parent=81 // pred_check
          %p504 = pneg %p503
        $region88: #{dgcn_layer_forward.10} parent=81 // pred_check_branch
          %506 = sbr.rel (%p504) target = $region90
        $region89: #{dgcn_layer_forward.10} parent=81 // pred_region
          %507 = vst [vmem:[#allocation2] sm:$0xff] 0.0
          %508 = vst [vmem:[#allocation2 + $0x8] sm:$0xff] 0.0
          %509 = vst [vmem:[#allocation2 + $0x10] sm:$0xff] 0.0
          %510 = vst [vmem:[#allocation2 + $0x18] sm:$0xff] 0.0
          %511 = vst [vmem:[#allocation2 + $0x20] sm:$0xff] 0.0
          %512 = vst [vmem:[#allocation2 + $0x28] sm:$0xff] 0.0
          %513 = vst [vmem:[#allocation2 + $0x30] sm:$0xff] 0.0
          %514 = vst [vmem:[#allocation2 + $0x38] sm:$0xff] 0.0
          %515 = vst [vmem:[#allocation2 + $0x40] sm:$0xff] 0.0
          %516 = vst [vmem:[#allocation2 + $0x48] sm:$0xff] 0.0
          %517 = vst [vmem:[#allocation2 + $0x50] sm:$0xff] 0.0
          %518 = vst [vmem:[#allocation2 + $0x58] sm:$0xff] 0.0
          %519 = vst [vmem:[#allocation2 + $0x60] sm:$0xff] 0.0
          %520 = vst [vmem:[#allocation2 + $0x68] sm:$0xff] 0.0
          %521 = vst [vmem:[#allocation2 + $0x70] sm:$0xff] 0.0
          %522 = vst [vmem:[#allocation2 + $0x78] sm:$0xff] 0.0
          %523 = vst [vmem:[#allocation2 + $0x80] sm:$0xff] 0.0
          %524 = vst [vmem:[#allocation2 + $0x88] sm:$0xff] 0.0
          %525 = vst [vmem:[#allocation2 + $0x90] sm:$0xff] 0.0
          %526 = vst [vmem:[#allocation2 + $0x98] sm:$0xff] 0.0
          %527 = vst [vmem:[#allocation2 + $0xa0] sm:$0xff] 0.0
          %528 = vst [vmem:[#allocation2 + $0xa8] sm:$0xff] 0.0
          %529 = vst [vmem:[#allocation2 + $0xb0] sm:$0xff] 0.0
          %530 = vst [vmem:[#allocation2 + $0xb8] sm:$0xff] 0.0
          %531 = vst [vmem:[#allocation2 + $0xc0] sm:$0xff] 0.0
          %532 = vst [vmem:[#allocation2 + $0xc8] sm:$0xff] 0.0
          %533 = vst [vmem:[#allocation2 + $0xd0] sm:$0xff] 0.0
          %534 = vst [vmem:[#allocation2 + $0xd8] sm:$0xff] 0.0
          %535 = vst [vmem:[#allocation2 + $0xe0] sm:$0xff] 0.0
          %536 = vst [vmem:[#allocation2 + $0xe8] sm:$0xff] 0.0
          %537 = vst [vmem:[#allocation2 + $0xf0] sm:$0xff] 0.0
          %538 = vst [vmem:[#allocation2 + $0xf8] sm:$0xff] 0.0
        $region90: #{dgcn_layer_forward.10} parent=81 // pred_fallthru
          _
        %v539 = vld [vmem:[#allocation2] sm:$0xff]
        %v540 = vld [vmem:[#allocation2 + $0x8] sm:$0xff]
        %v541 = vld [vmem:[#allocation2 + $0x10] sm:$0xff]
        %v542 = vld [vmem:[#allocation2 + $0x18] sm:$0xff]
        %v543 = vld [vmem:[#allocation2 + $0x20] sm:$0xff]
        %v544 = vld [vmem:[#allocation2 + $0x28] sm:$0xff]
        %v545 = vld [vmem:[#allocation2 + $0x30] sm:$0xff]
        %v546 = vld [vmem:[#allocation2 + $0x38] sm:$0xff]
        %v547 = vld [vmem:[#allocation2 + $0x40] sm:$0xff]
        %v548 = vld [vmem:[#allocation2 + $0x48] sm:$0xff]
        %v549 = vld [vmem:[#allocation2 + $0x50] sm:$0xff]
        %v550 = vld [vmem:[#allocation2 + $0x58] sm:$0xff]
        %v551 = vld [vmem:[#allocation2 + $0x60] sm:$0xff]
        %v552 = vld [vmem:[#allocation2 + $0x68] sm:$0xff]
        %v553 = vld [vmem:[#allocation2 + $0x70] sm:$0xff]
        %v554 = vld [vmem:[#allocation2 + $0x78] sm:$0xff]
        %v555 = vld [vmem:[#allocation2 + $0x80] sm:$0xff]
        %v556 = vld [vmem:[#allocation2 + $0x88] sm:$0xff]
        %v557 = vld [vmem:[#allocation2 + $0x90] sm:$0xff]
        %v558 = vld [vmem:[#allocation2 + $0x98] sm:$0xff]
        %v559 = vld [vmem:[#allocation2 + $0xa0] sm:$0xff]
        %v560 = vld [vmem:[#allocation2 + $0xa8] sm:$0xff]
        %v561 = vld [vmem:[#allocation2 + $0xb0] sm:$0xff]
        %v562 = vld [vmem:[#allocation2 + $0xb8] sm:$0xff]
        %v563 = vld [vmem:[#allocation2 + $0xc0] sm:$0xff]
        %v564 = vld [vmem:[#allocation2 + $0xc8] sm:$0xff]
        %v565 = vld [vmem:[#allocation2 + $0xd0] sm:$0xff]
        %v566 = vld [vmem:[#allocation2 + $0xd8] sm:$0xff]
        %v567 = vld [vmem:[#allocation2 + $0xe0] sm:$0xff]
        %v568 = vld [vmem:[#allocation2 + $0xe8] sm:$0xff]
        %v569 = vld [vmem:[#allocation2 + $0xf0] sm:$0xff]
        %v570 = vld [vmem:[#allocation2 + $0xf8] sm:$0xff]
        %v571 = vld [vmem:[%s443] sm:$0xff]
        %v572 = vld [vmem:[%s443 + $0x8] sm:$0xff]
        %v573 = vld [vmem:[%s443 + $0x10] sm:$0xff]
        %v574 = vld [vmem:[%s443 + $0x18] sm:$0xff]
        %v575 = vld [vmem:[%s443 + $0x20] sm:$0xff]
        %v576 = vld [vmem:[%s443 + $0x28] sm:$0xff]
        %v577 = vld [vmem:[%s443 + $0x30] sm:$0xff]
        %v578 = vld [vmem:[%s443 + $0x38] sm:$0xff]
        %v579 = vld [vmem:[%s443 + $0x40] sm:$0xff]
        %v580 = vld [vmem:[%s443 + $0x48] sm:$0xff]
        %v581 = vld [vmem:[%s443 + $0x50] sm:$0xff]
        %v582 = vld [vmem:[%s443 + $0x58] sm:$0xff]
        %v583 = vld [vmem:[%s443 + $0x60] sm:$0xff]
        %v584 = vld [vmem:[%s443 + $0x68] sm:$0xff]
        %v585 = vld [vmem:[%s443 + $0x70] sm:$0xff]
        %v586 = vld [vmem:[%s443 + $0x78] sm:$0xff]
        %v587 = vld [vmem:[%s443 + $0x80] sm:$0xff]
        %v588 = vld [vmem:[%s443 + $0x88] sm:$0xff]
        %v589 = vld [vmem:[%s443 + $0x90] sm:$0xff]
        %v590 = vld [vmem:[%s443 + $0x98] sm:$0xff]
        %v591 = vld [vmem:[%s443 + $0xa0] sm:$0xff]
        %v592 = vld [vmem:[%s443 + $0xa8] sm:$0xff]
        %v593 = vld [vmem:[%s443 + $0xb0] sm:$0xff]
        %v594 = vld [vmem:[%s443 + $0xb8] sm:$0xff]
        %v595 = vld [vmem:[%s443 + $0xc0] sm:$0xff]
        %v596 = vld [vmem:[%s443 + $0xc8] sm:$0xff]
        %v597 = vld [vmem:[%s443 + $0xd0] sm:$0xff]
        %v598 = vld [vmem:[%s443 + $0xd8] sm:$0xff]
        %v599 = vld [vmem:[%s443 + $0xe0] sm:$0xff]
        %v600 = vld [vmem:[%s443 + $0xe8] sm:$0xff]
        %v601 = vld [vmem:[%s443 + $0xf0] sm:$0xff]
        %v602 = vld [vmem:[%s443 + $0xf8] sm:$0xff]
        %v603 = vld [vmem:[%s488] sm:$0xf]
        %v604 = vld [vmem:[%s488 + $0x4] sm:$0xf]
        %v605 = vld [vmem:[%s488 + $0x8] sm:$0xf]
        %v606 = vld [vmem:[%s488 + $0xc] sm:$0xf]
        %v607 = vld [vmem:[%s488 + $0x10] sm:$0xf]
        %v608 = vld [vmem:[%s488 + $0x14] sm:$0xf]
        %v609 = vld [vmem:[%s488 + $0x18] sm:$0xf]
        %v610 = vld [vmem:[%s488 + $0x1c] sm:$0xf]
        %v611 = vld [vmem:[%s488 + $0x20] sm:$0xf]
        %v612 = vld [vmem:[%s488 + $0x24] sm:$0xf]
        %v613 = vld [vmem:[%s488 + $0x28] sm:$0xf]
        %v614 = vld [vmem:[%s488 + $0x2c] sm:$0xf]
        %v615 = vld [vmem:[%s488 + $0x30] sm:$0xf]
        %v616 = vld [vmem:[%s488 + $0x34] sm:$0xf]
        %v617 = vld [vmem:[%s488 + $0x38] sm:$0xf]
        %v618 = vld [vmem:[%s488 + $0x3c] sm:$0xf]
        %v619 = vld [vmem:[%s488 + $0x40] sm:$0xf]
        %v620 = vld [vmem:[%s488 + $0x44] sm:$0xf]
        %v621 = vld [vmem:[%s488 + $0x48] sm:$0xf]
        %v622 = vld [vmem:[%s488 + $0x4c] sm:$0xf]
        %v623 = vld [vmem:[%s488 + $0x50] sm:$0xf]
        %v624 = vld [vmem:[%s488 + $0x54] sm:$0xf]
        %v625 = vld [vmem:[%s488 + $0x58] sm:$0xf]
        %v626 = vld [vmem:[%s488 + $0x5c] sm:$0xf]
        %v627 = vld [vmem:[%s488 + $0x60] sm:$0xf]
        %v628 = vld [vmem:[%s488 + $0x64] sm:$0xf]
        %v629 = vld [vmem:[%s488 + $0x68] sm:$0xf]
        %v630 = vld [vmem:[%s488 + $0x6c] sm:$0xf]
        %v631 = vld [vmem:[%s488 + $0x70] sm:$0xf]
        %v632 = vld [vmem:[%s488 + $0x74] sm:$0xf]
        %v633 = vld [vmem:[%s488 + $0x78] sm:$0xf]
        %v634 = vld [vmem:[%s488 + $0x7c] sm:$0xf]
        %v667 = vunpack.c.l.b16 %v571
        %v668 = vunpack.c.h.b16 %v571
        %v669 = vunpack.c.l.b16 %v572
        %v670 = vunpack.c.h.b16 %v572
        %v671 = vunpack.c.l.b16 %v573
        %v672 = vunpack.c.h.b16 %v573
        %v673 = vunpack.c.l.b16 %v574
        %v674 = vunpack.c.h.b16 %v574
        %v675 = vunpack.c.l.b16 %v575
        %v676 = vunpack.c.h.b16 %v575
        %v677 = vunpack.c.l.b16 %v576
        %v678 = vunpack.c.h.b16 %v576
        %v679 = vunpack.c.l.b16 %v577
        %v680 = vunpack.c.h.b16 %v577
        %v681 = vunpack.c.l.b16 %v578
        %v682 = vunpack.c.h.b16 %v578
        %v683 = vunpack.c.l.b16 %v579
        %v684 = vunpack.c.h.b16 %v579
        %v685 = vunpack.c.l.b16 %v580
        %v686 = vunpack.c.h.b16 %v580
        %v687 = vunpack.c.l.b16 %v581
        %v688 = vunpack.c.h.b16 %v581
        %v689 = vunpack.c.l.b16 %v582
        %v690 = vunpack.c.h.b16 %v582
        %v691 = vunpack.c.l.b16 %v583
        %v692 = vunpack.c.h.b16 %v583
        %v693 = vunpack.c.l.b16 %v584
        %v694 = vunpack.c.h.b16 %v584
        %v695 = vunpack.c.l.b16 %v585
        %v696 = vunpack.c.h.b16 %v585
        %v697 = vunpack.c.l.b16 %v586
        %v698 = vunpack.c.h.b16 %v586
        %v699 = vunpack.c.l.b16 %v587
        %v700 = vunpack.c.h.b16 %v587
        %v701 = vunpack.c.l.b16 %v588
        %v702 = vunpack.c.h.b16 %v588
        %v703 = vunpack.c.l.b16 %v589
        %v704 = vunpack.c.h.b16 %v589
        %v705 = vunpack.c.l.b16 %v590
        %v706 = vunpack.c.h.b16 %v590
        %v707 = vunpack.c.l.b16 %v591
        %v708 = vunpack.c.h.b16 %v591
        %v709 = vunpack.c.l.b16 %v592
        %v710 = vunpack.c.h.b16 %v592
        %v711 = vunpack.c.l.b16 %v593
        %v712 = vunpack.c.h.b16 %v593
        %v713 = vunpack.c.l.b16 %v594
        %v714 = vunpack.c.h.b16 %v594
        %v715 = vunpack.c.l.b16 %v595
        %v716 = vunpack.c.h.b16 %v595
        %v717 = vunpack.c.l.b16 %v596
        %v718 = vunpack.c.h.b16 %v596
        %v719 = vunpack.c.l.b16 %v597
        %v720 = vunpack.c.h.b16 %v597
        %v721 = vunpack.c.l.b16 %v598
        %v722 = vunpack.c.h.b16 %v598
        %v723 = vunpack.c.l.b16 %v599
        %v724 = vunpack.c.h.b16 %v599
        %v725 = vunpack.c.l.b16 %v600
        %v726 = vunpack.c.h.b16 %v600
        %v727 = vunpack.c.l.b16 %v601
        %v728 = vunpack.c.h.b16 %v601
        %v729 = vunpack.c.l.b16 %v602
        %v730 = vunpack.c.h.b16 %v602
        %v731 = vpack.c.b16 %v669, %v667
        %v732 = vpack.c.b16 %v670, %v668
        %v733 = vpack.c.b16 %v673, %v671
        %v734 = vpack.c.b16 %v674, %v672
        %v735 = vpack.c.b16 %v677, %v675
        %v736 = vpack.c.b16 %v678, %v676
        %v737 = vpack.c.b16 %v681, %v679
        %v738 = vpack.c.b16 %v682, %v680
        %v739 = vpack.c.b16 %v685, %v683
        %v740 = vpack.c.b16 %v686, %v684
        %v741 = vpack.c.b16 %v689, %v687
        %v742 = vpack.c.b16 %v690, %v688
        %v743 = vpack.c.b16 %v693, %v691
        %v744 = vpack.c.b16 %v694, %v692
        %v745 = vpack.c.b16 %v697, %v695
        %v746 = vpack.c.b16 %v698, %v696
        %v747 = vpack.c.b16 %v701, %v699
        %v748 = vpack.c.b16 %v702, %v700
        %v749 = vpack.c.b16 %v705, %v703
        %v750 = vpack.c.b16 %v706, %v704
        %v751 = vpack.c.b16 %v709, %v707
        %v752 = vpack.c.b16 %v710, %v708
        %v753 = vpack.c.b16 %v713, %v711
        %v754 = vpack.c.b16 %v714, %v712
        %v755 = vpack.c.b16 %v717, %v715
        %v756 = vpack.c.b16 %v718, %v716
        %v757 = vpack.c.b16 %v721, %v719
        %v758 = vpack.c.b16 %v722, %v720
        %v759 = vpack.c.b16 %v725, %v723
        %v760 = vpack.c.b16 %v726, %v724
        %v761 = vpack.c.b16 %v729, %v727
        %v762 = vpack.c.b16 %v730, %v728
        %v827 = vunpack.c.l.b16 %v603
        %v828 = vunpack.c.l.b16 %v604
        %v829 = vunpack.c.l.b16 %v605
        %v830 = vunpack.c.l.b16 %v606
        %v831 = vunpack.c.l.b16 %v607
        %v832 = vunpack.c.l.b16 %v608
        %v833 = vunpack.c.l.b16 %v609
        %v834 = vunpack.c.l.b16 %v610
        %v835 = vunpack.c.l.b16 %v611
        %v836 = vunpack.c.l.b16 %v612
        %v837 = vunpack.c.l.b16 %v613
        %v838 = vunpack.c.l.b16 %v614
        %v839 = vunpack.c.l.b16 %v615
        %v840 = vunpack.c.l.b16 %v616
        %v841 = vunpack.c.l.b16 %v617
        %v842 = vunpack.c.l.b16 %v618
        %v843 = vunpack.c.l.b16 %v619
        %v844 = vunpack.c.l.b16 %v620
        %v845 = vunpack.c.l.b16 %v621
        %v846 = vunpack.c.l.b16 %v622
        %v847 = vunpack.c.l.b16 %v623
        %v848 = vunpack.c.l.b16 %v624
        %v849 = vunpack.c.l.b16 %v625
        %v850 = vunpack.c.l.b16 %v626
        %v851 = vunpack.c.l.b16 %v627
        %v852 = vunpack.c.l.b16 %v628
        %v853 = vunpack.c.l.b16 %v629
        %v854 = vunpack.c.l.b16 %v630
        %v855 = vunpack.c.l.b16 %v631
        %v856 = vunpack.c.l.b16 %v632
        %v857 = vunpack.c.l.b16 %v633
        %v858 = vunpack.c.l.b16 %v634
        %v859 = vpack.c.b16 %v828, %v827
        %v860 = vpack.c.b16 %v830, %v829
        %v861 = vpack.c.b16 %v832, %v831
        %v862 = vpack.c.b16 %v834, %v833
        %v863 = vpack.c.b16 %v836, %v835
        %v864 = vpack.c.b16 %v838, %v837
        %v865 = vpack.c.b16 %v840, %v839
        %v866 = vpack.c.b16 %v842, %v841
        %v867 = vpack.c.b16 %v844, %v843
        %v868 = vpack.c.b16 %v846, %v845
        %v869 = vpack.c.b16 %v848, %v847
        %v870 = vpack.c.b16 %v850, %v849
        %v871 = vpack.c.b16 %v852, %v851
        %v872 = vpack.c.b16 %v854, %v853
        %v873 = vpack.c.b16 %v856, %v855
        %v874 = vpack.c.b16 %v858, %v857
        %891 = vmatprep.subr.bf16.mxu0 0
        %892 = vmatpush1.bf16.msra.mxu0 %v859
        %893 = vmatprep.subr.bf16.mxu0 0
        %894 = vmatpush1.bf16.msra.mxu0 %v860
        %895 = vmatprep.subr.bf16.mxu0 0
        %896 = vmatpush1.bf16.msra.mxu0 %v861
        %897 = vmatprep.subr.bf16.mxu0 0
        %898 = vmatpush1.bf16.msra.mxu0 %v862
        %899 = vmatprep.subr.bf16.mxu0 0
        %900 = vmatpush1.bf16.msra.mxu0 %v863
        %901 = vmatprep.subr.bf16.mxu0 0
        %902 = vmatpush1.bf16.msra.mxu0 %v864
        %903 = vmatprep.subr.bf16.mxu0 0
        %904 = vmatpush1.bf16.msra.mxu0 %v865
        %905 = vmatprep.subr.bf16.mxu0 0
        %906 = vmatpush1.bf16.msra.mxu0 %v866
        %907 = vmatprep.subr.bf16.mxu0 0
        %908 = vmatpush1.bf16.msra.mxu0 %v867
        %909 = vmatprep.subr.bf16.mxu0 0
        %910 = vmatpush1.bf16.msra.mxu0 %v868
        %911 = vmatprep.subr.bf16.mxu0 0
        %912 = vmatpush1.bf16.msra.mxu0 %v869
        %913 = vmatprep.subr.bf16.mxu0 0
        %914 = vmatpush1.bf16.msra.mxu0 %v870
        %915 = vmatprep.subr.bf16.mxu0 0
        %916 = vmatpush1.bf16.msra.mxu0 %v871
        %917 = vmatprep.subr.bf16.mxu0 0
        %918 = vmatpush1.bf16.msra.mxu0 %v872
        %919 = vmatprep.subr.bf16.mxu0 0
        %920 = vmatpush1.bf16.msra.mxu0 %v873
        %921 = vmatprep.subr.bf16.mxu0 0
        %922 = vmatpush1.bf16.msra.mxu0 %v874
        %923 = vmatprep.mubr.bf16.mxu0 %v732
        %924 = vmatmul.mubr.bf16.gmra.mrb[0].mxu0 %v731
        %v925 = vpop.f32.mrb[0].mxu0
        %v926 = vadd.f32 0.0, %v925
        %v927 = vpop.f32.mrb[0].mxu0
        %v928 = vpop.f32.mrb[0].mxu0
        %v929 = vadd.f32 0.0, %v928
        %v930 = vpop.f32.mrb[0].mxu0
        %931 = vmatprep.mubr.bf16.mxu0 %v734
        %932 = vmatmul.mubr.bf16.gmra.mrb[0].mxu0 %v733
        %v933 = vpop.f32.mrb[0].mxu0
        %v934 = vadd.f32 0.0, %v933
        %v935 = vpop.f32.mrb[0].mxu0
        %v936 = vpop.f32.mrb[0].mxu0
        %v937 = vadd.f32 0.0, %v936
        %v938 = vpop.f32.mrb[0].mxu0
        %939 = vmatprep.mubr.bf16.mxu0 %v736
        %940 = vmatmul.mubr.bf16.gmra.mrb[0].mxu0 %v735
        %v941 = vpop.f32.mrb[0].mxu0
        %v942 = vadd.f32 0.0, %v941
        %v943 = vpop.f32.mrb[0].mxu0
        %v944 = vpop.f32.mrb[0].mxu0
        %v945 = vadd.f32 0.0, %v944
        %v946 = vpop.f32.mrb[0].mxu0
        %947 = vmatprep.mubr.bf16.mxu0 %v738
        %948 = vmatmul.mubr.bf16.gmra.mrb[0].mxu0 %v737
        %v949 = vpop.f32.mrb[0].mxu0
        %v950 = vadd.f32 0.0, %v949
        %v951 = vpop.f32.mrb[0].mxu0
        %v952 = vpop.f32.mrb[0].mxu0
        %v953 = vadd.f32 0.0, %v952
        %v954 = vpop.f32.mrb[0].mxu0
        %955 = vmatprep.mubr.bf16.mxu0 %v740
        %956 = vmatmul.mubr.bf16.gmra.mrb[0].mxu0 %v739
        %v957 = vpop.f32.mrb[0].mxu0
        %v958 = vadd.f32 0.0, %v957
        %v959 = vpop.f32.mrb[0].mxu0
        %v960 = vpop.f32.mrb[0].mxu0
        %v961 = vadd.f32 0.0, %v960
        %v962 = vpop.f32.mrb[0].mxu0
        %963 = vmatprep.mubr.bf16.mxu0 %v742
        %964 = vmatmul.mubr.bf16.gmra.mrb[0].mxu0 %v741
        %v965 = vpop.f32.mrb[0].mxu0
        %v966 = vadd.f32 0.0, %v965
        %v967 = vpop.f32.mrb[0].mxu0
        %v968 = vpop.f32.mrb[0].mxu0
        %v969 = vadd.f32 0.0, %v968
        %v970 = vpop.f32.mrb[0].mxu0
        %971 = vmatprep.mubr.bf16.mxu0 %v744
        %972 = vmatmul.mubr.bf16.gmra.mrb[0].mxu0 %v743
        %v973 = vpop.f32.mrb[0].mxu0
        %v974 = vadd.f32 0.0, %v973
        %v975 = vpop.f32.mrb[0].mxu0
        %v976 = vpop.f32.mrb[0].mxu0
        %v977 = vadd.f32 0.0, %v976
        %v978 = vpop.f32.mrb[0].mxu0
        %979 = vmatprep.mubr.bf16.mxu0 %v746
        %980 = vmatmul.mubr.bf16.gmra.mrb[0].mxu0 %v745
        %v981 = vpop.f32.mrb[0].mxu0
        %v982 = vadd.f32 0.0, %v981
        %v983 = vpop.f32.mrb[0].mxu0
        %v984 = vpop.f32.mrb[0].mxu0
        %v985 = vadd.f32 0.0, %v984
        %v986 = vpop.f32.mrb[0].mxu0
        %987 = vmatprep.mubr.bf16.mxu0 %v748
        %988 = vmatmul.mubr.bf16.gmra.mrb[0].mxu0 %v747
        %v989 = vpop.f32.mrb[0].mxu0
        %v990 = vadd.f32 0.0, %v989
        %v991 = vpop.f32.mrb[0].mxu0
        %v992 = vpop.f32.mrb[0].mxu0
        %v993 = vadd.f32 0.0, %v992
        %v994 = vpop.f32.mrb[0].mxu0
        %995 = vmatprep.mubr.bf16.mxu0 %v750
        %996 = vmatmul.mubr.bf16.gmra.mrb[0].mxu0 %v749
        %v997 = vpop.f32.mrb[0].mxu0
        %v998 = vadd.f32 0.0, %v997
        %v999 = vpop.f32.mrb[0].mxu0
        %v1000 = vpop.f32.mrb[0].mxu0
        %v1001 = vadd.f32 0.0, %v1000
        %v1002 = vpop.f32.mrb[0].mxu0
        %1003 = vmatprep.mubr.bf16.mxu0 %v752
        %1004 = vmatmul.mubr.bf16.gmra.mrb[0].mxu0 %v751
        %v1005 = vpop.f32.mrb[0].mxu0
        %v1006 = vadd.f32 0.0, %v1005
        %v1007 = vpop.f32.mrb[0].mxu0
        %v1008 = vpop.f32.mrb[0].mxu0
        %v1009 = vadd.f32 0.0, %v1008
        %v1010 = vpop.f32.mrb[0].mxu0
        %1011 = vmatprep.mubr.bf16.mxu0 %v754
        %1012 = vmatmul.mubr.bf16.gmra.mrb[0].mxu0 %v753
        %v1013 = vpop.f32.mrb[0].mxu0
        %v1014 = vadd.f32 0.0, %v1013
        %v1015 = vpop.f32.mrb[0].mxu0
        %v1016 = vpop.f32.mrb[0].mxu0
        %v1017 = vadd.f32 0.0, %v1016
        %v1018 = vpop.f32.mrb[0].mxu0
        %1019 = vmatprep.mubr.bf16.mxu0 %v756
        %1020 = vmatmul.mubr.bf16.gmra.mrb[0].mxu0 %v755
        %v1021 = vpop.f32.mrb[0].mxu0
        %v1022 = vadd.f32 0.0, %v1021
        %v1023 = vpop.f32.mrb[0].mxu0
        %v1024 = vpop.f32.mrb[0].mxu0
        %v1025 = vadd.f32 0.0, %v1024
        %v1026 = vpop.f32.mrb[0].mxu0
        %1027 = vmatprep.mubr.bf16.mxu0 %v758
        %1028 = vmatmul.mubr.bf16.gmra.mrb[0].mxu0 %v757
        %v1029 = vpop.f32.mrb[0].mxu0
        %v1030 = vadd.f32 0.0, %v1029
        %v1031 = vpop.f32.mrb[0].mxu0
        %v1032 = vpop.f32.mrb[0].mxu0
        %v1033 = vadd.f32 0.0, %v1032
        %v1034 = vpop.f32.mrb[0].mxu0
        %1035 = vmatprep.mubr.bf16.mxu0 %v760
        %1036 = vmatmul.mubr.bf16.gmra.mrb[0].mxu0 %v759
        %v1037 = vpop.f32.mrb[0].mxu0
        %v1038 = vadd.f32 0.0, %v1037
        %v1039 = vpop.f32.mrb[0].mxu0
        %v1040 = vpop.f32.mrb[0].mxu0
        %v1041 = vadd.f32 0.0, %v1040
        %v1042 = vpop.f32.mrb[0].mxu0
        %1043 = vmatprep.mubr.bf16.mxu0 %v762
        %1044 = vmatmul.mubr.bf16.gmra.mrb[0].mxu0 %v761
        %v1045 = vpop.f32.mrb[0].mxu0
        %v1046 = vadd.f32 0.0, %v1045
        %v1047 = vpop.f32.mrb[0].mxu0
        %v1048 = vpop.f32.mrb[0].mxu0
        %v1049 = vadd.f32 0.0, %v1048
        %v1050 = vpop.f32.mrb[0].mxu0
        %1051 = vdwg.mxu0
        %v1052 = vadd.f32 %v539, %v926
        %v1053 = vadd.f32 %v540, %v929
        %v1054 = vadd.f32 %v541, %v934
        %v1055 = vadd.f32 %v542, %v937
        %v1056 = vadd.f32 %v543, %v942
        %v1057 = vadd.f32 %v544, %v945
        %v1058 = vadd.f32 %v545, %v950
        %v1059 = vadd.f32 %v546, %v953
        %v1060 = vadd.f32 %v547, %v958
        %v1061 = vadd.f32 %v548, %v961
        %v1062 = vadd.f32 %v549, %v966
        %v1063 = vadd.f32 %v550, %v969
        %v1064 = vadd.f32 %v551, %v974
        %v1065 = vadd.f32 %v552, %v977
        %v1066 = vadd.f32 %v553, %v982
        %v1067 = vadd.f32 %v554, %v985
        %v1068 = vadd.f32 %v555, %v990
        %v1069 = vadd.f32 %v556, %v993
        %v1070 = vadd.f32 %v557, %v998
        %v1071 = vadd.f32 %v558, %v1001
        %v1072 = vadd.f32 %v559, %v1006
        %v1073 = vadd.f32 %v560, %v1009
        %v1074 = vadd.f32 %v561, %v1014
        %v1075 = vadd.f32 %v562, %v1017
        %v1076 = vadd.f32 %v563, %v1022
        %v1077 = vadd.f32 %v564, %v1025
        %v1078 = vadd.f32 %v565, %v1030
        %v1079 = vadd.f32 %v566, %v1033
        %v1080 = vadd.f32 %v567, %v1038
        %v1081 = vadd.f32 %v568, %v1041
        %v1082 = vadd.f32 %v569, %v1046
        %v1083 = vadd.f32 %v570, %v1049
        %1084 = vst [vmem:[#allocation2] sm:$0xff] %v1052
        %1085 = vst [vmem:[#allocation2 + $0x8] sm:$0xff] %v1053
        %1086 = vst [vmem:[#allocation2 + $0x10] sm:$0xff] %v1054
        %1087 = vst [vmem:[#allocation2 + $0x18] sm:$0xff] %v1055
        %1088 = vst [vmem:[#allocation2 + $0x20] sm:$0xff] %v1056
        %1089 = vst [vmem:[#allocation2 + $0x28] sm:$0xff] %v1057
        %1090 = vst [vmem:[#allocation2 + $0x30] sm:$0xff] %v1058
        %1091 = vst [vmem:[#allocation2 + $0x38] sm:$0xff] %v1059
        %1092 = vst [vmem:[#allocation2 + $0x40] sm:$0xff] %v1060
        %1093 = vst [vmem:[#allocation2 + $0x48] sm:$0xff] %v1061
        %1094 = vst [vmem:[#allocation2 + $0x50] sm:$0xff] %v1062
        %1095 = vst [vmem:[#allocation2 + $0x58] sm:$0xff] %v1063
        %1096 = vst [vmem:[#allocation2 + $0x60] sm:$0xff] %v1064
        %1097 = vst [vmem:[#allocation2 + $0x68] sm:$0xff] %v1065
        %1098 = vst [vmem:[#allocation2 + $0x70] sm:$0xff] %v1066
        %1099 = vst [vmem:[#allocation2 + $0x78] sm:$0xff] %v1067
        %1100 = vst [vmem:[#allocation2 + $0x80] sm:$0xff] %v1068
        %1101 = vst [vmem:[#allocation2 + $0x88] sm:$0xff] %v1069
        %1102 = vst [vmem:[#allocation2 + $0x90] sm:$0xff] %v1070
        %1103 = vst [vmem:[#allocation2 + $0x98] sm:$0xff] %v1071
        %1104 = vst [vmem:[#allocation2 + $0xa0] sm:$0xff] %v1072
        %1105 = vst [vmem:[#allocation2 + $0xa8] sm:$0xff] %v1073
        %1106 = vst [vmem:[#allocation2 + $0xb0] sm:$0xff] %v1074
        %1107 = vst [vmem:[#allocation2 + $0xb8] sm:$0xff] %v1075
        %1108 = vst [vmem:[#allocation2 + $0xc0] sm:$0xff] %v1076
        %1109 = vst [vmem:[#allocation2 + $0xc8] sm:$0xff] %v1077
        %1110 = vst [vmem:[#allocation2 + $0xd0] sm:$0xff] %v1078
        %1111 = vst [vmem:[#allocation2 + $0xd8] sm:$0xff] %v1079
        %1112 = vst [vmem:[#allocation2 + $0xe0] sm:$0xff] %v1080
        %1113 = vst [vmem:[#allocation2 + $0xe8] sm:$0xff] %v1081
        %1114 = vst [vmem:[#allocation2 + $0xf0] sm:$0xff] %v1082
        %1115 = vst [vmem:[#allocation2 + $0xf8] sm:$0xff] %v1083
        %p1116 = scmp.eq.s32.totalorder %s23, 1
        // Predicated region
        $region91: #{dgcn_layer_forward.10} parent=81 // pred_check
          %p1117 = pneg %p1116
        $region92: #{dgcn_layer_forward.10} parent=81 // pred_check_branch
          %1119 = sbr.rel (%p1117) target = $region94
        $region93: #{dgcn_layer_forward.10} parent=81 // pred_region
          %v1120 = vld [vmem:[#allocation2] sm:$0xff]
          %v1121 = vld [vmem:[#allocation2 + $0x8] sm:$0xff]
          %v1122 = vld [vmem:[#allocation2 + $0x10] sm:$0xff]
          %v1123 = vld [vmem:[#allocation2 + $0x18] sm:$0xff]
          %v1124 = vld [vmem:[#allocation2 + $0x20] sm:$0xff]
          %v1125 = vld [vmem:[#allocation2 + $0x28] sm:$0xff]
          %v1126 = vld [vmem:[#allocation2 + $0x30] sm:$0xff]
          %v1127 = vld [vmem:[#allocation2 + $0x38] sm:$0xff]
          %v1128 = vld [vmem:[#allocation2 + $0x40] sm:$0xff]
          %v1129 = vld [vmem:[#allocation2 + $0x48] sm:$0xff]
          %v1130 = vld [vmem:[#allocation2 + $0x50] sm:$0xff]
          %v1131 = vld [vmem:[#allocation2 + $0x58] sm:$0xff]
          %v1132 = vld [vmem:[#allocation2 + $0x60] sm:$0xff]
          %v1133 = vld [vmem:[#allocation2 + $0x68] sm:$0xff]
          %v1134 = vld [vmem:[#allocation2 + $0x70] sm:$0xff]
          %v1135 = vld [vmem:[#allocation2 + $0x78] sm:$0xff]
          %v1136 = vld [vmem:[#allocation2 + $0x80] sm:$0xff]
          %v1137 = vld [vmem:[#allocation2 + $0x88] sm:$0xff]
          %v1138 = vld [vmem:[#allocation2 + $0x90] sm:$0xff]
          %v1139 = vld [vmem:[#allocation2 + $0x98] sm:$0xff]
          %v1140 = vld [vmem:[#allocation2 + $0xa0] sm:$0xff]
          %v1141 = vld [vmem:[#allocation2 + $0xa8] sm:$0xff]
          %v1142 = vld [vmem:[#allocation2 + $0xb0] sm:$0xff]
          %v1143 = vld [vmem:[#allocation2 + $0xb8] sm:$0xff]
          %v1144 = vld [vmem:[#allocation2 + $0xc0] sm:$0xff]
          %v1145 = vld [vmem:[#allocation2 + $0xc8] sm:$0xff]
          %v1146 = vld [vmem:[#allocation2 + $0xd0] sm:$0xff]
          %v1147 = vld [vmem:[#allocation2 + $0xd8] sm:$0xff]
          %v1148 = vld [vmem:[#allocation2 + $0xe0] sm:$0xff]
          %v1149 = vld [vmem:[#allocation2 + $0xe8] sm:$0xff]
          %v1150 = vld [vmem:[#allocation2 + $0xf0] sm:$0xff]
          %v1151 = vld [vmem:[#allocation2 + $0xf8] sm:$0xff]
          %v1152 = vld [vmem:[%s2] sm:$0x1]
          %v1154 = vlaneseq
          %v1155 = vshrl.u32 %v1154, 7
          %v1156 = vsub.s32 0, %v1155
          %v1157 = vrot.slane %v1152, %v1156
          %v1159 = vadd.f32 %v1120, %v1157
          %v1160 = vadd.f32 %v1121, %v1157
          %v1161 = vadd.f32 %v1122, %v1157
          %v1162 = vadd.f32 %v1123, %v1157
          %v1163 = vadd.f32 %v1124, %v1157
          %v1164 = vadd.f32 %v1125, %v1157
          %v1165 = vadd.f32 %v1126, %v1157
          %v1166 = vadd.f32 %v1127, %v1157
          %v1167 = vadd.f32 %v1128, %v1157
          %v1168 = vadd.f32 %v1129, %v1157
          %v1169 = vadd.f32 %v1130, %v1157
          %v1170 = vadd.f32 %v1131, %v1157
          %v1171 = vadd.f32 %v1132, %v1157
          %v1172 = vadd.f32 %v1133, %v1157
          %v1173 = vadd.f32 %v1134, %v1157
          %v1174 = vadd.f32 %v1135, %v1157
          %v1175 = vadd.f32 %v1136, %v1157
          %v1176 = vadd.f32 %v1137, %v1157
          %v1177 = vadd.f32 %v1138, %v1157
          %v1178 = vadd.f32 %v1139, %v1157
          %v1179 = vadd.f32 %v1140, %v1157
          %v1180 = vadd.f32 %v1141, %v1157
          %v1181 = vadd.f32 %v1142, %v1157
          %v1182 = vadd.f32 %v1143, %v1157
          %v1183 = vadd.f32 %v1144, %v1157
          %v1184 = vadd.f32 %v1145, %v1157
          %v1185 = vadd.f32 %v1146, %v1157
          %v1186 = vadd.f32 %v1147, %v1157
          %v1187 = vadd.f32 %v1148, %v1157
          %v1188 = vadd.f32 %v1149, %v1157
          %v1189 = vadd.f32 %v1150, %v1157
          %v1190 = vadd.f32 %v1151, %v1157
          %vm1191 = vcmp.gt.f32.partialorder %v1159, 0.0
          %vm1192 = vcmp.gt.f32.partialorder %v1160, 0.0
          %vm1193 = vcmp.gt.f32.partialorder %v1161, 0.0
          %vm1194 = vcmp.gt.f32.partialorder %v1162, 0.0
          %vm1195 = vcmp.gt.f32.partialorder %v1163, 0.0
          %vm1196 = vcmp.gt.f32.partialorder %v1164, 0.0
          %vm1197 = vcmp.gt.f32.partialorder %v1165, 0.0
          %vm1198 = vcmp.gt.f32.partialorder %v1166, 0.0
          %vm1199 = vcmp.gt.f32.partialorder %v1167, 0.0
          %vm1200 = vcmp.gt.f32.partialorder %v1168, 0.0
          %vm1201 = vcmp.gt.f32.partialorder %v1169, 0.0
          %vm1202 = vcmp.gt.f32.partialorder %v1170, 0.0
          %vm1203 = vcmp.gt.f32.partialorder %v1171, 0.0
          %vm1204 = vcmp.gt.f32.partialorder %v1172, 0.0
          %vm1205 = vcmp.gt.f32.partialorder %v1173, 0.0
          %vm1206 = vcmp.gt.f32.partialorder %v1174, 0.0
          %vm1207 = vcmp.gt.f32.partialorder %v1175, 0.0
          %vm1208 = vcmp.gt.f32.partialorder %v1176, 0.0
          %vm1209 = vcmp.gt.f32.partialorder %v1177, 0.0
          %vm1210 = vcmp.gt.f32.partialorder %v1178, 0.0
          %vm1211 = vcmp.gt.f32.partialorder %v1179, 0.0
          %vm1212 = vcmp.gt.f32.partialorder %v1180, 0.0
          %vm1213 = vcmp.gt.f32.partialorder %v1181, 0.0
          %vm1214 = vcmp.gt.f32.partialorder %v1182, 0.0
          %vm1215 = vcmp.gt.f32.partialorder %v1183, 0.0
          %vm1216 = vcmp.gt.f32.partialorder %v1184, 0.0
          %vm1217 = vcmp.gt.f32.partialorder %v1185, 0.0
          %vm1218 = vcmp.gt.f32.partialorder %v1186, 0.0
          %vm1219 = vcmp.gt.f32.partialorder %v1187, 0.0
          %vm1220 = vcmp.gt.f32.partialorder %v1188, 0.0
          %vm1221 = vcmp.gt.f32.partialorder %v1189, 0.0
          %vm1222 = vcmp.gt.f32.partialorder %v1190, 0.0
          %v1223 = vmul.f32 %v1159, 0.1
          %v1224 = vmul.f32 %v1160, 0.1
          %v1225 = vmul.f32 %v1161, 0.1
          %v1226 = vmul.f32 %v1162, 0.1
          %v1227 = vmul.f32 %v1163, 0.1
          %v1228 = vmul.f32 %v1164, 0.1
          %v1229 = vmul.f32 %v1165, 0.1
          %v1230 = vmul.f32 %v1166, 0.1
          %v1231 = vmul.f32 %v1167, 0.1
          %v1232 = vmul.f32 %v1168, 0.1
          %v1233 = vmul.f32 %v1169, 0.1
          %v1234 = vmul.f32 %v1170, 0.1
          %v1235 = vmul.f32 %v1171, 0.1
          %v1236 = vmul.f32 %v1172, 0.1
          %v1237 = vmul.f32 %v1173, 0.1
          %v1238 = vmul.f32 %v1174, 0.1
          %v1239 = vmul.f32 %v1175, 0.1
          %v1240 = vmul.f32 %v1176, 0.1
          %v1241 = vmul.f32 %v1177, 0.1
          %v1242 = vmul.f32 %v1178, 0.1
          %v1243 = vmul.f32 %v1179, 0.1
          %v1244 = vmul.f32 %v1180, 0.1
          %v1245 = vmul.f32 %v1181, 0.1
          %v1246 = vmul.f32 %v1182, 0.1
          %v1247 = vmul.f32 %v1183, 0.1
          %v1248 = vmul.f32 %v1184, 0.1
          %v1249 = vmul.f32 %v1185, 0.1
          %v1250 = vmul.f32 %v1186, 0.1
          %v1251 = vmul.f32 %v1187, 0.1
          %v1252 = vmul.f32 %v1188, 0.1
          %v1253 = vmul.f32 %v1189, 0.1
          %v1254 = vmul.f32 %v1190, 0.1
          %v1255 = vsel %vm1191, %v1159, %v1223
          %v1256 = vsel %vm1192, %v1160, %v1224
          %v1257 = vsel %vm1193, %v1161, %v1225
          %v1258 = vsel %vm1194, %v1162, %v1226
          %v1259 = vsel %vm1195, %v1163, %v1227
          %v1260 = vsel %vm1196, %v1164, %v1228
          %v1261 = vsel %vm1197, %v1165, %v1229
          %v1262 = vsel %vm1198, %v1166, %v1230
          %v1263 = vsel %vm1199, %v1167, %v1231
          %v1264 = vsel %vm1200, %v1168, %v1232
          %v1265 = vsel %vm1201, %v1169, %v1233
          %v1266 = vsel %vm1202, %v1170, %v1234
          %v1267 = vsel %vm1203, %v1171, %v1235
          %v1268 = vsel %vm1204, %v1172, %v1236
          %v1269 = vsel %vm1205, %v1173, %v1237
          %v1270 = vsel %vm1206, %v1174, %v1238
          %v1271 = vsel %vm1207, %v1175, %v1239
          %v1272 = vsel %vm1208, %v1176, %v1240
          %v1273 = vsel %vm1209, %v1177, %v1241
          %v1274 = vsel %vm1210, %v1178, %v1242
          %v1275 = vsel %vm1211, %v1179, %v1243
          %v1276 = vsel %vm1212, %v1180, %v1244
          %v1277 = vsel %vm1213, %v1181, %v1245
          %v1278 = vsel %vm1214, %v1182, %v1246
          %v1279 = vsel %vm1215, %v1183, %v1247
          %v1280 = vsel %vm1216, %v1184, %v1248
          %v1281 = vsel %vm1217, %v1185, %v1249
          %v1282 = vsel %vm1218, %v1186, %v1250
          %v1283 = vsel %vm1219, %v1187, %v1251
          %v1284 = vsel %vm1220, %v1188, %v1252
          %v1285 = vsel %vm1221, %v1189, %v1253
          %v1286 = vsel %vm1222, %v1190, %v1254
          %v1287 = vpack.c.bf16 %v1256, %v1255
          %v1288 = vpack.c.bf16 %v1258, %v1257
          %v1289 = vpack.c.bf16 %v1260, %v1259
          %v1290 = vpack.c.bf16 %v1262, %v1261
          %v1291 = vpack.c.bf16 %v1264, %v1263
          %v1292 = vpack.c.bf16 %v1266, %v1265
          %v1293 = vpack.c.bf16 %v1268, %v1267
          %v1294 = vpack.c.bf16 %v1270, %v1269
          %v1295 = vpack.c.bf16 %v1272, %v1271
          %v1296 = vpack.c.bf16 %v1274, %v1273
          %v1297 = vpack.c.bf16 %v1276, %v1275
          %v1298 = vpack.c.bf16 %v1278, %v1277
          %v1299 = vpack.c.bf16 %v1280, %v1279
          %v1300 = vpack.c.bf16 %v1282, %v1281
          %v1301 = vpack.c.bf16 %v1284, %v1283
          %v1302 = vpack.c.bf16 %v1286, %v1285
          %v1303 = vld [vmem:[%s4] sm:$0xf]
          %v1304 = vld [vmem:[%s4 + $0x4] sm:$0xf]
          %v1305 = vld [vmem:[%s4 + $0x8] sm:$0xf]
          %v1306 = vld [vmem:[%s4 + $0xc] sm:$0xf]
          %v1307 = vld [vmem:[%s4 + $0x10] sm:$0xf]
          %v1308 = vld [vmem:[%s4 + $0x14] sm:$0xf]
          %v1309 = vld [vmem:[%s4 + $0x18] sm:$0xf]
          %v1310 = vld [vmem:[%s4 + $0x1c] sm:$0xf]
          %v1311 = vld [vmem:[%s4 + $0x20] sm:$0xf]
          %v1312 = vld [vmem:[%s4 + $0x24] sm:$0xf]
          %v1313 = vld [vmem:[%s4 + $0x28] sm:$0xf]
          %v1314 = vld [vmem:[%s4 + $0x2c] sm:$0xf]
          %v1315 = vld [vmem:[%s4 + $0x30] sm:$0xf]
          %v1316 = vld [vmem:[%s4 + $0x34] sm:$0xf]
          %v1317 = vld [vmem:[%s4 + $0x38] sm:$0xf]
          %v1318 = vld [vmem:[%s4 + $0x3c] sm:$0xf]
          %v1319 = vld [vmem:[%s494] sm:$0xf]
          %v1320 = vld [vmem:[%s494 + $0x4] sm:$0xf]
          %v1321 = vld [vmem:[%s494 + $0x8] sm:$0xf]
          %v1322 = vld [vmem:[%s494 + $0xc] sm:$0xf]
          %v1323 = vld [vmem:[%s494 + $0x10] sm:$0xf]
          %v1324 = vld [vmem:[%s494 + $0x14] sm:$0xf]
          %v1325 = vld [vmem:[%s494 + $0x18] sm:$0xf]
          %v1326 = vld [vmem:[%s494 + $0x1c] sm:$0xf]
          %v1327 = vld [vmem:[%s494 + $0x20] sm:$0xf]
          %v1328 = vld [vmem:[%s494 + $0x24] sm:$0xf]
          %v1329 = vld [vmem:[%s494 + $0x28] sm:$0xf]
          %v1330 = vld [vmem:[%s494 + $0x2c] sm:$0xf]
          %v1331 = vld [vmem:[%s494 + $0x30] sm:$0xf]
          %v1332 = vld [vmem:[%s494 + $0x34] sm:$0xf]
          %v1333 = vld [vmem:[%s494 + $0x38] sm:$0xf]
          %v1334 = vld [vmem:[%s494 + $0x3c] sm:$0xf]
          %v1335 = vld [vmem:[%s494 + $0x40] sm:$0xf]
          %v1336 = vld [vmem:[%s494 + $0x44] sm:$0xf]
          %v1337 = vld [vmem:[%s494 + $0x48] sm:$0xf]
          %v1338 = vld [vmem:[%s494 + $0x4c] sm:$0xf]
          %v1339 = vld [vmem:[%s494 + $0x50] sm:$0xf]
          %v1340 = vld [vmem:[%s494 + $0x54] sm:$0xf]
          %v1341 = vld [vmem:[%s494 + $0x58] sm:$0xf]
          %v1342 = vld [vmem:[%s494 + $0x5c] sm:$0xf]
          %v1343 = vld [vmem:[%s494 + $0x60] sm:$0xf]
          %v1344 = vld [vmem:[%s494 + $0x64] sm:$0xf]
          %v1345 = vld [vmem:[%s494 + $0x68] sm:$0xf]
          %v1346 = vld [vmem:[%s494 + $0x6c] sm:$0xf]
          %v1347 = vld [vmem:[%s494 + $0x70] sm:$0xf]
          %v1348 = vld [vmem:[%s494 + $0x74] sm:$0xf]
          %v1349 = vld [vmem:[%s494 + $0x78] sm:$0xf]
          %v1350 = vld [vmem:[%s494 + $0x7c] sm:$0xf]
          %v1351 = vld [vmem:[%s5] sm:$0xf]
          %v1352 = vld [vmem:[%s5 + $0x4] sm:$0xf]
          %v1353 = vld [vmem:[%s5 + $0x8] sm:$0xf]
          %v1354 = vld [vmem:[%s5 + $0xc] sm:$0xf]
          %v1355 = vld [vmem:[%s5 + $0x10] sm:$0xf]
          %v1356 = vld [vmem:[%s5 + $0x14] sm:$0xf]
          %v1357 = vld [vmem:[%s5 + $0x18] sm:$0xf]
          %v1358 = vld [vmem:[%s5 + $0x1c] sm:$0xf]
          %v1359 = vld [vmem:[%s5 + $0x20] sm:$0xf]
          %v1360 = vld [vmem:[%s5 + $0x24] sm:$0xf]
          %v1361 = vld [vmem:[%s5 + $0x28] sm:$0xf]
          %v1362 = vld [vmem:[%s5 + $0x2c] sm:$0xf]
          %v1363 = vld [vmem:[%s5 + $0x30] sm:$0xf]
          %v1364 = vld [vmem:[%s5 + $0x34] sm:$0xf]
          %v1365 = vld [vmem:[%s5 + $0x38] sm:$0xf]
          %v1366 = vld [vmem:[%s5 + $0x3c] sm:$0xf]
          %v1399 = vunpack.c.l.b16 %v1319
          %v1400 = vunpack.c.l.b16 %v1320
          %v1401 = vunpack.c.l.b16 %v1321
          %v1402 = vunpack.c.l.b16 %v1322
          %v1403 = vunpack.c.l.b16 %v1323
          %v1404 = vunpack.c.l.b16 %v1324
          %v1405 = vunpack.c.l.b16 %v1325
          %v1406 = vunpack.c.l.b16 %v1326
          %v1407 = vunpack.c.l.b16 %v1327
          %v1408 = vunpack.c.l.b16 %v1328
          %v1409 = vunpack.c.l.b16 %v1329
          %v1410 = vunpack.c.l.b16 %v1330
          %v1411 = vunpack.c.l.b16 %v1331
          %v1412 = vunpack.c.l.b16 %v1332
          %v1413 = vunpack.c.l.b16 %v1333
          %v1414 = vunpack.c.l.b16 %v1334
          %v1415 = vunpack.c.l.b16 %v1335
          %v1416 = vunpack.c.l.b16 %v1336
          %v1417 = vunpack.c.l.b16 %v1337
          %v1418 = vunpack.c.l.b16 %v1338
          %v1419 = vunpack.c.l.b16 %v1339
          %v1420 = vunpack.c.l.b16 %v1340
          %v1421 = vunpack.c.l.b16 %v1341
          %v1422 = vunpack.c.l.b16 %v1342
          %v1423 = vunpack.c.l.b16 %v1343
          %v1424 = vunpack.c.l.b16 %v1344
          %v1425 = vunpack.c.l.b16 %v1345
          %v1426 = vunpack.c.l.b16 %v1346
          %v1427 = vunpack.c.l.b16 %v1347
          %v1428 = vunpack.c.l.b16 %v1348
          %v1429 = vunpack.c.l.b16 %v1349
          %v1430 = vunpack.c.l.b16 %v1350
          %v1431 = vpack.c.b16 %v1400, %v1399
          %v1432 = vpack.c.b16 %v1402, %v1401
          %v1433 = vpack.c.b16 %v1404, %v1403
          %v1434 = vpack.c.b16 %v1406, %v1405
          %v1435 = vpack.c.b16 %v1408, %v1407
          %v1436 = vpack.c.b16 %v1410, %v1409
          %v1437 = vpack.c.b16 %v1412, %v1411
          %v1438 = vpack.c.b16 %v1414, %v1413
          %v1439 = vpack.c.b16 %v1416, %v1415
          %v1440 = vpack.c.b16 %v1418, %v1417
          %v1441 = vpack.c.b16 %v1420, %v1419
          %v1442 = vpack.c.b16 %v1422, %v1421
          %v1443 = vpack.c.b16 %v1424, %v1423
          %v1444 = vpack.c.b16 %v1426, %v1425
          %v1445 = vpack.c.b16 %v1428, %v1427
          %v1446 = vpack.c.b16 %v1430, %v1429
          %v1479 = vunpack.c.l.b16 %v1351
          %v1480 = vunpack.c.l.b16 %v1352
          %v1481 = vunpack.c.l.b16 %v1353
          %v1482 = vunpack.c.l.b16 %v1354
          %v1483 = vunpack.c.l.b16 %v1355
          %v1484 = vunpack.c.l.b16 %v1356
          %v1485 = vunpack.c.l.b16 %v1357
          %v1486 = vunpack.c.l.b16 %v1358
          %v1487 = vunpack.c.l.b16 %v1359
          %v1488 = vunpack.c.l.b16 %v1360
          %v1489 = vunpack.c.l.b16 %v1361
          %v1490 = vunpack.c.l.b16 %v1362
          %v1491 = vunpack.c.l.b16 %v1363
          %v1492 = vunpack.c.l.b16 %v1364
          %v1493 = vunpack.c.l.b16 %v1365
          %v1494 = vunpack.c.l.b16 %v1366
          %v1495 = vpack.c.b16 %v1480, %v1479
          %v1496 = vpack.c.b16 %v1482, %v1481
          %v1497 = vpack.c.b16 %v1484, %v1483
          %v1498 = vpack.c.b16 %v1486, %v1485
          %v1499 = vpack.c.b16 %v1488, %v1487
          %v1500 = vpack.c.b16 %v1490, %v1489
          %v1501 = vpack.c.b16 %v1492, %v1491
          %v1502 = vpack.c.b16 %v1494, %v1493
          %1511 = vmatprep.subr.bf16.mxu0 0
          %1512 = vmatpush1.bf16.msra.mxu0 %v1495
          %1513 = vmatprep.subr.bf16.mxu0 0
          %1514 = vmatpush1.bf16.msra.mxu0 %v1496
          %1515 = vmatprep.subr.bf16.mxu0 0
          %1516 = vmatpush1.bf16.msra.mxu0 %v1497
          %1517 = vmatprep.subr.bf16.mxu0 0
          %1518 = vmatpush1.bf16.msra.mxu0 %v1498
          %1519 = vmatprep.subr.bf16.mxu0 0
          %1520 = vmatpush1.bf16.msra.mxu0 %v1499
          %1521 = vmatprep.subr.bf16.mxu0 0
          %1522 = vmatpush1.bf16.msra.mxu0 %v1500
          %1523 = vmatprep.subr.bf16.mxu0 0
          %1524 = vmatpush1.bf16.msra.mxu0 %v1501
          %1525 = vmatprep.subr.bf16.mxu0 0
          %1526 = vmatpush1.bf16.msra.mxu0 %v1502
          %1527 = vmatprep.subr.bf16.mxu0 0
          %1528 = vmatpush1.bf16.msra.mxu0 0
          %1529 = vmatprep.subr.bf16.mxu0 0
          %1530 = vmatpush1.bf16.msra.mxu0 0
          %1531 = vmatprep.subr.bf16.mxu0 0
          %1532 = vmatpush1.bf16.msra.mxu0 0
          %1533 = vmatprep.subr.bf16.mxu0 0
          %1534 = vmatpush1.bf16.msra.mxu0 0
          %1535 = vmatprep.subr.bf16.mxu0 0
          %1536 = vmatpush1.bf16.msra.mxu0 0
          %1537 = vmatprep.subr.bf16.mxu0 0
          %1538 = vmatpush1.bf16.msra.mxu0 0
          %1539 = vmatprep.subr.bf16.mxu0 0
          %1540 = vmatpush1.bf16.msra.mxu0 0
          %1541 = vmatprep.subr.bf16.mxu0 0
          %1542 = vmatpush1.bf16.msra.mxu0 0
          %1543 = vmatprep.mubr.bf16.mxu0 0
          %1544 = vmatmul.mubr.bf16.gmra.mrb[0].mxu0 %v1431
          %v1545 = vpop.f32.mrb[0].mxu0
          %v1546 = vadd.f32 0.0, %v1545
          %v1547 = vpop.f32.mrb[0].mxu0
          %v1548 = vpop.f32.mrb[0].mxu0
          %v1549 = vadd.f32 0.0, %v1548
          %v1550 = vpop.f32.mrb[0].mxu0
          %1551 = vmatprep.mubr.bf16.mxu0 0
          %1552 = vmatmul.mubr.bf16.gmra.mrb[0].mxu0 %v1432
          %v1553 = vpop.f32.mrb[0].mxu0
          %v1554 = vadd.f32 0.0, %v1553
          %v1555 = vpop.f32.mrb[0].mxu0
          %v1556 = vpop.f32.mrb[0].mxu0
          %v1557 = vadd.f32 0.0, %v1556
          %v1558 = vpop.f32.mrb[0].mxu0
          %1559 = vmatprep.mubr.bf16.mxu0 0
          %1560 = vmatmul.mubr.bf16.gmra.mrb[0].mxu0 %v1433
          %v1561 = vpop.f32.mrb[0].mxu0
          %v1562 = vadd.f32 0.0, %v1561
          %v1563 = vpop.f32.mrb[0].mxu0
          %v1564 = vpop.f32.mrb[0].mxu0
          %v1565 = vadd.f32 0.0, %v1564
          %v1566 = vpop.f32.mrb[0].mxu0
          %1567 = vmatprep.mubr.bf16.mxu0 0
          %1568 = vmatmul.mubr.bf16.gmra.mrb[0].mxu0 %v1434
          %v1569 = vpop.f32.mrb[0].mxu0
          %v1570 = vadd.f32 0.0, %v1569
          %v1571 = vpop.f32.mrb[0].mxu0
          %v1572 = vpop.f32.mrb[0].mxu0
          %v1573 = vadd.f32 0.0, %v1572
          %v1574 = vpop.f32.mrb[0].mxu0
          %1575 = vmatprep.mubr.bf16.mxu0 0
          %1576 = vmatmul.mubr.bf16.gmra.mrb[0].mxu0 %v1435
          %v1577 = vpop.f32.mrb[0].mxu0
          %v1578 = vadd.f32 0.0, %v1577
          %v1579 = vpop.f32.mrb[0].mxu0
          %v1580 = vpop.f32.mrb[0].mxu0
          %v1581 = vadd.f32 0.0, %v1580
          %v1582 = vpop.f32.mrb[0].mxu0
          %1583 = vmatprep.mubr.bf16.mxu0 0
          %1584 = vmatmul.mubr.bf16.gmra.mrb[0].mxu0 %v1436
          %v1585 = vpop.f32.mrb[0].mxu0
          %v1586 = vadd.f32 0.0, %v1585
          %v1587 = vpop.f32.mrb[0].mxu0
          %v1588 = vpop.f32.mrb[0].mxu0
          %v1589 = vadd.f32 0.0, %v1588
          %v1590 = vpop.f32.mrb[0].mxu0
          %1591 = vmatprep.mubr.bf16.mxu0 0
          %1592 = vmatmul.mubr.bf16.gmra.mrb[0].mxu0 %v1437
          %v1593 = vpop.f32.mrb[0].mxu0
          %v1594 = vadd.f32 0.0, %v1593
          %v1595 = vpop.f32.mrb[0].mxu0
          %v1596 = vpop.f32.mrb[0].mxu0
          %v1597 = vadd.f32 0.0, %v1596
          %v1598 = vpop.f32.mrb[0].mxu0
          %1599 = vmatprep.mubr.bf16.mxu0 0
          %1600 = vmatmul.mubr.bf16.gmra.mrb[0].mxu0 %v1438
          %v1601 = vpop.f32.mrb[0].mxu0
          %v1602 = vadd.f32 0.0, %v1601
          %v1603 = vpop.f32.mrb[0].mxu0
          %v1604 = vpop.f32.mrb[0].mxu0
          %v1605 = vadd.f32 0.0, %v1604
          %v1606 = vpop.f32.mrb[0].mxu0
          %1607 = vmatprep.mubr.bf16.mxu0 0
          %1608 = vmatmul.mubr.bf16.gmra.mrb[0].mxu0 %v1439
          %v1609 = vpop.f32.mrb[0].mxu0
          %v1610 = vadd.f32 0.0, %v1609
          %v1611 = vpop.f32.mrb[0].mxu0
          %v1612 = vpop.f32.mrb[0].mxu0
          %v1613 = vadd.f32 0.0, %v1612
          %v1614 = vpop.f32.mrb[0].mxu0
          %1615 = vmatprep.mubr.bf16.mxu0 0
          %1616 = vmatmul.mubr.bf16.gmra.mrb[0].mxu0 %v1440
          %v1617 = vpop.f32.mrb[0].mxu0
          %v1618 = vadd.f32 0.0, %v1617
          %v1619 = vpop.f32.mrb[0].mxu0
          %v1620 = vpop.f32.mrb[0].mxu0
          %v1621 = vadd.f32 0.0, %v1620
          %v1622 = vpop.f32.mrb[0].mxu0
          %1623 = vmatprep.mubr.bf16.mxu0 0
          %1624 = vmatmul.mubr.bf16.gmra.mrb[0].mxu0 %v1441
          %v1625 = vpop.f32.mrb[0].mxu0
          %v1626 = vadd.f32 0.0, %v1625
          %v1627 = vpop.f32.mrb[0].mxu0
          %v1628 = vpop.f32.mrb[0].mxu0
          %v1629 = vadd.f32 0.0, %v1628
          %v1630 = vpop.f32.mrb[0].mxu0
          %1631 = vmatprep.mubr.bf16.mxu0 0
          %1632 = vmatmul.mubr.bf16.gmra.mrb[0].mxu0 %v1442
          %v1633 = vpop.f32.mrb[0].mxu0
          %v1634 = vadd.f32 0.0, %v1633
          %v1635 = vpop.f32.mrb[0].mxu0
          %v1636 = vpop.f32.mrb[0].mxu0
          %v1637 = vadd.f32 0.0, %v1636
          %v1638 = vpop.f32.mrb[0].mxu0
          %1639 = vmatprep.mubr.bf16.mxu0 0
          %1640 = vmatmul.mubr.bf16.gmra.mrb[0].mxu0 %v1443
          %v1641 = vpop.f32.mrb[0].mxu0
          %v1642 = vadd.f32 0.0, %v1641
          %v1643 = vpop.f32.mrb[0].mxu0
          %v1644 = vpop.f32.mrb[0].mxu0
          %v1645 = vadd.f32 0.0, %v1644
          %v1646 = vpop.f32.mrb[0].mxu0
          %1647 = vmatprep.mubr.bf16.mxu0 0
          %1648 = vmatmul.mubr.bf16.gmra.mrb[0].mxu0 %v1444
          %v1649 = vpop.f32.mrb[0].mxu0
          %v1650 = vadd.f32 0.0, %v1649
          %v1651 = vpop.f32.mrb[0].mxu0
          %v1652 = vpop.f32.mrb[0].mxu0
          %v1653 = vadd.f32 0.0, %v1652
          %v1654 = vpop.f32.mrb[0].mxu0
          %1655 = vmatprep.mubr.bf16.mxu0 0
          %1656 = vmatmul.mubr.bf16.gmra.mrb[0].mxu0 %v1445
          %v1657 = vpop.f32.mrb[0].mxu0
          %v1658 = vadd.f32 0.0, %v1657
          %v1659 = vpop.f32.mrb[0].mxu0
          %v1660 = vpop.f32.mrb[0].mxu0
          %v1661 = vadd.f32 0.0, %v1660
          %v1662 = vpop.f32.mrb[0].mxu0
          %1663 = vmatprep.mubr.bf16.mxu0 0
          %1664 = vmatmul.mubr.bf16.gmra.mrb[0].mxu0 %v1446
          %v1665 = vpop.f32.mrb[0].mxu0
          %v1666 = vadd.f32 0.0, %v1665
          %v1667 = vpop.f32.mrb[0].mxu0
          %v1668 = vpop.f32.mrb[0].mxu0
          %v1669 = vadd.f32 0.0, %v1668
          %v1670 = vpop.f32.mrb[0].mxu0
          %1671 = vdwg.mxu0
          %v1688 = vunpack.c.l.b16 %v1303
          %v1689 = vunpack.c.l.b16 %v1304
          %v1690 = vunpack.c.l.b16 %v1305
          %v1691 = vunpack.c.l.b16 %v1306
          %v1692 = vunpack.c.l.b16 %v1307
          %v1693 = vunpack.c.l.b16 %v1308
          %v1694 = vunpack.c.l.b16 %v1309
          %v1695 = vunpack.c.l.b16 %v1310
          %v1696 = vunpack.c.l.b16 %v1311
          %v1697 = vunpack.c.l.b16 %v1312
          %v1698 = vunpack.c.l.b16 %v1313
          %v1699 = vunpack.c.l.b16 %v1314
          %v1700 = vunpack.c.l.b16 %v1315
          %v1701 = vunpack.c.l.b16 %v1316
          %v1702 = vunpack.c.l.b16 %v1317
          %v1703 = vunpack.c.l.b16 %v1318
          %v1704 = vpack.c.b16 %v1689, %v1688
          %v1705 = vpack.c.b16 %v1691, %v1690
          %v1706 = vpack.c.b16 %v1693, %v1692
          %v1707 = vpack.c.b16 %v1695, %v1694
          %v1708 = vpack.c.b16 %v1697, %v1696
          %v1709 = vpack.c.b16 %v1699, %v1698
          %v1710 = vpack.c.b16 %v1701, %v1700
          %v1711 = vpack.c.b16 %v1703, %v1702
          %1720 = vmatprep.subr.bf16.mxu0 0
          %1721 = vmatpush1.bf16.msra.mxu0 %v1704
          %1722 = vmatprep.subr.bf16.mxu0 0
          %1723 = vmatpush1.bf16.msra.mxu0 %v1705
          %1724 = vmatprep.subr.bf16.mxu0 0
          %1725 = vmatpush1.bf16.msra.mxu0 %v1706
          %1726 = vmatprep.subr.bf16.mxu0 0
          %1727 = vmatpush1.bf16.msra.mxu0 %v1707
          %1728 = vmatprep.subr.bf16.mxu0 0
          %1729 = vmatpush1.bf16.msra.mxu0 %v1708
          %1730 = vmatprep.subr.bf16.mxu0 0
          %1731 = vmatpush1.bf16.msra.mxu0 %v1709
          %1732 = vmatprep.subr.bf16.mxu0 0
          %1733 = vmatpush1.bf16.msra.mxu0 %v1710
          %1734 = vmatprep.subr.bf16.mxu0 0
          %1735 = vmatpush1.bf16.msra.mxu0 %v1711
          %1736 = vmatprep.subr.bf16.mxu0 0
          %1737 = vmatpush1.bf16.msra.mxu0 0
          %1738 = vmatprep.subr.bf16.mxu0 0
          %1739 = vmatpush1.bf16.msra.mxu0 0
          %1740 = vmatprep.subr.bf16.mxu0 0
          %1741 = vmatpush1.bf16.msra.mxu0 0
          %1742 = vmatprep.subr.bf16.mxu0 0
          %1743 = vmatpush1.bf16.msra.mxu0 0
          %1744 = vmatprep.subr.bf16.mxu0 0
          %1745 = vmatpush1.bf16.msra.mxu0 0
          %1746 = vmatprep.subr.bf16.mxu0 0
          %1747 = vmatpush1.bf16.msra.mxu0 0
          %1748 = vmatprep.subr.bf16.mxu0 0
          %1749 = vmatpush1.bf16.msra.mxu0 0
          %1750 = vmatprep.subr.bf16.mxu0 0
          %1751 = vmatpush1.bf16.msra.mxu0 0
          %1752 = vmatprep.mubr.bf16.mxu0 0
          %1753 = vmatmul.mubr.bf16.gmra.mrb[0].mxu0 %v1287
          %v1754 = vpop.f32.mrb[0].mxu0
          %v1755 = vadd.f32 %v1546, %v1754
          %v1756 = vpop.f32.mrb[0].mxu0
          %v1757 = vpop.f32.mrb[0].mxu0
          %v1758 = vadd.f32 %v1549, %v1757
          %v1759 = vpop.f32.mrb[0].mxu0
          %1760 = vmatprep.mubr.bf16.mxu0 0
          %1761 = vmatmul.mubr.bf16.gmra.mrb[0].mxu0 %v1288
          %v1762 = vpop.f32.mrb[0].mxu0
          %v1763 = vadd.f32 %v1554, %v1762
          %v1764 = vpop.f32.mrb[0].mxu0
          %v1765 = vpop.f32.mrb[0].mxu0
          %v1766 = vadd.f32 %v1557, %v1765
          %v1767 = vpop.f32.mrb[0].mxu0
          %1768 = vmatprep.mubr.bf16.mxu0 0
          %1769 = vmatmul.mubr.bf16.gmra.mrb[0].mxu0 %v1289
          %v1770 = vpop.f32.mrb[0].mxu0
          %v1771 = vadd.f32 %v1562, %v1770
          %v1772 = vpop.f32.mrb[0].mxu0
          %v1773 = vpop.f32.mrb[0].mxu0
          %v1774 = vadd.f32 %v1565, %v1773
          %v1775 = vpop.f32.mrb[0].mxu0
          %1776 = vmatprep.mubr.bf16.mxu0 0
          %1777 = vmatmul.mubr.bf16.gmra.mrb[0].mxu0 %v1290
          %v1778 = vpop.f32.mrb[0].mxu0
          %v1779 = vadd.f32 %v1570, %v1778
          %v1780 = vpop.f32.mrb[0].mxu0
          %v1781 = vpop.f32.mrb[0].mxu0
          %v1782 = vadd.f32 %v1573, %v1781
          %v1783 = vpop.f32.mrb[0].mxu0
          %1784 = vmatprep.mubr.bf16.mxu0 0
          %1785 = vmatmul.mubr.bf16.gmra.mrb[0].mxu0 %v1291
          %v1786 = vpop.f32.mrb[0].mxu0
          %v1787 = vadd.f32 %v1578, %v1786
          %v1788 = vpop.f32.mrb[0].mxu0
          %v1789 = vpop.f32.mrb[0].mxu0
          %v1790 = vadd.f32 %v1581, %v1789
          %v1791 = vpop.f32.mrb[0].mxu0
          %1792 = vmatprep.mubr.bf16.mxu0 0
          %1793 = vmatmul.mubr.bf16.gmra.mrb[0].mxu0 %v1292
          %v1794 = vpop.f32.mrb[0].mxu0
          %v1795 = vadd.f32 %v1586, %v1794
          %v1796 = vpop.f32.mrb[0].mxu0
          %v1797 = vpop.f32.mrb[0].mxu0
          %v1798 = vadd.f32 %v1589, %v1797
          %v1799 = vpop.f32.mrb[0].mxu0
          %1800 = vmatprep.mubr.bf16.mxu0 0
          %1801 = vmatmul.mubr.bf16.gmra.mrb[0].mxu0 %v1293
          %v1802 = vpop.f32.mrb[0].mxu0
          %v1803 = vadd.f32 %v1594, %v1802
          %v1804 = vpop.f32.mrb[0].mxu0
          %v1805 = vpop.f32.mrb[0].mxu0
          %v1806 = vadd.f32 %v1597, %v1805
          %v1807 = vpop.f32.mrb[0].mxu0
          %1808 = vmatprep.mubr.bf16.mxu0 0
          %1809 = vmatmul.mubr.bf16.gmra.mrb[0].mxu0 %v1294
          %v1810 = vpop.f32.mrb[0].mxu0
          %v1811 = vadd.f32 %v1602, %v1810
          %v1812 = vpop.f32.mrb[0].mxu0
          %v1813 = vpop.f32.mrb[0].mxu0
          %v1814 = vadd.f32 %v1605, %v1813
          %v1815 = vpop.f32.mrb[0].mxu0
          %1816 = vmatprep.mubr.bf16.mxu0 0
          %1817 = vmatmul.mubr.bf16.gmra.mrb[0].mxu0 %v1295
          %v1818 = vpop.f32.mrb[0].mxu0
          %v1819 = vadd.f32 %v1610, %v1818
          %v1820 = vpop.f32.mrb[0].mxu0
          %v1821 = vpop.f32.mrb[0].mxu0
          %v1822 = vadd.f32 %v1613, %v1821
          %v1823 = vpop.f32.mrb[0].mxu0
          %1824 = vmatprep.mubr.bf16.mxu0 0
          %1825 = vmatmul.mubr.bf16.gmra.mrb[0].mxu0 %v1296
          %v1826 = vpop.f32.mrb[0].mxu0
          %v1827 = vadd.f32 %v1618, %v1826
          %v1828 = vpop.f32.mrb[0].mxu0
          %v1829 = vpop.f32.mrb[0].mxu0
          %v1830 = vadd.f32 %v1621, %v1829
          %v1831 = vpop.f32.mrb[0].mxu0
          %1832 = vmatprep.mubr.bf16.mxu0 0
          %1833 = vmatmul.mubr.bf16.gmra.mrb[0].mxu0 %v1297
          %v1834 = vpop.f32.mrb[0].mxu0
          %v1835 = vadd.f32 %v1626, %v1834
          %v1836 = vpop.f32.mrb[0].mxu0
          %v1837 = vpop.f32.mrb[0].mxu0
          %v1838 = vadd.f32 %v1629, %v1837
          %v1839 = vpop.f32.mrb[0].mxu0
          %1840 = vmatprep.mubr.bf16.mxu0 0
          %1841 = vmatmul.mubr.bf16.gmra.mrb[0].mxu0 %v1298
          %v1842 = vpop.f32.mrb[0].mxu0
          %v1843 = vadd.f32 %v1634, %v1842
          %v1844 = vpop.f32.mrb[0].mxu0
          %v1845 = vpop.f32.mrb[0].mxu0
          %v1846 = vadd.f32 %v1637, %v1845
          %v1847 = vpop.f32.mrb[0].mxu0
          %1848 = vmatprep.mubr.bf16.mxu0 0
          %1849 = vmatmul.mubr.bf16.gmra.mrb[0].mxu0 %v1299
          %v1850 = vpop.f32.mrb[0].mxu0
          %v1851 = vadd.f32 %v1642, %v1850
          %v1852 = vpop.f32.mrb[0].mxu0
          %v1853 = vpop.f32.mrb[0].mxu0
          %v1854 = vadd.f32 %v1645, %v1853
          %v1855 = vpop.f32.mrb[0].mxu0
          %1856 = vmatprep.mubr.bf16.mxu0 0
          %1857 = vmatmul.mubr.bf16.gmra.mrb[0].mxu0 %v1300
          %v1858 = vpop.f32.mrb[0].mxu0
          %v1859 = vadd.f32 %v1650, %v1858
          %v1860 = vpop.f32.mrb[0].mxu0
          %v1861 = vpop.f32.mrb[0].mxu0
          %v1862 = vadd.f32 %v1653, %v1861
          %v1863 = vpop.f32.mrb[0].mxu0
          %1864 = vmatprep.mubr.bf16.mxu0 0
          %1865 = vmatmul.mubr.bf16.gmra.mrb[0].mxu0 %v1301
          %v1866 = vpop.f32.mrb[0].mxu0
          %v1867 = vadd.f32 %v1658, %v1866
          %v1868 = vpop.f32.mrb[0].mxu0
          %v1869 = vpop.f32.mrb[0].mxu0
          %v1870 = vadd.f32 %v1661, %v1869
          %v1871 = vpop.f32.mrb[0].mxu0
          %1872 = vmatprep.mubr.bf16.mxu0 0
          %1873 = vmatmul.mubr.bf16.gmra.mrb[0].mxu0 %v1302
          %v1874 = vpop.f32.mrb[0].mxu0
          %v1875 = vadd.f32 %v1666, %v1874
          %v1876 = vpop.f32.mrb[0].mxu0
          %v1877 = vpop.f32.mrb[0].mxu0
          %v1878 = vadd.f32 %v1669, %v1877
          %v1879 = vpop.f32.mrb[0].mxu0
          %1880 = vdwg.mxu0
          %v1881 = vld [vmem:[%s6] sm:$0x1]
          %v1883 = vlaneseq
          %v1884 = vshrl.u32 %v1883, 7
          %v1885 = vsub.s32 0, %v1884
          %v1886 = vrot.slane %v1881, %v1885
          %v1888 = vadd.f32 %v1755, %v1886
          %v1889 = vadd.f32 %v1758, %v1886
          %v1890 = vadd.f32 %v1763, %v1886
          %v1891 = vadd.f32 %v1766, %v1886
          %v1892 = vadd.f32 %v1771, %v1886
          %v1893 = vadd.f32 %v1774, %v1886
          %v1894 = vadd.f32 %v1779, %v1886
          %v1895 = vadd.f32 %v1782, %v1886
          %v1896 = vadd.f32 %v1787, %v1886
          %v1897 = vadd.f32 %v1790, %v1886
          %v1898 = vadd.f32 %v1795, %v1886
          %v1899 = vadd.f32 %v1798, %v1886
          %v1900 = vadd.f32 %v1803, %v1886
          %v1901 = vadd.f32 %v1806, %v1886
          %v1902 = vadd.f32 %v1811, %v1886
          %v1903 = vadd.f32 %v1814, %v1886
          %v1904 = vadd.f32 %v1819, %v1886
          %v1905 = vadd.f32 %v1822, %v1886
          %v1906 = vadd.f32 %v1827, %v1886
          %v1907 = vadd.f32 %v1830, %v1886
          %v1908 = vadd.f32 %v1835, %v1886
          %v1909 = vadd.f32 %v1838, %v1886
          %v1910 = vadd.f32 %v1843, %v1886
          %v1911 = vadd.f32 %v1846, %v1886
          %v1912 = vadd.f32 %v1851, %v1886
          %v1913 = vadd.f32 %v1854, %v1886
          %v1914 = vadd.f32 %v1859, %v1886
          %v1915 = vadd.f32 %v1862, %v1886
          %v1916 = vadd.f32 %v1867, %v1886
          %v1917 = vadd.f32 %v1870, %v1886
          %v1918 = vadd.f32 %v1875, %v1886
          %v1919 = vadd.f32 %v1878, %v1886
          %v1920 = vmax.f32 %v1888, 0.0
          %v1921 = vmax.f32 %v1889, 0.0
          %v1922 = vmax.f32 %v1890, 0.0
          %v1923 = vmax.f32 %v1891, 0.0
          %v1924 = vmax.f32 %v1892, 0.0
          %v1925 = vmax.f32 %v1893, 0.0
          %v1926 = vmax.f32 %v1894, 0.0
          %v1927 = vmax.f32 %v1895, 0.0
          %v1928 = vmax.f32 %v1896, 0.0
          %v1929 = vmax.f32 %v1897, 0.0
          %v1930 = vmax.f32 %v1898, 0.0
          %v1931 = vmax.f32 %v1899, 0.0
          %v1932 = vmax.f32 %v1900, 0.0
          %v1933 = vmax.f32 %v1901, 0.0
          %v1934 = vmax.f32 %v1902, 0.0
          %v1935 = vmax.f32 %v1903, 0.0
          %v1936 = vmax.f32 %v1904, 0.0
          %v1937 = vmax.f32 %v1905, 0.0
          %v1938 = vmax.f32 %v1906, 0.0
          %v1939 = vmax.f32 %v1907, 0.0
          %v1940 = vmax.f32 %v1908, 0.0
          %v1941 = vmax.f32 %v1909, 0.0
          %v1942 = vmax.f32 %v1910, 0.0
          %v1943 = vmax.f32 %v1911, 0.0
          %v1944 = vmax.f32 %v1912, 0.0
          %v1945 = vmax.f32 %v1913, 0.0
          %v1946 = vmax.f32 %v1914, 0.0
          %v1947 = vmax.f32 %v1915, 0.0
          %v1948 = vmax.f32 %v1916, 0.0
          %v1949 = vmax.f32 %v1917, 0.0
          %v1950 = vmax.f32 %v1918, 0.0
          %v1951 = vmax.f32 %v1919, 0.0
          %1952 = vst [vmem:[%s500] sm:$0xff] %v1920
          %1953 = vst [vmem:[%s500 + $0x8] sm:$0xff] %v1921
          %1954 = vst [vmem:[%s500 + $0x10] sm:$0xff] %v1922
          %1955 = vst [vmem:[%s500 + $0x18] sm:$0xff] %v1923
          %1956 = vst [vmem:[%s500 + $0x20] sm:$0xff] %v1924
          %1957 = vst [vmem:[%s500 + $0x28] sm:$0xff] %v1925
          %1958 = vst [vmem:[%s500 + $0x30] sm:$0xff] %v1926
          %1959 = vst [vmem:[%s500 + $0x38] sm:$0xff] %v1927
          %1960 = vst [vmem:[%s500 + $0x40] sm:$0xff] %v1928
          %1961 = vst [vmem:[%s500 + $0x48] sm:$0xff] %v1929
          %1962 = vst [vmem:[%s500 + $0x50] sm:$0xff] %v1930
          %1963 = vst [vmem:[%s500 + $0x58] sm:$0xff] %v1931
          %1964 = vst [vmem:[%s500 + $0x60] sm:$0xff] %v1932
          %1965 = vst [vmem:[%s500 + $0x68] sm:$0xff] %v1933
          %1966 = vst [vmem:[%s500 + $0x70] sm:$0xff] %v1934
          %1967 = vst [vmem:[%s500 + $0x78] sm:$0xff] %v1935
          %1968 = vst [vmem:[%s500 + $0x80] sm:$0xff] %v1936
          %1969 = vst [vmem:[%s500 + $0x88] sm:$0xff] %v1937
          %1970 = vst [vmem:[%s500 + $0x90] sm:$0xff] %v1938
          %1971 = vst [vmem:[%s500 + $0x98] sm:$0xff] %v1939
          %1972 = vst [vmem:[%s500 + $0xa0] sm:$0xff] %v1940
          %1973 = vst [vmem:[%s500 + $0xa8] sm:$0xff] %v1941
          %1974 = vst [vmem:[%s500 + $0xb0] sm:$0xff] %v1942
          %1975 = vst [vmem:[%s500 + $0xb8] sm:$0xff] %v1943
          %1976 = vst [vmem:[%s500 + $0xc0] sm:$0xff] %v1944
          %1977 = vst [vmem:[%s500 + $0xc8] sm:$0xff] %v1945
          %1978 = vst [vmem:[%s500 + $0xd0] sm:$0xff] %v1946
          %1979 = vst [vmem:[%s500 + $0xd8] sm:$0xff] %v1947
          %1980 = vst [vmem:[%s500 + $0xe0] sm:$0xff] %v1948
          %1981 = vst [vmem:[%s500 + $0xe8] sm:$0xff] %v1949
          %1982 = vst [vmem:[%s500 + $0xf0] sm:$0xff] %v1950
          %1983 = vst [vmem:[%s500 + $0xf8] sm:$0xff] %v1951
        $region94: #{dgcn_layer_forward.10} parent=81 // pred_fallthru
          _
        %s1984 = smul.u32 32, %s22
        %p1985 = scmp.lt.s32.totalorder %s1984, 31
        %s1986 = scalar_select %p1985, %s1984, 31
        %s1987 = smul.addr %s1986, 8
        %s1988 = scalar_lea.vmem %s7, %s1987
        // Predicated region
        $region95: #{dgcn_layer_forward.10} parent=81 // pred_check
          %p1989 = pneg %p212
        $region96: #{dgcn_layer_forward.10} parent=81 // pred_check_branch
          %1991 = sbr.rel (%p1989) target = $region98
        $region97: #{dgcn_layer_forward.10} parent=81 // pred_region
          %s1992 = smul.u32 32, %s22
        $region98: #{dgcn_layer_forward.10} parent=81 // pred_fallthru
          _
        // Predicated region
        $region99: #{dgcn_layer_forward.10} parent=81 // pred_check
          %p1993 = pneg %p212
        $region100: #{dgcn_layer_forward.10} parent=81 // pred_check_branch
          %1995 = sbr.rel (%p1993) target = $region102
        $region101: #{dgcn_layer_forward.10} parent=81 // pred_region
          %s1996 = smul.u32 32, %s22
          %p1997 = scmp.lt.s32.totalorder %s1996, 31
          %s1998 = scalar_select %p1997, %s1996, 31
          %s1999 = smul.addr %s1998, 8
          %s2000 = scalar_lea.vmem %s7, %s1999
        $region102: #{dgcn_layer_forward.10} parent=81 // pred_fallthru
          _
      $region82: #{dgcn_layer_forward.10} parent=5 // pred_fallthru
        _
      %p2001 = scmp.le.s32.totalorder 2, %s13
      // Predicated region
      $region103: #{dgcn_layer_forward.10} parent=5 // pred_check
        %p2002 = pneg %p2001
      $region104: #{dgcn_layer_forward.10} parent=5 // pred_check_branch
        %2004 = sbr.rel (%p2002) target = $region106
      $region105: #{dgcn_layer_forward.10} parent=5 // pred_region
        %s2005 = ssub.s32 %s13, 2
      $region106: #{dgcn_layer_forward.10} parent=5 // pred_fallthru
        _
    $region6: #{dgcn_layer_forward.10} parent=1 // loop_footer
      %s17 = sadd.s32 1, %s13
    $region7: #{dgcn_layer_forward.10} parent=1 // loop_footer_branch
      %12 = sbr.rel target = $region3
    $region8: #{dgcn_layer_forward.10} parent=1 // loop_exit
      _

// kernel: dgcn_layer_forward.7
$region0: #{dgcn_layer_forward.7}
  #allocation0 [shape = 'u32[]', space=smem, size = 0x4, offset = 0x4, fixed_abs, tag = 'smem constant byte address 0x4 - core index']
  #allocation1 [shape = 'u32[144,128]{1,0:T(1,128)}', space=vmem, size = 0x12000, scoped, tag = 'internal scratch']
  %s0 = inlined_call_operand.vmem [shape: bf16[512,128], index: 0, kind: input, shape index: {}]
  %s1 = inlined_call_operand.vmem [shape: bf16[128,128], index: 1, kind: input, shape index: {}]
  %s2 = inlined_call_operand.vmem [shape: bf16[512,128], index: 2, kind: output, shape index: {}]
  %s3 = sld [smem:[#allocation0]]
  $region41: #{dgcn_layer_forward.7} parent=0
    _
  %s5 = ssub.s32 1, %s3
  %s6 = scalar_select 0, %s5, %s3
  loop: start=0, step=1, limit=4
  $region2: #{dgcn_layer_forward.7} parent=0 // loop_pre_header
    _
  $region3: #{dgcn_layer_forward.7} parent=0 // loop_header
    %s8 = sphi 0, %s12
    %p9 = scmp.ge.s32.totalorder %s8, 4
    %s18 = sphi 0, %s20
    %s21 = sphi 0, %s18
    %s22 = sphi 0, %s21
    %s38 = sphi 0, %s22
    %s42 = sphi 0, %s42
    %s44 = sphi 0, %s42
    %s45 = sphi 0, %s44
    %s59 = sphi 0, %s45
    %s65 = sphi 0, %s67
    %s68 = sphi 0, %s65
    %s69 = sphi 0, %s68
    %s85 = sphi 0, %s69
  $region4: #{dgcn_layer_forward.7} parent=0 // loop_header_branch
    %11 = sbr.rel (%p9) target = $region8
  $region5: #{dgcn_layer_forward.7} parent=0 // loop_body
    %s13 = ssub.s32 %s8, 1
    %s14 = ssub.s32 %s8, 2
    %s15 = sadd.s32 %s8, 1
    %s16 = ssub.s32 %s8, %s15
    %p17 = scmp.eq.s32.totalorder %s16, 0
    %s19 = sadd.s32 %s18, 1
    %s20 = scalar_select %p17, %s18, %s19
    %p23 = pneg %p17
    %p24 = scmp.eq.s32.totalorder %s8, 1
    %p25 = por %p23, %p24
    %p26 = scmp.ne.s32.totalorder %s18, %s21
    %p27 = scmp.eq.s32.totalorder %s8, 0
    %p28 = por %p26, %p27
    %p29 = scmp.ne.s32.totalorder %s18, %s21
    %p30 = scmp.eq.s32.totalorder %s13, 1
    %p31 = por %p29, %p30
    %p32 = scmp.ne.s32.totalorder %s21, %s22
    %p33 = scmp.eq.s32.totalorder %s13, 0
    %p34 = por %p32, %p33
    %p35 = scmp.ne.s32.totalorder %s21, %s22
    %p36 = scmp.eq.s32.totalorder %s14, 1
    %p37 = por %p35, %p36
    %p39 = scmp.ne.s32.totalorder %s22, %s38
    %p40 = scmp.eq.s32.totalorder %s14, 0
    %p41 = por %p39, %p40
    %s43 = sadd.s32 %s42, 1
    %p46 = scmp.eq.s32.totalorder %s8, 1
    %p47 = scmp.ne.s32.totalorder %s42, %s44
    %p48 = scmp.eq.s32.totalorder %s8, 0
    %p49 = por %p47, %p48
    %p50 = scmp.ne.s32.totalorder %s42, %s44
    %p51 = scmp.eq.s32.totalorder %s13, 1
    %p52 = por %p50, %p51
    %p53 = scmp.ne.s32.totalorder %s44, %s45
    %p54 = scmp.eq.s32.totalorder %s13, 0
    %p55 = por %p53, %p54
    %p56 = scmp.ne.s32.totalorder %s44, %s45
    %p57 = scmp.eq.s32.totalorder %s14, 1
    %p58 = por %p56, %p57
    %p60 = scmp.ne.s32.totalorder %s45, %s59
    %p61 = scmp.eq.s32.totalorder %s14, 0
    %p62 = por %p60, %p61
    %s63 = ssub.s32 %s8, %s15
    %p64 = scmp.eq.s32.totalorder %s63, 0
    %s66 = sadd.s32 %s65, 1
    %s67 = scalar_select %p64, %s65, %s66
    %p70 = pneg %p64
    %p71 = scmp.eq.s32.totalorder %s8, 1
    %p72 = por %p70, %p71
    %p73 = scmp.ne.s32.totalorder %s65, %s68
    %p74 = scmp.eq.s32.totalorder %s8, 0
    %p75 = por %p73, %p74
    %p76 = scmp.ne.s32.totalorder %s65, %s68
    %p77 = scmp.eq.s32.totalorder %s13, 1
    %p78 = por %p76, %p77
    %p79 = scmp.ne.s32.totalorder %s68, %s69
    %p80 = scmp.eq.s32.totalorder %s13, 0
    %p81 = por %p79, %p80
    %p82 = scmp.ne.s32.totalorder %s68, %s69
    %p83 = scmp.eq.s32.totalorder %s14, 1
    %p84 = por %p82, %p83
    %p86 = scmp.ne.s32.totalorder %s69, %s85
    %p87 = scmp.eq.s32.totalorder %s14, 0
    %p88 = por %p86, %p87
    %p89 = scmp.le.s32.totalorder 1, %s8
    %p90 = scmp.lt.s32.totalorder %s8, 3
    %p91 = pnand %p89, %p90
    %p92 = pneg %p91
    // Predicated region
    $region9: #{dgcn_layer_forward.7} parent=5 // pred_check
      _
    $region10: #{dgcn_layer_forward.7} parent=5 // pred_check_branch
      %94 = sbr.rel (%p91) target = $region12
    $region11: #{dgcn_layer_forward.7} parent=5 // pred_region
      %s95 = ssub.s32 %s8, 1
      // Predicated region
      $region13: #{dgcn_layer_forward.7} parent=11 // pred_check
        %p96 = pneg %p55
      $region14: #{dgcn_layer_forward.7} parent=11 // pred_check_branch
        %98 = sbr.rel (%p96) target = $region16
      $region15: #{dgcn_layer_forward.7} parent=11 // pred_region
        _
      $region16: #{dgcn_layer_forward.7} parent=11 // pred_fallthru
        _
    $region12: #{dgcn_layer_forward.7} parent=5 // pred_fallthru
      _
    %p99 = scmp.lt.s32.totalorder %s8, 2
    // Predicated region
    $region17: #{dgcn_layer_forward.7} parent=5 // pred_check
      %p100 = pneg %p99
    $region18: #{dgcn_layer_forward.7} parent=5 // pred_check_branch
      %102 = sbr.rel (%p100) target = $region20
    $region19: #{dgcn_layer_forward.7} parent=5 // pred_region
      // Predicated region
      $region21: #{dgcn_layer_forward.7} parent=19 // pred_check
        %p103 = pneg %p28
      $region22: #{dgcn_layer_forward.7} parent=19 // pred_check_branch
        %105 = sbr.rel (%p103) target = $region24
      $region23: #{dgcn_layer_forward.7} parent=19 // pred_region
        %s106 = smul.u32 32, %s8
        %p107 = scmp.lt.s32.totalorder %s106, 63
        %s108 = scalar_select %p107, %s106, 63
        %s109 = smul.addr %s108, 4
        %s110 = scalar_lea.vmem %s0, %s109
        %s111 = smul.u32 32, %s8
      $region24: #{dgcn_layer_forward.7} parent=19 // pred_fallthru
        _
    $region20: #{dgcn_layer_forward.7} parent=5 // pred_fallthru
      _
    %p112 = scmp.le.s32.totalorder 1, %s8
    %p113 = scmp.lt.s32.totalorder %s8, 3
    %p114 = pnand %p112, %p113
    %p115 = pneg %p114
    // Predicated region
    $region25: #{dgcn_layer_forward.7} parent=5 // pred_check
      _
    $region26: #{dgcn_layer_forward.7} parent=5 // pred_check_branch
      %117 = sbr.rel (%p114) target = $region28
    $region27: #{dgcn_layer_forward.7} parent=5 // pred_region
      %s118 = ssub.s32 %s8, 1
      %s119 = smul.u32 32, %s13
      %p120 = scmp.lt.s32.totalorder %s119, 63
      %s121 = scalar_select %p120, %s119, 63
      %s122 = smul.addr %s121, 4
      %s123 = scalar_lea.vmem %s0, %s122
      %p124 = pneg %p34
      %p125 = pneg %p31
      %p126 = pneg %p55
      %p127 = pneg %p52
      %p128 = pneg %p81
      %p129 = pneg %p78
      %s130 = smul.u32 32, %s13
      %p131 = scmp.lt.s32.totalorder %s130, 63
      %s132 = scalar_select %p131, %s130, 63
      %s133 = smul.addr %s132, 4
      %s134 = scalar_lea.vmem %s2, %s133
      %s135 = smul.u32 32, %s13
      %p136 = scmp.lt.s32.totalorder %s135, 63
      %s137 = scalar_select %p136, %s135, 63
      %s138 = smul.addr %s137, 4
      %s139 = scalar_lea.vmem %s0, %s138
      %s140 = smul.u32 32, %s13
      %s141 = smul.u32 32, %s13
      %p142 = scmp.lt.s32.totalorder %s141, 63
      %s143 = scalar_select %p142, %s141, 63
      %s144 = smul.addr %s143, 4
      %s145 = scalar_lea.vmem %s2, %s144
      %s146 = smul.u32 32, %s13
      %v148 = vld [vmem:[%s139] sm:$0xf]
      %v149 = vld [vmem:[%s139 + $0x4] sm:$0xf]
      %v150 = vld [vmem:[%s139 + $0x8] sm:$0xf]
      %v151 = vld [vmem:[%s139 + $0xc] sm:$0xf]
      %v152 = vld [vmem:[%s139 + $0x10] sm:$0xf]
      %v153 = vld [vmem:[%s139 + $0x14] sm:$0xf]
      %v154 = vld [vmem:[%s139 + $0x18] sm:$0xf]
      %v155 = vld [vmem:[%s139 + $0x1c] sm:$0xf]
      %v156 = vld [vmem:[%s139 + $0x20] sm:$0xf]
      %v157 = vld [vmem:[%s139 + $0x24] sm:$0xf]
      %v158 = vld [vmem:[%s139 + $0x28] sm:$0xf]
      %v159 = vld [vmem:[%s139 + $0x2c] sm:$0xf]
      %v160 = vld [vmem:[%s139 + $0x30] sm:$0xf]
      %v161 = vld [vmem:[%s139 + $0x34] sm:$0xf]
      %v162 = vld [vmem:[%s139 + $0x38] sm:$0xf]
      %v163 = vld [vmem:[%s139 + $0x3c] sm:$0xf]
      %v164 = vld [vmem:[%s139 + $0x40] sm:$0xf]
      %v165 = vld [vmem:[%s139 + $0x44] sm:$0xf]
      %v166 = vld [vmem:[%s139 + $0x48] sm:$0xf]
      %v167 = vld [vmem:[%s139 + $0x4c] sm:$0xf]
      %v168 = vld [vmem:[%s139 + $0x50] sm:$0xf]
      %v169 = vld [vmem:[%s139 + $0x54] sm:$0xf]
      %v170 = vld [vmem:[%s139 + $0x58] sm:$0xf]
      %v171 = vld [vmem:[%s139 + $0x5c] sm:$0xf]
      %v172 = vld [vmem:[%s139 + $0x60] sm:$0xf]
      %v173 = vld [vmem:[%s139 + $0x64] sm:$0xf]
      %v174 = vld [vmem:[%s139 + $0x68] sm:$0xf]
      %v175 = vld [vmem:[%s139 + $0x6c] sm:$0xf]
      %v176 = vld [vmem:[%s139 + $0x70] sm:$0xf]
      %v177 = vld [vmem:[%s139 + $0x74] sm:$0xf]
      %v178 = vld [vmem:[%s139 + $0x78] sm:$0xf]
      %v179 = vld [vmem:[%s139 + $0x7c] sm:$0xf]
      %v180 = vld [vmem:[%s1] sm:$0xf]
      %v181 = vld [vmem:[%s1 + $0x4] sm:$0xf]
      %v182 = vld [vmem:[%s1 + $0x8] sm:$0xf]
      %v183 = vld [vmem:[%s1 + $0xc] sm:$0xf]
      %v184 = vld [vmem:[%s1 + $0x10] sm:$0xf]
      %v185 = vld [vmem:[%s1 + $0x14] sm:$0xf]
      %v186 = vld [vmem:[%s1 + $0x18] sm:$0xf]
      %v187 = vld [vmem:[%s1 + $0x1c] sm:$0xf]
      %v188 = vld [vmem:[%s1 + $0x20] sm:$0xf]
      %v189 = vld [vmem:[%s1 + $0x24] sm:$0xf]
      %v190 = vld [vmem:[%s1 + $0x28] sm:$0xf]
      %v191 = vld [vmem:[%s1 + $0x2c] sm:$0xf]
      %v192 = vld [vmem:[%s1 + $0x30] sm:$0xf]
      %v193 = vld [vmem:[%s1 + $0x34] sm:$0xf]
      %v194 = vld [vmem:[%s1 + $0x38] sm:$0xf]
      %v195 = vld [vmem:[%s1 + $0x3c] sm:$0xf]
      %v228 = vunpack.c.l.b16 %v148
      %v229 = vunpack.c.l.b16 %v149
      %v230 = vunpack.c.l.b16 %v150
      %v231 = vunpack.c.l.b16 %v151
      %v232 = vunpack.c.l.b16 %v152
      %v233 = vunpack.c.l.b16 %v153
      %v234 = vunpack.c.l.b16 %v154
      %v235 = vunpack.c.l.b16 %v155
      %v236 = vunpack.c.l.b16 %v156
      %v237 = vunpack.c.l.b16 %v157
      %v238 = vunpack.c.l.b16 %v158
      %v239 = vunpack.c.l.b16 %v159
      %v240 = vunpack.c.l.b16 %v160
      %v241 = vunpack.c.l.b16 %v161
      %v242 = vunpack.c.l.b16 %v162
      %v243 = vunpack.c.l.b16 %v163
      %v244 = vunpack.c.l.b16 %v164
      %v245 = vunpack.c.l.b16 %v165
      %v246 = vunpack.c.l.b16 %v166
      %v247 = vunpack.c.l.b16 %v167
      %v248 = vunpack.c.l.b16 %v168
      %v249 = vunpack.c.l.b16 %v169
      %v250 = vunpack.c.l.b16 %v170
      %v251 = vunpack.c.l.b16 %v171
      %v252 = vunpack.c.l.b16 %v172
      %v253 = vunpack.c.l.b16 %v173
      %v254 = vunpack.c.l.b16 %v174
      %v255 = vunpack.c.l.b16 %v175
      %v256 = vunpack.c.l.b16 %v176
      %v257 = vunpack.c.l.b16 %v177
      %v258 = vunpack.c.l.b16 %v178
      %v259 = vunpack.c.l.b16 %v179
      %v260 = vpack.c.b16 %v229, %v228
      %v261 = vpack.c.b16 %v231, %v230
      %v262 = vpack.c.b16 %v233, %v232
      %v263 = vpack.c.b16 %v235, %v234
      %v264 = vpack.c.b16 %v237, %v236
      %v265 = vpack.c.b16 %v239, %v238
      %v266 = vpack.c.b16 %v241, %v240
      %v267 = vpack.c.b16 %v243, %v242
      %v268 = vpack.c.b16 %v245, %v244
      %v269 = vpack.c.b16 %v247, %v246
      %v270 = vpack.c.b16 %v249, %v248
      %v271 = vpack.c.b16 %v251, %v250
      %v272 = vpack.c.b16 %v253, %v252
      %v273 = vpack.c.b16 %v255, %v254
      %v274 = vpack.c.b16 %v257, %v256
      %v275 = vpack.c.b16 %v259, %v258
      %v308 = vunpack.c.l.b16 %v180
      %v309 = vunpack.c.l.b16 %v181
      %v310 = vunpack.c.l.b16 %v182
      %v311 = vunpack.c.l.b16 %v183
      %v312 = vunpack.c.l.b16 %v184
      %v313 = vunpack.c.l.b16 %v185
      %v314 = vunpack.c.l.b16 %v186
      %v315 = vunpack.c.l.b16 %v187
      %v316 = vunpack.c.l.b16 %v188
      %v317 = vunpack.c.l.b16 %v189
      %v318 = vunpack.c.l.b16 %v190
      %v319 = vunpack.c.l.b16 %v191
      %v320 = vunpack.c.l.b16 %v192
      %v321 = vunpack.c.l.b16 %v193
      %v322 = vunpack.c.l.b16 %v194
      %v323 = vunpack.c.l.b16 %v195
      %v324 = vpack.c.b16 %v309, %v308
      %v325 = vpack.c.b16 %v311, %v310
      %v326 = vpack.c.b16 %v313, %v312
      %v327 = vpack.c.b16 %v315, %v314
      %v328 = vpack.c.b16 %v317, %v316
      %v329 = vpack.c.b16 %v319, %v318
      %v330 = vpack.c.b16 %v321, %v320
      %v331 = vpack.c.b16 %v323, %v322
      %340 = vmatprep.subr.bf16.mxu0 0
      %341 = vmatpush1.bf16.msra.mxu0 %v324
      %342 = vmatprep.subr.bf16.mxu0 0
      %343 = vmatpush1.bf16.msra.mxu0 %v325
      %344 = vmatprep.subr.bf16.mxu0 0
      %345 = vmatpush1.bf16.msra.mxu0 %v326
      %346 = vmatprep.subr.bf16.mxu0 0
      %347 = vmatpush1.bf16.msra.mxu0 %v327
      %348 = vmatprep.subr.bf16.mxu0 0
      %349 = vmatpush1.bf16.msra.mxu0 %v328
      %350 = vmatprep.subr.bf16.mxu0 0
      %351 = vmatpush1.bf16.msra.mxu0 %v329
      %352 = vmatprep.subr.bf16.mxu0 0
      %353 = vmatpush1.bf16.msra.mxu0 %v330
      %354 = vmatprep.subr.bf16.mxu0 0
      %355 = vmatpush1.bf16.msra.mxu0 %v331
      %356 = vmatprep.subr.bf16.mxu0 0
      %357 = vmatpush1.bf16.msra.mxu0 0
      %358 = vmatprep.subr.bf16.mxu0 0
      %359 = vmatpush1.bf16.msra.mxu0 0
      %360 = vmatprep.subr.bf16.mxu0 0
      %361 = vmatpush1.bf16.msra.mxu0 0
      %362 = vmatprep.subr.bf16.mxu0 0
      %363 = vmatpush1.bf16.msra.mxu0 0
      %364 = vmatprep.subr.bf16.mxu0 0
      %365 = vmatpush1.bf16.msra.mxu0 0
      %366 = vmatprep.subr.bf16.mxu0 0
      %367 = vmatpush1.bf16.msra.mxu0 0
      %368 = vmatprep.subr.bf16.mxu0 0
      %369 = vmatpush1.bf16.msra.mxu0 0
      %370 = vmatprep.subr.bf16.mxu0 0
      %371 = vmatpush1.bf16.msra.mxu0 0
      %372 = vmatprep.mubr.bf16.mxu0 0
      %373 = vmatmul.mubr.bf16.gmra.mrb[0].mxu0 %v260
      %v374 = vpop.f32.mrb[0].mxu0
      %v375 = vadd.f32 0.0, %v374
      %v376 = vpop.f32.mrb[0].mxu0
      %v377 = vpop.f32.mrb[0].mxu0
      %v378 = vadd.f32 0.0, %v377
      %v379 = vpop.f32.mrb[0].mxu0
      %380 = vmatprep.mubr.bf16.mxu0 0
      %381 = vmatmul.mubr.bf16.gmra.mrb[0].mxu0 %v261
      %v382 = vpop.f32.mrb[0].mxu0
      %v383 = vadd.f32 0.0, %v382
      %v384 = vpop.f32.mrb[0].mxu0
      %v385 = vpop.f32.mrb[0].mxu0
      %v386 = vadd.f32 0.0, %v385
      %v387 = vpop.f32.mrb[0].mxu0
      %388 = vmatprep.mubr.bf16.mxu0 0
      %389 = vmatmul.mubr.bf16.gmra.mrb[0].mxu0 %v262
      %v390 = vpop.f32.mrb[0].mxu0
      %v391 = vadd.f32 0.0, %v390
      %v392 = vpop.f32.mrb[0].mxu0
      %v393 = vpop.f32.mrb[0].mxu0
      %v394 = vadd.f32 0.0, %v393
      %v395 = vpop.f32.mrb[0].mxu0
      %396 = vmatprep.mubr.bf16.mxu0 0
      %397 = vmatmul.mubr.bf16.gmra.mrb[0].mxu0 %v263
      %v398 = vpop.f32.mrb[0].mxu0
      %v399 = vadd.f32 0.0, %v398
      %v400 = vpop.f32.mrb[0].mxu0
      %v401 = vpop.f32.mrb[0].mxu0
      %v402 = vadd.f32 0.0, %v401
      %v403 = vpop.f32.mrb[0].mxu0
      %404 = vmatprep.mubr.bf16.mxu0 0
      %405 = vmatmul.mubr.bf16.gmra.mrb[0].mxu0 %v264
      %v406 = vpop.f32.mrb[0].mxu0
      %v407 = vadd.f32 0.0, %v406
      %v408 = vpop.f32.mrb[0].mxu0
      %v409 = vpop.f32.mrb[0].mxu0
      %v410 = vadd.f32 0.0, %v409
      %v411 = vpop.f32.mrb[0].mxu0
      %412 = vmatprep.mubr.bf16.mxu0 0
      %413 = vmatmul.mubr.bf16.gmra.mrb[0].mxu0 %v265
      %v414 = vpop.f32.mrb[0].mxu0
      %v415 = vadd.f32 0.0, %v414
      %v416 = vpop.f32.mrb[0].mxu0
      %v417 = vpop.f32.mrb[0].mxu0
      %v418 = vadd.f32 0.0, %v417
      %v419 = vpop.f32.mrb[0].mxu0
      %420 = vmatprep.mubr.bf16.mxu0 0
      %421 = vmatmul.mubr.bf16.gmra.mrb[0].mxu0 %v266
      %v422 = vpop.f32.mrb[0].mxu0
      %v423 = vadd.f32 0.0, %v422
      %v424 = vpop.f32.mrb[0].mxu0
      %v425 = vpop.f32.mrb[0].mxu0
      %v426 = vadd.f32 0.0, %v425
      %v427 = vpop.f32.mrb[0].mxu0
      %428 = vmatprep.mubr.bf16.mxu0 0
      %429 = vmatmul.mubr.bf16.gmra.mrb[0].mxu0 %v267
      %v430 = vpop.f32.mrb[0].mxu0
      %v431 = vadd.f32 0.0, %v430
      %v432 = vpop.f32.mrb[0].mxu0
      %v433 = vpop.f32.mrb[0].mxu0
      %v434 = vadd.f32 0.0, %v433
      %v435 = vpop.f32.mrb[0].mxu0
      %436 = vmatprep.mubr.bf16.mxu0 0
      %437 = vmatmul.mubr.bf16.gmra.mrb[0].mxu0 %v268
      %v438 = vpop.f32.mrb[0].mxu0
      %v439 = vadd.f32 0.0, %v438
      %v440 = vpop.f32.mrb[0].mxu0
      %v441 = vpop.f32.mrb[0].mxu0
      %v442 = vadd.f32 0.0, %v441
      %v443 = vpop.f32.mrb[0].mxu0
      %444 = vmatprep.mubr.bf16.mxu0 0
      %445 = vmatmul.mubr.bf16.gmra.mrb[0].mxu0 %v269
      %v446 = vpop.f32.mrb[0].mxu0
      %v447 = vadd.f32 0.0, %v446
      %v448 = vpop.f32.mrb[0].mxu0
      %v449 = vpop.f32.mrb[0].mxu0
      %v450 = vadd.f32 0.0, %v449
      %v451 = vpop.f32.mrb[0].mxu0
      %452 = vmatprep.mubr.bf16.mxu0 0
      %453 = vmatmul.mubr.bf16.gmra.mrb[0].mxu0 %v270
      %v454 = vpop.f32.mrb[0].mxu0
      %v455 = vadd.f32 0.0, %v454
      %v456 = vpop.f32.mrb[0].mxu0
      %v457 = vpop.f32.mrb[0].mxu0
      %v458 = vadd.f32 0.0, %v457
      %v459 = vpop.f32.mrb[0].mxu0
      %460 = vmatprep.mubr.bf16.mxu0 0
      %461 = vmatmul.mubr.bf16.gmra.mrb[0].mxu0 %v271
      %v462 = vpop.f32.mrb[0].mxu0
      %v463 = vadd.f32 0.0, %v462
      %v464 = vpop.f32.mrb[0].mxu0
      %v465 = vpop.f32.mrb[0].mxu0
      %v466 = vadd.f32 0.0, %v465
      %v467 = vpop.f32.mrb[0].mxu0
      %468 = vmatprep.mubr.bf16.mxu0 0
      %469 = vmatmul.mubr.bf16.gmra.mrb[0].mxu0 %v272
      %v470 = vpop.f32.mrb[0].mxu0
      %v471 = vadd.f32 0.0, %v470
      %v472 = vpop.f32.mrb[0].mxu0
      %v473 = vpop.f32.mrb[0].mxu0
      %v474 = vadd.f32 0.0, %v473
      %v475 = vpop.f32.mrb[0].mxu0
      %476 = vmatprep.mubr.bf16.mxu0 0
      %477 = vmatmul.mubr.bf16.gmra.mrb[0].mxu0 %v273
      %v478 = vpop.f32.mrb[0].mxu0
      %v479 = vadd.f32 0.0, %v478
      %v480 = vpop.f32.mrb[0].mxu0
      %v481 = vpop.f32.mrb[0].mxu0
      %v482 = vadd.f32 0.0, %v481
      %v483 = vpop.f32.mrb[0].mxu0
      %484 = vmatprep.mubr.bf16.mxu0 0
      %485 = vmatmul.mubr.bf16.gmra.mrb[0].mxu0 %v274
      %v486 = vpop.f32.mrb[0].mxu0
      %v487 = vadd.f32 0.0, %v486
      %v488 = vpop.f32.mrb[0].mxu0
      %v489 = vpop.f32.mrb[0].mxu0
      %v490 = vadd.f32 0.0, %v489
      %v491 = vpop.f32.mrb[0].mxu0
      %492 = vmatprep.mubr.bf16.mxu0 0
      %493 = vmatmul.mubr.bf16.gmra.mrb[0].mxu0 %v275
      %v494 = vpop.f32.mrb[0].mxu0
      %v495 = vadd.f32 0.0, %v494
      %v496 = vpop.f32.mrb[0].mxu0
      %v497 = vpop.f32.mrb[0].mxu0
      %v498 = vadd.f32 0.0, %v497
      %v499 = vpop.f32.mrb[0].mxu0
      %500 = vdwg.mxu0
      %v501 = vpack.c.bf16 %v378, %v375
      %v502 = vpack.c.bf16 %v386, %v383
      %v503 = vpack.c.bf16 %v394, %v391
      %v504 = vpack.c.bf16 %v402, %v399
      %v505 = vpack.c.bf16 %v410, %v407
      %v506 = vpack.c.bf16 %v418, %v415
      %v507 = vpack.c.bf16 %v426, %v423
      %v508 = vpack.c.bf16 %v434, %v431
      %v509 = vpack.c.bf16 %v442, %v439
      %v510 = vpack.c.bf16 %v450, %v447
      %v511 = vpack.c.bf16 %v458, %v455
      %v512 = vpack.c.bf16 %v466, %v463
      %v513 = vpack.c.bf16 %v474, %v471
      %v514 = vpack.c.bf16 %v482, %v479
      %v515 = vpack.c.bf16 %v490, %v487
      %v516 = vpack.c.bf16 %v498, %v495
      %v533 = vunpack.c.l.b16 %v501
      %v534 = vunpack.c.h.b16 %v501
      %v535 = vunpack.c.l.b16 %v502
      %v536 = vunpack.c.h.b16 %v502
      %v537 = vunpack.c.l.b16 %v503
      %v538 = vunpack.c.h.b16 %v503
      %v539 = vunpack.c.l.b16 %v504
      %v540 = vunpack.c.h.b16 %v504
      %v541 = vunpack.c.l.b16 %v505
      %v542 = vunpack.c.h.b16 %v505
      %v543 = vunpack.c.l.b16 %v506
      %v544 = vunpack.c.h.b16 %v506
      %v545 = vunpack.c.l.b16 %v507
      %v546 = vunpack.c.h.b16 %v507
      %v547 = vunpack.c.l.b16 %v508
      %v548 = vunpack.c.h.b16 %v508
      %v549 = vunpack.c.l.b16 %v509
      %v550 = vunpack.c.h.b16 %v509
      %v551 = vunpack.c.l.b16 %v510
      %v552 = vunpack.c.h.b16 %v510
      %v553 = vunpack.c.l.b16 %v511
      %v554 = vunpack.c.h.b16 %v511
      %v555 = vunpack.c.l.b16 %v512
      %v556 = vunpack.c.h.b16 %v512
      %v557 = vunpack.c.l.b16 %v513
      %v558 = vunpack.c.h.b16 %v513
      %v559 = vunpack.c.l.b16 %v514
      %v560 = vunpack.c.h.b16 %v514
      %v561 = vunpack.c.l.b16 %v515
      %v562 = vunpack.c.h.b16 %v515
      %v563 = vunpack.c.l.b16 %v516
      %v564 = vunpack.c.h.b16 %v516
      %v565 = vpack.c.b16 %v533, %v533
      %v566 = vpack.c.b16 %v534, %v534
      %v567 = vpack.c.b16 %v535, %v535
      %v568 = vpack.c.b16 %v536, %v536
      %v569 = vpack.c.b16 %v537, %v537
      %v570 = vpack.c.b16 %v538, %v538
      %v571 = vpack.c.b16 %v539, %v539
      %v572 = vpack.c.b16 %v540, %v540
      %v573 = vpack.c.b16 %v541, %v541
      %v574 = vpack.c.b16 %v542, %v542
      %v575 = vpack.c.b16 %v543, %v543
      %v576 = vpack.c.b16 %v544, %v544
      %v577 = vpack.c.b16 %v545, %v545
      %v578 = vpack.c.b16 %v546, %v546
      %v579 = vpack.c.b16 %v547, %v547
      %v580 = vpack.c.b16 %v548, %v548
      %v581 = vpack.c.b16 %v549, %v549
      %v582 = vpack.c.b16 %v550, %v550
      %v583 = vpack.c.b16 %v551, %v551
      %v584 = vpack.c.b16 %v552, %v552
      %v585 = vpack.c.b16 %v553, %v553
      %v586 = vpack.c.b16 %v554, %v554
      %v587 = vpack.c.b16 %v555, %v555
      %v588 = vpack.c.b16 %v556, %v556
      %v589 = vpack.c.b16 %v557, %v557
      %v590 = vpack.c.b16 %v558, %v558
      %v591 = vpack.c.b16 %v559, %v559
      %v592 = vpack.c.b16 %v560, %v560
      %v593 = vpack.c.b16 %v561, %v561
      %v594 = vpack.c.b16 %v562, %v562
      %v595 = vpack.c.b16 %v563, %v563
      %v596 = vpack.c.b16 %v564, %v564
      %629 = vst [vmem:[%s145] sm:$0xf] %v565
      %630 = vst [vmem:[%s145 + $0x4] sm:$0xf] %v566
      %631 = vst [vmem:[%s145 + $0x8] sm:$0xf] %v567
      %632 = vst [vmem:[%s145 + $0xc] sm:$0xf] %v568
      %633 = vst [vmem:[%s145 + $0x10] sm:$0xf] %v569
      %634 = vst [vmem:[%s145 + $0x14] sm:$0xf] %v570
      %635 = vst [vmem:[%s145 + $0x18] sm:$0xf] %v571
      %636 = vst [vmem:[%s145 + $0x1c] sm:$0xf] %v572
      %637 = vst [vmem:[%s145 + $0x20] sm:$0xf] %v573
      %638 = vst [vmem:[%s145 + $0x24] sm:$0xf] %v574
      %639 = vst [vmem:[%s145 + $0x28] sm:$0xf] %v575
      %640 = vst [vmem:[%s145 + $0x2c] sm:$0xf] %v576
      %641 = vst [vmem:[%s145 + $0x30] sm:$0xf] %v577
      %642 = vst [vmem:[%s145 + $0x34] sm:$0xf] %v578
      %643 = vst [vmem:[%s145 + $0x38] sm:$0xf] %v579
      %644 = vst [vmem:[%s145 + $0x3c] sm:$0xf] %v580
      %645 = vst [vmem:[%s145 + $0x40] sm:$0xf] %v581
      %646 = vst [vmem:[%s145 + $0x44] sm:$0xf] %v582
      %647 = vst [vmem:[%s145 + $0x48] sm:$0xf] %v583
      %648 = vst [vmem:[%s145 + $0x4c] sm:$0xf] %v584
      %649 = vst [vmem:[%s145 + $0x50] sm:$0xf] %v585
      %650 = vst [vmem:[%s145 + $0x54] sm:$0xf] %v586
      %651 = vst [vmem:[%s145 + $0x58] sm:$0xf] %v587
      %652 = vst [vmem:[%s145 + $0x5c] sm:$0xf] %v588
      %653 = vst [vmem:[%s145 + $0x60] sm:$0xf] %v589
      %654 = vst [vmem:[%s145 + $0x64] sm:$0xf] %v590
      %655 = vst [vmem:[%s145 + $0x68] sm:$0xf] %v591
      %656 = vst [vmem:[%s145 + $0x6c] sm:$0xf] %v592
      %657 = vst [vmem:[%s145 + $0x70] sm:$0xf] %v593
      %658 = vst [vmem:[%s145 + $0x74] sm:$0xf] %v594
      %659 = vst [vmem:[%s145 + $0x78] sm:$0xf] %v595
      %660 = vst [vmem:[%s145 + $0x7c] sm:$0xf] %v596
      %s661 = smul.u32 32, %s13
      %p662 = scmp.lt.s32.totalorder %s661, 63
      %s663 = scalar_select %p662, %s661, 63
      %s664 = smul.addr %s663, 4
      %s665 = scalar_lea.vmem %s2, %s664
      // Predicated region
      $region29: #{dgcn_layer_forward.7} parent=27 // pred_check
        %p666 = pneg %p78
      $region30: #{dgcn_layer_forward.7} parent=27 // pred_check_branch
        %668 = sbr.rel (%p666) target = $region32
      $region31: #{dgcn_layer_forward.7} parent=27 // pred_region
        %s669 = smul.u32 32, %s13
      $region32: #{dgcn_layer_forward.7} parent=27 // pred_fallthru
        _
    $region28: #{dgcn_layer_forward.7} parent=5 // pred_fallthru
      _
    %p670 = scmp.le.s32.totalorder 2, %s8
    // Predicated region
    $region33: #{dgcn_layer_forward.7} parent=5 // pred_check
      %p671 = pneg %p670
    $region34: #{dgcn_layer_forward.7} parent=5 // pred_check_branch
      %673 = sbr.rel (%p671) target = $region36
    $region35: #{dgcn_layer_forward.7} parent=5 // pred_region
      %s674 = ssub.s32 %s8, 2
      // Predicated region
      $region37: #{dgcn_layer_forward.7} parent=35 // pred_check
        %p675 = pneg %p84
      $region38: #{dgcn_layer_forward.7} parent=35 // pred_check_branch
        %677 = sbr.rel (%p675) target = $region40
      $region39: #{dgcn_layer_forward.7} parent=35 // pred_region
        %s678 = smul.u32 32, %s14
        %p679 = scmp.lt.s32.totalorder %s678, 63
        %s680 = scalar_select %p679, %s678, 63
        %s681 = smul.addr %s680, 4
        %s682 = scalar_lea.vmem %s2, %s681
      $region40: #{dgcn_layer_forward.7} parent=35 // pred_fallthru
        _
    $region36: #{dgcn_layer_forward.7} parent=5 // pred_fallthru
      _
  $region6: #{dgcn_layer_forward.7} parent=0 // loop_footer
    %s12 = sadd.s32 1, %s8
  $region7: #{dgcn_layer_forward.7} parent=0 // loop_footer_branch
    %7 = sbr.rel target = $region3
  $region8: #{dgcn_layer_forward.7} parent=0 // loop_exit
    _

// kernel: dgcn_layer_forward.9
$region0: #{dgcn_layer_forward.9}
  #allocation0 [shape = 'u32[]', space=smem, size = 0x4, offset = 0x4, fixed_abs, tag = 'smem constant byte address 0x4 - core index']
  #allocation1 [shape = 'u32[144,128]{1,0:T(1,128)}', space=vmem, size = 0x12000, scoped, tag = 'internal scratch']
  #allocation2 [shape = 'f32[256,128]{1,0:T(8,128)}', space=vmem, size = 0x20000, scoped, tag = 'scratch operand']
  %s0 = inlined_call_operand.vmem [shape: bf16[256,512], index: 0, kind: input, shape index: {}]
  %s1 = inlined_call_operand.vmem [shape: bf16[512,128], index: 1, kind: input, shape index: {}]
  %s2 = inlined_call_operand.vmem [shape: f32[1,128], index: 2, kind: input, shape index: {}]
  %s3 = inlined_call_operand.vmem [shape: bf16[128,128], index: 3, kind: input, shape index: {}]
  %s4 = inlined_call_operand.vmem [shape: bf16[256,128], index: 4, kind: output, shape index: {}]
  %s5 = sld [smem:[#allocation0]]
  $region95: #{dgcn_layer_forward.9} parent=0
    _
  %s7 = ssub.s32 1, %s5
  %s8 = scalar_select 0, %s7, %s5
  $region1: #{dgcn_layer_forward.9} parent=0
    #allocation3 [shape = 'u8[262144]{0}', space=vmem, size = 0x40000, scoped, tag = 'input window, operand 0']
    loop: start=0, step=1, limit=4
    $region2: #{dgcn_layer_forward.9} parent=1 // loop_pre_header
      _
    $region3: #{dgcn_layer_forward.9} parent=1 // loop_header
      %s10 = sphi 0, %s14
      %p11 = scmp.ge.s32.totalorder %s10, 4
      %s17 = sphi 0, %s29
      %s18 = sphi 0, %s25
      %s19 = sphi 0, %s17
      %s20 = sphi 0, %s18
      %s21 = sphi 0, %s19
      %s22 = sphi 0, %s20
      %s34 = sphi 0, %s36
      %s37 = sphi 0, %s34
      %s38 = sphi 0, %s37
      %s54 = sphi 0, %s38
      %s60 = sphi 0, %s62
      %s63 = sphi 0, %s60
      %s64 = sphi 0, %s63
      %s80 = sphi 0, %s64
      %s84 = sphi 0, %s84
      %s86 = sphi 0, %s84
      %s87 = sphi 0, %s86
      %s101 = sphi 0, %s87
      %s105 = sphi 0, %s105
      %s107 = sphi 0, %s105
      %s108 = sphi 0, %s107
      %s122 = sphi 0, %s108
      %s128 = sphi 0, %s130
      %s131 = sphi 0, %s128
      %s132 = sphi 0, %s131
      %s148 = sphi 0, %s132
    $region4: #{dgcn_layer_forward.9} parent=1 // loop_header_branch
      %13 = sbr.rel (%p11) target = $region8
    $region5: #{dgcn_layer_forward.9} parent=1 // loop_body
      %s15 = ssub.s32 %s10, 1
      %s16 = ssub.s32 %s10, 2
      %s23 = sadd.s32 1, %s18
      %p24 = scmp.ge.s32.totalorder %s23, 2
      %s25 = scalar_select %p24, 0, %s23
      %s26 = sadd.s32 1, %s17
      %s27 = scalar_select %p24, %s26, %s17
      %p28 = scmp.ge.s32.totalorder %s27, 1
      %s29 = scalar_select %p28, 0, %s27
      %s30 = ssub.s32 %s17, %s29
      %s31 = ssub.s32 %s18, %s25
      %s32 = sor.u32 %s30, %s31
      %p33 = scmp.eq.s32.totalorder %s32, 0
      %s35 = sadd.s32 %s34, 1
      %s36 = scalar_select %p33, %s34, %s35
      %p39 = pneg %p33
      %p40 = scmp.eq.s32.totalorder %s10, 1
      %p41 = por %p39, %p40
      %p42 = scmp.ne.s32.totalorder %s34, %s37
      %p43 = scmp.eq.s32.totalorder %s10, 0
      %p44 = por %p42, %p43
      %p45 = scmp.ne.s32.totalorder %s34, %s37
      %p46 = scmp.eq.s32.totalorder %s15, 1
      %p47 = por %p45, %p46
      %p48 = scmp.ne.s32.totalorder %s37, %s38
      %p49 = scmp.eq.s32.totalorder %s15, 0
      %p50 = por %p48, %p49
      %p51 = scmp.ne.s32.totalorder %s37, %s38
      %p52 = scmp.eq.s32.totalorder %s16, 1
      %p53 = por %p51, %p52
      %p55 = scmp.ne.s32.totalorder %s38, %s54
      %p56 = scmp.eq.s32.totalorder %s16, 0
      %p57 = por %p55, %p56
      %s58 = ssub.s32 %s18, %s25
      %p59 = scmp.eq.s32.totalorder %s58, 0
      %s61 = sadd.s32 %s60, 1
      %s62 = scalar_select %p59, %s60, %s61
      %p65 = pneg %p59
      %p66 = scmp.eq.s32.totalorder %s10, 1
      %p67 = por %p65, %p66
      %p68 = scmp.ne.s32.totalorder %s60, %s63
      %p69 = scmp.eq.s32.totalorder %s10, 0
      %p70 = por %p68, %p69
      %p71 = scmp.ne.s32.totalorder %s60, %s63
      %p72 = scmp.eq.s32.totalorder %s15, 1
      %p73 = por %p71, %p72
      %p74 = scmp.ne.s32.totalorder %s63, %s64
      %p75 = scmp.eq.s32.totalorder %s15, 0
      %p76 = por %p74, %p75
      %p77 = scmp.ne.s32.totalorder %s63, %s64
      %p78 = scmp.eq.s32.totalorder %s16, 1
      %p79 = por %p77, %p78
      %p81 = scmp.ne.s32.totalorder %s64, %s80
      %p82 = scmp.eq.s32.totalorder %s16, 0
      %p83 = por %p81, %p82
      %s85 = sadd.s32 %s84, 1
      %p88 = scmp.eq.s32.totalorder %s10, 1
      %p89 = scmp.ne.s32.totalorder %s84, %s86
      %p90 = scmp.eq.s32.totalorder %s10, 0
      %p91 = por %p89, %p90
      %p92 = scmp.ne.s32.totalorder %s84, %s86
      %p93 = scmp.eq.s32.totalorder %s15, 1
      %p94 = por %p92, %p93
      %p95 = scmp.ne.s32.totalorder %s86, %s87
      %p96 = scmp.eq.s32.totalorder %s15, 0
      %p97 = por %p95, %p96
      %p98 = scmp.ne.s32.totalorder %s86, %s87
      %p99 = scmp.eq.s32.totalorder %s16, 1
      %p100 = por %p98, %p99
      %p102 = scmp.ne.s32.totalorder %s87, %s101
      %p103 = scmp.eq.s32.totalorder %s16, 0
      %p104 = por %p102, %p103
      %s106 = sadd.s32 %s105, 1
      %p109 = scmp.eq.s32.totalorder %s10, 1
      %p110 = scmp.ne.s32.totalorder %s105, %s107
      %p111 = scmp.eq.s32.totalorder %s10, 0
      %p112 = por %p110, %p111
      %p113 = scmp.ne.s32.totalorder %s105, %s107
      %p114 = scmp.eq.s32.totalorder %s15, 1
      %p115 = por %p113, %p114
      %p116 = scmp.ne.s32.totalorder %s107, %s108
      %p117 = scmp.eq.s32.totalorder %s15, 0
      %p118 = por %p116, %p117
      %p119 = scmp.ne.s32.totalorder %s107, %s108
      %p120 = scmp.eq.s32.totalorder %s16, 1
      %p121 = por %p119, %p120
      %p123 = scmp.ne.s32.totalorder %s108, %s122
      %p124 = scmp.eq.s32.totalorder %s16, 0
      %p125 = por %p123, %p124
      %s126 = ssub.s32 %s17, %s29
      %p127 = scmp.eq.s32.totalorder %s126, 0
      %s129 = sadd.s32 %s128, 1
      %s130 = scalar_select %p127, %s128, %s129
      %p133 = pneg %p127
      %p134 = scmp.eq.s32.totalorder %s10, 1
      %p135 = por %p133, %p134
      %p136 = scmp.ne.s32.totalorder %s128, %s131
      %p137 = scmp.eq.s32.totalorder %s10, 0
      %p138 = por %p136, %p137
      %p139 = scmp.ne.s32.totalorder %s128, %s131
      %p140 = scmp.eq.s32.totalorder %s15, 1
      %p141 = por %p139, %p140
      %p142 = scmp.ne.s32.totalorder %s131, %s132
      %p143 = scmp.eq.s32.totalorder %s15, 0
      %p144 = por %p142, %p143
      %p145 = scmp.ne.s32.totalorder %s131, %s132
      %p146 = scmp.eq.s32.totalorder %s16, 1
      %p147 = por %p145, %p146
      %p149 = scmp.ne.s32.totalorder %s132, %s148
      %p150 = scmp.eq.s32.totalorder %s16, 0
      %p151 = por %p149, %p150
      %p152 = scmp.le.s32.totalorder 1, %s10
      %p153 = scmp.lt.s32.totalorder %s10, 3
      %p154 = pnand %p152, %p153
      %p155 = pneg %p154
      // Predicated region
      $region9: #{dgcn_layer_forward.9} parent=5 // pred_check
        _
      $region10: #{dgcn_layer_forward.9} parent=5 // pred_check_branch
        %157 = sbr.rel (%p154) target = $region12
      $region11: #{dgcn_layer_forward.9} parent=5 // pred_region
        %s158 = ssub.s32 %s10, 1
        // Predicated region
        $region13: #{dgcn_layer_forward.9} parent=11 // pred_check
          %p159 = pneg %p97
        $region14: #{dgcn_layer_forward.9} parent=11 // pred_check_branch
          %161 = sbr.rel (%p159) target = $region16
        $region15: #{dgcn_layer_forward.9} parent=11 // pred_region
          _
        $region16: #{dgcn_layer_forward.9} parent=11 // pred_fallthru
          _
        // Predicated region
        $region17: #{dgcn_layer_forward.9} parent=11 // pred_check
          %p162 = pneg %p118
        $region18: #{dgcn_layer_forward.9} parent=11 // pred_check_branch
          %164 = sbr.rel (%p162) target = $region20
        $region19: #{dgcn_layer_forward.9} parent=11 // pred_region
          _
        $region20: #{dgcn_layer_forward.9} parent=11 // pred_fallthru
          _
      $region12: #{dgcn_layer_forward.9} parent=5 // pred_fallthru
        _
      %p165 = scmp.lt.s32.totalorder %s10, 2
      // Predicated region
      $region21: #{dgcn_layer_forward.9} parent=5 // pred_check
        %p166 = pneg %p165
      $region22: #{dgcn_layer_forward.9} parent=5 // pred_check_branch
        %168 = sbr.rel (%p166) target = $region24
      $region23: #{dgcn_layer_forward.9} parent=5 // pred_region
        // Predicated region
        $region25: #{dgcn_layer_forward.9} parent=23 // pred_check
          %p169 = pneg %p44
        $region26: #{dgcn_layer_forward.9} parent=23 // pred_check_branch
          %171 = sbr.rel (%p169) target = $region28
        $region27: #{dgcn_layer_forward.9} parent=23 // pred_region
          %s172 = sand.u32 %s34, 1
          %s173 = sand.u32 %s34, 1
          %s174 = smul.addr %s173, 256
          %s175 = scalar_lea.vmem [#allocation3], %s174
          %s176 = smul.u32 32, %s17
          %s177 = smul.u32 2, %s18
          %s178 = smul.addr %s176, 4
          %s179 = sadd.s32 %s177, %s178
          %s180 = smul.addr %s179, 4
          %s181 = scalar_lea.vmem %s0, %s180
          // Predicated region
          $region29: #{dgcn_layer_forward.9} parent=27 // pred_check
            _
          $region30: #{dgcn_layer_forward.9} parent=27 // pred_check_branch
            %183 = sbr.rel (0) target = $region32
          $region31: #{dgcn_layer_forward.9} parent=27 // pred_region
            // Predicated region
            $region33: #{dgcn_layer_forward.9} parent=31 // pred_check
              _
            $region34: #{dgcn_layer_forward.9} parent=31 // pred_check_branch
              %185 = sbr.rel (0) target = $region36
            $region35: #{dgcn_layer_forward.9} parent=31 // pred_region
              // Predicated region
              $region48: #{dgcn_layer_forward.9} parent=35 // pred_check
                _
              $region49: #{dgcn_layer_forward.9} parent=35 // pred_check_branch
                %262 = sbr.rel (0) target = $region51
              $region50: #{dgcn_layer_forward.9} parent=35 // pred_region
                loop: start=0, step=1, limit=1
                $region52: #{dgcn_layer_forward.9} parent=50 // loop_pre_header
                  _
                $region53: #{dgcn_layer_forward.9} parent=50 // loop_header
                  %s264 = sphi 0, %s268
                  %p265 = scmp.ge.s32.totalorder %s264, 1
                  %s269 = sphi %s181, %s181
                  %s270 = sphi %s175, %s175
                $region54: #{dgcn_layer_forward.9} parent=50 // loop_header_branch
                  %267 = sbr.rel (%p265) target = $region58
                $region55: #{dgcn_layer_forward.9} parent=50 // loop_body
                  %v271 = vld [vmem:[%s269] sm:$0xff]
                  %272 = vst [vmem:[%s270] sm:$0xff] %v271
                  %v273 = vld [vmem:[%s269 + $0x10] sm:$0xff]
                  %274 = vst [vmem:[%s270 + $0x8] sm:$0xff] %v273
                  %v275 = vld [vmem:[%s269 + $0x20] sm:$0xff]
                  %276 = vst [vmem:[%s270 + $0x10] sm:$0xff] %v275
                  %v277 = vld [vmem:[%s269 + $0x30] sm:$0xff]
                  %278 = vst [vmem:[%s270 + $0x18] sm:$0xff] %v277
                  %v279 = vld [vmem:[%s269 + $0x40] sm:$0xff]
                  %280 = vst [vmem:[%s270 + $0x20] sm:$0xff] %v279
                  %v281 = vld [vmem:[%s269 + $0x50] sm:$0xff]
                  %282 = vst [vmem:[%s270 + $0x28] sm:$0xff] %v281
                  %v283 = vld [vmem:[%s269 + $0x60] sm:$0xff]
                  %284 = vst [vmem:[%s270 + $0x30] sm:$0xff] %v283
                  %v285 = vld [vmem:[%s269 + $0x70] sm:$0xff]
                  %286 = vst [vmem:[%s270 + $0x38] sm:$0xff] %v285
                  %v287 = vld [vmem:[%s269 + $0x80] sm:$0xff]
                  %288 = vst [vmem:[%s270 + $0x40] sm:$0xff] %v287
                  %v289 = vld [vmem:[%s269 + $0x90] sm:$0xff]
                  %290 = vst [vmem:[%s270 + $0x48] sm:$0xff] %v289
                  %v291 = vld [vmem:[%s269 + $0xa0] sm:$0xff]
                  %292 = vst [vmem:[%s270 + $0x50] sm:$0xff] %v291
                  %v293 = vld [vmem:[%s269 + $0xb0] sm:$0xff]
                  %294 = vst [vmem:[%s270 + $0x58] sm:$0xff] %v293
                  %v295 = vld [vmem:[%s269 + $0xc0] sm:$0xff]
                  %296 = vst [vmem:[%s270 + $0x60] sm:$0xff] %v295
                  %v297 = vld [vmem:[%s269 + $0xd0] sm:$0xff]
                  %298 = vst [vmem:[%s270 + $0x68] sm:$0xff] %v297
                  %v299 = vld [vmem:[%s269 + $0xe0] sm:$0xff]
                  %300 = vst [vmem:[%s270 + $0x70] sm:$0xff] %v299
                  %v301 = vld [vmem:[%s269 + $0xf0] sm:$0xff]
                  %302 = vst [vmem:[%s270 + $0x78] sm:$0xff] %v301
                  %v303 = vld [vmem:[%s269 + $0x100] sm:$0xff]
                  %304 = vst [vmem:[%s270 + $0x80] sm:$0xff] %v303
                  %v305 = vld [vmem:[%s269 + $0x110] sm:$0xff]
                  %306 = vst [vmem:[%s270 + $0x88] sm:$0xff] %v305
                  %v307 = vld [vmem:[%s269 + $0x120] sm:$0xff]
                  %308 = vst [vmem:[%s270 + $0x90] sm:$0xff] %v307
                  %v309 = vld [vmem:[%s269 + $0x130] sm:$0xff]
                  %310 = vst [vmem:[%s270 + $0x98] sm:$0xff] %v309
                  %v311 = vld [vmem:[%s269 + $0x140] sm:$0xff]
                  %312 = vst [vmem:[%s270 + $0xa0] sm:$0xff] %v311
                  %v313 = vld [vmem:[%s269 + $0x150] sm:$0xff]
                  %314 = vst [vmem:[%s270 + $0xa8] sm:$0xff] %v313
                  %v315 = vld [vmem:[%s269 + $0x160] sm:$0xff]
                  %316 = vst [vmem:[%s270 + $0xb0] sm:$0xff] %v315
                  %v317 = vld [vmem:[%s269 + $0x170] sm:$0xff]
                  %318 = vst [vmem:[%s270 + $0xb8] sm:$0xff] %v317
                  %v319 = vld [vmem:[%s269 + $0x180] sm:$0xff]
                  %320 = vst [vmem:[%s270 + $0xc0] sm:$0xff] %v319
                  %v321 = vld [vmem:[%s269 + $0x190] sm:$0xff]
                  %322 = vst [vmem:[%s270 + $0xc8] sm:$0xff] %v321
                  %v323 = vld [vmem:[%s269 + $0x1a0] sm:$0xff]
                  %324 = vst [vmem:[%s270 + $0xd0] sm:$0xff] %v323
                  %v325 = vld [vmem:[%s269 + $0x1b0] sm:$0xff]
                  %326 = vst [vmem:[%s270 + $0xd8] sm:$0xff] %v325
                  %v327 = vld [vmem:[%s269 + $0x1c0] sm:$0xff]
                  %328 = vst [vmem:[%s270 + $0xe0] sm:$0xff] %v327
                  %v329 = vld [vmem:[%s269 + $0x1d0] sm:$0xff]
                  %330 = vst [vmem:[%s270 + $0xe8] sm:$0xff] %v329
                  %v331 = vld [vmem:[%s269 + $0x1e0] sm:$0xff]
                  %332 = vst [vmem:[%s270 + $0xf0] sm:$0xff] %v331
                  %v333 = vld [vmem:[%s269 + $0x1f0] sm:$0xff]
                  %334 = vst [vmem:[%s270 + $0xf8] sm:$0xff] %v333
                $region56: #{dgcn_layer_forward.9} parent=50 // loop_footer
                  %s268 = sadd.s32 1, %s264
                $region57: #{dgcn_layer_forward.9} parent=50 // loop_footer_branch
                  %263 = sbr.rel target = $region53
                $region58: #{dgcn_layer_forward.9} parent=50 // loop_exit
                  _
              $region51: #{dgcn_layer_forward.9} parent=35 // pred_fallthru
                _
              // Predicated region
              $region59: #{dgcn_layer_forward.9} parent=35 // pred_check
                _
              $region60: #{dgcn_layer_forward.9} parent=35 // pred_check_branch
                %336 = sbr.rel target = $region62
              $region61: #{dgcn_layer_forward.9} parent=35 // pred_region
                _
              $region62: #{dgcn_layer_forward.9} parent=35 // pred_fallthru
                _
            $region36: #{dgcn_layer_forward.9} parent=31 // pred_fallthru
              _
            // Predicated region
            $region37: #{dgcn_layer_forward.9} parent=31 // pred_check
              _
            $region38: #{dgcn_layer_forward.9} parent=31 // pred_check_branch
              %187 = sbr.rel target = $region40
            $region39: #{dgcn_layer_forward.9} parent=31 // pred_region
              loop: start=0, step=1, limit=1
              $region41: #{dgcn_layer_forward.9} parent=39 // loop_pre_header
                _
              $region42: #{dgcn_layer_forward.9} parent=39 // loop_header
                %s190 = sphi 0, %s194
                %p191 = scmp.ge.s32.totalorder %s190, 1
                %s195 = sphi %s181, %s181
                %s196 = sphi %s175, %s175
              $region43: #{dgcn_layer_forward.9} parent=39 // loop_header_branch
                %193 = sbr.rel (%p191) target = $region47
              $region44: #{dgcn_layer_forward.9} parent=39 // loop_body
                %v197 = vld [vmem:[%s195] sm:$0xff]
                %198 = vst [vmem:[%s196] sm:$0xff] %v197
                %v199 = vld [vmem:[%s195 + $0x10] sm:$0xff]
                %200 = vst [vmem:[%s196 + $0x8] sm:$0xff] %v199
                %v201 = vld [vmem:[%s195 + $0x20] sm:$0xff]
                %202 = vst [vmem:[%s196 + $0x10] sm:$0xff] %v201
                %v203 = vld [vmem:[%s195 + $0x30] sm:$0xff]
                %204 = vst [vmem:[%s196 + $0x18] sm:$0xff] %v203
                %v205 = vld [vmem:[%s195 + $0x40] sm:$0xff]
                %206 = vst [vmem:[%s196 + $0x20] sm:$0xff] %v205
                %v207 = vld [vmem:[%s195 + $0x50] sm:$0xff]
                %208 = vst [vmem:[%s196 + $0x28] sm:$0xff] %v207
                %v209 = vld [vmem:[%s195 + $0x60] sm:$0xff]
                %210 = vst [vmem:[%s196 + $0x30] sm:$0xff] %v209
                %v211 = vld [vmem:[%s195 + $0x70] sm:$0xff]
                %212 = vst [vmem:[%s196 + $0x38] sm:$0xff] %v211
                %v213 = vld [vmem:[%s195 + $0x80] sm:$0xff]
                %214 = vst [vmem:[%s196 + $0x40] sm:$0xff] %v213
                %v215 = vld [vmem:[%s195 + $0x90] sm:$0xff]
                %216 = vst [vmem:[%s196 + $0x48] sm:$0xff] %v215
                %v217 = vld [vmem:[%s195 + $0xa0] sm:$0xff]
                %218 = vst [vmem:[%s196 + $0x50] sm:$0xff] %v217
                %v219 = vld [vmem:[%s195 + $0xb0] sm:$0xff]
                %220 = vst [vmem:[%s196 + $0x58] sm:$0xff] %v219
                %v221 = vld [vmem:[%s195 + $0xc0] sm:$0xff]
                %222 = vst [vmem:[%s196 + $0x60] sm:$0xff] %v221
                %v223 = vld [vmem:[%s195 + $0xd0] sm:$0xff]
                %224 = vst [vmem:[%s196 + $0x68] sm:$0xff] %v223
                %v225 = vld [vmem:[%s195 + $0xe0] sm:$0xff]
                %226 = vst [vmem:[%s196 + $0x70] sm:$0xff] %v225
                %v227 = vld [vmem:[%s195 + $0xf0] sm:$0xff]
                %228 = vst [vmem:[%s196 + $0x78] sm:$0xff] %v227
                %v229 = vld [vmem:[%s195 + $0x100] sm:$0xff]
                %230 = vst [vmem:[%s196 + $0x80] sm:$0xff] %v229
                %v231 = vld [vmem:[%s195 + $0x110] sm:$0xff]
                %232 = vst [vmem:[%s196 + $0x88] sm:$0xff] %v231
                %v233 = vld [vmem:[%s195 + $0x120] sm:$0xff]
                %234 = vst [vmem:[%s196 + $0x90] sm:$0xff] %v233
                %v235 = vld [vmem:[%s195 + $0x130] sm:$0xff]
                %236 = vst [vmem:[%s196 + $0x98] sm:$0xff] %v235
                %v237 = vld [vmem:[%s195 + $0x140] sm:$0xff]
                %238 = vst [vmem:[%s196 + $0xa0] sm:$0xff] %v237
                %v239 = vld [vmem:[%s195 + $0x150] sm:$0xff]
                %240 = vst [vmem:[%s196 + $0xa8] sm:$0xff] %v239
                %v241 = vld [vmem:[%s195 + $0x160] sm:$0xff]
                %242 = vst [vmem:[%s196 + $0xb0] sm:$0xff] %v241
                %v243 = vld [vmem:[%s195 + $0x170] sm:$0xff]
                %244 = vst [vmem:[%s196 + $0xb8] sm:$0xff] %v243
                %v245 = vld [vmem:[%s195 + $0x180] sm:$0xff]
                %246 = vst [vmem:[%s196 + $0xc0] sm:$0xff] %v245
                %v247 = vld [vmem:[%s195 + $0x190] sm:$0xff]
                %248 = vst [vmem:[%s196 + $0xc8] sm:$0xff] %v247
                %v249 = vld [vmem:[%s195 + $0x1a0] sm:$0xff]
                %250 = vst [vmem:[%s196 + $0xd0] sm:$0xff] %v249
                %v251 = vld [vmem:[%s195 + $0x1b0] sm:$0xff]
                %252 = vst [vmem:[%s196 + $0xd8] sm:$0xff] %v251
                %v253 = vld [vmem:[%s195 + $0x1c0] sm:$0xff]
                %254 = vst [vmem:[%s196 + $0xe0] sm:$0xff] %v253
                %v255 = vld [vmem:[%s195 + $0x1d0] sm:$0xff]
                %256 = vst [vmem:[%s196 + $0xe8] sm:$0xff] %v255
                %v257 = vld [vmem:[%s195 + $0x1e0] sm:$0xff]
                %258 = vst [vmem:[%s196 + $0xf0] sm:$0xff] %v257
                %v259 = vld [vmem:[%s195 + $0x1f0] sm:$0xff]
                %260 = vst [vmem:[%s196 + $0xf8] sm:$0xff] %v259
              $region45: #{dgcn_layer_forward.9} parent=39 // loop_footer
                %s194 = sadd.s32 1, %s190
              $region46: #{dgcn_layer_forward.9} parent=39 // loop_footer_branch
                %189 = sbr.rel target = $region42
              $region47: #{dgcn_layer_forward.9} parent=39 // loop_exit
                _
            $region40: #{dgcn_layer_forward.9} parent=31 // pred_fallthru
              _
          $region32: #{dgcn_layer_forward.9} parent=27 // pred_fallthru
            _
          %337 = vnop
        $region28: #{dgcn_layer_forward.9} parent=23 // pred_fallthru
          _
        // Predicated region
        $region63: #{dgcn_layer_forward.9} parent=23 // pred_check
          %p338 = pneg %p70
        $region64: #{dgcn_layer_forward.9} parent=23 // pred_check_branch
          %340 = sbr.rel (%p338) target = $region66
        $region65: #{dgcn_layer_forward.9} parent=23 // pred_region
          %s341 = smul.u32 32, %s18
          %p342 = scmp.lt.s32.totalorder %s341, 63
          %s343 = scalar_select %p342, %s341, 63
          %s344 = smul.addr %s343, 4
          %s345 = scalar_lea.vmem %s1, %s344
          %s346 = smul.u32 32, %s18
        $region66: #{dgcn_layer_forward.9} parent=23 // pred_fallthru
          _
      $region24: #{dgcn_layer_forward.9} parent=5 // pred_fallthru
        _
      %p347 = scmp.le.s32.totalorder 1, %s10
      %p348 = scmp.lt.s32.totalorder %s10, 3
      %p349 = pnand %p347, %p348
      %p350 = pneg %p349
      // Predicated region
      $region67: #{dgcn_layer_forward.9} parent=5 // pred_check
        _
      $region68: #{dgcn_layer_forward.9} parent=5 // pred_check_branch
        %352 = sbr.rel (%p349) target = $region70
      $region69: #{dgcn_layer_forward.9} parent=5 // pred_region
        %s353 = ssub.s32 %s10, 1
        %s354 = sand.u32 %s37, 1
        %s355 = sand.u32 %s37, 1
        %s356 = smul.addr %s355, 256
        %s357 = scalar_lea.vmem [#allocation3], %s356
        // Predicated region
        $region71: #{dgcn_layer_forward.9} parent=69 // pred_check
          %p358 = pneg %p50
        $region72: #{dgcn_layer_forward.9} parent=69 // pred_check_branch
          %360 = sbr.rel (%p358) target = $region74
        $region73: #{dgcn_layer_forward.9} parent=69 // pred_region
          _
        $region74: #{dgcn_layer_forward.9} parent=69 // pred_fallthru
          _
        %s361 = sand.u32 %s37, 1
        %s362 = sand.u32 %s37, 1
        %s363 = smul.addr %s362, 256
        %s364 = scalar_lea.vmem [#allocation3], %s363
        %p365 = pneg %p50
        %p366 = pneg %p47
        %s367 = smul.u32 32, %s20
        %p368 = scmp.lt.s32.totalorder %s367, 63
        %s369 = scalar_select %p368, %s367, 63
        %s370 = smul.addr %s369, 4
        %s371 = scalar_lea.vmem %s1, %s370
        %p372 = pneg %p76
        %p373 = pneg %p73
        %p374 = pneg %p97
        %p375 = pneg %p94
        %p376 = pneg %p118
        %p377 = pneg %p115
        %p378 = pneg %p144
        %p379 = pneg %p141
        %s380 = smul.u32 32, %s19
        %p381 = scmp.lt.s32.totalorder %s380, 31
        %s382 = scalar_select %p381, %s380, 31
        %s383 = smul.addr %s382, 4
        %s384 = scalar_lea.vmem %s4, %s383
        %s385 = smul.u32 32, %s19
        %s386 = smul.u32 2, %s20
        %s387 = smul.u32 32, %s20
        %p388 = scmp.lt.s32.totalorder %s387, 63
        %s389 = scalar_select %p388, %s387, 63
        %s390 = smul.addr %s389, 4
        %s391 = scalar_lea.vmem %s1, %s390
        %s392 = smul.u32 32, %s20
        %s393 = smul.u32 32, %s19
        %p394 = scmp.lt.s32.totalorder %s393, 31
        %s395 = scalar_select %p394, %s393, 31
        %s396 = smul.addr %s395, 4
        %s397 = scalar_lea.vmem %s4, %s396
        %s398 = smul.u32 32, %s19
        %p400 = scmp.eq.s32.totalorder %s20, 0
        // Predicated region
        $region75: #{dgcn_layer_forward.9} parent=69 // pred_check
          %p401 = pneg %p400
        $region76: #{dgcn_layer_forward.9} parent=69 // pred_check_branch
          %403 = sbr.rel (%p401) target = $region78
        $region77: #{dgcn_layer_forward.9} parent=69 // pred_region
          %404 = vst [vmem:[#allocation2] sm:$0xff] 0.0
          %405 = vst [vmem:[#allocation2 + $0x8] sm:$0xff] 0.0
          %406 = vst [vmem:[#allocation2 + $0x10] sm:$0xff] 0.0
          %407 = vst [vmem:[#allocation2 + $0x18] sm:$0xff] 0.0
          %408 = vst [vmem:[#allocation2 + $0x20] sm:$0xff] 0.0
          %409 = vst [vmem:[#allocation2 + $0x28] sm:$0xff] 0.0
          %410 = vst [vmem:[#allocation2 + $0x30] sm:$0xff] 0.0
          %411 = vst [vmem:[#allocation2 + $0x38] sm:$0xff] 0.0
          %412 = vst [vmem:[#allocation2 + $0x40] sm:$0xff] 0.0
          %413 = vst [vmem:[#allocation2 + $0x48] sm:$0xff] 0.0
          %414 = vst [vmem:[#allocation2 + $0x50] sm:$0xff] 0.0
          %415 = vst [vmem:[#allocation2 + $0x58] sm:$0xff] 0.0
          %416 = vst [vmem:[#allocation2 + $0x60] sm:$0xff] 0.0
          %417 = vst [vmem:[#allocation2 + $0x68] sm:$0xff] 0.0
          %418 = vst [vmem:[#allocation2 + $0x70] sm:$0xff] 0.0
          %419 = vst [vmem:[#allocation2 + $0x78] sm:$0xff] 0.0
          %420 = vst [vmem:[#allocation2 + $0x80] sm:$0xff] 0.0
          %421 = vst [vmem:[#allocation2 + $0x88] sm:$0xff] 0.0
          %422 = vst [vmem:[#allocation2 + $0x90] sm:$0xff] 0.0
          %423 = vst [vmem:[#allocation2 + $0x98] sm:$0xff] 0.0
          %424 = vst [vmem:[#allocation2 + $0xa0] sm:$0xff] 0.0
          %425 = vst [vmem:[#allocation2 + $0xa8] sm:$0xff] 0.0
          %426 = vst [vmem:[#allocation2 + $0xb0] sm:$0xff] 0.0
          %427 = vst [vmem:[#allocation2 + $0xb8] sm:$0xff] 0.0
          %428 = vst [vmem:[#allocation2 + $0xc0] sm:$0xff] 0.0
          %429 = vst [vmem:[#allocation2 + $0xc8] sm:$0xff] 0.0
          %430 = vst [vmem:[#allocation2 + $0xd0] sm:$0xff] 0.0
          %431 = vst [vmem:[#allocation2 + $0xd8] sm:$0xff] 0.0
          %432 = vst [vmem:[#allocation2 + $0xe0] sm:$0xff] 0.0
          %433 = vst [vmem:[#allocation2 + $0xe8] sm:$0xff] 0.0
          %434 = vst [vmem:[#allocation2 + $0xf0] sm:$0xff] 0.0
          %435 = vst [vmem:[#allocation2 + $0xf8] sm:$0xff] 0.0
        $region78: #{dgcn_layer_forward.9} parent=69 // pred_fallthru
          _
        %v436 = vld [vmem:[#allocation2] sm:$0xff]
        %v437 = vld [vmem:[#allocation2 + $0x8] sm:$0xff]
        %v438 = vld [vmem:[#allocation2 + $0x10] sm:$0xff]
        %v439 = vld [vmem:[#allocation2 + $0x18] sm:$0xff]
        %v440 = vld [vmem:[#allocation2 + $0x20] sm:$0xff]
        %v441 = vld [vmem:[#allocation2 + $0x28] sm:$0xff]
        %v442 = vld [vmem:[#allocation2 + $0x30] sm:$0xff]
        %v443 = vld [vmem:[#allocation2 + $0x38] sm:$0xff]
        %v444 = vld [vmem:[#allocation2 + $0x40] sm:$0xff]
        %v445 = vld [vmem:[#allocation2 + $0x48] sm:$0xff]
        %v446 = vld [vmem:[#allocation2 + $0x50] sm:$0xff]
        %v447 = vld [vmem:[#allocation2 + $0x58] sm:$0xff]
        %v448 = vld [vmem:[#allocation2 + $0x60] sm:$0xff]
        %v449 = vld [vmem:[#allocation2 + $0x68] sm:$0xff]
        %v450 = vld [vmem:[#allocation2 + $0x70] sm:$0xff]
        %v451 = vld [vmem:[#allocation2 + $0x78] sm:$0xff]
        %v452 = vld [vmem:[#allocation2 + $0x80] sm:$0xff]
        %v453 = vld [vmem:[#allocation2 + $0x88] sm:$0xff]
        %v454 = vld [vmem:[#allocation2 + $0x90] sm:$0xff]
        %v455 = vld [vmem:[#allocation2 + $0x98] sm:$0xff]
        %v456 = vld [vmem:[#allocation2 + $0xa0] sm:$0xff]
        %v457 = vld [vmem:[#allocation2 + $0xa8] sm:$0xff]
        %v458 = vld [vmem:[#allocation2 + $0xb0] sm:$0xff]
        %v459 = vld [vmem:[#allocation2 + $0xb8] sm:$0xff]
        %v460 = vld [vmem:[#allocation2 + $0xc0] sm:$0xff]
        %v461 = vld [vmem:[#allocation2 + $0xc8] sm:$0xff]
        %v462 = vld [vmem:[#allocation2 + $0xd0] sm:$0xff]
        %v463 = vld [vmem:[#allocation2 + $0xd8] sm:$0xff]
        %v464 = vld [vmem:[#allocation2 + $0xe0] sm:$0xff]
        %v465 = vld [vmem:[#allocation2 + $0xe8] sm:$0xff]
        %v466 = vld [vmem:[#allocation2 + $0xf0] sm:$0xff]
        %v467 = vld [vmem:[#allocation2 + $0xf8] sm:$0xff]
        %v468 = vld [vmem:[%s357] sm:$0xff]
        %v469 = vld [vmem:[%s357 + $0x8] sm:$0xff]
        %v470 = vld [vmem:[%s357 + $0x10] sm:$0xff]
        %v471 = vld [vmem:[%s357 + $0x18] sm:$0xff]
        %v472 = vld [vmem:[%s357 + $0x20] sm:$0xff]
        %v473 = vld [vmem:[%s357 + $0x28] sm:$0xff]
        %v474 = vld [vmem:[%s357 + $0x30] sm:$0xff]
        %v475 = vld [vmem:[%s357 + $0x38] sm:$0xff]
        %v476 = vld [vmem:[%s357 + $0x40] sm:$0xff]
        %v477 = vld [vmem:[%s357 + $0x48] sm:$0xff]
        %v478 = vld [vmem:[%s357 + $0x50] sm:$0xff]
        %v479 = vld [vmem:[%s357 + $0x58] sm:$0xff]
        %v480 = vld [vmem:[%s357 + $0x60] sm:$0xff]
        %v481 = vld [vmem:[%s357 + $0x68] sm:$0xff]
        %v482 = vld [vmem:[%s357 + $0x70] sm:$0xff]
        %v483 = vld [vmem:[%s357 + $0x78] sm:$0xff]
        %v484 = vld [vmem:[%s357 + $0x80] sm:$0xff]
        %v485 = vld [vmem:[%s357 + $0x88] sm:$0xff]
        %v486 = vld [vmem:[%s357 + $0x90] sm:$0xff]
        %v487 = vld [vmem:[%s357 + $0x98] sm:$0xff]
        %v488 = vld [vmem:[%s357 + $0xa0] sm:$0xff]
        %v489 = vld [vmem:[%s357 + $0xa8] sm:$0xff]
        %v490 = vld [vmem:[%s357 + $0xb0] sm:$0xff]
        %v491 = vld [vmem:[%s357 + $0xb8] sm:$0xff]
        %v492 = vld [vmem:[%s357 + $0xc0] sm:$0xff]
        %v493 = vld [vmem:[%s357 + $0xc8] sm:$0xff]
        %v494 = vld [vmem:[%s357 + $0xd0] sm:$0xff]
        %v495 = vld [vmem:[%s357 + $0xd8] sm:$0xff]
        %v496 = vld [vmem:[%s357 + $0xe0] sm:$0xff]
        %v497 = vld [vmem:[%s357 + $0xe8] sm:$0xff]
        %v498 = vld [vmem:[%s357 + $0xf0] sm:$0xff]
        %v499 = vld [vmem:[%s357 + $0xf8] sm:$0xff]
        %v500 = vld [vmem:[%s391] sm:$0xf]
        %v501 = vld [vmem:[%s391 + $0x4] sm:$0xf]
        %v502 = vld [vmem:[%s391 + $0x8] sm:$0xf]
        %v503 = vld [vmem:[%s391 + $0xc] sm:$0xf]
        %v504 = vld [vmem:[%s391 + $0x10] sm:$0xf]
        %v505 = vld [vmem:[%s391 + $0x14] sm:$0xf]
        %v506 = vld [vmem:[%s391 + $0x18] sm:$0xf]
        %v507 = vld [vmem:[%s391 + $0x1c] sm:$0xf]
        %v508 = vld [vmem:[%s391 + $0x20] sm:$0xf]
        %v509 = vld [vmem:[%s391 + $0x24] sm:$0xf]
        %v510 = vld [vmem:[%s391 + $0x28] sm:$0xf]
        %v511 = vld [vmem:[%s391 + $0x2c] sm:$0xf]
        %v512 = vld [vmem:[%s391 + $0x30] sm:$0xf]
        %v513 = vld [vmem:[%s391 + $0x34] sm:$0xf]
        %v514 = vld [vmem:[%s391 + $0x38] sm:$0xf]
        %v515 = vld [vmem:[%s391 + $0x3c] sm:$0xf]
        %v516 = vld [vmem:[%s391 + $0x40] sm:$0xf]
        %v517 = vld [vmem:[%s391 + $0x44] sm:$0xf]
        %v518 = vld [vmem:[%s391 + $0x48] sm:$0xf]
        %v519 = vld [vmem:[%s391 + $0x4c] sm:$0xf]
        %v520 = vld [vmem:[%s391 + $0x50] sm:$0xf]
        %v521 = vld [vmem:[%s391 + $0x54] sm:$0xf]
        %v522 = vld [vmem:[%s391 + $0x58] sm:$0xf]
        %v523 = vld [vmem:[%s391 + $0x5c] sm:$0xf]
        %v524 = vld [vmem:[%s391 + $0x60] sm:$0xf]
        %v525 = vld [vmem:[%s391 + $0x64] sm:$0xf]
        %v526 = vld [vmem:[%s391 + $0x68] sm:$0xf]
        %v527 = vld [vmem:[%s391 + $0x6c] sm:$0xf]
        %v528 = vld [vmem:[%s391 + $0x70] sm:$0xf]
        %v529 = vld [vmem:[%s391 + $0x74] sm:$0xf]
        %v530 = vld [vmem:[%s391 + $0x78] sm:$0xf]
        %v531 = vld [vmem:[%s391 + $0x7c] sm:$0xf]
        %v564 = vunpack.c.l.b16 %v468
        %v565 = vunpack.c.h.b16 %v468
        %v566 = vunpack.c.l.b16 %v469
        %v567 = vunpack.c.h.b16 %v469
        %v568 = vunpack.c.l.b16 %v470
        %v569 = vunpack.c.h.b16 %v470
        %v570 = vunpack.c.l.b16 %v471
        %v571 = vunpack.c.h.b16 %v471
        %v572 = vunpack.c.l.b16 %v472
        %v573 = vunpack.c.h.b16 %v472
        %v574 = vunpack.c.l.b16 %v473
        %v575 = vunpack.c.h.b16 %v473
        %v576 = vunpack.c.l.b16 %v474
        %v577 = vunpack.c.h.b16 %v474
        %v578 = vunpack.c.l.b16 %v475
        %v579 = vunpack.c.h.b16 %v475
        %v580 = vunpack.c.l.b16 %v476
        %v581 = vunpack.c.h.b16 %v476
        %v582 = vunpack.c.l.b16 %v477
        %v583 = vunpack.c.h.b16 %v477
        %v584 = vunpack.c.l.b16 %v478
        %v585 = vunpack.c.h.b16 %v478
        %v586 = vunpack.c.l.b16 %v479
        %v587 = vunpack.c.h.b16 %v479
        %v588 = vunpack.c.l.b16 %v480
        %v589 = vunpack.c.h.b16 %v480
        %v590 = vunpack.c.l.b16 %v481
        %v591 = vunpack.c.h.b16 %v481
        %v592 = vunpack.c.l.b16 %v482
        %v593 = vunpack.c.h.b16 %v482
        %v594 = vunpack.c.l.b16 %v483
        %v595 = vunpack.c.h.b16 %v483
        %v596 = vunpack.c.l.b16 %v484
        %v597 = vunpack.c.h.b16 %v484
        %v598 = vunpack.c.l.b16 %v485
        %v599 = vunpack.c.h.b16 %v485
        %v600 = vunpack.c.l.b16 %v486
        %v601 = vunpack.c.h.b16 %v486
        %v602 = vunpack.c.l.b16 %v487
        %v603 = vunpack.c.h.b16 %v487
        %v604 = vunpack.c.l.b16 %v488
        %v605 = vunpack.c.h.b16 %v488
        %v606 = vunpack.c.l.b16 %v489
        %v607 = vunpack.c.h.b16 %v489
        %v608 = vunpack.c.l.b16 %v490
        %v609 = vunpack.c.h.b16 %v490
        %v610 = vunpack.c.l.b16 %v491
        %v611 = vunpack.c.h.b16 %v491
        %v612 = vunpack.c.l.b16 %v492
        %v613 = vunpack.c.h.b16 %v492
        %v614 = vunpack.c.l.b16 %v493
        %v615 = vunpack.c.h.b16 %v493
        %v616 = vunpack.c.l.b16 %v494
        %v617 = vunpack.c.h.b16 %v494
        %v618 = vunpack.c.l.b16 %v495
        %v619 = vunpack.c.h.b16 %v495
        %v620 = vunpack.c.l.b16 %v496
        %v621 = vunpack.c.h.b16 %v496
        %v622 = vunpack.c.l.b16 %v497
        %v623 = vunpack.c.h.b16 %v497
        %v624 = vunpack.c.l.b16 %v498
        %v625 = vunpack.c.h.b16 %v498
        %v626 = vunpack.c.l.b16 %v499
        %v627 = vunpack.c.h.b16 %v499
        %v628 = vpack.c.b16 %v566, %v564
        %v629 = vpack.c.b16 %v567, %v565
        %v630 = vpack.c.b16 %v570, %v568
        %v631 = vpack.c.b16 %v571, %v569
        %v632 = vpack.c.b16 %v574, %v572
        %v633 = vpack.c.b16 %v575, %v573
        %v634 = vpack.c.b16 %v578, %v576
        %v635 = vpack.c.b16 %v579, %v577
        %v636 = vpack.c.b16 %v582, %v580
        %v637 = vpack.c.b16 %v583, %v581
        %v638 = vpack.c.b16 %v586, %v584
        %v639 = vpack.c.b16 %v587, %v585
        %v640 = vpack.c.b16 %v590, %v588
        %v641 = vpack.c.b16 %v591, %v589
        %v642 = vpack.c.b16 %v594, %v592
        %v643 = vpack.c.b16 %v595, %v593
        %v644 = vpack.c.b16 %v598, %v596
        %v645 = vpack.c.b16 %v599, %v597
        %v646 = vpack.c.b16 %v602, %v600
        %v647 = vpack.c.b16 %v603, %v601
        %v648 = vpack.c.b16 %v606, %v604
        %v649 = vpack.c.b16 %v607, %v605
        %v650 = vpack.c.b16 %v610, %v608
        %v651 = vpack.c.b16 %v611, %v609
        %v652 = vpack.c.b16 %v614, %v612
        %v653 = vpack.c.b16 %v615, %v613
        %v654 = vpack.c.b16 %v618, %v616
        %v655 = vpack.c.b16 %v619, %v617
        %v656 = vpack.c.b16 %v622, %v620
        %v657 = vpack.c.b16 %v623, %v621
        %v658 = vpack.c.b16 %v626, %v624
        %v659 = vpack.c.b16 %v627, %v625
        %v724 = vunpack.c.l.b16 %v500
        %v725 = vunpack.c.l.b16 %v501
        %v726 = vunpack.c.l.b16 %v502
        %v727 = vunpack.c.l.b16 %v503
        %v728 = vunpack.c.l.b16 %v504
        %v729 = vunpack.c.l.b16 %v505
        %v730 = vunpack.c.l.b16 %v506
        %v731 = vunpack.c.l.b16 %v507
        %v732 = vunpack.c.l.b16 %v508
        %v733 = vunpack.c.l.b16 %v509
        %v734 = vunpack.c.l.b16 %v510
        %v735 = vunpack.c.l.b16 %v511
        %v736 = vunpack.c.l.b16 %v512
        %v737 = vunpack.c.l.b16 %v513
        %v738 = vunpack.c.l.b16 %v514
        %v739 = vunpack.c.l.b16 %v515
        %v740 = vunpack.c.l.b16 %v516
        %v741 = vunpack.c.l.b16 %v517
        %v742 = vunpack.c.l.b16 %v518
        %v743 = vunpack.c.l.b16 %v519
        %v744 = vunpack.c.l.b16 %v520
        %v745 = vunpack.c.l.b16 %v521
        %v746 = vunpack.c.l.b16 %v522
        %v747 = vunpack.c.l.b16 %v523
        %v748 = vunpack.c.l.b16 %v524
        %v749 = vunpack.c.l.b16 %v525
        %v750 = vunpack.c.l.b16 %v526
        %v751 = vunpack.c.l.b16 %v527
        %v752 = vunpack.c.l.b16 %v528
        %v753 = vunpack.c.l.b16 %v529
        %v754 = vunpack.c.l.b16 %v530
        %v755 = vunpack.c.l.b16 %v531
        %v756 = vpack.c.b16 %v725, %v724
        %v757 = vpack.c.b16 %v727, %v726
        %v758 = vpack.c.b16 %v729, %v728
        %v759 = vpack.c.b16 %v731, %v730
        %v760 = vpack.c.b16 %v733, %v732
        %v761 = vpack.c.b16 %v735, %v734
        %v762 = vpack.c.b16 %v737, %v736
        %v763 = vpack.c.b16 %v739, %v738
        %v764 = vpack.c.b16 %v741, %v740
        %v765 = vpack.c.b16 %v743, %v742
        %v766 = vpack.c.b16 %v745, %v744
        %v767 = vpack.c.b16 %v747, %v746
        %v768 = vpack.c.b16 %v749, %v748
        %v769 = vpack.c.b16 %v751, %v750
        %v770 = vpack.c.b16 %v753, %v752
        %v771 = vpack.c.b16 %v755, %v754
        %788 = vmatprep.subr.bf16.mxu0 0
        %789 = vmatpush1.bf16.msra.mxu0 %v756
        %790 = vmatprep.subr.bf16.mxu0 0
        %791 = vmatpush1.bf16.msra.mxu0 %v757
        %792 = vmatprep.subr.bf16.mxu0 0
        %793 = vmatpush1.bf16.msra.mxu0 %v758
        %794 = vmatprep.subr.bf16.mxu0 0
        %795 = vmatpush1.bf16.msra.mxu0 %v759
        %796 = vmatprep.subr.bf16.mxu0 0
        %797 = vmatpush1.bf16.msra.mxu0 %v760
        %798 = vmatprep.subr.bf16.mxu0 0
        %799 = vmatpush1.bf16.msra.mxu0 %v761
        %800 = vmatprep.subr.bf16.mxu0 0
        %801 = vmatpush1.bf16.msra.mxu0 %v762
        %802 = vmatprep.subr.bf16.mxu0 0
        %803 = vmatpush1.bf16.msra.mxu0 %v763
        %804 = vmatprep.subr.bf16.mxu0 0
        %805 = vmatpush1.bf16.msra.mxu0 %v764
        %806 = vmatprep.subr.bf16.mxu0 0
        %807 = vmatpush1.bf16.msra.mxu0 %v765
        %808 = vmatprep.subr.bf16.mxu0 0
        %809 = vmatpush1.bf16.msra.mxu0 %v766
        %810 = vmatprep.subr.bf16.mxu0 0
        %811 = vmatpush1.bf16.msra.mxu0 %v767
        %812 = vmatprep.subr.bf16.mxu0 0
        %813 = vmatpush1.bf16.msra.mxu0 %v768
        %814 = vmatprep.subr.bf16.mxu0 0
        %815 = vmatpush1.bf16.msra.mxu0 %v769
        %816 = vmatprep.subr.bf16.mxu0 0
        %817 = vmatpush1.bf16.msra.mxu0 %v770
        %818 = vmatprep.subr.bf16.mxu0 0
        %819 = vmatpush1.bf16.msra.mxu0 %v771
        %820 = vmatprep.mubr.bf16.mxu0 %v629
        %821 = vmatmul.mubr.bf16.gmra.mrb[0].mxu0 %v628
        %v822 = vpop.f32.mrb[0].mxu0
        %v823 = vadd.f32 0.0, %v822
        %v824 = vpop.f32.mrb[0].mxu0
        %v825 = vpop.f32.mrb[0].mxu0
        %v826 = vadd.f32 0.0, %v825
        %v827 = vpop.f32.mrb[0].mxu0
        %828 = vmatprep.mubr.bf16.mxu0 %v631
        %829 = vmatmul.mubr.bf16.gmra.mrb[0].mxu0 %v630
        %v830 = vpop.f32.mrb[0].mxu0
        %v831 = vadd.f32 0.0, %v830
        %v832 = vpop.f32.mrb[0].mxu0
        %v833 = vpop.f32.mrb[0].mxu0
        %v834 = vadd.f32 0.0, %v833
        %v835 = vpop.f32.mrb[0].mxu0
        %836 = vmatprep.mubr.bf16.mxu0 %v633
        %837 = vmatmul.mubr.bf16.gmra.mrb[0].mxu0 %v632
        %v838 = vpop.f32.mrb[0].mxu0
        %v839 = vadd.f32 0.0, %v838
        %v840 = vpop.f32.mrb[0].mxu0
        %v841 = vpop.f32.mrb[0].mxu0
        %v842 = vadd.f32 0.0, %v841
        %v843 = vpop.f32.mrb[0].mxu0
        %844 = vmatprep.mubr.bf16.mxu0 %v635
        %845 = vmatmul.mubr.bf16.gmra.mrb[0].mxu0 %v634
        %v846 = vpop.f32.mrb[0].mxu0
        %v847 = vadd.f32 0.0, %v846
        %v848 = vpop.f32.mrb[0].mxu0
        %v849 = vpop.f32.mrb[0].mxu0
        %v850 = vadd.f32 0.0, %v849
        %v851 = vpop.f32.mrb[0].mxu0
        %852 = vmatprep.mubr.bf16.mxu0 %v637
        %853 = vmatmul.mubr.bf16.gmra.mrb[0].mxu0 %v636
        %v854 = vpop.f32.mrb[0].mxu0
        %v855 = vadd.f32 0.0, %v854
        %v856 = vpop.f32.mrb[0].mxu0
        %v857 = vpop.f32.mrb[0].mxu0
        %v858 = vadd.f32 0.0, %v857
        %v859 = vpop.f32.mrb[0].mxu0
        %860 = vmatprep.mubr.bf16.mxu0 %v639
        %861 = vmatmul.mubr.bf16.gmra.mrb[0].mxu0 %v638
        %v862 = vpop.f32.mrb[0].mxu0
        %v863 = vadd.f32 0.0, %v862
        %v864 = vpop.f32.mrb[0].mxu0
        %v865 = vpop.f32.mrb[0].mxu0
        %v866 = vadd.f32 0.0, %v865
        %v867 = vpop.f32.mrb[0].mxu0
        %868 = vmatprep.mubr.bf16.mxu0 %v641
        %869 = vmatmul.mubr.bf16.gmra.mrb[0].mxu0 %v640
        %v870 = vpop.f32.mrb[0].mxu0
        %v871 = vadd.f32 0.0, %v870
        %v872 = vpop.f32.mrb[0].mxu0
        %v873 = vpop.f32.mrb[0].mxu0
        %v874 = vadd.f32 0.0, %v873
        %v875 = vpop.f32.mrb[0].mxu0
        %876 = vmatprep.mubr.bf16.mxu0 %v643
        %877 = vmatmul.mubr.bf16.gmra.mrb[0].mxu0 %v642
        %v878 = vpop.f32.mrb[0].mxu0
        %v879 = vadd.f32 0.0, %v878
        %v880 = vpop.f32.mrb[0].mxu0
        %v881 = vpop.f32.mrb[0].mxu0
        %v882 = vadd.f32 0.0, %v881
        %v883 = vpop.f32.mrb[0].mxu0
        %884 = vmatprep.mubr.bf16.mxu0 %v645
        %885 = vmatmul.mubr.bf16.gmra.mrb[0].mxu0 %v644
        %v886 = vpop.f32.mrb[0].mxu0
        %v887 = vadd.f32 0.0, %v886
        %v888 = vpop.f32.mrb[0].mxu0
        %v889 = vpop.f32.mrb[0].mxu0
        %v890 = vadd.f32 0.0, %v889
        %v891 = vpop.f32.mrb[0].mxu0
        %892 = vmatprep.mubr.bf16.mxu0 %v647
        %893 = vmatmul.mubr.bf16.gmra.mrb[0].mxu0 %v646
        %v894 = vpop.f32.mrb[0].mxu0
        %v895 = vadd.f32 0.0, %v894
        %v896 = vpop.f32.mrb[0].mxu0
        %v897 = vpop.f32.mrb[0].mxu0
        %v898 = vadd.f32 0.0, %v897
        %v899 = vpop.f32.mrb[0].mxu0
        %900 = vmatprep.mubr.bf16.mxu0 %v649
        %901 = vmatmul.mubr.bf16.gmra.mrb[0].mxu0 %v648
        %v902 = vpop.f32.mrb[0].mxu0
        %v903 = vadd.f32 0.0, %v902
        %v904 = vpop.f32.mrb[0].mxu0
        %v905 = vpop.f32.mrb[0].mxu0
        %v906 = vadd.f32 0.0, %v905
        %v907 = vpop.f32.mrb[0].mxu0
        %908 = vmatprep.mubr.bf16.mxu0 %v651
        %909 = vmatmul.mubr.bf16.gmra.mrb[0].mxu0 %v650
        %v910 = vpop.f32.mrb[0].mxu0
        %v911 = vadd.f32 0.0, %v910
        %v912 = vpop.f32.mrb[0].mxu0
        %v913 = vpop.f32.mrb[0].mxu0
        %v914 = vadd.f32 0.0, %v913
        %v915 = vpop.f32.mrb[0].mxu0
        %916 = vmatprep.mubr.bf16.mxu0 %v653
        %917 = vmatmul.mubr.bf16.gmra.mrb[0].mxu0 %v652
        %v918 = vpop.f32.mrb[0].mxu0
        %v919 = vadd.f32 0.0, %v918
        %v920 = vpop.f32.mrb[0].mxu0
        %v921 = vpop.f32.mrb[0].mxu0
        %v922 = vadd.f32 0.0, %v921
        %v923 = vpop.f32.mrb[0].mxu0
        %924 = vmatprep.mubr.bf16.mxu0 %v655
        %925 = vmatmul.mubr.bf16.gmra.mrb[0].mxu0 %v654
        %v926 = vpop.f32.mrb[0].mxu0
        %v927 = vadd.f32 0.0, %v926
        %v928 = vpop.f32.mrb[0].mxu0
        %v929 = vpop.f32.mrb[0].mxu0
        %v930 = vadd.f32 0.0, %v929
        %v931 = vpop.f32.mrb[0].mxu0
        %932 = vmatprep.mubr.bf16.mxu0 %v657
        %933 = vmatmul.mubr.bf16.gmra.mrb[0].mxu0 %v656
        %v934 = vpop.f32.mrb[0].mxu0
        %v935 = vadd.f32 0.0, %v934
        %v936 = vpop.f32.mrb[0].mxu0
        %v937 = vpop.f32.mrb[0].mxu0
        %v938 = vadd.f32 0.0, %v937
        %v939 = vpop.f32.mrb[0].mxu0
        %940 = vmatprep.mubr.bf16.mxu0 %v659
        %941 = vmatmul.mubr.bf16.gmra.mrb[0].mxu0 %v658
        %v942 = vpop.f32.mrb[0].mxu0
        %v943 = vadd.f32 0.0, %v942
        %v944 = vpop.f32.mrb[0].mxu0
        %v945 = vpop.f32.mrb[0].mxu0
        %v946 = vadd.f32 0.0, %v945
        %v947 = vpop.f32.mrb[0].mxu0
        %948 = vdwg.mxu0
        %v949 = vadd.f32 %v436, %v823
        %v950 = vadd.f32 %v437, %v826
        %v951 = vadd.f32 %v438, %v831
        %v952 = vadd.f32 %v439, %v834
        %v953 = vadd.f32 %v440, %v839
        %v954 = vadd.f32 %v441, %v842
        %v955 = vadd.f32 %v442, %v847
        %v956 = vadd.f32 %v443, %v850
        %v957 = vadd.f32 %v444, %v855
        %v958 = vadd.f32 %v445, %v858
        %v959 = vadd.f32 %v446, %v863
        %v960 = vadd.f32 %v447, %v866
        %v961 = vadd.f32 %v448, %v871
        %v962 = vadd.f32 %v449, %v874
        %v963 = vadd.f32 %v450, %v879
        %v964 = vadd.f32 %v451, %v882
        %v965 = vadd.f32 %v452, %v887
        %v966 = vadd.f32 %v453, %v890
        %v967 = vadd.f32 %v454, %v895
        %v968 = vadd.f32 %v455, %v898
        %v969 = vadd.f32 %v456, %v903
        %v970 = vadd.f32 %v457, %v906
        %v971 = vadd.f32 %v458, %v911
        %v972 = vadd.f32 %v459, %v914
        %v973 = vadd.f32 %v460, %v919
        %v974 = vadd.f32 %v461, %v922
        %v975 = vadd.f32 %v462, %v927
        %v976 = vadd.f32 %v463, %v930
        %v977 = vadd.f32 %v464, %v935
        %v978 = vadd.f32 %v465, %v938
        %v979 = vadd.f32 %v466, %v943
        %v980 = vadd.f32 %v467, %v946
        %981 = vst [vmem:[#allocation2] sm:$0xff] %v949
        %982 = vst [vmem:[#allocation2 + $0x8] sm:$0xff] %v950
        %983 = vst [vmem:[#allocation2 + $0x10] sm:$0xff] %v951
        %984 = vst [vmem:[#allocation2 + $0x18] sm:$0xff] %v952
        %985 = vst [vmem:[#allocation2 + $0x20] sm:$0xff] %v953
        %986 = vst [vmem:[#allocation2 + $0x28] sm:$0xff] %v954
        %987 = vst [vmem:[#allocation2 + $0x30] sm:$0xff] %v955
        %988 = vst [vmem:[#allocation2 + $0x38] sm:$0xff] %v956
        %989 = vst [vmem:[#allocation2 + $0x40] sm:$0xff] %v957
        %990 = vst [vmem:[#allocation2 + $0x48] sm:$0xff] %v958
        %991 = vst [vmem:[#allocation2 + $0x50] sm:$0xff] %v959
        %992 = vst [vmem:[#allocation2 + $0x58] sm:$0xff] %v960
        %993 = vst [vmem:[#allocation2 + $0x60] sm:$0xff] %v961
        %994 = vst [vmem:[#allocation2 + $0x68] sm:$0xff] %v962
        %995 = vst [vmem:[#allocation2 + $0x70] sm:$0xff] %v963
        %996 = vst [vmem:[#allocation2 + $0x78] sm:$0xff] %v964
        %997 = vst [vmem:[#allocation2 + $0x80] sm:$0xff] %v965
        %998 = vst [vmem:[#allocation2 + $0x88] sm:$0xff] %v966
        %999 = vst [vmem:[#allocation2 + $0x90] sm:$0xff] %v967
        %1000 = vst [vmem:[#allocation2 + $0x98] sm:$0xff] %v968
        %1001 = vst [vmem:[#allocation2 + $0xa0] sm:$0xff] %v969
        %1002 = vst [vmem:[#allocation2 + $0xa8] sm:$0xff] %v970
        %1003 = vst [vmem:[#allocation2 + $0xb0] sm:$0xff] %v971
        %1004 = vst [vmem:[#allocation2 + $0xb8] sm:$0xff] %v972
        %1005 = vst [vmem:[#allocation2 + $0xc0] sm:$0xff] %v973
        %1006 = vst [vmem:[#allocation2 + $0xc8] sm:$0xff] %v974
        %1007 = vst [vmem:[#allocation2 + $0xd0] sm:$0xff] %v975
        %1008 = vst [vmem:[#allocation2 + $0xd8] sm:$0xff] %v976
        %1009 = vst [vmem:[#allocation2 + $0xe0] sm:$0xff] %v977
        %1010 = vst [vmem:[#allocation2 + $0xe8] sm:$0xff] %v978
        %1011 = vst [vmem:[#allocation2 + $0xf0] sm:$0xff] %v979
        %1012 = vst [vmem:[#allocation2 + $0xf8] sm:$0xff] %v980
        %p1013 = scmp.eq.s32.totalorder %s20, 1
        // Predicated region
        $region79: #{dgcn_layer_forward.9} parent=69 // pred_check
          %p1014 = pneg %p1013
        $region80: #{dgcn_layer_forward.9} parent=69 // pred_check_branch
          %1016 = sbr.rel (%p1014) target = $region82
        $region81: #{dgcn_layer_forward.9} parent=69 // pred_region
          %v1017 = vld [vmem:[#allocation2] sm:$0xff]
          %v1018 = vld [vmem:[#allocation2 + $0x8] sm:$0xff]
          %v1019 = vld [vmem:[#allocation2 + $0x10] sm:$0xff]
          %v1020 = vld [vmem:[#allocation2 + $0x18] sm:$0xff]
          %v1021 = vld [vmem:[#allocation2 + $0x20] sm:$0xff]
          %v1022 = vld [vmem:[#allocation2 + $0x28] sm:$0xff]
          %v1023 = vld [vmem:[#allocation2 + $0x30] sm:$0xff]
          %v1024 = vld [vmem:[#allocation2 + $0x38] sm:$0xff]
          %v1025 = vld [vmem:[#allocation2 + $0x40] sm:$0xff]
          %v1026 = vld [vmem:[#allocation2 + $0x48] sm:$0xff]
          %v1027 = vld [vmem:[#allocation2 + $0x50] sm:$0xff]
          %v1028 = vld [vmem:[#allocation2 + $0x58] sm:$0xff]
          %v1029 = vld [vmem:[#allocation2 + $0x60] sm:$0xff]
          %v1030 = vld [vmem:[#allocation2 + $0x68] sm:$0xff]
          %v1031 = vld [vmem:[#allocation2 + $0x70] sm:$0xff]
          %v1032 = vld [vmem:[#allocation2 + $0x78] sm:$0xff]
          %v1033 = vld [vmem:[#allocation2 + $0x80] sm:$0xff]
          %v1034 = vld [vmem:[#allocation2 + $0x88] sm:$0xff]
          %v1035 = vld [vmem:[#allocation2 + $0x90] sm:$0xff]
          %v1036 = vld [vmem:[#allocation2 + $0x98] sm:$0xff]
          %v1037 = vld [vmem:[#allocation2 + $0xa0] sm:$0xff]
          %v1038 = vld [vmem:[#allocation2 + $0xa8] sm:$0xff]
          %v1039 = vld [vmem:[#allocation2 + $0xb0] sm:$0xff]
          %v1040 = vld [vmem:[#allocation2 + $0xb8] sm:$0xff]
          %v1041 = vld [vmem:[#allocation2 + $0xc0] sm:$0xff]
          %v1042 = vld [vmem:[#allocation2 + $0xc8] sm:$0xff]
          %v1043 = vld [vmem:[#allocation2 + $0xd0] sm:$0xff]
          %v1044 = vld [vmem:[#allocation2 + $0xd8] sm:$0xff]
          %v1045 = vld [vmem:[#allocation2 + $0xe0] sm:$0xff]
          %v1046 = vld [vmem:[#allocation2 + $0xe8] sm:$0xff]
          %v1047 = vld [vmem:[#allocation2 + $0xf0] sm:$0xff]
          %v1048 = vld [vmem:[#allocation2 + $0xf8] sm:$0xff]
          %v1049 = vld [vmem:[%s2] sm:$0x1]
          %v1051 = vlaneseq
          %v1052 = vshrl.u32 %v1051, 7
          %v1053 = vsub.s32 0, %v1052
          %v1054 = vrot.slane %v1049, %v1053
          %v1056 = vadd.f32 %v1017, %v1054
          %v1057 = vadd.f32 %v1018, %v1054
          %v1058 = vadd.f32 %v1019, %v1054
          %v1059 = vadd.f32 %v1020, %v1054
          %v1060 = vadd.f32 %v1021, %v1054
          %v1061 = vadd.f32 %v1022, %v1054
          %v1062 = vadd.f32 %v1023, %v1054
          %v1063 = vadd.f32 %v1024, %v1054
          %v1064 = vadd.f32 %v1025, %v1054
          %v1065 = vadd.f32 %v1026, %v1054
          %v1066 = vadd.f32 %v1027, %v1054
          %v1067 = vadd.f32 %v1028, %v1054
          %v1068 = vadd.f32 %v1029, %v1054
          %v1069 = vadd.f32 %v1030, %v1054
          %v1070 = vadd.f32 %v1031, %v1054
          %v1071 = vadd.f32 %v1032, %v1054
          %v1072 = vadd.f32 %v1033, %v1054
          %v1073 = vadd.f32 %v1034, %v1054
          %v1074 = vadd.f32 %v1035, %v1054
          %v1075 = vadd.f32 %v1036, %v1054
          %v1076 = vadd.f32 %v1037, %v1054
          %v1077 = vadd.f32 %v1038, %v1054
          %v1078 = vadd.f32 %v1039, %v1054
          %v1079 = vadd.f32 %v1040, %v1054
          %v1080 = vadd.f32 %v1041, %v1054
          %v1081 = vadd.f32 %v1042, %v1054
          %v1082 = vadd.f32 %v1043, %v1054
          %v1083 = vadd.f32 %v1044, %v1054
          %v1084 = vadd.f32 %v1045, %v1054
          %v1085 = vadd.f32 %v1046, %v1054
          %v1086 = vadd.f32 %v1047, %v1054
          %v1087 = vadd.f32 %v1048, %v1054
          %vm1088 = vcmp.gt.f32.partialorder %v1056, 0.0
          %vm1089 = vcmp.gt.f32.partialorder %v1057, 0.0
          %vm1090 = vcmp.gt.f32.partialorder %v1058, 0.0
          %vm1091 = vcmp.gt.f32.partialorder %v1059, 0.0
          %vm1092 = vcmp.gt.f32.partialorder %v1060, 0.0
          %vm1093 = vcmp.gt.f32.partialorder %v1061, 0.0
          %vm1094 = vcmp.gt.f32.partialorder %v1062, 0.0
          %vm1095 = vcmp.gt.f32.partialorder %v1063, 0.0
          %vm1096 = vcmp.gt.f32.partialorder %v1064, 0.0
          %vm1097 = vcmp.gt.f32.partialorder %v1065, 0.0
          %vm1098 = vcmp.gt.f32.partialorder %v1066, 0.0
          %vm1099 = vcmp.gt.f32.partialorder %v1067, 0.0
          %vm1100 = vcmp.gt.f32.partialorder %v1068, 0.0
          %vm1101 = vcmp.gt.f32.partialorder %v1069, 0.0
          %vm1102 = vcmp.gt.f32.partialorder %v1070, 0.0
          %vm1103 = vcmp.gt.f32.partialorder %v1071, 0.0
          %vm1104 = vcmp.gt.f32.partialorder %v1072, 0.0
          %vm1105 = vcmp.gt.f32.partialorder %v1073, 0.0
          %vm1106 = vcmp.gt.f32.partialorder %v1074, 0.0
          %vm1107 = vcmp.gt.f32.partialorder %v1075, 0.0
          %vm1108 = vcmp.gt.f32.partialorder %v1076, 0.0
          %vm1109 = vcmp.gt.f32.partialorder %v1077, 0.0
          %vm1110 = vcmp.gt.f32.partialorder %v1078, 0.0
          %vm1111 = vcmp.gt.f32.partialorder %v1079, 0.0
          %vm1112 = vcmp.gt.f32.partialorder %v1080, 0.0
          %vm1113 = vcmp.gt.f32.partialorder %v1081, 0.0
          %vm1114 = vcmp.gt.f32.partialorder %v1082, 0.0
          %vm1115 = vcmp.gt.f32.partialorder %v1083, 0.0
          %vm1116 = vcmp.gt.f32.partialorder %v1084, 0.0
          %vm1117 = vcmp.gt.f32.partialorder %v1085, 0.0
          %vm1118 = vcmp.gt.f32.partialorder %v1086, 0.0
          %vm1119 = vcmp.gt.f32.partialorder %v1087, 0.0
          %v1120 = vmul.f32 %v1056, 0.1
          %v1121 = vmul.f32 %v1057, 0.1
          %v1122 = vmul.f32 %v1058, 0.1
          %v1123 = vmul.f32 %v1059, 0.1
          %v1124 = vmul.f32 %v1060, 0.1
          %v1125 = vmul.f32 %v1061, 0.1
          %v1126 = vmul.f32 %v1062, 0.1
          %v1127 = vmul.f32 %v1063, 0.1
          %v1128 = vmul.f32 %v1064, 0.1
          %v1129 = vmul.f32 %v1065, 0.1
          %v1130 = vmul.f32 %v1066, 0.1
          %v1131 = vmul.f32 %v1067, 0.1
          %v1132 = vmul.f32 %v1068, 0.1
          %v1133 = vmul.f32 %v1069, 0.1
          %v1134 = vmul.f32 %v1070, 0.1
          %v1135 = vmul.f32 %v1071, 0.1
          %v1136 = vmul.f32 %v1072, 0.1
          %v1137 = vmul.f32 %v1073, 0.1
          %v1138 = vmul.f32 %v1074, 0.1
          %v1139 = vmul.f32 %v1075, 0.1
          %v1140 = vmul.f32 %v1076, 0.1
          %v1141 = vmul.f32 %v1077, 0.1
          %v1142 = vmul.f32 %v1078, 0.1
          %v1143 = vmul.f32 %v1079, 0.1
          %v1144 = vmul.f32 %v1080, 0.1
          %v1145 = vmul.f32 %v1081, 0.1
          %v1146 = vmul.f32 %v1082, 0.1
          %v1147 = vmul.f32 %v1083, 0.1
          %v1148 = vmul.f32 %v1084, 0.1
          %v1149 = vmul.f32 %v1085, 0.1
          %v1150 = vmul.f32 %v1086, 0.1
          %v1151 = vmul.f32 %v1087, 0.1
          %v1152 = vsel %vm1088, %v1056, %v1120
          %v1153 = vsel %vm1089, %v1057, %v1121
          %v1154 = vsel %vm1090, %v1058, %v1122
          %v1155 = vsel %vm1091, %v1059, %v1123
          %v1156 = vsel %vm1092, %v1060, %v1124
          %v1157 = vsel %vm1093, %v1061, %v1125
          %v1158 = vsel %vm1094, %v1062, %v1126
          %v1159 = vsel %vm1095, %v1063, %v1127
          %v1160 = vsel %vm1096, %v1064, %v1128
          %v1161 = vsel %vm1097, %v1065, %v1129
          %v1162 = vsel %vm1098, %v1066, %v1130
          %v1163 = vsel %vm1099, %v1067, %v1131
          %v1164 = vsel %vm1100, %v1068, %v1132
          %v1165 = vsel %vm1101, %v1069, %v1133
          %v1166 = vsel %vm1102, %v1070, %v1134
          %v1167 = vsel %vm1103, %v1071, %v1135
          %v1168 = vsel %vm1104, %v1072, %v1136
          %v1169 = vsel %vm1105, %v1073, %v1137
          %v1170 = vsel %vm1106, %v1074, %v1138
          %v1171 = vsel %vm1107, %v1075, %v1139
          %v1172 = vsel %vm1108, %v1076, %v1140
          %v1173 = vsel %vm1109, %v1077, %v1141
          %v1174 = vsel %vm1110, %v1078, %v1142
          %v1175 = vsel %vm1111, %v1079, %v1143
          %v1176 = vsel %vm1112, %v1080, %v1144
          %v1177 = vsel %vm1113, %v1081, %v1145
          %v1178 = vsel %vm1114, %v1082, %v1146
          %v1179 = vsel %vm1115, %v1083, %v1147
          %v1180 = vsel %vm1116, %v1084, %v1148
          %v1181 = vsel %vm1117, %v1085, %v1149
          %v1182 = vsel %vm1118, %v1086, %v1150
          %v1183 = vsel %vm1119, %v1087, %v1151
          %v1184 = vpack.c.bf16 %v1153, %v1152
          %v1185 = vpack.c.bf16 %v1155, %v1154
          %v1186 = vpack.c.bf16 %v1157, %v1156
          %v1187 = vpack.c.bf16 %v1159, %v1158
          %v1188 = vpack.c.bf16 %v1161, %v1160
          %v1189 = vpack.c.bf16 %v1163, %v1162
          %v1190 = vpack.c.bf16 %v1165, %v1164
          %v1191 = vpack.c.bf16 %v1167, %v1166
          %v1192 = vpack.c.bf16 %v1169, %v1168
          %v1193 = vpack.c.bf16 %v1171, %v1170
          %v1194 = vpack.c.bf16 %v1173, %v1172
          %v1195 = vpack.c.bf16 %v1175, %v1174
          %v1196 = vpack.c.bf16 %v1177, %v1176
          %v1197 = vpack.c.bf16 %v1179, %v1178
          %v1198 = vpack.c.bf16 %v1181, %v1180
          %v1199 = vpack.c.bf16 %v1183, %v1182
          %v1200 = vld [vmem:[%s3] sm:$0xf]
          %v1201 = vld [vmem:[%s3 + $0x4] sm:$0xf]
          %v1202 = vld [vmem:[%s3 + $0x8] sm:$0xf]
          %v1203 = vld [vmem:[%s3 + $0xc] sm:$0xf]
          %v1204 = vld [vmem:[%s3 + $0x10] sm:$0xf]
          %v1205 = vld [vmem:[%s3 + $0x14] sm:$0xf]
          %v1206 = vld [vmem:[%s3 + $0x18] sm:$0xf]
          %v1207 = vld [vmem:[%s3 + $0x1c] sm:$0xf]
          %v1208 = vld [vmem:[%s3 + $0x20] sm:$0xf]
          %v1209 = vld [vmem:[%s3 + $0x24] sm:$0xf]
          %v1210 = vld [vmem:[%s3 + $0x28] sm:$0xf]
          %v1211 = vld [vmem:[%s3 + $0x2c] sm:$0xf]
          %v1212 = vld [vmem:[%s3 + $0x30] sm:$0xf]
          %v1213 = vld [vmem:[%s3 + $0x34] sm:$0xf]
          %v1214 = vld [vmem:[%s3 + $0x38] sm:$0xf]
          %v1215 = vld [vmem:[%s3 + $0x3c] sm:$0xf]
          %v1232 = vunpack.c.l.b16 %v1200
          %v1233 = vunpack.c.l.b16 %v1201
          %v1234 = vunpack.c.l.b16 %v1202
          %v1235 = vunpack.c.l.b16 %v1203
          %v1236 = vunpack.c.l.b16 %v1204
          %v1237 = vunpack.c.l.b16 %v1205
          %v1238 = vunpack.c.l.b16 %v1206
          %v1239 = vunpack.c.l.b16 %v1207
          %v1240 = vunpack.c.l.b16 %v1208
          %v1241 = vunpack.c.l.b16 %v1209
          %v1242 = vunpack.c.l.b16 %v1210
          %v1243 = vunpack.c.l.b16 %v1211
          %v1244 = vunpack.c.l.b16 %v1212
          %v1245 = vunpack.c.l.b16 %v1213
          %v1246 = vunpack.c.l.b16 %v1214
          %v1247 = vunpack.c.l.b16 %v1215
          %v1248 = vpack.c.b16 %v1233, %v1232
          %v1249 = vpack.c.b16 %v1235, %v1234
          %v1250 = vpack.c.b16 %v1237, %v1236
          %v1251 = vpack.c.b16 %v1239, %v1238
          %v1252 = vpack.c.b16 %v1241, %v1240
          %v1253 = vpack.c.b16 %v1243, %v1242
          %v1254 = vpack.c.b16 %v1245, %v1244
          %v1255 = vpack.c.b16 %v1247, %v1246
          %1264 = vmatprep.subr.bf16.mxu0 0
          %1265 = vmatpush1.bf16.msra.mxu0 %v1248
          %1266 = vmatprep.subr.bf16.mxu0 0
          %1267 = vmatpush1.bf16.msra.mxu0 %v1249
          %1268 = vmatprep.subr.bf16.mxu0 0
          %1269 = vmatpush1.bf16.msra.mxu0 %v1250
          %1270 = vmatprep.subr.bf16.mxu0 0
          %1271 = vmatpush1.bf16.msra.mxu0 %v1251
          %1272 = vmatprep.subr.bf16.mxu0 0
          %1273 = vmatpush1.bf16.msra.mxu0 %v1252
          %1274 = vmatprep.subr.bf16.mxu0 0
          %1275 = vmatpush1.bf16.msra.mxu0 %v1253
          %1276 = vmatprep.subr.bf16.mxu0 0
          %1277 = vmatpush1.bf16.msra.mxu0 %v1254
          %1278 = vmatprep.subr.bf16.mxu0 0
          %1279 = vmatpush1.bf16.msra.mxu0 %v1255
          %1280 = vmatprep.subr.bf16.mxu0 0
          %1281 = vmatpush1.bf16.msra.mxu0 0
          %1282 = vmatprep.subr.bf16.mxu0 0
          %1283 = vmatpush1.bf16.msra.mxu0 0
          %1284 = vmatprep.subr.bf16.mxu0 0
          %1285 = vmatpush1.bf16.msra.mxu0 0
          %1286 = vmatprep.subr.bf16.mxu0 0
          %1287 = vmatpush1.bf16.msra.mxu0 0
          %1288 = vmatprep.subr.bf16.mxu0 0
          %1289 = vmatpush1.bf16.msra.mxu0 0
          %1290 = vmatprep.subr.bf16.mxu0 0
          %1291 = vmatpush1.bf16.msra.mxu0 0
          %1292 = vmatprep.subr.bf16.mxu0 0
          %1293 = vmatpush1.bf16.msra.mxu0 0
          %1294 = vmatprep.subr.bf16.mxu0 0
          %1295 = vmatpush1.bf16.msra.mxu0 0
          %1296 = vmatprep.mubr.bf16.mxu0 0
          %1297 = vmatmul.mubr.bf16.gmra.mrb[0].mxu0 %v1184
          %v1298 = vpop.f32.mrb[0].mxu0
          %v1299 = vadd.f32 0.0, %v1298
          %v1300 = vpop.f32.mrb[0].mxu0
          %v1301 = vpop.f32.mrb[0].mxu0
          %v1302 = vadd.f32 0.0, %v1301
          %v1303 = vpop.f32.mrb[0].mxu0
          %1304 = vmatprep.mubr.bf16.mxu0 0
          %1305 = vmatmul.mubr.bf16.gmra.mrb[0].mxu0 %v1185
          %v1306 = vpop.f32.mrb[0].mxu0
          %v1307 = vadd.f32 0.0, %v1306
          %v1308 = vpop.f32.mrb[0].mxu0
          %v1309 = vpop.f32.mrb[0].mxu0
          %v1310 = vadd.f32 0.0, %v1309
          %v1311 = vpop.f32.mrb[0].mxu0
          %1312 = vmatprep.mubr.bf16.mxu0 0
          %1313 = vmatmul.mubr.bf16.gmra.mrb[0].mxu0 %v1186
          %v1314 = vpop.f32.mrb[0].mxu0
          %v1315 = vadd.f32 0.0, %v1314
          %v1316 = vpop.f32.mrb[0].mxu0
          %v1317 = vpop.f32.mrb[0].mxu0
          %v1318 = vadd.f32 0.0, %v1317
          %v1319 = vpop.f32.mrb[0].mxu0
          %1320 = vmatprep.mubr.bf16.mxu0 0
          %1321 = vmatmul.mubr.bf16.gmra.mrb[0].mxu0 %v1187
          %v1322 = vpop.f32.mrb[0].mxu0
          %v1323 = vadd.f32 0.0, %v1322
          %v1324 = vpop.f32.mrb[0].mxu0
          %v1325 = vpop.f32.mrb[0].mxu0
          %v1326 = vadd.f32 0.0, %v1325
          %v1327 = vpop.f32.mrb[0].mxu0
          %1328 = vmatprep.mubr.bf16.mxu0 0
          %1329 = vmatmul.mubr.bf16.gmra.mrb[0].mxu0 %v1188
          %v1330 = vpop.f32.mrb[0].mxu0
          %v1331 = vadd.f32 0.0, %v1330
          %v1332 = vpop.f32.mrb[0].mxu0
          %v1333 = vpop.f32.mrb[0].mxu0
          %v1334 = vadd.f32 0.0, %v1333
          %v1335 = vpop.f32.mrb[0].mxu0
          %1336 = vmatprep.mubr.bf16.mxu0 0
          %1337 = vmatmul.mubr.bf16.gmra.mrb[0].mxu0 %v1189
          %v1338 = vpop.f32.mrb[0].mxu0
          %v1339 = vadd.f32 0.0, %v1338
          %v1340 = vpop.f32.mrb[0].mxu0
          %v1341 = vpop.f32.mrb[0].mxu0
          %v1342 = vadd.f32 0.0, %v1341
          %v1343 = vpop.f32.mrb[0].mxu0
          %1344 = vmatprep.mubr.bf16.mxu0 0
          %1345 = vmatmul.mubr.bf16.gmra.mrb[0].mxu0 %v1190
          %v1346 = vpop.f32.mrb[0].mxu0
          %v1347 = vadd.f32 0.0, %v1346
          %v1348 = vpop.f32.mrb[0].mxu0
          %v1349 = vpop.f32.mrb[0].mxu0
          %v1350 = vadd.f32 0.0, %v1349
          %v1351 = vpop.f32.mrb[0].mxu0
          %1352 = vmatprep.mubr.bf16.mxu0 0
          %1353 = vmatmul.mubr.bf16.gmra.mrb[0].mxu0 %v1191
          %v1354 = vpop.f32.mrb[0].mxu0
          %v1355 = vadd.f32 0.0, %v1354
          %v1356 = vpop.f32.mrb[0].mxu0
          %v1357 = vpop.f32.mrb[0].mxu0
          %v1358 = vadd.f32 0.0, %v1357
          %v1359 = vpop.f32.mrb[0].mxu0
          %1360 = vmatprep.mubr.bf16.mxu0 0
          %1361 = vmatmul.mubr.bf16.gmra.mrb[0].mxu0 %v1192
          %v1362 = vpop.f32.mrb[0].mxu0
          %v1363 = vadd.f32 0.0, %v1362
          %v1364 = vpop.f32.mrb[0].mxu0
          %v1365 = vpop.f32.mrb[0].mxu0
          %v1366 = vadd.f32 0.0, %v1365
          %v1367 = vpop.f32.mrb[0].mxu0
          %1368 = vmatprep.mubr.bf16.mxu0 0
          %1369 = vmatmul.mubr.bf16.gmra.mrb[0].mxu0 %v1193
          %v1370 = vpop.f32.mrb[0].mxu0
          %v1371 = vadd.f32 0.0, %v1370
          %v1372 = vpop.f32.mrb[0].mxu0
          %v1373 = vpop.f32.mrb[0].mxu0
          %v1374 = vadd.f32 0.0, %v1373
          %v1375 = vpop.f32.mrb[0].mxu0
          %1376 = vmatprep.mubr.bf16.mxu0 0
          %1377 = vmatmul.mubr.bf16.gmra.mrb[0].mxu0 %v1194
          %v1378 = vpop.f32.mrb[0].mxu0
          %v1379 = vadd.f32 0.0, %v1378
          %v1380 = vpop.f32.mrb[0].mxu0
          %v1381 = vpop.f32.mrb[0].mxu0
          %v1382 = vadd.f32 0.0, %v1381
          %v1383 = vpop.f32.mrb[0].mxu0
          %1384 = vmatprep.mubr.bf16.mxu0 0
          %1385 = vmatmul.mubr.bf16.gmra.mrb[0].mxu0 %v1195
          %v1386 = vpop.f32.mrb[0].mxu0
          %v1387 = vadd.f32 0.0, %v1386
          %v1388 = vpop.f32.mrb[0].mxu0
          %v1389 = vpop.f32.mrb[0].mxu0
          %v1390 = vadd.f32 0.0, %v1389
          %v1391 = vpop.f32.mrb[0].mxu0
          %1392 = vmatprep.mubr.bf16.mxu0 0
          %1393 = vmatmul.mubr.bf16.gmra.mrb[0].mxu0 %v1196
          %v1394 = vpop.f32.mrb[0].mxu0
          %v1395 = vadd.f32 0.0, %v1394
          %v1396 = vpop.f32.mrb[0].mxu0
          %v1397 = vpop.f32.mrb[0].mxu0
          %v1398 = vadd.f32 0.0, %v1397
          %v1399 = vpop.f32.mrb[0].mxu0
          %1400 = vmatprep.mubr.bf16.mxu0 0
          %1401 = vmatmul.mubr.bf16.gmra.mrb[0].mxu0 %v1197
          %v1402 = vpop.f32.mrb[0].mxu0
          %v1403 = vadd.f32 0.0, %v1402
          %v1404 = vpop.f32.mrb[0].mxu0
          %v1405 = vpop.f32.mrb[0].mxu0
          %v1406 = vadd.f32 0.0, %v1405
          %v1407 = vpop.f32.mrb[0].mxu0
          %1408 = vmatprep.mubr.bf16.mxu0 0
          %1409 = vmatmul.mubr.bf16.gmra.mrb[0].mxu0 %v1198
          %v1410 = vpop.f32.mrb[0].mxu0
          %v1411 = vadd.f32 0.0, %v1410
          %v1412 = vpop.f32.mrb[0].mxu0
          %v1413 = vpop.f32.mrb[0].mxu0
          %v1414 = vadd.f32 0.0, %v1413
          %v1415 = vpop.f32.mrb[0].mxu0
          %1416 = vmatprep.mubr.bf16.mxu0 0
          %1417 = vmatmul.mubr.bf16.gmra.mrb[0].mxu0 %v1199
          %v1418 = vpop.f32.mrb[0].mxu0
          %v1419 = vadd.f32 0.0, %v1418
          %v1420 = vpop.f32.mrb[0].mxu0
          %v1421 = vpop.f32.mrb[0].mxu0
          %v1422 = vadd.f32 0.0, %v1421
          %v1423 = vpop.f32.mrb[0].mxu0
          %1424 = vdwg.mxu0
          %v1425 = vpack.c.bf16 %v1302, %v1299
          %v1426 = vpack.c.bf16 %v1310, %v1307
          %v1427 = vpack.c.bf16 %v1318, %v1315
          %v1428 = vpack.c.bf16 %v1326, %v1323
          %v1429 = vpack.c.bf16 %v1334, %v1331
          %v1430 = vpack.c.bf16 %v1342, %v1339
          %v1431 = vpack.c.bf16 %v1350, %v1347
          %v1432 = vpack.c.bf16 %v1358, %v1355
          %v1433 = vpack.c.bf16 %v1366, %v1363
          %v1434 = vpack.c.bf16 %v1374, %v1371
          %v1435 = vpack.c.bf16 %v1382, %v1379
          %v1436 = vpack.c.bf16 %v1390, %v1387
          %v1437 = vpack.c.bf16 %v1398, %v1395
          %v1438 = vpack.c.bf16 %v1406, %v1403
          %v1439 = vpack.c.bf16 %v1414, %v1411
          %v1440 = vpack.c.bf16 %v1422, %v1419
          %v1457 = vunpack.c.l.b16 %v1425
          %v1458 = vunpack.c.h.b16 %v1425
          %v1459 = vunpack.c.l.b16 %v1426
          %v1460 = vunpack.c.h.b16 %v1426
          %v1461 = vunpack.c.l.b16 %v1427
          %v1462 = vunpack.c.h.b16 %v1427
          %v1463 = vunpack.c.l.b16 %v1428
          %v1464 = vunpack.c.h.b16 %v1428
          %v1465 = vunpack.c.l.b16 %v1429
          %v1466 = vunpack.c.h.b16 %v1429
          %v1467 = vunpack.c.l.b16 %v1430
          %v1468 = vunpack.c.h.b16 %v1430
          %v1469 = vunpack.c.l.b16 %v1431
          %v1470 = vunpack.c.h.b16 %v1431
          %v1471 = vunpack.c.l.b16 %v1432
          %v1472 = vunpack.c.h.b16 %v1432
          %v1473 = vunpack.c.l.b16 %v1433
          %v1474 = vunpack.c.h.b16 %v1433
          %v1475 = vunpack.c.l.b16 %v1434
          %v1476 = vunpack.c.h.b16 %v1434
          %v1477 = vunpack.c.l.b16 %v1435
          %v1478 = vunpack.c.h.b16 %v1435
          %v1479 = vunpack.c.l.b16 %v1436
          %v1480 = vunpack.c.h.b16 %v1436
          %v1481 = vunpack.c.l.b16 %v1437
          %v1482 = vunpack.c.h.b16 %v1437
          %v1483 = vunpack.c.l.b16 %v1438
          %v1484 = vunpack.c.h.b16 %v1438
          %v1485 = vunpack.c.l.b16 %v1439
          %v1486 = vunpack.c.h.b16 %v1439
          %v1487 = vunpack.c.l.b16 %v1440
          %v1488 = vunpack.c.h.b16 %v1440
          %v1489 = vpack.c.b16 %v1457, %v1457
          %v1490 = vpack.c.b16 %v1458, %v1458
          %v1491 = vpack.c.b16 %v1459, %v1459
          %v1492 = vpack.c.b16 %v1460, %v1460
          %v1493 = vpack.c.b16 %v1461, %v1461
          %v1494 = vpack.c.b16 %v1462, %v1462
          %v1495 = vpack.c.b16 %v1463, %v1463
          %v1496 = vpack.c.b16 %v1464, %v1464
          %v1497 = vpack.c.b16 %v1465, %v1465
          %v1498 = vpack.c.b16 %v1466, %v1466
          %v1499 = vpack.c.b16 %v1467, %v1467
          %v1500 = vpack.c.b16 %v1468, %v1468
          %v1501 = vpack.c.b16 %v1469, %v1469
          %v1502 = vpack.c.b16 %v1470, %v1470
          %v1503 = vpack.c.b16 %v1471, %v1471
          %v1504 = vpack.c.b16 %v1472, %v1472
          %v1505 = vpack.c.b16 %v1473, %v1473
          %v1506 = vpack.c.b16 %v1474, %v1474
          %v1507 = vpack.c.b16 %v1475, %v1475
          %v1508 = vpack.c.b16 %v1476, %v1476
          %v1509 = vpack.c.b16 %v1477, %v1477
          %v1510 = vpack.c.b16 %v1478, %v1478
          %v1511 = vpack.c.b16 %v1479, %v1479
          %v1512 = vpack.c.b16 %v1480, %v1480
          %v1513 = vpack.c.b16 %v1481, %v1481
          %v1514 = vpack.c.b16 %v1482, %v1482
          %v1515 = vpack.c.b16 %v1483, %v1483
          %v1516 = vpack.c.b16 %v1484, %v1484
          %v1517 = vpack.c.b16 %v1485, %v1485
          %v1518 = vpack.c.b16 %v1486, %v1486
          %v1519 = vpack.c.b16 %v1487, %v1487
          %v1520 = vpack.c.b16 %v1488, %v1488
          %1553 = vst [vmem:[%s397] sm:$0xf] %v1489
          %1554 = vst [vmem:[%s397 + $0x4] sm:$0xf] %v1490
          %1555 = vst [vmem:[%s397 + $0x8] sm:$0xf] %v1491
          %1556 = vst [vmem:[%s397 + $0xc] sm:$0xf] %v1492
          %1557 = vst [vmem:[%s397 + $0x10] sm:$0xf] %v1493
          %1558 = vst [vmem:[%s397 + $0x14] sm:$0xf] %v1494
          %1559 = vst [vmem:[%s397 + $0x18] sm:$0xf] %v1495
          %1560 = vst [vmem:[%s397 + $0x1c] sm:$0xf] %v1496
          %1561 = vst [vmem:[%s397 + $0x20] sm:$0xf] %v1497
          %1562 = vst [vmem:[%s397 + $0x24] sm:$0xf] %v1498
          %1563 = vst [vmem:[%s397 + $0x28] sm:$0xf] %v1499
          %1564 = vst [vmem:[%s397 + $0x2c] sm:$0xf] %v1500
          %1565 = vst [vmem:[%s397 + $0x30] sm:$0xf] %v1501
          %1566 = vst [vmem:[%s397 + $0x34] sm:$0xf] %v1502
          %1567 = vst [vmem:[%s397 + $0x38] sm:$0xf] %v1503
          %1568 = vst [vmem:[%s397 + $0x3c] sm:$0xf] %v1504
          %1569 = vst [vmem:[%s397 + $0x40] sm:$0xf] %v1505
          %1570 = vst [vmem:[%s397 + $0x44] sm:$0xf] %v1506
          %1571 = vst [vmem:[%s397 + $0x48] sm:$0xf] %v1507
          %1572 = vst [vmem:[%s397 + $0x4c] sm:$0xf] %v1508
          %1573 = vst [vmem:[%s397 + $0x50] sm:$0xf] %v1509
          %1574 = vst [vmem:[%s397 + $0x54] sm:$0xf] %v1510
          %1575 = vst [vmem:[%s397 + $0x58] sm:$0xf] %v1511
          %1576 = vst [vmem:[%s397 + $0x5c] sm:$0xf] %v1512
          %1577 = vst [vmem:[%s397 + $0x60] sm:$0xf] %v1513
          %1578 = vst [vmem:[%s397 + $0x64] sm:$0xf] %v1514
          %1579 = vst [vmem:[%s397 + $0x68] sm:$0xf] %v1515
          %1580 = vst [vmem:[%s397 + $0x6c] sm:$0xf] %v1516
          %1581 = vst [vmem:[%s397 + $0x70] sm:$0xf] %v1517
          %1582 = vst [vmem:[%s397 + $0x74] sm:$0xf] %v1518
          %1583 = vst [vmem:[%s397 + $0x78] sm:$0xf] %v1519
          %1584 = vst [vmem:[%s397 + $0x7c] sm:$0xf] %v1520
        $region82: #{dgcn_layer_forward.9} parent=69 // pred_fallthru
          _
        %s1585 = smul.u32 32, %s19
        %p1586 = scmp.lt.s32.totalorder %s1585, 31
        %s1587 = scalar_select %p1586, %s1585, 31
        %s1588 = smul.addr %s1587, 4
        %s1589 = scalar_lea.vmem %s4, %s1588
        // Predicated region
        $region83: #{dgcn_layer_forward.9} parent=69 // pred_check
          %p1590 = pneg %p141
        $region84: #{dgcn_layer_forward.9} parent=69 // pred_check_branch
          %1592 = sbr.rel (%p1590) target = $region86
        $region85: #{dgcn_layer_forward.9} parent=69 // pred_region
          %s1593 = smul.u32 32, %s19
        $region86: #{dgcn_layer_forward.9} parent=69 // pred_fallthru
          _
        // Predicated region
        $region87: #{dgcn_layer_forward.9} parent=69 // pred_check
          %p1594 = pneg %p141
        $region88: #{dgcn_layer_forward.9} parent=69 // pred_check_branch
          %1596 = sbr.rel (%p1594) target = $region90
        $region89: #{dgcn_layer_forward.9} parent=69 // pred_region
          %s1597 = smul.u32 32, %s19
          %p1598 = scmp.lt.s32.totalorder %s1597, 31
          %s1599 = scalar_select %p1598, %s1597, 31
          %s1600 = smul.addr %s1599, 4
          %s1601 = scalar_lea.vmem %s4, %s1600
        $region90: #{dgcn_layer_forward.9} parent=69 // pred_fallthru
          _
      $region70: #{dgcn_layer_forward.9} parent=5 // pred_fallthru
        _
      %p1602 = scmp.le.s32.totalorder 2, %s10
      // Predicated region
      $region91: #{dgcn_layer_forward.9} parent=5 // pred_check
        %p1603 = pneg %p1602
      $region92: #{dgcn_layer_forward.9} parent=5 // pred_check_branch
        %1605 = sbr.rel (%p1603) target = $region94
      $region93: #{dgcn_layer_forward.9} parent=5 // pred_region
        %s1606 = ssub.s32 %s10, 2
      $region94: #{dgcn_layer_forward.9} parent=5 // pred_fallthru
        _
    $region6: #{dgcn_layer_forward.9} parent=1 // loop_footer
      %s14 = sadd.s32 1, %s10
    $region7: #{dgcn_layer_forward.9} parent=1 // loop_footer_branch
      %9 = sbr.rel target = $region3
    $region8: #{dgcn_layer_forward.9} parent=1 // loop_exit
      _

// kernel: dgcn_layer_forward.11
$region0: #{dgcn_layer_forward.11}
  #allocation0 [shape = 'u32[]', space=smem, size = 0x4, offset = 0x4, fixed_abs, tag = 'smem constant byte address 0x4 - core index']
  #allocation1 [shape = 'u32[144,128]{1,0:T(1,128)}', space=vmem, size = 0x12000, scoped, tag = 'internal scratch']
  #allocation2 [shape = 'f32[256,128]{1,0:T(8,128)}', space=vmem, size = 0x20000, scoped, tag = 'scratch operand']
  %s0 = inlined_call_operand.vmem [shape: bf16[512,256], index: 0, kind: input, shape index: {}]
  %s1 = inlined_call_operand.vmem [shape: bf16[256,128], index: 1, kind: input, shape index: {}]
  %s2 = inlined_call_operand.vmem [shape: f32[1,128], index: 2, kind: input, shape index: {}]
  %s3 = inlined_call_operand.vmem [shape: bf16[512,128], index: 3, kind: input, shape index: {}]
  %s4 = inlined_call_operand.vmem [shape: bf16[128,128], index: 4, kind: input, shape index: {}]
  %s5 = inlined_call_operand.vmem [shape: bf16[128,128], index: 5, kind: input, shape index: {}]
  %s6 = inlined_call_operand.vmem [shape: f32[1,128], index: 6, kind: input, shape index: {}]
  %s7 = inlined_call_operand.vmem [shape: f32[512,128], index: 7, kind: output, shape index: {}]
  %s8 = sld [smem:[#allocation0]]
  $region69: #{dgcn_layer_forward.11} parent=0
    _
  %s10 = ssub.s32 1, %s8
  %s11 = scalar_select 0, %s10, %s8
  loop: start=0, step=1, limit=4
  $region2: #{dgcn_layer_forward.11} parent=0 // loop_pre_header
    _
  $region3: #{dgcn_layer_forward.11} parent=0 // loop_header
    %s13 = sphi 0, %s17
    %p14 = scmp.ge.s32.totalorder %s13, 4
    %s20 = sphi 0, %s32
    %s21 = sphi 0, %s28
    %s22 = sphi 0, %s20
    %s23 = sphi 0, %s21
    %s24 = sphi 0, %s22
    %s25 = sphi 0, %s23
    %s37 = sphi 0, %s39
    %s40 = sphi 0, %s37
    %s41 = sphi 0, %s40
    %s57 = sphi 0, %s41
    %s63 = sphi 0, %s65
    %s66 = sphi 0, %s63
    %s67 = sphi 0, %s66
    %s83 = sphi 0, %s67
    %s87 = sphi 0, %s87
    %s89 = sphi 0, %s87
    %s90 = sphi 0, %s89
    %s104 = sphi 0, %s90
    %s110 = sphi 0, %s112
    %s113 = sphi 0, %s110
    %s114 = sphi 0, %s113
    %s130 = sphi 0, %s114
    %s134 = sphi 0, %s134
    %s136 = sphi 0, %s134
    %s137 = sphi 0, %s136
    %s151 = sphi 0, %s137
    %s155 = sphi 0, %s155
    %s157 = sphi 0, %s155
    %s158 = sphi 0, %s157
    %s172 = sphi 0, %s158
    %s176 = sphi 0, %s176
    %s178 = sphi 0, %s176
    %s179 = sphi 0, %s178
    %s193 = sphi 0, %s179
    %s199 = sphi 0, %s201
    %s202 = sphi 0, %s199
    %s203 = sphi 0, %s202
    %s219 = sphi 0, %s203
  $region4: #{dgcn_layer_forward.11} parent=0 // loop_header_branch
    %16 = sbr.rel (%p14) target = $region8
  $region5: #{dgcn_layer_forward.11} parent=0 // loop_body
    %s18 = ssub.s32 %s13, 1
    %s19 = ssub.s32 %s13, 2
    %s26 = sadd.s32 1, %s21
    %p27 = scmp.ge.s32.totalorder %s26, 1
    %s28 = scalar_select %p27, 0, %s26
    %s29 = sadd.s32 1, %s20
    %s30 = scalar_select %p27, %s29, %s20
    %p31 = scmp.ge.s32.totalorder %s30, 2
    %s32 = scalar_select %p31, 0, %s30
    %s33 = ssub.s32 %s20, %s32
    %s34 = ssub.s32 %s21, %s28
    %s35 = sor.u32 %s33, %s34
    %p36 = scmp.eq.s32.totalorder %s35, 0
    %s38 = sadd.s32 %s37, 1
    %s39 = scalar_select %p36, %s37, %s38
    %p42 = pneg %p36
    %p43 = scmp.eq.s32.totalorder %s13, 1
    %p44 = por %p42, %p43
    %p45 = scmp.ne.s32.totalorder %s37, %s40
    %p46 = scmp.eq.s32.totalorder %s13, 0
    %p47 = por %p45, %p46
    %p48 = scmp.ne.s32.totalorder %s37, %s40
    %p49 = scmp.eq.s32.totalorder %s18, 1
    %p50 = por %p48, %p49
    %p51 = scmp.ne.s32.totalorder %s40, %s41
    %p52 = scmp.eq.s32.totalorder %s18, 0
    %p53 = por %p51, %p52
    %p54 = scmp.ne.s32.totalorder %s40, %s41
    %p55 = scmp.eq.s32.totalorder %s19, 1
    %p56 = por %p54, %p55
    %p58 = scmp.ne.s32.totalorder %s41, %s57
    %p59 = scmp.eq.s32.totalorder %s19, 0
    %p60 = por %p58, %p59
    %s61 = ssub.s32 %s21, %s28
    %p62 = scmp.eq.s32.totalorder %s61, 0
    %s64 = sadd.s32 %s63, 1
    %s65 = scalar_select %p62, %s63, %s64
    %p68 = pneg %p62
    %p69 = scmp.eq.s32.totalorder %s13, 1
    %p70 = por %p68, %p69
    %p71 = scmp.ne.s32.totalorder %s63, %s66
    %p72 = scmp.eq.s32.totalorder %s13, 0
    %p73 = por %p71, %p72
    %p74 = scmp.ne.s32.totalorder %s63, %s66
    %p75 = scmp.eq.s32.totalorder %s18, 1
    %p76 = por %p74, %p75
    %p77 = scmp.ne.s32.totalorder %s66, %s67
    %p78 = scmp.eq.s32.totalorder %s18, 0
    %p79 = por %p77, %p78
    %p80 = scmp.ne.s32.totalorder %s66, %s67
    %p81 = scmp.eq.s32.totalorder %s19, 1
    %p82 = por %p80, %p81
    %p84 = scmp.ne.s32.totalorder %s67, %s83
    %p85 = scmp.eq.s32.totalorder %s19, 0
    %p86 = por %p84, %p85
    %s88 = sadd.s32 %s87, 1
    %p91 = scmp.eq.s32.totalorder %s13, 1
    %p92 = scmp.ne.s32.totalorder %s87, %s89
    %p93 = scmp.eq.s32.totalorder %s13, 0
    %p94 = por %p92, %p93
    %p95 = scmp.ne.s32.totalorder %s87, %s89
    %p96 = scmp.eq.s32.totalorder %s18, 1
    %p97 = por %p95, %p96
    %p98 = scmp.ne.s32.totalorder %s89, %s90
    %p99 = scmp.eq.s32.totalorder %s18, 0
    %p100 = por %p98, %p99
    %p101 = scmp.ne.s32.totalorder %s89, %s90
    %p102 = scmp.eq.s32.totalorder %s19, 1
    %p103 = por %p101, %p102
    %p105 = scmp.ne.s32.totalorder %s90, %s104
    %p106 = scmp.eq.s32.totalorder %s19, 0
    %p107 = por %p105, %p106
    %s108 = ssub.s32 %s20, %s32
    %p109 = scmp.eq.s32.totalorder %s108, 0
    %s111 = sadd.s32 %s110, 1
    %s112 = scalar_select %p109, %s110, %s111
    %p115 = pneg %p109
    %p116 = scmp.eq.s32.totalorder %s13, 1
    %p117 = por %p115, %p116
    %p118 = scmp.ne.s32.totalorder %s110, %s113
    %p119 = scmp.eq.s32.totalorder %s13, 0
    %p120 = por %p118, %p119
    %p121 = scmp.ne.s32.totalorder %s110, %s113
    %p122 = scmp.eq.s32.totalorder %s18, 1
    %p123 = por %p121, %p122
    %p124 = scmp.ne.s32.totalorder %s113, %s114
    %p125 = scmp.eq.s32.totalorder %s18, 0
    %p126 = por %p124, %p125
    %p127 = scmp.ne.s32.totalorder %s113, %s114
    %p128 = scmp.eq.s32.totalorder %s19, 1
    %p129 = por %p127, %p128
    %p131 = scmp.ne.s32.totalorder %s114, %s130
    %p132 = scmp.eq.s32.totalorder %s19, 0
    %p133 = por %p131, %p132
    %s135 = sadd.s32 %s134, 1
    %p138 = scmp.eq.s32.totalorder %s13, 1
    %p139 = scmp.ne.s32.totalorder %s134, %s136
    %p140 = scmp.eq.s32.totalorder %s13, 0
    %p141 = por %p139, %p140
    %p142 = scmp.ne.s32.totalorder %s134, %s136
    %p143 = scmp.eq.s32.totalorder %s18, 1
    %p144 = por %p142, %p143
    %p145 = scmp.ne.s32.totalorder %s136, %s137
    %p146 = scmp.eq.s32.totalorder %s18, 0
    %p147 = por %p145, %p146
    %p148 = scmp.ne.s32.totalorder %s136, %s137
    %p149 = scmp.eq.s32.totalorder %s19, 1
    %p150 = por %p148, %p149
    %p152 = scmp.ne.s32.totalorder %s137, %s151
    %p153 = scmp.eq.s32.totalorder %s19, 0
    %p154 = por %p152, %p153
    %s156 = sadd.s32 %s155, 1
    %p159 = scmp.eq.s32.totalorder %s13, 1
    %p160 = scmp.ne.s32.totalorder %s155, %s157
    %p161 = scmp.eq.s32.totalorder %s13, 0
    %p162 = por %p160, %p161
    %p163 = scmp.ne.s32.totalorder %s155, %s157
    %p164 = scmp.eq.s32.totalorder %s18, 1
    %p165 = por %p163, %p164
    %p166 = scmp.ne.s32.totalorder %s157, %s158
    %p167 = scmp.eq.s32.totalorder %s18, 0
    %p168 = por %p166, %p167
    %p169 = scmp.ne.s32.totalorder %s157, %s158
    %p170 = scmp.eq.s32.totalorder %s19, 1
    %p171 = por %p169, %p170
    %p173 = scmp.ne.s32.totalorder %s158, %s172
    %p174 = scmp.eq.s32.totalorder %s19, 0
    %p175 = por %p173, %p174
    %s177 = sadd.s32 %s176, 1
    %p180 = scmp.eq.s32.totalorder %s13, 1
    %p181 = scmp.ne.s32.totalorder %s176, %s178
    %p182 = scmp.eq.s32.totalorder %s13, 0
    %p183 = por %p181, %p182
    %p184 = scmp.ne.s32.totalorder %s176, %s178
    %p185 = scmp.eq.s32.totalorder %s18, 1
    %p186 = por %p184, %p185
    %p187 = scmp.ne.s32.totalorder %s178, %s179
    %p188 = scmp.eq.s32.totalorder %s18, 0
    %p189 = por %p187, %p188
    %p190 = scmp.ne.s32.totalorder %s178, %s179
    %p191 = scmp.eq.s32.totalorder %s19, 1
    %p192 = por %p190, %p191
    %p194 = scmp.ne.s32.totalorder %s179, %s193
    %p195 = scmp.eq.s32.totalorder %s19, 0
    %p196 = por %p194, %p195
    %s197 = ssub.s32 %s20, %s32
    %p198 = scmp.eq.s32.totalorder %s197, 0
    %s200 = sadd.s32 %s199, 1
    %s201 = scalar_select %p198, %s199, %s200
    %p204 = pneg %p198
    %p205 = scmp.eq.s32.totalorder %s13, 1
    %p206 = por %p204, %p205
    %p207 = scmp.ne.s32.totalorder %s199, %s202
    %p208 = scmp.eq.s32.totalorder %s13, 0
    %p209 = por %p207, %p208
    %p210 = scmp.ne.s32.totalorder %s199, %s202
    %p211 = scmp.eq.s32.totalorder %s18, 1
    %p212 = por %p210, %p211
    %p213 = scmp.ne.s32.totalorder %s202, %s203
    %p214 = scmp.eq.s32.totalorder %s18, 0
    %p215 = por %p213, %p214
    %p216 = scmp.ne.s32.totalorder %s202, %s203
    %p217 = scmp.eq.s32.totalorder %s19, 1
    %p218 = por %p216, %p217
    %p220 = scmp.ne.s32.totalorder %s203, %s219
    %p221 = scmp.eq.s32.totalorder %s19, 0
    %p222 = por %p220, %p221
    %p223 = scmp.le.s32.totalorder 1, %s13
    %p224 = scmp.lt.s32.totalorder %s13, 3
    %p225 = pnand %p223, %p224
    %p226 = pneg %p225
    // Predicated region
    $region9: #{dgcn_layer_forward.11} parent=5 // pred_check
      _
    $region10: #{dgcn_layer_forward.11} parent=5 // pred_check_branch
      %228 = sbr.rel (%p225) target = $region12
    $region11: #{dgcn_layer_forward.11} parent=5 // pred_region
      %s229 = ssub.s32 %s13, 1
      // Predicated region
      $region13: #{dgcn_layer_forward.11} parent=11 // pred_check
        %p230 = pneg %p79
      $region14: #{dgcn_layer_forward.11} parent=11 // pred_check_branch
        %232 = sbr.rel (%p230) target = $region16
      $region15: #{dgcn_layer_forward.11} parent=11 // pred_region
        %s233 = smul.u32 32, %s23
        %p234 = scmp.lt.s32.totalorder %s233, 31
        %s235 = scalar_select %p234, %s233, 31
        %s236 = smul.addr %s235, 4
        %s237 = scalar_lea.vmem %s1, %s236
        %s238 = smul.u32 32, %s23
      $region16: #{dgcn_layer_forward.11} parent=11 // pred_fallthru
        _
      // Predicated region
      $region17: #{dgcn_layer_forward.11} parent=11 // pred_check
        %p239 = pneg %p100
      $region18: #{dgcn_layer_forward.11} parent=11 // pred_check_branch
        %241 = sbr.rel (%p239) target = $region20
      $region19: #{dgcn_layer_forward.11} parent=11 // pred_region
        _
      $region20: #{dgcn_layer_forward.11} parent=11 // pred_fallthru
        _
      // Predicated region
      $region21: #{dgcn_layer_forward.11} parent=11 // pred_check
        %p242 = pneg %p147
      $region22: #{dgcn_layer_forward.11} parent=11 // pred_check_branch
        %244 = sbr.rel (%p242) target = $region24
      $region23: #{dgcn_layer_forward.11} parent=11 // pred_region
        _
      $region24: #{dgcn_layer_forward.11} parent=11 // pred_fallthru
        _
      // Predicated region
      $region25: #{dgcn_layer_forward.11} parent=11 // pred_check
        %p245 = pneg %p168
      $region26: #{dgcn_layer_forward.11} parent=11 // pred_check_branch
        %247 = sbr.rel (%p245) target = $region28
      $region27: #{dgcn_layer_forward.11} parent=11 // pred_region
        _
      $region28: #{dgcn_layer_forward.11} parent=11 // pred_fallthru
        _
      // Predicated region
      $region29: #{dgcn_layer_forward.11} parent=11 // pred_check
        %p248 = pneg %p189
      $region30: #{dgcn_layer_forward.11} parent=11 // pred_check_branch
        %250 = sbr.rel (%p248) target = $region32
      $region31: #{dgcn_layer_forward.11} parent=11 // pred_region
        _
      $region32: #{dgcn_layer_forward.11} parent=11 // pred_fallthru
        _
    $region12: #{dgcn_layer_forward.11} parent=5 // pred_fallthru
      _
    %p251 = scmp.lt.s32.totalorder %s13, 2
    // Predicated region
    $region33: #{dgcn_layer_forward.11} parent=5 // pred_check
      %p252 = pneg %p251
    $region34: #{dgcn_layer_forward.11} parent=5 // pred_check_branch
      %254 = sbr.rel (%p252) target = $region36
    $region35: #{dgcn_layer_forward.11} parent=5 // pred_region
      // Predicated region
      $region37: #{dgcn_layer_forward.11} parent=35 // pred_check
        %p255 = pneg %p47
      $region38: #{dgcn_layer_forward.11} parent=35 // pred_check_branch
        %257 = sbr.rel (%p255) target = $region40
      $region39: #{dgcn_layer_forward.11} parent=35 // pred_region
        %s258 = smul.u32 32, %s20
        %s259 = smul.u32 2, %s21
        %p260 = scmp.lt.s32.totalorder %s258, 63
        %s261 = scalar_select %p260, %s258, 63
        %p262 = scmp.lt.s32.totalorder %s259, 1
        %s263 = scalar_select %p262, %s259, 1
        %s264 = smul.addr %s261, 2
        %s265 = sadd.s32 %s263, %s264
        %s266 = smul.addr %s265, 4
        %s267 = scalar_lea.vmem %s0, %s266
        %s268 = smul.u32 32, %s20
        %s269 = smul.u32 2, %s21
      $region40: #{dgcn_layer_forward.11} parent=35 // pred_fallthru
        _
      // Predicated region
      $region41: #{dgcn_layer_forward.11} parent=35 // pred_check
        %p270 = pneg %p120
      $region42: #{dgcn_layer_forward.11} parent=35 // pred_check_branch
        %272 = sbr.rel (%p270) target = $region44
      $region43: #{dgcn_layer_forward.11} parent=35 // pred_region
        %s273 = smul.u32 32, %s20
        %p274 = scmp.lt.s32.totalorder %s273, 63
        %s275 = scalar_select %p274, %s273, 63
        %s276 = smul.addr %s275, 4
        %s277 = scalar_lea.vmem %s3, %s276
        %s278 = smul.u32 32, %s20
      $region44: #{dgcn_layer_forward.11} parent=35 // pred_fallthru
        _
    $region36: #{dgcn_layer_forward.11} parent=5 // pred_fallthru
      _
    %p279 = scmp.le.s32.totalorder 1, %s13
    %p280 = scmp.lt.s32.totalorder %s13, 3
    %p281 = pnand %p279, %p280
    %p282 = pneg %p281
    // Predicated region
    $region45: #{dgcn_layer_forward.11} parent=5 // pred_check
      _
    $region46: #{dgcn_layer_forward.11} parent=5 // pred_check_branch
      %284 = sbr.rel (%p281) target = $region48
    $region47: #{dgcn_layer_forward.11} parent=5 // pred_region
      %s285 = ssub.s32 %s13, 1
      %s286 = smul.u32 32, %s22
      %s287 = smul.u32 2, %s23
      %p288 = scmp.lt.s32.totalorder %s286, 63
      %s289 = scalar_select %p288, %s286, 63
      %p290 = scmp.lt.s32.totalorder %s287, 1
      %s291 = scalar_select %p290, %s287, 1
      %s292 = smul.addr %s289, 2
      %s293 = sadd.s32 %s291, %s292
      %s294 = smul.addr %s293, 4
      %s295 = scalar_lea.vmem %s0, %s294
      %p296 = pneg %p53
      %p297 = pneg %p50
      %s298 = smul.u32 32, %s23
      %p299 = scmp.lt.s32.totalorder %s298, 31
      %s300 = scalar_select %p299, %s298, 31
      %s301 = smul.addr %s300, 4
      %s302 = scalar_lea.vmem %s1, %s301
      %p303 = pneg %p79
      %p304 = pneg %p76
      %p305 = pneg %p100
      %p306 = pneg %p97
      %s307 = smul.u32 32, %s22
      %p308 = scmp.lt.s32.totalorder %s307, 63
      %s309 = scalar_select %p308, %s307, 63
      %s310 = smul.addr %s309, 4
      %s311 = scalar_lea.vmem %s3, %s310
      %p312 = pneg %p126
      %p313 = pneg %p123
      %p314 = pneg %p147
      %p315 = pneg %p144
      %p316 = pneg %p168
      %p317 = pneg %p165
      %p318 = pneg %p189
      %p319 = pneg %p186
      %p320 = pneg %p215
      %p321 = pneg %p212
      %s322 = smul.u32 32, %s22
      %p323 = scmp.lt.s32.totalorder %s322, 63
      %s324 = scalar_select %p323, %s322, 63
      %s325 = smul.addr %s324, 8
      %s326 = scalar_lea.vmem %s7, %s325
      %s327 = smul.u32 32, %s22
      %s328 = smul.u32 2, %s23
      %p329 = scmp.lt.s32.totalorder %s327, 63
      %s330 = scalar_select %p329, %s327, 63
      %p331 = scmp.lt.s32.totalorder %s328, 1
      %s332 = scalar_select %p331, %s328, 1
      %s333 = smul.addr %s330, 2
      %s334 = sadd.s32 %s332, %s333
      %s335 = smul.addr %s334, 4
      %s336 = scalar_lea.vmem %s0, %s335
      %s337 = smul.u32 32, %s22
      %s338 = smul.u32 2, %s23
      %s339 = smul.u32 32, %s23
      %p340 = scmp.lt.s32.totalorder %s339, 31
      %s341 = scalar_select %p340, %s339, 31
      %s342 = smul.addr %s341, 4
      %s343 = scalar_lea.vmem %s1, %s342
      %s344 = smul.u32 32, %s23
      %s345 = smul.u32 32, %s22
      %p346 = scmp.lt.s32.totalorder %s345, 63
      %s347 = scalar_select %p346, %s345, 63
      %s348 = smul.addr %s347, 4
      %s349 = scalar_lea.vmem %s3, %s348
      %s350 = smul.u32 32, %s22
      %s351 = smul.u32 32, %s22
      %p352 = scmp.lt.s32.totalorder %s351, 63
      %s353 = scalar_select %p352, %s351, 63
      %s354 = smul.addr %s353, 8
      %s355 = scalar_lea.vmem %s7, %s354
      %s356 = smul.u32 32, %s22
      %p358 = scmp.eq.s32.totalorder %s23, 0
      // Predicated region
      $region49: #{dgcn_layer_forward.11} parent=47 // pred_check
        %p359 = pneg %p358
      $region50: #{dgcn_layer_forward.11} parent=47 // pred_check_branch
        %361 = sbr.rel (%p359) target = $region52
      $region51: #{dgcn_layer_forward.11} parent=47 // pred_region
        %362 = vst [vmem:[#allocation2] sm:$0xff] 0.0
        %363 = vst [vmem:[#allocation2 + $0x8] sm:$0xff] 0.0
        %364 = vst [vmem:[#allocation2 + $0x10] sm:$0xff] 0.0
        %365 = vst [vmem:[#allocation2 + $0x18] sm:$0xff] 0.0
        %366 = vst [vmem:[#allocation2 + $0x20] sm:$0xff] 0.0
        %367 = vst [vmem:[#allocation2 + $0x28] sm:$0xff] 0.0
        %368 = vst [vmem:[#allocation2 + $0x30] sm:$0xff] 0.0
        %369 = vst [vmem:[#allocation2 + $0x38] sm:$0xff] 0.0
        %370 = vst [vmem:[#allocation2 + $0x40] sm:$0xff] 0.0
        %371 = vst [vmem:[#allocation2 + $0x48] sm:$0xff] 0.0
        %372 = vst [vmem:[#allocation2 + $0x50] sm:$0xff] 0.0
        %373 = vst [vmem:[#allocation2 + $0x58] sm:$0xff] 0.0
        %374 = vst [vmem:[#allocation2 + $0x60] sm:$0xff] 0.0
        %375 = vst [vmem:[#allocation2 + $0x68] sm:$0xff] 0.0
        %376 = vst [vmem:[#allocation2 + $0x70] sm:$0xff] 0.0
        %377 = vst [vmem:[#allocation2 + $0x78] sm:$0xff] 0.0
        %378 = vst [vmem:[#allocation2 + $0x80] sm:$0xff] 0.0
        %379 = vst [vmem:[#allocation2 + $0x88] sm:$0xff] 0.0
        %380 = vst [vmem:[#allocation2 + $0x90] sm:$0xff] 0.0
        %381 = vst [vmem:[#allocation2 + $0x98] sm:$0xff] 0.0
        %382 = vst [vmem:[#allocation2 + $0xa0] sm:$0xff] 0.0
        %383 = vst [vmem:[#allocation2 + $0xa8] sm:$0xff] 0.0
        %384 = vst [vmem:[#allocation2 + $0xb0] sm:$0xff] 0.0
        %385 = vst [vmem:[#allocation2 + $0xb8] sm:$0xff] 0.0
        %386 = vst [vmem:[#allocation2 + $0xc0] sm:$0xff] 0.0
        %387 = vst [vmem:[#allocation2 + $0xc8] sm:$0xff] 0.0
        %388 = vst [vmem:[#allocation2 + $0xd0] sm:$0xff] 0.0
        %389 = vst [vmem:[#allocation2 + $0xd8] sm:$0xff] 0.0
        %390 = vst [vmem:[#allocation2 + $0xe0] sm:$0xff] 0.0
        %391 = vst [vmem:[#allocation2 + $0xe8] sm:$0xff] 0.0
        %392 = vst [vmem:[#allocation2 + $0xf0] sm:$0xff] 0.0
        %393 = vst [vmem:[#allocation2 + $0xf8] sm:$0xff] 0.0
      $region52: #{dgcn_layer_forward.11} parent=47 // pred_fallthru
        _
      %v394 = vld [vmem:[#allocation2] sm:$0xff]
      %v395 = vld [vmem:[#allocation2 + $0x8] sm:$0xff]
      %v396 = vld [vmem:[#allocation2 + $0x10] sm:$0xff]
      %v397 = vld [vmem:[#allocation2 + $0x18] sm:$0xff]
      %v398 = vld [vmem:[#allocation2 + $0x20] sm:$0xff]
      %v399 = vld [vmem:[#allocation2 + $0x28] sm:$0xff]
      %v400 = vld [vmem:[#allocation2 + $0x30] sm:$0xff]
      %v401 = vld [vmem:[#allocation2 + $0x38] sm:$0xff]
      %v402 = vld [vmem:[#allocation2 + $0x40] sm:$0xff]
      %v403 = vld [vmem:[#allocation2 + $0x48] sm:$0xff]
      %v404 = vld [vmem:[#allocation2 + $0x50] sm:$0xff]
      %v405 = vld [vmem:[#allocation2 + $0x58] sm:$0xff]
      %v406 = vld [vmem:[#allocation2 + $0x60] sm:$0xff]
      %v407 = vld [vmem:[#allocation2 + $0x68] sm:$0xff]
      %v408 = vld [vmem:[#allocation2 + $0x70] sm:$0xff]
      %v409 = vld [vmem:[#allocation2 + $0x78] sm:$0xff]
      %v410 = vld [vmem:[#allocation2 + $0x80] sm:$0xff]
      %v411 = vld [vmem:[#allocation2 + $0x88] sm:$0xff]
      %v412 = vld [vmem:[#allocation2 + $0x90] sm:$0xff]
      %v413 = vld [vmem:[#allocation2 + $0x98] sm:$0xff]
      %v414 = vld [vmem:[#allocation2 + $0xa0] sm:$0xff]
      %v415 = vld [vmem:[#allocation2 + $0xa8] sm:$0xff]
      %v416 = vld [vmem:[#allocation2 + $0xb0] sm:$0xff]
      %v417 = vld [vmem:[#allocation2 + $0xb8] sm:$0xff]
      %v418 = vld [vmem:[#allocation2 + $0xc0] sm:$0xff]
      %v419 = vld [vmem:[#allocation2 + $0xc8] sm:$0xff]
      %v420 = vld [vmem:[#allocation2 + $0xd0] sm:$0xff]
      %v421 = vld [vmem:[#allocation2 + $0xd8] sm:$0xff]
      %v422 = vld [vmem:[#allocation2 + $0xe0] sm:$0xff]
      %v423 = vld [vmem:[#allocation2 + $0xe8] sm:$0xff]
      %v424 = vld [vmem:[#allocation2 + $0xf0] sm:$0xff]
      %v425 = vld [vmem:[#allocation2 + $0xf8] sm:$0xff]
      %v426 = vld [vmem:[%s336] sm:$0xff]
      %v427 = vld [vmem:[%s336 + $0x8] sm:$0xff]
      %v428 = vld [vmem:[%s336 + $0x10] sm:$0xff]
      %v429 = vld [vmem:[%s336 + $0x18] sm:$0xff]
      %v430 = vld [vmem:[%s336 + $0x20] sm:$0xff]
      %v431 = vld [vmem:[%s336 + $0x28] sm:$0xff]
      %v432 = vld [vmem:[%s336 + $0x30] sm:$0xff]
      %v433 = vld [vmem:[%s336 + $0x38] sm:$0xff]
      %v434 = vld [vmem:[%s336 + $0x40] sm:$0xff]
      %v435 = vld [vmem:[%s336 + $0x48] sm:$0xff]
      %v436 = vld [vmem:[%s336 + $0x50] sm:$0xff]
      %v437 = vld [vmem:[%s336 + $0x58] sm:$0xff]
      %v438 = vld [vmem:[%s336 + $0x60] sm:$0xff]
      %v439 = vld [vmem:[%s336 + $0x68] sm:$0xff]
      %v440 = vld [vmem:[%s336 + $0x70] sm:$0xff]
      %v441 = vld [vmem:[%s336 + $0x78] sm:$0xff]
      %v442 = vld [vmem:[%s336 + $0x80] sm:$0xff]
      %v443 = vld [vmem:[%s336 + $0x88] sm:$0xff]
      %v444 = vld [vmem:[%s336 + $0x90] sm:$0xff]
      %v445 = vld [vmem:[%s336 + $0x98] sm:$0xff]
      %v446 = vld [vmem:[%s336 + $0xa0] sm:$0xff]
      %v447 = vld [vmem:[%s336 + $0xa8] sm:$0xff]
      %v448 = vld [vmem:[%s336 + $0xb0] sm:$0xff]
      %v449 = vld [vmem:[%s336 + $0xb8] sm:$0xff]
      %v450 = vld [vmem:[%s336 + $0xc0] sm:$0xff]
      %v451 = vld [vmem:[%s336 + $0xc8] sm:$0xff]
      %v452 = vld [vmem:[%s336 + $0xd0] sm:$0xff]
      %v453 = vld [vmem:[%s336 + $0xd8] sm:$0xff]
      %v454 = vld [vmem:[%s336 + $0xe0] sm:$0xff]
      %v455 = vld [vmem:[%s336 + $0xe8] sm:$0xff]
      %v456 = vld [vmem:[%s336 + $0xf0] sm:$0xff]
      %v457 = vld [vmem:[%s336 + $0xf8] sm:$0xff]
      %v458 = vld [vmem:[%s343] sm:$0xf]
      %v459 = vld [vmem:[%s343 + $0x4] sm:$0xf]
      %v460 = vld [vmem:[%s343 + $0x8] sm:$0xf]
      %v461 = vld [vmem:[%s343 + $0xc] sm:$0xf]
      %v462 = vld [vmem:[%s343 + $0x10] sm:$0xf]
      %v463 = vld [vmem:[%s343 + $0x14] sm:$0xf]
      %v464 = vld [vmem:[%s343 + $0x18] sm:$0xf]
      %v465 = vld [vmem:[%s343 + $0x1c] sm:$0xf]
      %v466 = vld [vmem:[%s343 + $0x20] sm:$0xf]
      %v467 = vld [vmem:[%s343 + $0x24] sm:$0xf]
      %v468 = vld [vmem:[%s343 + $0x28] sm:$0xf]
      %v469 = vld [vmem:[%s343 + $0x2c] sm:$0xf]
      %v470 = vld [vmem:[%s343 + $0x30] sm:$0xf]
      %v471 = vld [vmem:[%s343 + $0x34] sm:$0xf]
      %v472 = vld [vmem:[%s343 + $0x38] sm:$0xf]
      %v473 = vld [vmem:[%s343 + $0x3c] sm:$0xf]
      %v474 = vld [vmem:[%s343 + $0x40] sm:$0xf]
      %v475 = vld [vmem:[%s343 + $0x44] sm:$0xf]
      %v476 = vld [vmem:[%s343 + $0x48] sm:$0xf]
      %v477 = vld [vmem:[%s343 + $0x4c] sm:$0xf]
      %v478 = vld [vmem:[%s343 + $0x50] sm:$0xf]
      %v479 = vld [vmem:[%s343 + $0x54] sm:$0xf]
      %v480 = vld [vmem:[%s343 + $0x58] sm:$0xf]
      %v481 = vld [vmem:[%s343 + $0x5c] sm:$0xf]
      %v482 = vld [vmem:[%s343 + $0x60] sm:$0xf]
      %v483 = vld [vmem:[%s343 + $0x64] sm:$0xf]
      %v484 = vld [vmem:[%s343 + $0x68] sm:$0xf]
      %v485 = vld [vmem:[%s343 + $0x6c] sm:$0xf]
      %v486 = vld [vmem:[%s343 + $0x70] sm:$0xf]
      %v487 = vld [vmem:[%s343 + $0x74] sm:$0xf]
      %v488 = vld [vmem:[%s343 + $0x78] sm:$0xf]
      %v489 = vld [vmem:[%s343 + $0x7c] sm:$0xf]
      %v522 = vunpack.c.l.b16 %v426
      %v523 = vunpack.c.h.b16 %v426
      %v524 = vunpack.c.l.b16 %v427
      %v525 = vunpack.c.h.b16 %v427
      %v526 = vunpack.c.l.b16 %v428
      %v527 = vunpack.c.h.b16 %v428
      %v528 = vunpack.c.l.b16 %v429
      %v529 = vunpack.c.h.b16 %v429
      %v530 = vunpack.c.l.b16 %v430
      %v531 = vunpack.c.h.b16 %v430
      %v532 = vunpack.c.l.b16 %v431
      %v533 = vunpack.c.h.b16 %v431
      %v534 = vunpack.c.l.b16 %v432
      %v535 = vunpack.c.h.b16 %v432
      %v536 = vunpack.c.l.b16 %v433
      %v537 = vunpack.c.h.b16 %v433
      %v538 = vunpack.c.l.b16 %v434
      %v539 = vunpack.c.h.b16 %v434
      %v540 = vunpack.c.l.b16 %v435
      %v541 = vunpack.c.h.b16 %v435
      %v542 = vunpack.c.l.b16 %v436
      %v543 = vunpack.c.h.b16 %v436
      %v544 = vunpack.c.l.b16 %v437
      %v545 = vunpack.c.h.b16 %v437
      %v546 = vunpack.c.l.b16 %v438
      %v547 = vunpack.c.h.b16 %v438
      %v548 = vunpack.c.l.b16 %v439
      %v549 = vunpack.c.h.b16 %v439
      %v550 = vunpack.c.l.b16 %v440
      %v551 = vunpack.c.h.b16 %v440
      %v552 = vunpack.c.l.b16 %v441
      %v553 = vunpack.c.h.b16 %v441
      %v554 = vunpack.c.l.b16 %v442
      %v555 = vunpack.c.h.b16 %v442
      %v556 = vunpack.c.l.b16 %v443
      %v557 = vunpack.c.h.b16 %v443
      %v558 = vunpack.c.l.b16 %v444
      %v559 = vunpack.c.h.b16 %v444
      %v560 = vunpack.c.l.b16 %v445
      %v561 = vunpack.c.h.b16 %v445
      %v562 = vunpack.c.l.b16 %v446
      %v563 = vunpack.c.h.b16 %v446
      %v564 = vunpack.c.l.b16 %v447
      %v565 = vunpack.c.h.b16 %v447
      %v566 = vunpack.c.l.b16 %v448
      %v567 = vunpack.c.h.b16 %v448
      %v568 = vunpack.c.l.b16 %v449
      %v569 = vunpack.c.h.b16 %v449
      %v570 = vunpack.c.l.b16 %v450
      %v571 = vunpack.c.h.b16 %v450
      %v572 = vunpack.c.l.b16 %v451
      %v573 = vunpack.c.h.b16 %v451
      %v574 = vunpack.c.l.b16 %v452
      %v575 = vunpack.c.h.b16 %v452
      %v576 = vunpack.c.l.b16 %v453
      %v577 = vunpack.c.h.b16 %v453
      %v578 = vunpack.c.l.b16 %v454
      %v579 = vunpack.c.h.b16 %v454
      %v580 = vunpack.c.l.b16 %v455
      %v581 = vunpack.c.h.b16 %v455
      %v582 = vunpack.c.l.b16 %v456
      %v583 = vunpack.c.h.b16 %v456
      %v584 = vunpack.c.l.b16 %v457
      %v585 = vunpack.c.h.b16 %v457
      %v586 = vpack.c.b16 %v524, %v522
      %v587 = vpack.c.b16 %v525, %v523
      %v588 = vpack.c.b16 %v528, %v526
      %v589 = vpack.c.b16 %v529, %v527
      %v590 = vpack.c.b16 %v532, %v530
      %v591 = vpack.c.b16 %v533, %v531
      %v592 = vpack.c.b16 %v536, %v534
      %v593 = vpack.c.b16 %v537, %v535
      %v594 = vpack.c.b16 %v540, %v538
      %v595 = vpack.c.b16 %v541, %v539
      %v596 = vpack.c.b16 %v544, %v542
      %v597 = vpack.c.b16 %v545, %v543
      %v598 = vpack.c.b16 %v548, %v546
      %v599 = vpack.c.b16 %v549, %v547
      %v600 = vpack.c.b16 %v552, %v550
      %v601 = vpack.c.b16 %v553, %v551
      %v602 = vpack.c.b16 %v556, %v554
      %v603 = vpack.c.b16 %v557, %v555
      %v604 = vpack.c.b16 %v560, %v558
      %v605 = vpack.c.b16 %v561, %v559
      %v606 = vpack.c.b16 %v564, %v562
      %v607 = vpack.c.b16 %v565, %v563
      %v608 = vpack.c.b16 %v568, %v566
      %v609 = vpack.c.b16 %v569, %v567
      %v610 = vpack.c.b16 %v572, %v570
      %v611 = vpack.c.b16 %v573, %v571
      %v612 = vpack.c.b16 %v576, %v574
      %v613 = vpack.c.b16 %v577, %v575
      %v614 = vpack.c.b16 %v580, %v578
      %v615 = vpack.c.b16 %v581, %v579
      %v616 = vpack.c.b16 %v584, %v582
      %v617 = vpack.c.b16 %v585, %v583
      %v682 = vunpack.c.l.b16 %v458
      %v683 = vunpack.c.l.b16 %v459
      %v684 = vunpack.c.l.b16 %v460
      %v685 = vunpack.c.l.b16 %v461
      %v686 = vunpack.c.l.b16 %v462
      %v687 = vunpack.c.l.b16 %v463
      %v688 = vunpack.c.l.b16 %v464
      %v689 = vunpack.c.l.b16 %v465
      %v690 = vunpack.c.l.b16 %v466
      %v691 = vunpack.c.l.b16 %v467
      %v692 = vunpack.c.l.b16 %v468
      %v693 = vunpack.c.l.b16 %v469
      %v694 = vunpack.c.l.b16 %v470
      %v695 = vunpack.c.l.b16 %v471
      %v696 = vunpack.c.l.b16 %v472
      %v697 = vunpack.c.l.b16 %v473
      %v698 = vunpack.c.l.b16 %v474
      %v699 = vunpack.c.l.b16 %v475
      %v700 = vunpack.c.l.b16 %v476
      %v701 = vunpack.c.l.b16 %v477
      %v702 = vunpack.c.l.b16 %v478
      %v703 = vunpack.c.l.b16 %v479
      %v704 = vunpack.c.l.b16 %v480
      %v705 = vunpack.c.l.b16 %v481
      %v706 = vunpack.c.l.b16 %v482
      %v707 = vunpack.c.l.b16 %v483
      %v708 = vunpack.c.l.b16 %v484
      %v709 = vunpack.c.l.b16 %v485
      %v710 = vunpack.c.l.b16 %v486
      %v711 = vunpack.c.l.b16 %v487
      %v712 = vunpack.c.l.b16 %v488
      %v713 = vunpack.c.l.b16 %v489
      %v714 = vpack.c.b16 %v683, %v682
      %v715 = vpack.c.b16 %v685, %v684
      %v716 = vpack.c.b16 %v687, %v686
      %v717 = vpack.c.b16 %v689, %v688
      %v718 = vpack.c.b16 %v691, %v690
      %v719 = vpack.c.b16 %v693, %v692
      %v720 = vpack.c.b16 %v695, %v694
      %v721 = vpack.c.b16 %v697, %v696
      %v722 = vpack.c.b16 %v699, %v698
      %v723 = vpack.c.b16 %v701, %v700
      %v724 = vpack.c.b16 %v703, %v702
      %v725 = vpack.c.b16 %v705, %v704
      %v726 = vpack.c.b16 %v707, %v706
      %v727 = vpack.c.b16 %v709, %v708
      %v728 = vpack.c.b16 %v711, %v710
      %v729 = vpack.c.b16 %v713, %v712
      %746 = vmatprep.subr.bf16.mxu0 0
      %747 = vmatpush1.bf16.msra.mxu0 %v714
      %748 = vmatprep.subr.bf16.mxu0 0
      %749 = vmatpush1.bf16.msra.mxu0 %v715
      %750 = vmatprep.subr.bf16.mxu0 0
      %751 = vmatpush1.bf16.msra.mxu0 %v716
      %752 = vmatprep.subr.bf16.mxu0 0
      %753 = vmatpush1.bf16.msra.mxu0 %v717
      %754 = vmatprep.subr.bf16.mxu0 0
      %755 = vmatpush1.bf16.msra.mxu0 %v718
      %756 = vmatprep.subr.bf16.mxu0 0
      %757 = vmatpush1.bf16.msra.mxu0 %v719
      %758 = vmatprep.subr.bf16.mxu0 0
      %759 = vmatpush1.bf16.msra.mxu0 %v720
      %760 = vmatprep.subr.bf16.mxu0 0
      %761 = vmatpush1.bf16.msra.mxu0 %v721
      %762 = vmatprep.subr.bf16.mxu0 0
      %763 = vmatpush1.bf16.msra.mxu0 %v722
      %764 = vmatprep.subr.bf16.mxu0 0
      %765 = vmatpush1.bf16.msra.mxu0 %v723
      %766 = vmatprep.subr.bf16.mxu0 0
      %767 = vmatpush1.bf16.msra.mxu0 %v724
      %768 = vmatprep.subr.bf16.mxu0 0
      %769 = vmatpush1.bf16.msra.mxu0 %v725
      %770 = vmatprep.subr.bf16.mxu0 0
      %771 = vmatpush1.bf16.msra.mxu0 %v726
      %772 = vmatprep.subr.bf16.mxu0 0
      %773 = vmatpush1.bf16.msra.mxu0 %v727
      %774 = vmatprep.subr.bf16.mxu0 0
      %775 = vmatpush1.bf16.msra.mxu0 %v728
      %776 = vmatprep.subr.bf16.mxu0 0
      %777 = vmatpush1.bf16.msra.mxu0 %v729
      %778 = vmatprep.mubr.bf16.mxu0 %v587
      %779 = vmatmul.mubr.bf16.gmra.mrb[0].mxu0 %v586
      %v780 = vpop.f32.mrb[0].mxu0
      %v781 = vadd.f32 0.0, %v780
      %v782 = vpop.f32.mrb[0].mxu0
      %v783 = vpop.f32.mrb[0].mxu0
      %v784 = vadd.f32 0.0, %v783
      %v785 = vpop.f32.mrb[0].mxu0
      %786 = vmatprep.mubr.bf16.mxu0 %v589
      %787 = vmatmul.mubr.bf16.gmra.mrb[0].mxu0 %v588
      %v788 = vpop.f32.mrb[0].mxu0
      %v789 = vadd.f32 0.0, %v788
      %v790 = vpop.f32.mrb[0].mxu0
      %v791 = vpop.f32.mrb[0].mxu0
      %v792 = vadd.f32 0.0, %v791
      %v793 = vpop.f32.mrb[0].mxu0
      %794 = vmatprep.mubr.bf16.mxu0 %v591
      %795 = vmatmul.mubr.bf16.gmra.mrb[0].mxu0 %v590
      %v796 = vpop.f32.mrb[0].mxu0
      %v797 = vadd.f32 0.0, %v796
      %v798 = vpop.f32.mrb[0].mxu0
      %v799 = vpop.f32.mrb[0].mxu0
      %v800 = vadd.f32 0.0, %v799
      %v801 = vpop.f32.mrb[0].mxu0
      %802 = vmatprep.mubr.bf16.mxu0 %v593
      %803 = vmatmul.mubr.bf16.gmra.mrb[0].mxu0 %v592
      %v804 = vpop.f32.mrb[0].mxu0
      %v805 = vadd.f32 0.0, %v804
      %v806 = vpop.f32.mrb[0].mxu0
      %v807 = vpop.f32.mrb[0].mxu0
      %v808 = vadd.f32 0.0, %v807
      %v809 = vpop.f32.mrb[0].mxu0
      %810 = vmatprep.mubr.bf16.mxu0 %v595
      %811 = vmatmul.mubr.bf16.gmra.mrb[0].mxu0 %v594
      %v812 = vpop.f32.mrb[0].mxu0
      %v813 = vadd.f32 0.0, %v812
      %v814 = vpop.f32.mrb[0].mxu0
      %v815 = vpop.f32.mrb[0].mxu0
      %v816 = vadd.f32 0.0, %v815
      %v817 = vpop.f32.mrb[0].mxu0
      %818 = vmatprep.mubr.bf16.mxu0 %v597
      %819 = vmatmul.mubr.bf16.gmra.mrb[0].mxu0 %v596
      %v820 = vpop.f32.mrb[0].mxu0
      %v821 = vadd.f32 0.0, %v820
      %v822 = vpop.f32.mrb[0].mxu0
      %v823 = vpop.f32.mrb[0].mxu0
      %v824 = vadd.f32 0.0, %v823
      %v825 = vpop.f32.mrb[0].mxu0
      %826 = vmatprep.mubr.bf16.mxu0 %v599
      %827 = vmatmul.mubr.bf16.gmra.mrb[0].mxu0 %v598
      %v828 = vpop.f32.mrb[0].mxu0
      %v829 = vadd.f32 0.0, %v828
      %v830 = vpop.f32.mrb[0].mxu0
      %v831 = vpop.f32.mrb[0].mxu0
      %v832 = vadd.f32 0.0, %v831
      %v833 = vpop.f32.mrb[0].mxu0
      %834 = vmatprep.mubr.bf16.mxu0 %v601
      %835 = vmatmul.mubr.bf16.gmra.mrb[0].mxu0 %v600
      %v836 = vpop.f32.mrb[0].mxu0
      %v837 = vadd.f32 0.0, %v836
      %v838 = vpop.f32.mrb[0].mxu0
      %v839 = vpop.f32.mrb[0].mxu0
      %v840 = vadd.f32 0.0, %v839
      %v841 = vpop.f32.mrb[0].mxu0
      %842 = vmatprep.mubr.bf16.mxu0 %v603
      %843 = vmatmul.mubr.bf16.gmra.mrb[0].mxu0 %v602
      %v844 = vpop.f32.mrb[0].mxu0
      %v845 = vadd.f32 0.0, %v844
      %v846 = vpop.f32.mrb[0].mxu0
      %v847 = vpop.f32.mrb[0].mxu0
      %v848 = vadd.f32 0.0, %v847
      %v849 = vpop.f32.mrb[0].mxu0
      %850 = vmatprep.mubr.bf16.mxu0 %v605
      %851 = vmatmul.mubr.bf16.gmra.mrb[0].mxu0 %v604
      %v852 = vpop.f32.mrb[0].mxu0
      %v853 = vadd.f32 0.0, %v852
      %v854 = vpop.f32.mrb[0].mxu0
      %v855 = vpop.f32.mrb[0].mxu0
      %v856 = vadd.f32 0.0, %v855
      %v857 = vpop.f32.mrb[0].mxu0
      %858 = vmatprep.mubr.bf16.mxu0 %v607
      %859 = vmatmul.mubr.bf16.gmra.mrb[0].mxu0 %v606
      %v860 = vpop.f32.mrb[0].mxu0
      %v861 = vadd.f32 0.0, %v860
      %v862 = vpop.f32.mrb[0].mxu0
      %v863 = vpop.f32.mrb[0].mxu0
      %v864 = vadd.f32 0.0, %v863
      %v865 = vpop.f32.mrb[0].mxu0
      %866 = vmatprep.mubr.bf16.mxu0 %v609
      %867 = vmatmul.mubr.bf16.gmra.mrb[0].mxu0 %v608
      %v868 = vpop.f32.mrb[0].mxu0
      %v869 = vadd.f32 0.0, %v868
      %v870 = vpop.f32.mrb[0].mxu0
      %v871 = vpop.f32.mrb[0].mxu0
      %v872 = vadd.f32 0.0, %v871
      %v873 = vpop.f32.mrb[0].mxu0
      %874 = vmatprep.mubr.bf16.mxu0 %v611
      %875 = vmatmul.mubr.bf16.gmra.mrb[0].mxu0 %v610
      %v876 = vpop.f32.mrb[0].mxu0
      %v877 = vadd.f32 0.0, %v876
      %v878 = vpop.f32.mrb[0].mxu0
      %v879 = vpop.f32.mrb[0].mxu0
      %v880 = vadd.f32 0.0, %v879
      %v881 = vpop.f32.mrb[0].mxu0
      %882 = vmatprep.mubr.bf16.mxu0 %v613
      %883 = vmatmul.mubr.bf16.gmra.mrb[0].mxu0 %v612
      %v884 = vpop.f32.mrb[0].mxu0
      %v885 = vadd.f32 0.0, %v884
      %v886 = vpop.f32.mrb[0].mxu0
      %v887 = vpop.f32.mrb[0].mxu0
      %v888 = vadd.f32 0.0, %v887
      %v889 = vpop.f32.mrb[0].mxu0
      %890 = vmatprep.mubr.bf16.mxu0 %v615
      %891 = vmatmul.mubr.bf16.gmra.mrb[0].mxu0 %v614
      %v892 = vpop.f32.mrb[0].mxu0
      %v893 = vadd.f32 0.0, %v892
      %v894 = vpop.f32.mrb[0].mxu0
      %v895 = vpop.f32.mrb[0].mxu0
      %v896 = vadd.f32 0.0, %v895
      %v897 = vpop.f32.mrb[0].mxu0
      %898 = vmatprep.mubr.bf16.mxu0 %v617
      %899 = vmatmul.mubr.bf16.gmra.mrb[0].mxu0 %v616
      %v900 = vpop.f32.mrb[0].mxu0
      %v901 = vadd.f32 0.0, %v900
      %v902 = vpop.f32.mrb[0].mxu0
      %v903 = vpop.f32.mrb[0].mxu0
      %v904 = vadd.f32 0.0, %v903
      %v905 = vpop.f32.mrb[0].mxu0
      %906 = vdwg.mxu0
      %v907 = vadd.f32 %v394, %v781
      %v908 = vadd.f32 %v395, %v784
      %v909 = vadd.f32 %v396, %v789
      %v910 = vadd.f32 %v397, %v792
      %v911 = vadd.f32 %v398, %v797
      %v912 = vadd.f32 %v399, %v800
      %v913 = vadd.f32 %v400, %v805
      %v914 = vadd.f32 %v401, %v808
      %v915 = vadd.f32 %v402, %v813
      %v916 = vadd.f32 %v403, %v816
      %v917 = vadd.f32 %v404, %v821
      %v918 = vadd.f32 %v405, %v824
      %v919 = vadd.f32 %v406, %v829
      %v920 = vadd.f32 %v407, %v832
      %v921 = vadd.f32 %v408, %v837
      %v922 = vadd.f32 %v409, %v840
      %v923 = vadd.f32 %v410, %v845
      %v924 = vadd.f32 %v411, %v848
      %v925 = vadd.f32 %v412, %v853
      %v926 = vadd.f32 %v413, %v856
      %v927 = vadd.f32 %v414, %v861
      %v928 = vadd.f32 %v415, %v864
      %v929 = vadd.f32 %v416, %v869
      %v930 = vadd.f32 %v417, %v872
      %v931 = vadd.f32 %v418, %v877
      %v932 = vadd.f32 %v419, %v880
      %v933 = vadd.f32 %v420, %v885
      %v934 = vadd.f32 %v421, %v888
      %v935 = vadd.f32 %v422, %v893
      %v936 = vadd.f32 %v423, %v896
      %v937 = vadd.f32 %v424, %v901
      %v938 = vadd.f32 %v425, %v904
      %939 = vst [vmem:[#allocation2] sm:$0xff] %v907
      %940 = vst [vmem:[#allocation2 + $0x8] sm:$0xff] %v908
      %941 = vst [vmem:[#allocation2 + $0x10] sm:$0xff] %v909
      %942 = vst [vmem:[#allocation2 + $0x18] sm:$0xff] %v910
      %943 = vst [vmem:[#allocation2 + $0x20] sm:$0xff] %v911
      %944 = vst [vmem:[#allocation2 + $0x28] sm:$0xff] %v912
      %945 = vst [vmem:[#allocation2 + $0x30] sm:$0xff] %v913
      %946 = vst [vmem:[#allocation2 + $0x38] sm:$0xff] %v914
      %947 = vst [vmem:[#allocation2 + $0x40] sm:$0xff] %v915
      %948 = vst [vmem:[#allocation2 + $0x48] sm:$0xff] %v916
      %949 = vst [vmem:[#allocation2 + $0x50] sm:$0xff] %v917
      %950 = vst [vmem:[#allocation2 + $0x58] sm:$0xff] %v918
      %951 = vst [vmem:[#allocation2 + $0x60] sm:$0xff] %v919
      %952 = vst [vmem:[#allocation2 + $0x68] sm:$0xff] %v920
      %953 = vst [vmem:[#allocation2 + $0x70] sm:$0xff] %v921
      %954 = vst [vmem:[#allocation2 + $0x78] sm:$0xff] %v922
      %955 = vst [vmem:[#allocation2 + $0x80] sm:$0xff] %v923
      %956 = vst [vmem:[#allocation2 + $0x88] sm:$0xff] %v924
      %957 = vst [vmem:[#allocation2 + $0x90] sm:$0xff] %v925
      %958 = vst [vmem:[#allocation2 + $0x98] sm:$0xff] %v926
      %959 = vst [vmem:[#allocation2 + $0xa0] sm:$0xff] %v927
      %960 = vst [vmem:[#allocation2 + $0xa8] sm:$0xff] %v928
      %961 = vst [vmem:[#allocation2 + $0xb0] sm:$0xff] %v929
      %962 = vst [vmem:[#allocation2 + $0xb8] sm:$0xff] %v930
      %963 = vst [vmem:[#allocation2 + $0xc0] sm:$0xff] %v931
      %964 = vst [vmem:[#allocation2 + $0xc8] sm:$0xff] %v932
      %965 = vst [vmem:[#allocation2 + $0xd0] sm:$0xff] %v933
      %966 = vst [vmem:[#allocation2 + $0xd8] sm:$0xff] %v934
      %967 = vst [vmem:[#allocation2 + $0xe0] sm:$0xff] %v935
      %968 = vst [vmem:[#allocation2 + $0xe8] sm:$0xff] %v936
      %969 = vst [vmem:[#allocation2 + $0xf0] sm:$0xff] %v937
      %970 = vst [vmem:[#allocation2 + $0xf8] sm:$0xff] %v938
      // Predicated region
      $region53: #{dgcn_layer_forward.11} parent=47 // pred_check
        %p971 = pneg %p358
      $region54: #{dgcn_layer_forward.11} parent=47 // pred_check_branch
        %973 = sbr.rel (%p971) target = $region56
      $region55: #{dgcn_layer_forward.11} parent=47 // pred_region
        %v974 = vld [vmem:[#allocation2] sm:$0xff]
        %v975 = vld [vmem:[#allocation2 + $0x8] sm:$0xff]
        %v976 = vld [vmem:[#allocation2 + $0x10] sm:$0xff]
        %v977 = vld [vmem:[#allocation2 + $0x18] sm:$0xff]
        %v978 = vld [vmem:[#allocation2 + $0x20] sm:$0xff]
        %v979 = vld [vmem:[#allocation2 + $0x28] sm:$0xff]
        %v980 = vld [vmem:[#allocation2 + $0x30] sm:$0xff]
        %v981 = vld [vmem:[#allocation2 + $0x38] sm:$0xff]
        %v982 = vld [vmem:[#allocation2 + $0x40] sm:$0xff]
        %v983 = vld [vmem:[#allocation2 + $0x48] sm:$0xff]
        %v984 = vld [vmem:[#allocation2 + $0x50] sm:$0xff]
        %v985 = vld [vmem:[#allocation2 + $0x58] sm:$0xff]
        %v986 = vld [vmem:[#allocation2 + $0x60] sm:$0xff]
        %v987 = vld [vmem:[#allocation2 + $0x68] sm:$0xff]
        %v988 = vld [vmem:[#allocation2 + $0x70] sm:$0xff]
        %v989 = vld [vmem:[#allocation2 + $0x78] sm:$0xff]
        %v990 = vld [vmem:[#allocation2 + $0x80] sm:$0xff]
        %v991 = vld [vmem:[#allocation2 + $0x88] sm:$0xff]
        %v992 = vld [vmem:[#allocation2 + $0x90] sm:$0xff]
        %v993 = vld [vmem:[#allocation2 + $0x98] sm:$0xff]
        %v994 = vld [vmem:[#allocation2 + $0xa0] sm:$0xff]
        %v995 = vld [vmem:[#allocation2 + $0xa8] sm:$0xff]
        %v996 = vld [vmem:[#allocation2 + $0xb0] sm:$0xff]
        %v997 = vld [vmem:[#allocation2 + $0xb8] sm:$0xff]
        %v998 = vld [vmem:[#allocation2 + $0xc0] sm:$0xff]
        %v999 = vld [vmem:[#allocation2 + $0xc8] sm:$0xff]
        %v1000 = vld [vmem:[#allocation2 + $0xd0] sm:$0xff]
        %v1001 = vld [vmem:[#allocation2 + $0xd8] sm:$0xff]
        %v1002 = vld [vmem:[#allocation2 + $0xe0] sm:$0xff]
        %v1003 = vld [vmem:[#allocation2 + $0xe8] sm:$0xff]
        %v1004 = vld [vmem:[#allocation2 + $0xf0] sm:$0xff]
        %v1005 = vld [vmem:[#allocation2 + $0xf8] sm:$0xff]
        %v1006 = vld [vmem:[%s2] sm:$0x1]
        %v1008 = vlaneseq
        %v1009 = vshrl.u32 %v1008, 7
        %v1010 = vsub.s32 0, %v1009
        %v1011 = vrot.slane %v1006, %v1010
        %v1013 = vadd.f32 %v974, %v1011
        %v1014 = vadd.f32 %v975, %v1011
        %v1015 = vadd.f32 %v976, %v1011
        %v1016 = vadd.f32 %v977, %v1011
        %v1017 = vadd.f32 %v978, %v1011
        %v1018 = vadd.f32 %v979, %v1011
        %v1019 = vadd.f32 %v980, %v1011
        %v1020 = vadd.f32 %v981, %v1011
        %v1021 = vadd.f32 %v982, %v1011
        %v1022 = vadd.f32 %v983, %v1011
        %v1023 = vadd.f32 %v984, %v1011
        %v1024 = vadd.f32 %v985, %v1011
        %v1025 = vadd.f32 %v986, %v1011
        %v1026 = vadd.f32 %v987, %v1011
        %v1027 = vadd.f32 %v988, %v1011
        %v1028 = vadd.f32 %v989, %v1011
        %v1029 = vadd.f32 %v990, %v1011
        %v1030 = vadd.f32 %v991, %v1011
        %v1031 = vadd.f32 %v992, %v1011
        %v1032 = vadd.f32 %v993, %v1011
        %v1033 = vadd.f32 %v994, %v1011
        %v1034 = vadd.f32 %v995, %v1011
        %v1035 = vadd.f32 %v996, %v1011
        %v1036 = vadd.f32 %v997, %v1011
        %v1037 = vadd.f32 %v998, %v1011
        %v1038 = vadd.f32 %v999, %v1011
        %v1039 = vadd.f32 %v1000, %v1011
        %v1040 = vadd.f32 %v1001, %v1011
        %v1041 = vadd.f32 %v1002, %v1011
        %v1042 = vadd.f32 %v1003, %v1011
        %v1043 = vadd.f32 %v1004, %v1011
        %v1044 = vadd.f32 %v1005, %v1011
        %vm1045 = vcmp.gt.f32.partialorder %v1013, 0.0
        %vm1046 = vcmp.gt.f32.partialorder %v1014, 0.0
        %vm1047 = vcmp.gt.f32.partialorder %v1015, 0.0
        %vm1048 = vcmp.gt.f32.partialorder %v1016, 0.0
        %vm1049 = vcmp.gt.f32.partialorder %v1017, 0.0
        %vm1050 = vcmp.gt.f32.partialorder %v1018, 0.0
        %vm1051 = vcmp.gt.f32.partialorder %v1019, 0.0
        %vm1052 = vcmp.gt.f32.partialorder %v1020, 0.0
        %vm1053 = vcmp.gt.f32.partialorder %v1021, 0.0
        %vm1054 = vcmp.gt.f32.partialorder %v1022, 0.0
        %vm1055 = vcmp.gt.f32.partialorder %v1023, 0.0
        %vm1056 = vcmp.gt.f32.partialorder %v1024, 0.0
        %vm1057 = vcmp.gt.f32.partialorder %v1025, 0.0
        %vm1058 = vcmp.gt.f32.partialorder %v1026, 0.0
        %vm1059 = vcmp.gt.f32.partialorder %v1027, 0.0
        %vm1060 = vcmp.gt.f32.partialorder %v1028, 0.0
        %vm1061 = vcmp.gt.f32.partialorder %v1029, 0.0
        %vm1062 = vcmp.gt.f32.partialorder %v1030, 0.0
        %vm1063 = vcmp.gt.f32.partialorder %v1031, 0.0
        %vm1064 = vcmp.gt.f32.partialorder %v1032, 0.0
        %vm1065 = vcmp.gt.f32.partialorder %v1033, 0.0
        %vm1066 = vcmp.gt.f32.partialorder %v1034, 0.0
        %vm1067 = vcmp.gt.f32.partialorder %v1035, 0.0
        %vm1068 = vcmp.gt.f32.partialorder %v1036, 0.0
        %vm1069 = vcmp.gt.f32.partialorder %v1037, 0.0
        %vm1070 = vcmp.gt.f32.partialorder %v1038, 0.0
        %vm1071 = vcmp.gt.f32.partialorder %v1039, 0.0
        %vm1072 = vcmp.gt.f32.partialorder %v1040, 0.0
        %vm1073 = vcmp.gt.f32.partialorder %v1041, 0.0
        %vm1074 = vcmp.gt.f32.partialorder %v1042, 0.0
        %vm1075 = vcmp.gt.f32.partialorder %v1043, 0.0
        %vm1076 = vcmp.gt.f32.partialorder %v1044, 0.0
        %v1077 = vmul.f32 %v1013, 0.1
        %v1078 = vmul.f32 %v1014, 0.1
        %v1079 = vmul.f32 %v1015, 0.1
        %v1080 = vmul.f32 %v1016, 0.1
        %v1081 = vmul.f32 %v1017, 0.1
        %v1082 = vmul.f32 %v1018, 0.1
        %v1083 = vmul.f32 %v1019, 0.1
        %v1084 = vmul.f32 %v1020, 0.1
        %v1085 = vmul.f32 %v1021, 0.1
        %v1086 = vmul.f32 %v1022, 0.1
        %v1087 = vmul.f32 %v1023, 0.1
        %v1088 = vmul.f32 %v1024, 0.1
        %v1089 = vmul.f32 %v1025, 0.1
        %v1090 = vmul.f32 %v1026, 0.1
        %v1091 = vmul.f32 %v1027, 0.1
        %v1092 = vmul.f32 %v1028, 0.1
        %v1093 = vmul.f32 %v1029, 0.1
        %v1094 = vmul.f32 %v1030, 0.1
        %v1095 = vmul.f32 %v1031, 0.1
        %v1096 = vmul.f32 %v1032, 0.1
        %v1097 = vmul.f32 %v1033, 0.1
        %v1098 = vmul.f32 %v1034, 0.1
        %v1099 = vmul.f32 %v1035, 0.1
        %v1100 = vmul.f32 %v1036, 0.1
        %v1101 = vmul.f32 %v1037, 0.1
        %v1102 = vmul.f32 %v1038, 0.1
        %v1103 = vmul.f32 %v1039, 0.1
        %v1104 = vmul.f32 %v1040, 0.1
        %v1105 = vmul.f32 %v1041, 0.1
        %v1106 = vmul.f32 %v1042, 0.1
        %v1107 = vmul.f32 %v1043, 0.1
        %v1108 = vmul.f32 %v1044, 0.1
        %v1109 = vsel %vm1045, %v1013, %v1077
        %v1110 = vsel %vm1046, %v1014, %v1078
        %v1111 = vsel %vm1047, %v1015, %v1079
        %v1112 = vsel %vm1048, %v1016, %v1080
        %v1113 = vsel %vm1049, %v1017, %v1081
        %v1114 = vsel %vm1050, %v1018, %v1082
        %v1115 = vsel %vm1051, %v1019, %v1083
        %v1116 = vsel %vm1052, %v1020, %v1084
        %v1117 = vsel %vm1053, %v1021, %v1085
        %v1118 = vsel %vm1054, %v1022, %v1086
        %v1119 = vsel %vm1055, %v1023, %v1087
        %v1120 = vsel %vm1056, %v1024, %v1088
        %v1121 = vsel %vm1057, %v1025, %v1089
        %v1122 = vsel %vm1058, %v1026, %v1090
        %v1123 = vsel %vm1059, %v1027, %v1091
        %v1124 = vsel %vm1060, %v1028, %v1092
        %v1125 = vsel %vm1061, %v1029, %v1093
        %v1126 = vsel %vm1062, %v1030, %v1094
        %v1127 = vsel %vm1063, %v1031, %v1095
        %v1128 = vsel %vm1064, %v1032, %v1096
        %v1129 = vsel %vm1065, %v1033, %v1097
        %v1130 = vsel %vm1066, %v1034, %v1098
        %v1131 = vsel %vm1067, %v1035, %v1099
        %v1132 = vsel %vm1068, %v1036, %v1100
        %v1133 = vsel %vm1069, %v1037, %v1101
        %v1134 = vsel %vm1070, %v1038, %v1102
        %v1135 = vsel %vm1071, %v1039, %v1103
        %v1136 = vsel %vm1072, %v1040, %v1104
        %v1137 = vsel %vm1073, %v1041, %v1105
        %v1138 = vsel %vm1074, %v1042, %v1106
        %v1139 = vsel %vm1075, %v1043, %v1107
        %v1140 = vsel %vm1076, %v1044, %v1108
        %v1141 = vpack.c.bf16 %v1110, %v1109
        %v1142 = vpack.c.bf16 %v1112, %v1111
        %v1143 = vpack.c.bf16 %v1114, %v1113
        %v1144 = vpack.c.bf16 %v1116, %v1115
        %v1145 = vpack.c.bf16 %v1118, %v1117
        %v1146 = vpack.c.bf16 %v1120, %v1119
        %v1147 = vpack.c.bf16 %v1122, %v1121
        %v1148 = vpack.c.bf16 %v1124, %v1123
        %v1149 = vpack.c.bf16 %v1126, %v1125
        %v1150 = vpack.c.bf16 %v1128, %v1127
        %v1151 = vpack.c.bf16 %v1130, %v1129
        %v1152 = vpack.c.bf16 %v1132, %v1131
        %v1153 = vpack.c.bf16 %v1134, %v1133
        %v1154 = vpack.c.bf16 %v1136, %v1135
        %v1155 = vpack.c.bf16 %v1138, %v1137
        %v1156 = vpack.c.bf16 %v1140, %v1139
        %v1157 = vld [vmem:[%s4] sm:$0xf]
        %v1158 = vld [vmem:[%s4 + $0x4] sm:$0xf]
        %v1159 = vld [vmem:[%s4 + $0x8] sm:$0xf]
        %v1160 = vld [vmem:[%s4 + $0xc] sm:$0xf]
        %v1161 = vld [vmem:[%s4 + $0x10] sm:$0xf]
        %v1162 = vld [vmem:[%s4 + $0x14] sm:$0xf]
        %v1163 = vld [vmem:[%s4 + $0x18] sm:$0xf]
        %v1164 = vld [vmem:[%s4 + $0x1c] sm:$0xf]
        %v1165 = vld [vmem:[%s4 + $0x20] sm:$0xf]
        %v1166 = vld [vmem:[%s4 + $0x24] sm:$0xf]
        %v1167 = vld [vmem:[%s4 + $0x28] sm:$0xf]
        %v1168 = vld [vmem:[%s4 + $0x2c] sm:$0xf]
        %v1169 = vld [vmem:[%s4 + $0x30] sm:$0xf]
        %v1170 = vld [vmem:[%s4 + $0x34] sm:$0xf]
        %v1171 = vld [vmem:[%s4 + $0x38] sm:$0xf]
        %v1172 = vld [vmem:[%s4 + $0x3c] sm:$0xf]
        %v1173 = vld [vmem:[%s349] sm:$0xf]
        %v1174 = vld [vmem:[%s349 + $0x4] sm:$0xf]
        %v1175 = vld [vmem:[%s349 + $0x8] sm:$0xf]
        %v1176 = vld [vmem:[%s349 + $0xc] sm:$0xf]
        %v1177 = vld [vmem:[%s349 + $0x10] sm:$0xf]
        %v1178 = vld [vmem:[%s349 + $0x14] sm:$0xf]
        %v1179 = vld [vmem:[%s349 + $0x18] sm:$0xf]
        %v1180 = vld [vmem:[%s349 + $0x1c] sm:$0xf]
        %v1181 = vld [vmem:[%s349 + $0x20] sm:$0xf]
        %v1182 = vld [vmem:[%s349 + $0x24] sm:$0xf]
        %v1183 = vld [vmem:[%s349 + $0x28] sm:$0xf]
        %v1184 = vld [vmem:[%s349 + $0x2c] sm:$0xf]
        %v1185 = vld [vmem:[%s349 + $0x30] sm:$0xf]
        %v1186 = vld [vmem:[%s349 + $0x34] sm:$0xf]
        %v1187 = vld [vmem:[%s349 + $0x38] sm:$0xf]
        %v1188 = vld [vmem:[%s349 + $0x3c] sm:$0xf]
        %v1189 = vld [vmem:[%s349 + $0x40] sm:$0xf]
        %v1190 = vld [vmem:[%s349 + $0x44] sm:$0xf]
        %v1191 = vld [vmem:[%s349 + $0x48] sm:$0xf]
        %v1192 = vld [vmem:[%s349 + $0x4c] sm:$0xf]
        %v1193 = vld [vmem:[%s349 + $0x50] sm:$0xf]
        %v1194 = vld [vmem:[%s349 + $0x54] sm:$0xf]
        %v1195 = vld [vmem:[%s349 + $0x58] sm:$0xf]
        %v1196 = vld [vmem:[%s349 + $0x5c] sm:$0xf]
        %v1197 = vld [vmem:[%s349 + $0x60] sm:$0xf]
        %v1198 = vld [vmem:[%s349 + $0x64] sm:$0xf]
        %v1199 = vld [vmem:[%s349 + $0x68] sm:$0xf]
        %v1200 = vld [vmem:[%s349 + $0x6c] sm:$0xf]
        %v1201 = vld [vmem:[%s349 + $0x70] sm:$0xf]
        %v1202 = vld [vmem:[%s349 + $0x74] sm:$0xf]
        %v1203 = vld [vmem:[%s349 + $0x78] sm:$0xf]
        %v1204 = vld [vmem:[%s349 + $0x7c] sm:$0xf]
        %v1205 = vld [vmem:[%s5] sm:$0xf]
        %v1206 = vld [vmem:[%s5 + $0x4] sm:$0xf]
        %v1207 = vld [vmem:[%s5 + $0x8] sm:$0xf]
        %v1208 = vld [vmem:[%s5 + $0xc] sm:$0xf]
        %v1209 = vld [vmem:[%s5 + $0x10] sm:$0xf]
        %v1210 = vld [vmem:[%s5 + $0x14] sm:$0xf]
        %v1211 = vld [vmem:[%s5 + $0x18] sm:$0xf]
        %v1212 = vld [vmem:[%s5 + $0x1c] sm:$0xf]
        %v1213 = vld [vmem:[%s5 + $0x20] sm:$0xf]
        %v1214 = vld [vmem:[%s5 + $0x24] sm:$0xf]
        %v1215 = vld [vmem:[%s5 + $0x28] sm:$0xf]
        %v1216 = vld [vmem:[%s5 + $0x2c] sm:$0xf]
        %v1217 = vld [vmem:[%s5 + $0x30] sm:$0xf]
        %v1218 = vld [vmem:[%s5 + $0x34] sm:$0xf]
        %v1219 = vld [vmem:[%s5 + $0x38] sm:$0xf]
        %v1220 = vld [vmem:[%s5 + $0x3c] sm:$0xf]
        %v1253 = vunpack.c.l.b16 %v1173
        %v1254 = vunpack.c.l.b16 %v1174
        %v1255 = vunpack.c.l.b16 %v1175
        %v1256 = vunpack.c.l.b16 %v1176
        %v1257 = vunpack.c.l.b16 %v1177
        %v1258 = vunpack.c.l.b16 %v1178
        %v1259 = vunpack.c.l.b16 %v1179
        %v1260 = vunpack.c.l.b16 %v1180
        %v1261 = vunpack.c.l.b16 %v1181
        %v1262 = vunpack.c.l.b16 %v1182
        %v1263 = vunpack.c.l.b16 %v1183
        %v1264 = vunpack.c.l.b16 %v1184
        %v1265 = vunpack.c.l.b16 %v1185
        %v1266 = vunpack.c.l.b16 %v1186
        %v1267 = vunpack.c.l.b16 %v1187
        %v1268 = vunpack.c.l.b16 %v1188
        %v1269 = vunpack.c.l.b16 %v1189
        %v1270 = vunpack.c.l.b16 %v1190
        %v1271 = vunpack.c.l.b16 %v1191
        %v1272 = vunpack.c.l.b16 %v1192
        %v1273 = vunpack.c.l.b16 %v1193
        %v1274 = vunpack.c.l.b16 %v1194
        %v1275 = vunpack.c.l.b16 %v1195
        %v1276 = vunpack.c.l.b16 %v1196
        %v1277 = vunpack.c.l.b16 %v1197
        %v1278 = vunpack.c.l.b16 %v1198
        %v1279 = vunpack.c.l.b16 %v1199
        %v1280 = vunpack.c.l.b16 %v1200
        %v1281 = vunpack.c.l.b16 %v1201
        %v1282 = vunpack.c.l.b16 %v1202
        %v1283 = vunpack.c.l.b16 %v1203
        %v1284 = vunpack.c.l.b16 %v1204
        %v1285 = vpack.c.b16 %v1254, %v1253
        %v1286 = vpack.c.b16 %v1256, %v1255
        %v1287 = vpack.c.b16 %v1258, %v1257
        %v1288 = vpack.c.b16 %v1260, %v1259
        %v1289 = vpack.c.b16 %v1262, %v1261
        %v1290 = vpack.c.b16 %v1264, %v1263
        %v1291 = vpack.c.b16 %v1266, %v1265
        %v1292 = vpack.c.b16 %v1268, %v1267
        %v1293 = vpack.c.b16 %v1270, %v1269
        %v1294 = vpack.c.b16 %v1272, %v1271
        %v1295 = vpack.c.b16 %v1274, %v1273
        %v1296 = vpack.c.b16 %v1276, %v1275
        %v1297 = vpack.c.b16 %v1278, %v1277
        %v1298 = vpack.c.b16 %v1280, %v1279
        %v1299 = vpack.c.b16 %v1282, %v1281
        %v1300 = vpack.c.b16 %v1284, %v1283
        %v1333 = vunpack.c.l.b16 %v1205
        %v1334 = vunpack.c.l.b16 %v1206
        %v1335 = vunpack.c.l.b16 %v1207
        %v1336 = vunpack.c.l.b16 %v1208
        %v1337 = vunpack.c.l.b16 %v1209
        %v1338 = vunpack.c.l.b16 %v1210
        %v1339 = vunpack.c.l.b16 %v1211
        %v1340 = vunpack.c.l.b16 %v1212
        %v1341 = vunpack.c.l.b16 %v1213
        %v1342 = vunpack.c.l.b16 %v1214
        %v1343 = vunpack.c.l.b16 %v1215
        %v1344 = vunpack.c.l.b16 %v1216
        %v1345 = vunpack.c.l.b16 %v1217
        %v1346 = vunpack.c.l.b16 %v1218
        %v1347 = vunpack.c.l.b16 %v1219
        %v1348 = vunpack.c.l.b16 %v1220
        %v1349 = vpack.c.b16 %v1334, %v1333
        %v1350 = vpack.c.b16 %v1336, %v1335
        %v1351 = vpack.c.b16 %v1338, %v1337
        %v1352 = vpack.c.b16 %v1340, %v1339
        %v1353 = vpack.c.b16 %v1342, %v1341
        %v1354 = vpack.c.b16 %v1344, %v1343
        %v1355 = vpack.c.b16 %v1346, %v1345
        %v1356 = vpack.c.b16 %v1348, %v1347
        %1365 = vmatprep.subr.bf16.mxu0 0
        %1366 = vmatpush1.bf16.msra.mxu0 %v1349
        %1367 = vmatprep.subr.bf16.mxu0 0
        %1368 = vmatpush1.bf16.msra.mxu0 %v1350
        %1369 = vmatprep.subr.bf16.mxu0 0
        %1370 = vmatpush1.bf16.msra.mxu0 %v1351
        %1371 = vmatprep.subr.bf16.mxu0 0
        %1372 = vmatpush1.bf16.msra.mxu0 %v1352
        %1373 = vmatprep.subr.bf16.mxu0 0
        %1374 = vmatpush1.bf16.msra.mxu0 %v1353
        %1375 = vmatprep.subr.bf16.mxu0 0
        %1376 = vmatpush1.bf16.msra.mxu0 %v1354
        %1377 = vmatprep.subr.bf16.mxu0 0
        %1378 = vmatpush1.bf16.msra.mxu0 %v1355
        %1379 = vmatprep.subr.bf16.mxu0 0
        %1380 = vmatpush1.bf16.msra.mxu0 %v1356
        %1381 = vmatprep.subr.bf16.mxu0 0
        %1382 = vmatpush1.bf16.msra.mxu0 0
        %1383 = vmatprep.subr.bf16.mxu0 0
        %1384 = vmatpush1.bf16.msra.mxu0 0
        %1385 = vmatprep.subr.bf16.mxu0 0
        %1386 = vmatpush1.bf16.msra.mxu0 0
        %1387 = vmatprep.subr.bf16.mxu0 0
        %1388 = vmatpush1.bf16.msra.mxu0 0
        %1389 = vmatprep.subr.bf16.mxu0 0
        %1390 = vmatpush1.bf16.msra.mxu0 0
        %1391 = vmatprep.subr.bf16.mxu0 0
        %1392 = vmatpush1.bf16.msra.mxu0 0
        %1393 = vmatprep.subr.bf16.mxu0 0
        %1394 = vmatpush1.bf16.msra.mxu0 0
        %1395 = vmatprep.subr.bf16.mxu0 0
        %1396 = vmatpush1.bf16.msra.mxu0 0
        %1397 = vmatprep.mubr.bf16.mxu0 0
        %1398 = vmatmul.mubr.bf16.gmra.mrb[0].mxu0 %v1285
        %v1399 = vpop.f32.mrb[0].mxu0
        %v1400 = vadd.f32 0.0, %v1399
        %v1401 = vpop.f32.mrb[0].mxu0
        %v1402 = vpop.f32.mrb[0].mxu0
        %v1403 = vadd.f32 0.0, %v1402
        %v1404 = vpop.f32.mrb[0].mxu0
        %1405 = vmatprep.mubr.bf16.mxu0 0
        %1406 = vmatmul.mubr.bf16.gmra.mrb[0].mxu0 %v1286
        %v1407 = vpop.f32.mrb[0].mxu0
        %v1408 = vadd.f32 0.0, %v1407
        %v1409 = vpop.f32.mrb[0].mxu0
        %v1410 = vpop.f32.mrb[0].mxu0
        %v1411 = vadd.f32 0.0, %v1410
        %v1412 = vpop.f32.mrb[0].mxu0
        %1413 = vmatprep.mubr.bf16.mxu0 0
        %1414 = vmatmul.mubr.bf16.gmra.mrb[0].mxu0 %v1287
        %v1415 = vpop.f32.mrb[0].mxu0
        %v1416 = vadd.f32 0.0, %v1415
        %v1417 = vpop.f32.mrb[0].mxu0
        %v1418 = vpop.f32.mrb[0].mxu0
        %v1419 = vadd.f32 0.0, %v1418
        %v1420 = vpop.f32.mrb[0].mxu0
        %1421 = vmatprep.mubr.bf16.mxu0 0
        %1422 = vmatmul.mubr.bf16.gmra.mrb[0].mxu0 %v1288
        %v1423 = vpop.f32.mrb[0].mxu0
        %v1424 = vadd.f32 0.0, %v1423
        %v1425 = vpop.f32.mrb[0].mxu0
        %v1426 = vpop.f32.mrb[0].mxu0
        %v1427 = vadd.f32 0.0, %v1426
        %v1428 = vpop.f32.mrb[0].mxu0
        %1429 = vmatprep.mubr.bf16.mxu0 0
        %1430 = vmatmul.mubr.bf16.gmra.mrb[0].mxu0 %v1289
        %v1431 = vpop.f32.mrb[0].mxu0
        %v1432 = vadd.f32 0.0, %v1431
        %v1433 = vpop.f32.mrb[0].mxu0
        %v1434 = vpop.f32.mrb[0].mxu0
        %v1435 = vadd.f32 0.0, %v1434
        %v1436 = vpop.f32.mrb[0].mxu0
        %1437 = vmatprep.mubr.bf16.mxu0 0
        %1438 = vmatmul.mubr.bf16.gmra.mrb[0].mxu0 %v1290
        %v1439 = vpop.f32.mrb[0].mxu0
        %v1440 = vadd.f32 0.0, %v1439
        %v1441 = vpop.f32.mrb[0].mxu0
        %v1442 = vpop.f32.mrb[0].mxu0
        %v1443 = vadd.f32 0.0, %v1442
        %v1444 = vpop.f32.mrb[0].mxu0
        %1445 = vmatprep.mubr.bf16.mxu0 0
        %1446 = vmatmul.mubr.bf16.gmra.mrb[0].mxu0 %v1291
        %v1447 = vpop.f32.mrb[0].mxu0
        %v1448 = vadd.f32 0.0, %v1447
        %v1449 = vpop.f32.mrb[0].mxu0
        %v1450 = vpop.f32.mrb[0].mxu0
        %v1451 = vadd.f32 0.0, %v1450
        %v1452 = vpop.f32.mrb[0].mxu0
        %1453 = vmatprep.mubr.bf16.mxu0 0
        %1454 = vmatmul.mubr.bf16.gmra.mrb[0].mxu0 %v1292
        %v1455 = vpop.f32.mrb[0].mxu0
        %v1456 = vadd.f32 0.0, %v1455
        %v1457 = vpop.f32.mrb[0].mxu0
        %v1458 = vpop.f32.mrb[0].mxu0
        %v1459 = vadd.f32 0.0, %v1458
        %v1460 = vpop.f32.mrb[0].mxu0
        %1461 = vmatprep.mubr.bf16.mxu0 0
        %1462 = vmatmul.mubr.bf16.gmra.mrb[0].mxu0 %v1293
        %v1463 = vpop.f32.mrb[0].mxu0
        %v1464 = vadd.f32 0.0, %v1463
        %v1465 = vpop.f32.mrb[0].mxu0
        %v1466 = vpop.f32.mrb[0].mxu0
        %v1467 = vadd.f32 0.0, %v1466
        %v1468 = vpop.f32.mrb[0].mxu0
        %1469 = vmatprep.mubr.bf16.mxu0 0
        %1470 = vmatmul.mubr.bf16.gmra.mrb[0].mxu0 %v1294
        %v1471 = vpop.f32.mrb[0].mxu0
        %v1472 = vadd.f32 0.0, %v1471
        %v1473 = vpop.f32.mrb[0].mxu0
        %v1474 = vpop.f32.mrb[0].mxu0
        %v1475 = vadd.f32 0.0, %v1474
        %v1476 = vpop.f32.mrb[0].mxu0
        %1477 = vmatprep.mubr.bf16.mxu0 0
        %1478 = vmatmul.mubr.bf16.gmra.mrb[0].mxu0 %v1295
        %v1479 = vpop.f32.mrb[0].mxu0
        %v1480 = vadd.f32 0.0, %v1479
        %v1481 = vpop.f32.mrb[0].mxu0
        %v1482 = vpop.f32.mrb[0].mxu0
        %v1483 = vadd.f32 0.0, %v1482
        %v1484 = vpop.f32.mrb[0].mxu0
        %1485 = vmatprep.mubr.bf16.mxu0 0
        %1486 = vmatmul.mubr.bf16.gmra.mrb[0].mxu0 %v1296
        %v1487 = vpop.f32.mrb[0].mxu0
        %v1488 = vadd.f32 0.0, %v1487
        %v1489 = vpop.f32.mrb[0].mxu0
        %v1490 = vpop.f32.mrb[0].mxu0
        %v1491 = vadd.f32 0.0, %v1490
        %v1492 = vpop.f32.mrb[0].mxu0
        %1493 = vmatprep.mubr.bf16.mxu0 0
        %1494 = vmatmul.mubr.bf16.gmra.mrb[0].mxu0 %v1297
        %v1495 = vpop.f32.mrb[0].mxu0
        %v1496 = vadd.f32 0.0, %v1495
        %v1497 = vpop.f32.mrb[0].mxu0
        %v1498 = vpop.f32.mrb[0].mxu0
        %v1499 = vadd.f32 0.0, %v1498
        %v1500 = vpop.f32.mrb[0].mxu0
        %1501 = vmatprep.mubr.bf16.mxu0 0
        %1502 = vmatmul.mubr.bf16.gmra.mrb[0].mxu0 %v1298
        %v1503 = vpop.f32.mrb[0].mxu0
        %v1504 = vadd.f32 0.0, %v1503
        %v1505 = vpop.f32.mrb[0].mxu0
        %v1506 = vpop.f32.mrb[0].mxu0
        %v1507 = vadd.f32 0.0, %v1506
        %v1508 = vpop.f32.mrb[0].mxu0
        %1509 = vmatprep.mubr.bf16.mxu0 0
        %1510 = vmatmul.mubr.bf16.gmra.mrb[0].mxu0 %v1299
        %v1511 = vpop.f32.mrb[0].mxu0
        %v1512 = vadd.f32 0.0, %v1511
        %v1513 = vpop.f32.mrb[0].mxu0
        %v1514 = vpop.f32.mrb[0].mxu0
        %v1515 = vadd.f32 0.0, %v1514
        %v1516 = vpop.f32.mrb[0].mxu0
        %1517 = vmatprep.mubr.bf16.mxu0 0
        %1518 = vmatmul.mubr.bf16.gmra.mrb[0].mxu0 %v1300
        %v1519 = vpop.f32.mrb[0].mxu0
        %v1520 = vadd.f32 0.0, %v1519
        %v1521 = vpop.f32.mrb[0].mxu0
        %v1522 = vpop.f32.mrb[0].mxu0
        %v1523 = vadd.f32 0.0, %v1522
        %v1524 = vpop.f32.mrb[0].mxu0
        %1525 = vdwg.mxu0
        %v1542 = vunpack.c.l.b16 %v1157
        %v1543 = vunpack.c.l.b16 %v1158
        %v1544 = vunpack.c.l.b16 %v1159
        %v1545 = vunpack.c.l.b16 %v1160
        %v1546 = vunpack.c.l.b16 %v1161
        %v1547 = vunpack.c.l.b16 %v1162
        %v1548 = vunpack.c.l.b16 %v1163
        %v1549 = vunpack.c.l.b16 %v1164
        %v1550 = vunpack.c.l.b16 %v1165
        %v1551 = vunpack.c.l.b16 %v1166
        %v1552 = vunpack.c.l.b16 %v1167
        %v1553 = vunpack.c.l.b16 %v1168
        %v1554 = vunpack.c.l.b16 %v1169
        %v1555 = vunpack.c.l.b16 %v1170
        %v1556 = vunpack.c.l.b16 %v1171
        %v1557 = vunpack.c.l.b16 %v1172
        %v1558 = vpack.c.b16 %v1543, %v1542
        %v1559 = vpack.c.b16 %v1545, %v1544
        %v1560 = vpack.c.b16 %v1547, %v1546
        %v1561 = vpack.c.b16 %v1549, %v1548
        %v1562 = vpack.c.b16 %v1551, %v1550
        %v1563 = vpack.c.b16 %v1553, %v1552
        %v1564 = vpack.c.b16 %v1555, %v1554
        %v1565 = vpack.c.b16 %v1557, %v1556
        %1574 = vmatprep.subr.bf16.mxu0 0
        %1575 = vmatpush1.bf16.msra.mxu0 %v1558
        %1576 = vmatprep.subr.bf16.mxu0 0
        %1577 = vmatpush1.bf16.msra.mxu0 %v1559
        %1578 = vmatprep.subr.bf16.mxu0 0
        %1579 = vmatpush1.bf16.msra.mxu0 %v1560
        %1580 = vmatprep.subr.bf16.mxu0 0
        %1581 = vmatpush1.bf16.msra.mxu0 %v1561
        %1582 = vmatprep.subr.bf16.mxu0 0
        %1583 = vmatpush1.bf16.msra.mxu0 %v1562
        %1584 = vmatprep.subr.bf16.mxu0 0
        %1585 = vmatpush1.bf16.msra.mxu0 %v1563
        %1586 = vmatprep.subr.bf16.mxu0 0
        %1587 = vmatpush1.bf16.msra.mxu0 %v1564
        %1588 = vmatprep.subr.bf16.mxu0 0
        %1589 = vmatpush1.bf16.msra.mxu0 %v1565
        %1590 = vmatprep.subr.bf16.mxu0 0
        %1591 = vmatpush1.bf16.msra.mxu0 0
        %1592 = vmatprep.subr.bf16.mxu0 0
        %1593 = vmatpush1.bf16.msra.mxu0 0
        %1594 = vmatprep.subr.bf16.mxu0 0
        %1595 = vmatpush1.bf16.msra.mxu0 0
        %1596 = vmatprep.subr.bf16.mxu0 0
        %1597 = vmatpush1.bf16.msra.mxu0 0
        %1598 = vmatprep.subr.bf16.mxu0 0
        %1599 = vmatpush1.bf16.msra.mxu0 0
        %1600 = vmatprep.subr.bf16.mxu0 0
        %1601 = vmatpush1.bf16.msra.mxu0 0
        %1602 = vmatprep.subr.bf16.mxu0 0
        %1603 = vmatpush1.bf16.msra.mxu0 0
        %1604 = vmatprep.subr.bf16.mxu0 0
        %1605 = vmatpush1.bf16.msra.mxu0 0
        %1606 = vmatprep.mubr.bf16.mxu0 0
        %1607 = vmatmul.mubr.bf16.gmra.mrb[0].mxu0 %v1141
        %v1608 = vpop.f32.mrb[0].mxu0
        %v1609 = vadd.f32 %v1400, %v1608
        %v1610 = vpop.f32.mrb[0].mxu0
        %v1611 = vpop.f32.mrb[0].mxu0
        %v1612 = vadd.f32 %v1403, %v1611
        %v1613 = vpop.f32.mrb[0].mxu0
        %1614 = vmatprep.mubr.bf16.mxu0 0
        %1615 = vmatmul.mubr.bf16.gmra.mrb[0].mxu0 %v1142
        %v1616 = vpop.f32.mrb[0].mxu0
        %v1617 = vadd.f32 %v1408, %v1616
        %v1618 = vpop.f32.mrb[0].mxu0
        %v1619 = vpop.f32.mrb[0].mxu0
        %v1620 = vadd.f32 %v1411, %v1619
        %v1621 = vpop.f32.mrb[0].mxu0
        %1622 = vmatprep.mubr.bf16.mxu0 0
        %1623 = vmatmul.mubr.bf16.gmra.mrb[0].mxu0 %v1143
        %v1624 = vpop.f32.mrb[0].mxu0
        %v1625 = vadd.f32 %v1416, %v1624
        %v1626 = vpop.f32.mrb[0].mxu0
        %v1627 = vpop.f32.mrb[0].mxu0
        %v1628 = vadd.f32 %v1419, %v1627
        %v1629 = vpop.f32.mrb[0].mxu0
        %1630 = vmatprep.mubr.bf16.mxu0 0
        %1631 = vmatmul.mubr.bf16.gmra.mrb[0].mxu0 %v1144
        %v1632 = vpop.f32.mrb[0].mxu0
        %v1633 = vadd.f32 %v1424, %v1632
        %v1634 = vpop.f32.mrb[0].mxu0
        %v1635 = vpop.f32.mrb[0].mxu0
        %v1636 = vadd.f32 %v1427, %v1635
        %v1637 = vpop.f32.mrb[0].mxu0
        %1638 = vmatprep.mubr.bf16.mxu0 0
        %1639 = vmatmul.mubr.bf16.gmra.mrb[0].mxu0 %v1145
        %v1640 = vpop.f32.mrb[0].mxu0
        %v1641 = vadd.f32 %v1432, %v1640
        %v1642 = vpop.f32.mrb[0].mxu0
        %v1643 = vpop.f32.mrb[0].mxu0
        %v1644 = vadd.f32 %v1435, %v1643
        %v1645 = vpop.f32.mrb[0].mxu0
        %1646 = vmatprep.mubr.bf16.mxu0 0
        %1647 = vmatmul.mubr.bf16.gmra.mrb[0].mxu0 %v1146
        %v1648 = vpop.f32.mrb[0].mxu0
        %v1649 = vadd.f32 %v1440, %v1648
        %v1650 = vpop.f32.mrb[0].mxu0
        %v1651 = vpop.f32.mrb[0].mxu0
        %v1652 = vadd.f32 %v1443, %v1651
        %v1653 = vpop.f32.mrb[0].mxu0
        %1654 = vmatprep.mubr.bf16.mxu0 0
        %1655 = vmatmul.mubr.bf16.gmra.mrb[0].mxu0 %v1147
        %v1656 = vpop.f32.mrb[0].mxu0
        %v1657 = vadd.f32 %v1448, %v1656
        %v1658 = vpop.f32.mrb[0].mxu0
        %v1659 = vpop.f32.mrb[0].mxu0
        %v1660 = vadd.f32 %v1451, %v1659
        %v1661 = vpop.f32.mrb[0].mxu0
        %1662 = vmatprep.mubr.bf16.mxu0 0
        %1663 = vmatmul.mubr.bf16.gmra.mrb[0].mxu0 %v1148
        %v1664 = vpop.f32.mrb[0].mxu0
        %v1665 = vadd.f32 %v1456, %v1664
        %v1666 = vpop.f32.mrb[0].mxu0
        %v1667 = vpop.f32.mrb[0].mxu0
        %v1668 = vadd.f32 %v1459, %v1667
        %v1669 = vpop.f32.mrb[0].mxu0
        %1670 = vmatprep.mubr.bf16.mxu0 0
        %1671 = vmatmul.mubr.bf16.gmra.mrb[0].mxu0 %v1149
        %v1672 = vpop.f32.mrb[0].mxu0
        %v1673 = vadd.f32 %v1464, %v1672
        %v1674 = vpop.f32.mrb[0].mxu0
        %v1675 = vpop.f32.mrb[0].mxu0
        %v1676 = vadd.f32 %v1467, %v1675
        %v1677 = vpop.f32.mrb[0].mxu0
        %1678 = vmatprep.mubr.bf16.mxu0 0
        %1679 = vmatmul.mubr.bf16.gmra.mrb[0].mxu0 %v1150
        %v1680 = vpop.f32.mrb[0].mxu0
        %v1681 = vadd.f32 %v1472, %v1680
        %v1682 = vpop.f32.mrb[0].mxu0
        %v1683 = vpop.f32.mrb[0].mxu0
        %v1684 = vadd.f32 %v1475, %v1683
        %v1685 = vpop.f32.mrb[0].mxu0
        %1686 = vmatprep.mubr.bf16.mxu0 0
        %1687 = vmatmul.mubr.bf16.gmra.mrb[0].mxu0 %v1151
        %v1688 = vpop.f32.mrb[0].mxu0
        %v1689 = vadd.f32 %v1480, %v1688
        %v1690 = vpop.f32.mrb[0].mxu0
        %v1691 = vpop.f32.mrb[0].mxu0
        %v1692 = vadd.f32 %v1483, %v1691
        %v1693 = vpop.f32.mrb[0].mxu0
        %1694 = vmatprep.mubr.bf16.mxu0 0
        %1695 = vmatmul.mubr.bf16.gmra.mrb[0].mxu0 %v1152
        %v1696 = vpop.f32.mrb[0].mxu0
        %v1697 = vadd.f32 %v1488, %v1696
        %v1698 = vpop.f32.mrb[0].mxu0
        %v1699 = vpop.f32.mrb[0].mxu0
        %v1700 = vadd.f32 %v1491, %v1699
        %v1701 = vpop.f32.mrb[0].mxu0
        %1702 = vmatprep.mubr.bf16.mxu0 0
        %1703 = vmatmul.mubr.bf16.gmra.mrb[0].mxu0 %v1153
        %v1704 = vpop.f32.mrb[0].mxu0
        %v1705 = vadd.f32 %v1496, %v1704
        %v1706 = vpop.f32.mrb[0].mxu0
        %v1707 = vpop.f32.mrb[0].mxu0
        %v1708 = vadd.f32 %v1499, %v1707
        %v1709 = vpop.f32.mrb[0].mxu0
        %1710 = vmatprep.mubr.bf16.mxu0 0
        %1711 = vmatmul.mubr.bf16.gmra.mrb[0].mxu0 %v1154
        %v1712 = vpop.f32.mrb[0].mxu0
        %v1713 = vadd.f32 %v1504, %v1712
        %v1714 = vpop.f32.mrb[0].mxu0
        %v1715 = vpop.f32.mrb[0].mxu0
        %v1716 = vadd.f32 %v1507, %v1715
        %v1717 = vpop.f32.mrb[0].mxu0
        %1718 = vmatprep.mubr.bf16.mxu0 0
        %1719 = vmatmul.mubr.bf16.gmra.mrb[0].mxu0 %v1155
        %v1720 = vpop.f32.mrb[0].mxu0
        %v1721 = vadd.f32 %v1512, %v1720
        %v1722 = vpop.f32.mrb[0].mxu0
        %v1723 = vpop.f32.mrb[0].mxu0
        %v1724 = vadd.f32 %v1515, %v1723
        %v1725 = vpop.f32.mrb[0].mxu0
        %1726 = vmatprep.mubr.bf16.mxu0 0
        %1727 = vmatmul.mubr.bf16.gmra.mrb[0].mxu0 %v1156
        %v1728 = vpop.f32.mrb[0].mxu0
        %v1729 = vadd.f32 %v1520, %v1728
        %v1730 = vpop.f32.mrb[0].mxu0
        %v1731 = vpop.f32.mrb[0].mxu0
        %v1732 = vadd.f32 %v1523, %v1731
        %v1733 = vpop.f32.mrb[0].mxu0
        %1734 = vdwg.mxu0
        %v1735 = vld [vmem:[%s6] sm:$0x1]
        %v1737 = vlaneseq
        %v1738 = vshrl.u32 %v1737, 7
        %v1739 = vsub.s32 0, %v1738
        %v1740 = vrot.slane %v1735, %v1739
        %v1742 = vadd.f32 %v1609, %v1740
        %v1743 = vadd.f32 %v1612, %v1740
        %v1744 = vadd.f32 %v1617, %v1740
        %v1745 = vadd.f32 %v1620, %v1740
        %v1746 = vadd.f32 %v1625, %v1740
        %v1747 = vadd.f32 %v1628, %v1740
        %v1748 = vadd.f32 %v1633, %v1740
        %v1749 = vadd.f32 %v1636, %v1740
        %v1750 = vadd.f32 %v1641, %v1740
        %v1751 = vadd.f32 %v1644, %v1740
        %v1752 = vadd.f32 %v1649, %v1740
        %v1753 = vadd.f32 %v1652, %v1740
        %v1754 = vadd.f32 %v1657, %v1740
        %v1755 = vadd.f32 %v1660, %v1740
        %v1756 = vadd.f32 %v1665, %v1740
        %v1757 = vadd.f32 %v1668, %v1740
        %v1758 = vadd.f32 %v1673, %v1740
        %v1759 = vadd.f32 %v1676, %v1740
        %v1760 = vadd.f32 %v1681, %v1740
        %v1761 = vadd.f32 %v1684, %v1740
        %v1762 = vadd.f32 %v1689, %v1740
        %v1763 = vadd.f32 %v1692, %v1740
        %v1764 = vadd.f32 %v1697, %v1740
        %v1765 = vadd.f32 %v1700, %v1740
        %v1766 = vadd.f32 %v1705, %v1740
        %v1767 = vadd.f32 %v1708, %v1740
        %v1768 = vadd.f32 %v1713, %v1740
        %v1769 = vadd.f32 %v1716, %v1740
        %v1770 = vadd.f32 %v1721, %v1740
        %v1771 = vadd.f32 %v1724, %v1740
        %v1772 = vadd.f32 %v1729, %v1740
        %v1773 = vadd.f32 %v1732, %v1740
        %v1774 = vmax.f32 %v1742, 0.0
        %v1775 = vmax.f32 %v1743, 0.0
        %v1776 = vmax.f32 %v1744, 0.0
        %v1777 = vmax.f32 %v1745, 0.0
        %v1778 = vmax.f32 %v1746, 0.0
        %v1779 = vmax.f32 %v1747, 0.0
        %v1780 = vmax.f32 %v1748, 0.0
        %v1781 = vmax.f32 %v1749, 0.0
        %v1782 = vmax.f32 %v1750, 0.0
        %v1783 = vmax.f32 %v1751, 0.0
        %v1784 = vmax.f32 %v1752, 0.0
        %v1785 = vmax.f32 %v1753, 0.0
        %v1786 = vmax.f32 %v1754, 0.0
        %v1787 = vmax.f32 %v1755, 0.0
        %v1788 = vmax.f32 %v1756, 0.0
        %v1789 = vmax.f32 %v1757, 0.0
        %v1790 = vmax.f32 %v1758, 0.0
        %v1791 = vmax.f32 %v1759, 0.0
        %v1792 = vmax.f32 %v1760, 0.0
        %v1793 = vmax.f32 %v1761, 0.0
        %v1794 = vmax.f32 %v1762, 0.0
        %v1795 = vmax.f32 %v1763, 0.0
        %v1796 = vmax.f32 %v1764, 0.0
        %v1797 = vmax.f32 %v1765, 0.0
        %v1798 = vmax.f32 %v1766, 0.0
        %v1799 = vmax.f32 %v1767, 0.0
        %v1800 = vmax.f32 %v1768, 0.0
        %v1801 = vmax.f32 %v1769, 0.0
        %v1802 = vmax.f32 %v1770, 0.0
        %v1803 = vmax.f32 %v1771, 0.0
        %v1804 = vmax.f32 %v1772, 0.0
        %v1805 = vmax.f32 %v1773, 0.0
        %1806 = vst [vmem:[%s355] sm:$0xff] %v1774
        %1807 = vst [vmem:[%s355 + $0x8] sm:$0xff] %v1775
        %1808 = vst [vmem:[%s355 + $0x10] sm:$0xff] %v1776
        %1809 = vst [vmem:[%s355 + $0x18] sm:$0xff] %v1777
        %1810 = vst [vmem:[%s355 + $0x20] sm:$0xff] %v1778
        %1811 = vst [vmem:[%s355 + $0x28] sm:$0xff] %v1779
        %1812 = vst [vmem:[%s355 + $0x30] sm:$0xff] %v1780
        %1813 = vst [vmem:[%s355 + $0x38] sm:$0xff] %v1781
        %1814 = vst [vmem:[%s355 + $0x40] sm:$0xff] %v1782
        %1815 = vst [vmem:[%s355 + $0x48] sm:$0xff] %v1783
        %1816 = vst [vmem:[%s355 + $0x50] sm:$0xff] %v1784
        %1817 = vst [vmem:[%s355 + $0x58] sm:$0xff] %v1785
        %1818 = vst [vmem:[%s355 + $0x60] sm:$0xff] %v1786
        %1819 = vst [vmem:[%s355 + $0x68] sm:$0xff] %v1787
        %1820 = vst [vmem:[%s355 + $0x70] sm:$0xff] %v1788
        %1821 = vst [vmem:[%s355 + $0x78] sm:$0xff] %v1789
        %1822 = vst [vmem:[%s355 + $0x80] sm:$0xff] %v1790
        %1823 = vst [vmem:[%s355 + $0x88] sm:$0xff] %v1791
        %1824 = vst [vmem:[%s355 + $0x90] sm:$0xff] %v1792
        %1825 = vst [vmem:[%s355 + $0x98] sm:$0xff] %v1793
        %1826 = vst [vmem:[%s355 + $0xa0] sm:$0xff] %v1794
        %1827 = vst [vmem:[%s355 + $0xa8] sm:$0xff] %v1795
        %1828 = vst [vmem:[%s355 + $0xb0] sm:$0xff] %v1796
        %1829 = vst [vmem:[%s355 + $0xb8] sm:$0xff] %v1797
        %1830 = vst [vmem:[%s355 + $0xc0] sm:$0xff] %v1798
        %1831 = vst [vmem:[%s355 + $0xc8] sm:$0xff] %v1799
        %1832 = vst [vmem:[%s355 + $0xd0] sm:$0xff] %v1800
        %1833 = vst [vmem:[%s355 + $0xd8] sm:$0xff] %v1801
        %1834 = vst [vmem:[%s355 + $0xe0] sm:$0xff] %v1802
        %1835 = vst [vmem:[%s355 + $0xe8] sm:$0xff] %v1803
        %1836 = vst [vmem:[%s355 + $0xf0] sm:$0xff] %v1804
        %1837 = vst [vmem:[%s355 + $0xf8] sm:$0xff] %v1805
      $region56: #{dgcn_layer_forward.11} parent=47 // pred_fallthru
        _
      %s1838 = smul.u32 32, %s22
      %p1839 = scmp.lt.s32.totalorder %s1838, 63
      %s1840 = scalar_select %p1839, %s1838, 63
      %s1841 = smul.addr %s1840, 8
      %s1842 = scalar_lea.vmem %s7, %s1841
      // Predicated region
      $region57: #{dgcn_layer_forward.11} parent=47 // pred_check
        %p1843 = pneg %p212
      $region58: #{dgcn_layer_forward.11} parent=47 // pred_check_branch
        %1845 = sbr.rel (%p1843) target = $region60
      $region59: #{dgcn_layer_forward.11} parent=47 // pred_region
        %s1846 = smul.u32 32, %s22
      $region60: #{dgcn_layer_forward.11} parent=47 // pred_fallthru
        _
    $region48: #{dgcn_layer_forward.11} parent=5 // pred_fallthru
      _
    %p1847 = scmp.le.s32.totalorder 2, %s13
    // Predicated region
    $region61: #{dgcn_layer_forward.11} parent=5 // pred_check
      %p1848 = pneg %p1847
    $region62: #{dgcn_layer_forward.11} parent=5 // pred_check_branch
      %1850 = sbr.rel (%p1848) target = $region64
    $region63: #{dgcn_layer_forward.11} parent=5 // pred_region
      %s1851 = ssub.s32 %s13, 2
      // Predicated region
      $region65: #{dgcn_layer_forward.11} parent=63 // pred_check
        %p1852 = pneg %p218
      $region66: #{dgcn_layer_forward.11} parent=63 // pred_check_branch
        %1854 = sbr.rel (%p1852) target = $region68
      $region67: #{dgcn_layer_forward.11} parent=63 // pred_region
        %s1855 = smul.u32 32, %s24
        %p1856 = scmp.lt.s32.totalorder %s1855, 63
        %s1857 = scalar_select %p1856, %s1855, 63
        %s1858 = smul.addr %s1857, 8
        %s1859 = scalar_lea.vmem %s7, %s1858
      $region68: #{dgcn_layer_forward.11} parent=63 // pred_fallthru
        _
    $region64: #{dgcn_layer_forward.11} parent=5 // pred_fallthru
      _
  $region6: #{dgcn_layer_forward.11} parent=0 // loop_footer
    %s17 = sadd.s32 1, %s13
  $region7: #{dgcn_layer_forward.11} parent=0 // loop_footer_branch
    %12 = sbr.rel target = $region3
  $region8: #{dgcn_layer_forward.11} parent=0 // loop_exit
    _

</llo_original>
